<compile_context>
chip_gen: v6e
topology: v6e:2x2x1
jax: 0.10.0
libtpu: 0.0.40
codegen_flags: <defaults>
</compile_context>

<pallas_src>
import functools
import math

import jax
import jax.numpy as jnp
from jax.experimental import pallas as pl
from jax.experimental.pallas import tpu as pltpu

# Explicit scoped-VMEM budget: >= default on v6e/v7x, raises the 16 MiB default on v5e,
# and stays well under v7x's 64 MiB physical VMEM.
VMEM_LIMIT_BYTES = 32 * 1024 * 1024


# ----------------------------------------------------------------------------
# Tiling helper
# ----------------------------------------------------------------------------
def _pick_tile(dim, target, align):
    """Largest tile <= target that divides `dim` and respects alignment.

    Falls back to the full dimension (always a legal block size) when the dim
    is small or no aligned divisor exists.
    """
    if dim <= target:
        return dim
    t = (target // align) * align
    while t >= align:
        if dim % t == 0:
            return t
        t -= align
    return dim


# ----------------------------------------------------------------------------
# Fused (LayerNorm?) -> matmul -> (+bias) -> (QuickGELU?) -> (+residual) kernel
# ----------------------------------------------------------------------------
def _linear_kernel(*refs, activation, has_bias, has_residual, has_ln):
    refs = list(refs)
    acc_ref = refs.pop()          # scratch (last)
    o_ref = refs.pop()            # output
    x_ref = refs.pop(0)
    w_ref = refs.pop(0)
    g_ref = refs.pop(0) if has_ln else None
    beta_ref = refs.pop(0) if has_ln else None
    b_ref = refs.pop(0) if has_bias else None
    r_ref = refs.pop(0) if has_residual else None

    k = pl.program_id(2)

    @pl.when(k == 0)
    def _():
        acc_ref[...] = jnp.zeros_like(acc_ref)

    if has_ln:
        # LayerNorm fused on the (tm, K) activation tile (wrapper guarantees tk == K).
        xf = x_ref[...].astype(jnp.float32)
        mu = jnp.mean(xf, axis=-1, keepdims=True)
        xc = xf - mu
        var = jnp.mean(xc * xc, axis=-1, keepdims=True)
        xf = xc * jax.lax.rsqrt(var + 1e-5)
        xf = xf * g_ref[...].astype(jnp.float32) + beta_ref[...].astype(jnp.float32)
        x_mx = xf.astype(jnp.bfloat16)
    else:
        x_mx = x_ref[...].astype(jnp.bfloat16)

    # bf16 x bf16 -> f32 accumulation on the MXU.
    acc_ref[...] += jnp.dot(x_mx, w_ref[...].astype(jnp.bfloat16),
                            preferred_element_type=jnp.float32)

    @pl.when(k == pl.num_programs(2) - 1)
    def _():
        y = acc_ref[...]
        if has_bias:
            y = y + b_ref[...].astype(jnp.float32)
        if activation == "quick_gelu":               # CLIP's QuickGELU: x * sigmoid(1.702 x)
            y = y * jax.nn.sigmoid(1.702 * y)
        if has_residual:
            y = y + r_ref[...].astype(jnp.float32)
        o_ref[...] = y.astype(o_ref.dtype)


def linear(x, w, b=None, activation=None, residual=None, ln=None):
    """y = [LN(x)] @ w (+ b) (+ QuickGELU) (+ residual).  x: (..., K), w: (K, N).

    Tiled over (M, N, K) with an f32 VMEM accumulator; when `ln=(gamma, beta)` is given the
    LayerNorm is applied on the activation tile in-kernel (tk is forced to K), removing a
    separate pallas_call + HBM round trip.
    """
    orig_shape = x.shape
    K = orig_shape[-1]
    M = math.prod(orig_shape[:-1])
    N = w.shape[1]
    x2 = x.reshape(M, K)

    tm = _pick_tile(M, 512, 16)          # 16-aligned sublanes (bf16-friendly)
    tn = _pick_tile(N, 512, 256)         # 256-aligned to fill the 2x256^2 MXU (v6e/v7x)
    tk = K if ln is not None else _pick_tile(K, 1024, 256)
    grid = (M // tm, N // tn, K // tk)
    n_k_steps = K // tk

    # Deep-K matmuls (real CLIP MLP) may expose weight-tile DMA once compute shrinks with
    # bf16 operands; a 3-deep buffer hides it.  Never triggers at small shapes.
    if n_k_steps >= 3:
        w_spec = pl.BlockSpec((tk, tn), lambda i, j, k: (k, j),
                              pipeline_mode=pl.Buffered(3))
    else:
        w_spec = pl.BlockSpec((tk, tn), lambda i, j, k: (k, j))

    in_specs = [pl.BlockSpec((tm, tk), lambda i, j, k: (i, k)), w_spec]
    inputs = [x2, w]
    if ln is not None:
        g, beta = ln
        in_specs.append(pl.BlockSpec((1, tk), lambda i, j, k: (0, k)))
        in_specs.append(pl.BlockSpec((1, tk), lambda i, j, k: (0, k)))
        inputs += [g.reshape(1, K), beta.reshape(1, K)]
    if b is not None:
        in_specs.append(pl.BlockSpec((1, tn), lambda i, j, k: (0, j)))
        inputs.append(b.reshape(1, N))
    if residual is not None:
        in_specs.append(pl.BlockSpec((tm, tn), lambda i, j, k: (i, j)))
        inputs.append(residual.reshape(M, N))

    bytes_accessed = (M * K * jnp.dtype(x.dtype).itemsize
                      + K * N * jnp.dtype(w.dtype).itemsize
                      + M * N * jnp.dtype(x.dtype).itemsize)
    if ln is not None:
        bytes_accessed += 2 * K * 4
    if b is not None:
        bytes_accessed += N * jnp.dtype(b.dtype).itemsize
    if residual is not None:
        bytes_accessed += M * N * jnp.dtype(residual.dtype).itemsize
    cost = pl.CostEstimate(
        flops=2 * M * N * K,
        transcendentals=M * N if activation == "quick_gelu" else 0,
        bytes_accessed=bytes_accessed,
    )

    out = pl.pallas_call(
        functools.partial(
            _linear_kernel,
            activation=activation,
            has_bias=b is not None,
            has_residual=residual is not None,
            has_ln=ln is not None,
        ),
        out_shape=jax.ShapeDtypeStruct((M, N), x.dtype),
        grid=grid,
        in_specs=in_specs,
        out_specs=pl.BlockSpec((tm, tn), lambda i, j, k: (i, j)),
        scratch_shapes=[pltpu.VMEM((tm, tn), jnp.float32)],
        compiler_params=pltpu.CompilerParams(
            dimension_semantics=("parallel", "parallel", "arbitrary"),
            vmem_limit_bytes=VMEM_LIMIT_BYTES,
        ),
        cost_estimate=cost,
    )(*inputs)
    return out.reshape(*orig_shape[:-1], N)


# ----------------------------------------------------------------------------
# Fused (x + pos_emb) -> LayerNorm kernel (visual ln_pre)
# ----------------------------------------------------------------------------
def _add_ln_kernel(x_ref, a_ref, g_ref, b_ref, o_ref):
    x = x_ref[0].astype(jnp.float32) + a_ref[...].astype(jnp.float32)
    mu = jnp.mean(x, axis=-1, keepdims=True)
    xc = x - mu
    var = jnp.mean(xc * xc, axis=-1, keepdims=True)
    y = xc * jax.lax.rsqrt(var + 1e-5)
    o_ref[0] = (y * g_ref[...].astype(jnp.float32)
                + b_ref[...].astype(jnp.float32)).astype(o_ref.dtype)


def add_layernorm(x, add, g, b):
    """LayerNorm(x + add) with the add (positional embedding) fused in-kernel."""
    B, S, D = x.shape
    return pl.pallas_call(
        _add_ln_kernel,
        out_shape=jax.ShapeDtypeStruct((B, S, D), x.dtype),
        grid=(B,),
        in_specs=[
            pl.BlockSpec((1, S, D), lambda i: (i, 0, 0)),
            pl.BlockSpec((S, D), lambda i: (0, 0)),
            pl.BlockSpec((1, D), lambda i: (0, 0)),
            pl.BlockSpec((1, D), lambda i: (0, 0)),
        ],
        out_specs=pl.BlockSpec((1, S, D), lambda i: (i, 0, 0)),
        compiler_params=pltpu.CompilerParams(dimension_semantics=("parallel",)),
    )(x, add, g.reshape(1, D), b.reshape(1, D))


# ----------------------------------------------------------------------------
# Multi-head attention on the fused (B, S, 3D) qkv tensor
# ----------------------------------------------------------------------------
def _attn_kernel(qkv_ref, o_ref, *, scale, n_heads, causal):
    # Per-head static lane slices of the qkv ref (no whole-slab f32 upcast), bf16 MXU feeds,
    # lax.dot_general contracting last dims (no explicit .T / XLU transpose), and each head's
    # (S, dh) result is stored directly into its lane slice of the lane-dense (S, D) output
    # block (no concatenate).
    S = qkv_ref.shape[1]
    D3 = qkv_ref.shape[2]
    D = D3 // 3
    dh = D // n_heads

    if causal:
        # Causal mask built in-kernel (pure VPU work) instead of streaming an (S,S) input.
        row = jax.lax.broadcasted_iota(jnp.int32, (S, S), 0)
        col = jax.lax.broadcasted_iota(jnp.int32, (S, S), 1)
        neg_mask = jnp.where(col <= row, 0.0, -1e30).astype(jnp.float32)

    contract_last = (((1,), (1,)), ((), ()))    # q (S,dh) . k (S,dh) -> (S,S)
    contract_inner = (((1,), (0,)), ((), ()))   # p (S,S)  . v (S,dh) -> (S,dh)

    # TODO(synk): for long sequences, move heads onto a grid axis (B, H) and use a flash-style
    # online-softmax KV loop; at CLIP shapes the per-head (S, S) scores fit easily in VMEM.
    for h in range(n_heads):                    # static unroll; qkv block stays VMEM-resident
        lo = h * dh
        q = qkv_ref[0, :, lo:lo + dh].astype(jnp.bfloat16)
        k = qkv_ref[0, :, D + lo:D + lo + dh].astype(jnp.bfloat16)
        v = qkv_ref[0, :, 2 * D + lo:2 * D + lo + dh].astype(jnp.bfloat16)

        s = jax.lax.dot_general(q, k, contract_last,
                                preferred_element_type=jnp.float32) * scale
        if causal:
            s = s + neg_mask
        m = jnp.max(s, axis=-1, keepdims=True)
        p = jnp.exp(s - m)
        p = p * pl.reciprocal(jnp.sum(p, axis=-1, keepdims=True), approx=True)
        o = jax.lax.dot_general(p.astype(jnp.bfloat16), v, contract_inner,
                                preferred_element_type=jnp.float32)
        o_ref[0, :, lo:lo + dh] = o.astype(o_ref.dtype)


def mha_attention(qkv, n_heads, causal=False):
    """qkv: (B, S, 3D) fused projection -> (B, S, D) attention output."""
    # TODO(synk): the (B,S,3D) intermediate still round-trips HBM between the qkv linear and
    # this kernel; fusing the qkv projection into the attention kernel is the next-level fusion.
    B, S, D3 = qkv.shape
    D = D3 // 3
    dh = D // n_heads
    scale = 1.0 / math.sqrt(dh)

    cost = pl.CostEstimate(
        flops=4 * B * S * S * D,
        transcendentals=B * n_heads * S * S,
        bytes_accessed=(B * S * D3 + B * S * D) * jnp.dtype(qkv.dtype).itemsize,
    )

    return pl.pallas_call(
        functools.partial(_attn_kernel, scale=scale, n_heads=n_heads, causal=causal),
        out_shape=jax.ShapeDtypeStruct((B, S, D), qkv.dtype),
        grid=(B,),
        in_specs=[pl.BlockSpec((1, S, D3), lambda b: (b, 0, 0))],
        out_specs=pl.BlockSpec((1, S, D), lambda b: (b, 0, 0)),
        compiler_params=pltpu.CompilerParams(
            dimension_semantics=("parallel",),
            vmem_limit_bytes=VMEM_LIMIT_BYTES,
        ),
        cost_estimate=cost,
    )(qkv)


# ----------------------------------------------------------------------------
# CLIP logit head: normalize both feature sets, scaled cosine-similarity logits
# ----------------------------------------------------------------------------
def _clip_head_kernel(scale_ref, img_ref, txt_ref, o_ref):
    img = img_ref[...].astype(jnp.float32)
    txt = txt_ref[...].astype(jnp.float32)
    eps = 1e-12
    img = img * jax.lax.rsqrt(jnp.sum(img * img, axis=-1, keepdims=True) + eps)
    txt = txt * jax.lax.rsqrt(jnp.sum(txt * txt, axis=-1, keepdims=True) + eps)
    ls = jnp.exp(scale_ref[0, 0])
    logits = jax.lax.dot_general(img, txt, (((1,), (1,)), ((), ())),
                                 preferred_element_type=jnp.float32)
    o_ref[...] = (ls * logits).astype(o_ref.dtype)


def clip_head(img_f, txt_f, logit_scale):
    """exp(logit_scale) * normalize(img) @ normalize(txt)^T with a lane-dense output."""
    B, D = img_f.shape
    C = txt_f.shape[0]
    # Pad classes to a multiple of 128 so the output store is lane-dense (padded rows are
    # zero -> zero logits, sliced off below).  Kept in f32: tiny compute, precision-sensitive.
    Cp = ((C + 127) // 128) * 128
    txt_p = jnp.pad(txt_f, ((0, Cp - C), (0, 0)))
    out = pl.pallas_call(
        _clip_head_kernel,
        out_shape=jax.ShapeDtypeStruct((B, Cp), jnp.float32),
        in_specs=[
            pl.BlockSpec(memory_space=pltpu.MemorySpace.SMEM),
            pl.BlockSpec(memory_space=pltpu.MemorySpace.VMEM),
            pl.BlockSpec(memory_space=pltpu.MemorySpace.VMEM),
        ],
        out_specs=pl.BlockSpec(memory_space=pltpu.MemorySpace.VMEM),
    )(logit_scale.reshape(1, 1).astype(jnp.float32), img_f, txt_p)
    return out[:, :C]


# ----------------------------------------------------------------------------
# Model glue (reshapes / control flow); all heavy math goes through the kernels
# ----------------------------------------------------------------------------
def transformer_block(x, p, n_heads, causal):
    # ln1 fused into the qkv projection; residual adds fused into the out/mlp projections;
    # ln2 fused into the MLP fc (with QuickGELU in the epilogue).
    qkv = linear(x, p["attn_in_w"], p["attn_in_b"], ln=(p["ln1_g"], p["ln1_b"]))
    o = mha_attention(qkv, n_heads, causal=causal)
    x = linear(o, p["attn_out_w"], p["attn_out_b"], residual=x)
    h = linear(x, p["fc_w"], p["fc_b"], activation="quick_gelu",
               ln=(p["ln2_g"], p["ln2_b"]))
    x = linear(h, p["proj_w"], p["proj_b"], residual=x)
    return x


def image_encoder(image, p, patch_size, n_heads):
    # image is NCHW (PyTorch convention); conv1 (stride == kernel == patch size)
    # is implemented as patch-extraction (glue) + tiled Pallas matmul.
    B, C, H, W = image.shape
    ps = patch_size
    nH, nW = H // ps, W // ps
    patches = (
        image.reshape(B, C, nH, ps, nW, ps)
        .transpose(0, 2, 4, 1, 3, 5)
        .reshape(B, nH * nW, C * ps * ps)
    )
    x = linear(patches, p["conv_w"])                              # (B, n_patches, width), no bias
    cls = jnp.broadcast_to(p["class_emb"].reshape(1, 1, -1), (B, 1, x.shape[-1]))
    x = jnp.concatenate([cls, x], axis=1)                         # (B, 1+n_patches, width)
    x = add_layernorm(x, p["pos_emb"], p["ln_pre_g"], p["ln_pre_b"])   # pos add fused into ln_pre
    for blk in p["blocks"]:
        x = transformer_block(x, blk, n_heads, causal=False)
    # ln_post fused into the final visual projection (CLS token only).
    return linear(x[:, 0, :], p["proj"], ln=(p["ln_post_g"], p["ln_post_b"]))


def prompt_learner_forward(p):
    # class_token_position == 'end': prompts = cat([prefix, ctx, suffix], dim=1)
    ctx = p["ctx"]                                                # (n_ctx, ctx_dim)
    n_cls = p["token_prefix"].shape[0]
    ctx = jnp.broadcast_to(ctx[None], (n_cls,) + ctx.shape)
    return jnp.concatenate([p["token_prefix"], ctx, p["token_suffix"]], axis=1)


def text_encoder(prompts, tokenized_prompts, p, n_heads):
    x = prompts + p["pos_emb"][None]
    for blk in p["blocks"]:
        x = transformer_block(x, blk, n_heads, causal=True)
    # LayerNorm is row-wise, so gather the EOT rows first and fuse ln_final into the
    # text projection (LN runs on n_cls rows instead of n_cls*seq rows).
    eot = jnp.argmax(tokenized_prompts, axis=-1)                  # EOT token position
    x = x[jnp.arange(x.shape[0]), eot]                            # (n_cls, ctx_dim)
    return linear(x, p["text_projection"], ln=(p["ln_final_g"], p["ln_final_b"]))


def custom_clip_forward(image, params, cfg):
    image_features = image_encoder(image, params["visual"], cfg["patch_size"], cfg["vis_heads"])
    prompts = prompt_learner_forward(params["prompt"])
    text_features = text_encoder(prompts, params["tokenized_prompts"], params["text"],
                                 cfg["txt_heads"])
    return clip_head(image_features, text_features, params["logit_scale"])


# ----------------------------------------------------------------------------
# Deterministic synthetic parameter construction (weights stored in bf16)
# ----------------------------------------------------------------------------
def _init_block(key, d):
    ks = jax.random.split(key, 4)
    f32, bf16 = jnp.float32, jnp.bfloat16
    return {
        "ln1_g": jnp.ones((d,), f32), "ln1_b": jnp.zeros((d,), f32),
        "attn_in_w": (0.02 * jax.random.normal(ks[0], (d, 3 * d), f32)).astype(bf16),
        "attn_in_b": jnp.zeros((3 * d,), f32),
        "attn_out_w": (0.02 * jax.random.normal(ks[1], (d, d), f32)).astype(bf16),
        "attn_out_b": jnp.zeros((d,), f32),
        "ln2_g": jnp.ones((d,), f32), "ln2_b": jnp.zeros((d,), f32),
        "fc_w": (0.02 * jax.random.normal(ks[2], (d, 4 * d), f32)).astype(bf16),
        "fc_b": jnp.zeros((4 * d,), f32),
        "proj_w": (0.02 * jax.random.normal(ks[3], (4 * d, d), f32)).astype(bf16),
        "proj_b": jnp.zeros((d,), f32),
    }


def build_params(key):
    f32, bf16 = jnp.float32, jnp.bfloat16
    # small config
    B, C, HW, PS = 2, 3, 16, 8
    vis_width, vis_layers, vis_heads = 32, 2, 4
    embed_dim = 16
    ctx_dim, txt_layers, txt_heads = 32, 2, 4
    seq_t, n_ctx, n_cls = 16, 4, 3

    n_patches = (HW // PS) ** 2
    keys = iter(jax.random.split(key, 32))

    visual = {
        "conv_w": (0.02 * jax.random.normal(next(keys), (C * PS * PS, vis_width), f32)).astype(bf16),
        "class_emb": 0.02 * jax.random.normal(next(keys), (vis_width,), f32),
        "pos_emb": 0.02 * jax.random.normal(next(keys), (n_patches + 1, vis_width), f32),
        "ln_pre_g": jnp.ones((vis_width,), f32), "ln_pre_b": jnp.zeros((vis_width,), f32),
        "blocks": [_init_block(next(keys), vis_width) for _ in range(vis_layers)],
        "ln_post_g": jnp.ones((vis_width,), f32), "ln_post_b": jnp.zeros((vis_width,), f32),
        "proj": (0.02 * jax.random.normal(next(keys), (vis_width, embed_dim), f32)).astype(bf16),
    }

    text = {
        "pos_emb": 0.02 * jax.random.normal(next(keys), (seq_t, ctx_dim), f32),
        "blocks": [_init_block(next(keys), ctx_dim) for _ in range(txt_layers)],
        "ln_final_g": jnp.ones((ctx_dim,), f32), "ln_final_b": jnp.zeros((ctx_dim,), f32),
        "text_projection": (0.02 * jax.random.normal(next(keys), (ctx_dim, embed_dim), f32)).astype(bf16),
    }

    # PromptLearner buffers (stand-ins for token_embedding(tokenized prompts)).
    # TODO(synk): real CLIP tokenizer + token_embedding lookup is replaced by
    # deterministically synthesized prefix/suffix embeddings (no .pt loading).
    prompt = {
        "ctx": 0.02 * jax.random.normal(next(keys), (n_ctx, ctx_dim), f32),
        "token_prefix": 0.02 * jax.random.normal(next(keys), (n_cls, 1, ctx_dim), f32),
        "token_suffix": 0.02 * jax.random.normal(next(keys), (n_cls, seq_t - 1 - n_ctx, ctx_dim), f32),
    }

    # tokenized prompts: ints whose argmax marks the EOT position per class
    tok = jnp.zeros((n_cls, seq_t), jnp.int32)
    eot_positions = jnp.array([7, 8, 9], jnp.int32)
    tok = tok.at[jnp.arange(n_cls), eot_positions].set(49407)

    params = {
        "visual": visual,
        "text": text,
        "prompt": prompt,
        "tokenized_prompts": tok,
        "logit_scale": jnp.array(math.log(1.0 / 0.07), f32),
    }
    # static (non-traced) config kept OUT of the jit-traced pytree
    cfg = {"patch_size": PS, "vis_heads": vis_heads, "txt_heads": txt_heads}
    return params, cfg, (B, C, HW, HW), n_cls


if __name__ == "__main__":
    key = jax.random.PRNGKey(0)
    k_params, k_img = jax.random.split(key)
    params, cfg, img_shape, n_cls = build_params(k_params)

    image = jax.random.normal(k_img, img_shape, jnp.float32)  # NCHW, like PyTorch

    fwd = jax.jit(lambda img, prm: custom_clip_forward(img, prm, cfg))
    logits = fwd(image, params)
    jax.block_until_ready(logits)

    assert logits.shape == (img_shape[0], n_cls), logits.shape
    assert bool(jnp.all(jnp.isfinite(logits)))
    print("KERNEL_OK")
</pallas_src>

<mosaic_0001>
module attributes {stable_mosaic.version = 11 : i64} {
  func.func @_linear_kernel(%arg0: i32, %arg1: i32, %arg2: i32, %arg3: memref<10x32xf32, #tpu.memory_space<vmem>>, %arg4: memref<32x96xbf16, #tpu.memory_space<vmem>>, %arg5: memref<1x32xf32, #tpu.memory_space<vmem>>, %arg6: memref<1x32xf32, #tpu.memory_space<vmem>>, %arg7: memref<1x96xf32, #tpu.memory_space<vmem>>, %arg8: memref<10x96xf32, #tpu.memory_space<vmem>>, %arg9: memref<10x96xf32, #tpu.memory_space<vmem>>) attributes {dimension_semantics = [#tpu.dimension_semantics<parallel>, #tpu.dimension_semantics<parallel>, #tpu.dimension_semantics<arbitrary>], iteration_bounds = array<i64: 1, 1, 1>, scalar_prefetch = 0 : i64, scratch_operands = 1 : i64, tpu.core_type = #tpu.core_type<tc>, window_params = [{transform_indices = @transform_0, window_bounds = array<i64: 10, 32>}, {transform_indices = @transform_1, window_bounds = array<i64: 32, 96>}, {transform_indices = @transform_2, window_bounds = array<i64: 1, 32>}, {transform_indices = @transform_3, window_bounds = array<i64: 1, 32>}, {transform_indices = @transform_4, window_bounds = array<i64: 1, 96>}, {transform_indices = @transform_5, window_bounds = array<i64: 10, 96>}]} {
    %c0_i32 = arith.constant 0 : i32
    %0 = arith.cmpi eq, %arg2, %c0_i32 : i32
    %1 = arith.extui %0 : i1 to i32
    %c0_i32_0 = arith.constant 0 : i32
    %2 = arith.cmpi ne, %1, %c0_i32_0 : i32
    scf.if %2 {
      %cst_19 = arith.constant 0.000000e+00 : f32
      %35 = vector.broadcast %cst_19 : f32 to vector<10x96xf32>
      %c0_20 = arith.constant 0 : index
      %c0_21 = arith.constant 0 : index
      %36 = vector.load %arg9[%c0_20, %c0_21] : memref<10x96xf32, #tpu.memory_space<vmem>>, vector<10x96xf32>
      tpu.vector_store %arg9[%c0_20, %c0_21], %35 {strides = array<i32>} : memref<10x96xf32, #tpu.memory_space<vmem>>, vector<10x96xf32>,
    } else {
    }
    %c0 = arith.constant 0 : index
    %c0_1 = arith.constant 0 : index
    %3 = vector.load %arg3[%c0, %c0_1] : memref<10x32xf32, #tpu.memory_space<vmem>>, vector<10x32xf32>
    %cst = arith.constant dense<0.000000e+00> : vector<10xf32>
    %4 = vector.multi_reduction <add>, %3, %cst [1] : vector<10x32xf32> to vector<10xf32>
    %5 = vector.shape_cast %4 : vector<10xf32> to vector<10x1xf32>
    %cst_2 = arith.constant 3.200000e+01 : f32
    %6 = vector.broadcast %cst_2 : f32 to vector<10x1xf32>
    %7 = arith.divf %5, %6 : vector<10x1xf32>
    %8 = vector.broadcast %7 : vector<10x1xf32> to vector<10x32xf32>
    %9 = arith.subf %3, %8 : vector<10x32xf32>
    %10 = arith.mulf %9, %9 : vector<10x32xf32>
    %cst_3 = arith.constant dense<0.000000e+00> : vector<10xf32>
    %11 = vector.multi_reduction <add>, %10, %cst_3 [1] : vector<10x32xf32> to vector<10xf32>
    %12 = vector.shape_cast %11 : vector<10xf32> to vector<10x1xf32>
    %cst_4 = arith.constant 3.200000e+01 : f32
    %13 = vector.broadcast %cst_4 : f32 to vector<10x1xf32>
    %14 = arith.divf %12, %13 : vector<10x1xf32>
    %cst_5 = arith.constant 9.99999974E-6 : f32
    %15 = vector.broadcast %cst_5 : f32 to vector<10x1xf32>
    %16 = arith.addf %14, %15 : vector<10x1xf32>
    %17 = math.rsqrt %16 : vector<10x1xf32>
    %18 = vector.broadcast %17 : vector<10x1xf32> to vector<10x32xf32>
    %19 = arith.mulf %9, %18 : vector<10x32xf32>
    %c0_6 = arith.constant 0 : index
    %c0_7 = arith.constant 0 : index
    %20 = vector.load %arg5[%c0_6, %c0_7] : memref<1x32xf32, #tpu.memory_space<vmem>>, vector<1x32xf32>
    %21 = vector.broadcast %20 : vector<1x32xf32> to vector<10x32xf32>
    %22 = arith.mulf %19, %21 : vector<10x32xf32>
    %c0_8 = arith.constant 0 : index
    %c0_9 = arith.constant 0 : index
    %23 = vector.load %arg6[%c0_8, %c0_9] : memref<1x32xf32, #tpu.memory_space<vmem>>, vector<1x32xf32>
    %24 = vector.broadcast %23 : vector<1x32xf32> to vector<10x32xf32>
    %25 = arith.addf %22, %24 : vector<10x32xf32>
    %26 = arith.truncf %25 : vector<10x32xf32> to vector<10x32xbf16>
    %c0_10 = arith.constant 0 : index
    %c0_11 = arith.constant 0 : index
    %27 = vector.load %arg9[%c0_10, %c0_11] : memref<10x96xf32, #tpu.memory_space<vmem>>, vector<10x96xf32>
    %c0_12 = arith.constant 0 : index
    %c0_13 = arith.constant 0 : index
    %28 = vector.load %arg4[%c0_12, %c0_13] : memref<32x96xbf16, #tpu.memory_space<vmem>>, vector<32x96xbf16>
    %cst_14 = arith.constant dense<0.000000e+00> : vector<10x96xf32>
    %29 = tpu.matmul %26, %28, %cst_14 {dimension_numbers = #tpu.dot_dimension_numbers<[1], [0], [0], [1], [0, 0, 1, 1], [], []>} : vector<10x32xbf16>, vector<32x96xbf16>, vector<10x96xf32> -> vector<10x96xf32>
    %30 = arith.addf %27, %29 : vector<10x96xf32>
    %c0_15 = arith.constant 0 : index
    %c0_16 = arith.constant 0 : index
    %31 = vector.load %arg9[%c0_15, %c0_16] : memref<10x96xf32, #tpu.memory_space<vmem>>, vector<10x96xf32>
    tpu.vector_store %arg9[%c0_15, %c0_16], %30 {strides = array<i32>} : memref<10x96xf32, #tpu.memory_space<vmem>>, vector<10x96xf32>,
    %c0_i32_17 = arith.constant 0 : i32
    %32 = arith.cmpi eq, %arg2, %c0_i32_17 : i32
    %33 = arith.extui %32 : i1 to i32
    %c0_i32_18 = arith.constant 0 : i32
    %34 = arith.cmpi ne, %33, %c0_i32_18 : i32
    scf.if %34 {
      %c0_19 = arith.constant 0 : index
      %c0_20 = arith.constant 0 : index
      %35 = vector.load %arg9[%c0_19, %c0_20] : memref<10x96xf32, #tpu.memory_space<vmem>>, vector<10x96xf32>
      %c0_21 = arith.constant 0 : index
      %c0_22 = arith.constant 0 : index
      %36 = vector.load %arg7[%c0_21, %c0_22] : memref<1x96xf32, #tpu.memory_space<vmem>>, vector<1x96xf32>
      %37 = vector.broadcast %36 : vector<1x96xf32> to vector<10x96xf32>
      %38 = arith.addf %35, %37 : vector<10x96xf32>
      %c0_23 = arith.constant 0 : index
      %c0_24 = arith.constant 0 : index
      %39 = vector.load %arg8[%c0_23, %c0_24] : memref<10x96xf32, #tpu.memory_space<vmem>>, vector<10x96xf32>
      tpu.vector_store %arg8[%c0_23, %c0_24], %38 {strides = array<i32>} : memref<10x96xf32, #tpu.memory_space<vmem>>, vector<10x96xf32>,
    } else {
    }
    return
  }
  func.func @transform_0(%arg0: i32, %arg1: i32, %arg2: i32) -> (i32, i32) {
    %c0_i32 = arith.constant 0 : i32
    return %arg0, %arg2 : i32, i32
  }
  func.func @transform_1(%arg0: i32, %arg1: i32, %arg2: i32) -> (i32, i32) {
    %c0_i32 = arith.constant 0 : i32
    return %arg2, %arg1 : i32, i32
  }
  func.func @transform_2(%arg0: i32, %arg1: i32, %arg2: i32) -> (i32, i32) {
    %c0_i32 = arith.constant 0 : i32
    %c0_i32_0 = arith.constant 0 : i32
    return %c0_i32, %arg2 : i32, i32
  }
  func.func @transform_3(%arg0: i32, %arg1: i32, %arg2: i32) -> (i32, i32) {
    %c0_i32 = arith.constant 0 : i32
    %c0_i32_0 = arith.constant 0 : i32
    return %c0_i32, %arg2 : i32, i32
  }
  func.func @transform_4(%arg0: i32, %arg1: i32, %arg2: i32) -> (i32, i32) {
    %c0_i32 = arith.constant 0 : i32
    %c0_i32_0 = arith.constant 0 : i32
    return %c0_i32, %arg1 : i32, i32
  }
  func.func @transform_5(%arg0: i32, %arg1: i32, %arg2: i32) -> (i32, i32) {
    %c0_i32 = arith.constant 0 : i32
    return %arg0, %arg1 : i32, i32
  }
}

module attributes {stable_mosaic.version = 11 : i64} {
  func.func @_linear_kernel(%arg0: i32, %arg1: i32, %arg2: i32, %arg3: memref<8x192xf32, #tpu.memory_space<vmem>>, %arg4: memref<192x32xbf16, #tpu.memory_space<vmem>>, %arg5: memref<8x32xf32, #tpu.memory_space<vmem>>, %arg6: memref<8x32xf32, #tpu.memory_space<vmem>>) attributes {dimension_semantics = [#tpu.dimension_semantics<parallel>, #tpu.dimension_semantics<parallel>, #tpu.dimension_semantics<arbitrary>], iteration_bounds = array<i64: 1, 1, 1>, scalar_prefetch = 0 : i64, scratch_operands = 1 : i64, tpu.core_type = #tpu.core_type<tc>, window_params = [{transform_indices = @transform_0, window_bounds = array<i64: 8, 192>}, {transform_indices = @transform_1, window_bounds = array<i64: 192, 32>}, {transform_indices = @transform_2, window_bounds = array<i64: 8, 32>}]} {
    %c0_i32 = arith.constant 0 : i32
    %0 = arith.cmpi eq, %arg2, %c0_i32 : i32
    %1 = arith.extui %0 : i1 to i32
    %c0_i32_0 = arith.constant 0 : i32
    %2 = arith.cmpi ne, %1, %c0_i32_0 : i32
    scf.if %2 {
      %cst_10 = arith.constant 0.000000e+00 : f32
      %13 = vector.broadcast %cst_10 : f32 to vector<8x32xf32>
      %c0_11 = arith.constant 0 : index
      %c0_12 = arith.constant 0 : index
      %14 = vector.load %arg6[%c0_11, %c0_12] : memref<8x32xf32, #tpu.memory_space<vmem>>, vector<8x32xf32>
      tpu.vector_store %arg6[%c0_11, %c0_12], %13 {strides = array<i32>} : memref<8x32xf32, #tpu.memory_space<vmem>>, vector<8x32xf32>,
    } else {
    }
    %c0 = arith.constant 0 : index
    %c0_1 = arith.constant 0 : index
    %3 = vector.load %arg3[%c0, %c0_1] : memref<8x192xf32, #tpu.memory_space<vmem>>, vector<8x192xf32>
    %4 = arith.truncf %3 : vector<8x192xf32> to vector<8x192xbf16>
    %c0_2 = arith.constant 0 : index
    %c0_3 = arith.constant 0 : index
    %5 = vector.load %arg6[%c0_2, %c0_3] : memref<8x32xf32, #tpu.memory_space<vmem>>, vector<8x32xf32>
    %c0_4 = arith.constant 0 : index
    %c0_5 = arith.constant 0 : index
    %6 = vector.load %arg4[%c0_4, %c0_5] : memref<192x32xbf16, #tpu.memory_space<vmem>>, vector<192x32xbf16>
    %cst = arith.constant dense<0.000000e+00> : vector<8x32xf32>
    %7 = tpu.matmul %4, %6, %cst {dimension_numbers = #tpu.dot_dimension_numbers<[1], [0], [0], [1], [0, 0, 1, 1], [], []>} : vector<8x192xbf16>, vector<192x32xbf16>, vector<8x32xf32> -> vector<8x32xf32>
    %8 = arith.addf %5, %7 : vector<8x32xf32>
    %c0_6 = arith.constant 0 : index
    %c0_7 = arith.constant 0 : index
    %9 = vector.load %arg6[%c0_6, %c0_7] : memref<8x32xf32, #tpu.memory_space<vmem>>, vector<8x32xf32>
    tpu.vector_store %arg6[%c0_6, %c0_7], %8 {strides = array<i32>} : memref<8x32xf32, #tpu.memory_space<vmem>>, vector<8x32xf32>,
    %c0_i32_8 = arith.constant 0 : i32
    %10 = arith.cmpi eq, %arg2, %c0_i32_8 : i32
    %11 = arith.extui %10 : i1 to i32
    %c0_i32_9 = arith.constant 0 : i32
    %12 = arith.cmpi ne, %11, %c0_i32_9 : i32
    scf.if %12 {
      %c0_10 = arith.constant 0 : index
      %c0_11 = arith.constant 0 : index
      %13 = vector.load %arg6[%c0_10, %c0_11] : memref<8x32xf32, #tpu.memory_space<vmem>>, vector<8x32xf32>
      %c0_12 = arith.constant 0 : index
      %c0_13 = arith.constant 0 : index
      %14 = vector.load %arg5[%c0_12, %c0_13] : memref<8x32xf32, #tpu.memory_space<vmem>>, vector<8x32xf32>
      tpu.vector_store %arg5[%c0_12, %c0_13], %13 {strides = array<i32>} : memref<8x32xf32, #tpu.memory_space<vmem>>, vector<8x32xf32>,
    } else {
    }
    return
  }
  func.func @transform_0(%arg0: i32, %arg1: i32, %arg2: i32) -> (i32, i32) {
    %c0_i32 = arith.constant 0 : i32
    return %arg0, %arg2 : i32, i32
  }
  func.func @transform_1(%arg0: i32, %arg1: i32, %arg2: i32) -> (i32, i32) {
    %c0_i32 = arith.constant 0 : i32
    return %arg2, %arg1 : i32, i32
  }
  func.func @transform_2(%arg0: i32, %arg1: i32, %arg2: i32) -> (i32, i32) {
    %c0_i32 = arith.constant 0 : i32
    return %arg0, %arg1 : i32, i32
  }
}

module attributes {stable_mosaic.version = 11 : i64} {
  func.func @_add_ln_kernel(%arg0: i32, %arg1: memref<1x5x32xf32, #tpu.memory_space<vmem>>, %arg2: memref<5x32xf32, #tpu.memory_space<vmem>>, %arg3: memref<1x32xf32, #tpu.memory_space<vmem>>, %arg4: memref<1x32xf32, #tpu.memory_space<vmem>>, %arg5: memref<1x5x32xf32, #tpu.memory_space<vmem>>) attributes {dimension_semantics = [#tpu.dimension_semantics<parallel>], iteration_bounds = array<i64: 2>, scalar_prefetch = 0 : i64, scratch_operands = 0 : i64, tpu.core_type = #tpu.core_type<tc>, window_params = [{transform_indices = @transform_0, window_bounds = array<i64: 1, 5, 32>}, {pipeline_mode = #tpu.pipeline_mode<synchronous>, transform_indices = @transform_1, window_bounds = array<i64: 5, 32>}, {pipeline_mode = #tpu.pipeline_mode<synchronous>, transform_indices = @transform_2, window_bounds = array<i64: 1, 32>}, {pipeline_mode = #tpu.pipeline_mode<synchronous>, transform_indices = @transform_3, window_bounds = array<i64: 1, 32>}, {transform_indices = @transform_4, window_bounds = array<i64: 1, 5, 32>}]} {
    %c0 = arith.constant 0 : index
    %c0_0 = arith.constant 0 : index
    %c0_1 = arith.constant 0 : index
    %0 = vector.load %arg1[%c0, %c0_0, %c0_1] : memref<1x5x32xf32, #tpu.memory_space<vmem>>, vector<1x5x32xf32>
    %1 = vector.shape_cast %0 : vector<1x5x32xf32> to vector<5x32xf32>
    %c0_2 = arith.constant 0 : index
    %c0_3 = arith.constant 0 : index
    %2 = vector.load %arg2[%c0_2, %c0_3] : memref<5x32xf32, #tpu.memory_space<vmem>>, vector<5x32xf32>
    %3 = arith.addf %1, %2 : vector<5x32xf32>
    %cst = arith.constant dense<0.000000e+00> : vector<5xf32>
    %4 = vector.multi_reduction <add>, %3, %cst [1] : vector<5x32xf32> to vector<5xf32>
    %5 = vector.shape_cast %4 : vector<5xf32> to vector<5x1xf32>
    %cst_4 = arith.constant 3.200000e+01 : f32
    %6 = vector.broadcast %cst_4 : f32 to vector<5x1xf32>
    %7 = arith.divf %5, %6 : vector<5x1xf32>
    %8 = vector.broadcast %7 : vector<5x1xf32> to vector<5x32xf32>
    %9 = arith.subf %3, %8 : vector<5x32xf32>
    %10 = arith.mulf %9, %9 : vector<5x32xf32>
    %cst_5 = arith.constant dense<0.000000e+00> : vector<5xf32>
    %11 = vector.multi_reduction <add>, %10, %cst_5 [1] : vector<5x32xf32> to vector<5xf32>
    %12 = vector.shape_cast %11 : vector<5xf32> to vector<5x1xf32>
    %cst_6 = arith.constant 3.200000e+01 : f32
    %13 = vector.broadcast %cst_6 : f32 to vector<5x1xf32>
    %14 = arith.divf %12, %13 : vector<5x1xf32>
    %cst_7 = arith.constant 9.99999974E-6 : f32
    %15 = vector.broadcast %cst_7 : f32 to vector<5x1xf32>
    %16 = arith.addf %14, %15 : vector<5x1xf32>
    %17 = math.rsqrt %16 : vector<5x1xf32>
    %18 = vector.broadcast %17 : vector<5x1xf32> to vector<5x32xf32>
    %19 = arith.mulf %9, %18 : vector<5x32xf32>
    %c0_8 = arith.constant 0 : index
    %c0_9 = arith.constant 0 : index
    %20 = vector.load %arg3[%c0_8, %c0_9] : memref<1x32xf32, #tpu.memory_space<vmem>>, vector<1x32xf32>
    %21 = vector.broadcast %20 : vector<1x32xf32> to vector<5x32xf32>
    %22 = arith.mulf %19, %21 : vector<5x32xf32>
    %c0_10 = arith.constant 0 : index
    %c0_11 = arith.constant 0 : index
    %23 = vector.load %arg4[%c0_10, %c0_11] : memref<1x32xf32, #tpu.memory_space<vmem>>, vector<1x32xf32>
    %24 = vector.broadcast %23 : vector<1x32xf32> to vector<5x32xf32>
    %25 = arith.addf %22, %24 : vector<5x32xf32>
    %c0_12 = arith.constant 0 : index
    %c0_13 = arith.constant 0 : index
    %c0_14 = arith.constant 0 : index
    %26 = vector.load %arg5[%c0_12, %c0_13, %c0_14] : memref<1x5x32xf32, #tpu.memory_space<vmem>>, vector<1x5x32xf32>
    %27 = vector.shape_cast %26 : vector<1x5x32xf32> to vector<5x32xf32>
    %28 = vector.shape_cast %25 : vector<5x32xf32> to vector<1x5x32xf32>
    tpu.vector_store %arg5[%c0_12, %c0_13, %c0_14], %28 {strides = array<i32>} : memref<1x5x32xf32, #tpu.memory_space<vmem>>, vector<1x5x32xf32>,
    return
  }
  func.func @transform_0(%arg0: i32) -> (i32, i32, i32) {
    %c0_i32 = arith.constant 0 : i32
    %c0_i32_0 = arith.constant 0 : i32
    %c0_i32_1 = arith.constant 0 : i32
    return %arg0, %c0_i32, %c0_i32_0 : i32, i32, i32
  }
  func.func @transform_1(%arg0: i32) -> (i32, i32) {
    %c0_i32 = arith.constant 0 : i32
    %c0_i32_0 = arith.constant 0 : i32
    %c0_i32_1 = arith.constant 0 : i32
    return %c0_i32, %c0_i32_0 : i32, i32
  }
  func.func @transform_2(%arg0: i32) -> (i32, i32) {
    %c0_i32 = arith.constant 0 : i32
    %c0_i32_0 = arith.constant 0 : i32
    %c0_i32_1 = arith.constant 0 : i32
    return %c0_i32, %c0_i32_0 : i32, i32
  }
  func.func @transform_3(%arg0: i32) -> (i32, i32) {
    %c0_i32 = arith.constant 0 : i32
    %c0_i32_0 = arith.constant 0 : i32
    %c0_i32_1 = arith.constant 0 : i32
    return %c0_i32, %c0_i32_0 : i32, i32
  }
  func.func @transform_4(%arg0: i32) -> (i32, i32, i32) {
    %c0_i32 = arith.constant 0 : i32
    %c0_i32_0 = arith.constant 0 : i32
    %c0_i32_1 = arith.constant 0 : i32
    return %arg0, %c0_i32, %c0_i32_0 : i32, i32, i32
  }
}

module attributes {stable_mosaic.version = 11 : i64} {
  func.func @_attn_kernel(%arg0: i32, %arg1: memref<1x5x96xf32, #tpu.memory_space<vmem>>, %arg2: memref<1x5x32xf32, #tpu.memory_space<vmem>>) attributes {dimension_semantics = [#tpu.dimension_semantics<parallel>], iteration_bounds = array<i64: 2>, scalar_prefetch = 0 : i64, scratch_operands = 0 : i64, tpu.core_type = #tpu.core_type<tc>, window_params = [{transform_indices = @transform_0, window_bounds = array<i64: 1, 5, 96>}, {transform_indices = @transform_1, window_bounds = array<i64: 1, 5, 32>}]} {
    %c0 = arith.constant 0 : index
    %c0_0 = arith.constant 0 : index
    %c0_1 = arith.constant 0 : index
    %0 = vector.load %arg1[%c0, %c0_0, %c0_1] : memref<1x5x96xf32, #tpu.memory_space<vmem>>, vector<1x5x8xf32>
    %1 = vector.shape_cast %0 : vector<1x5x8xf32> to vector<5x8xf32>
    %2 = arith.truncf %1 : vector<5x8xf32> to vector<5x8xbf16>
    %c0_2 = arith.constant 0 : index
    %c0_3 = arith.constant 0 : index
    %c32 = arith.constant 32 : index
    %3 = vector.load %arg1[%c0_2, %c0_3, %c32] : memref<1x5x96xf32, #tpu.memory_space<vmem>>, vector<1x5x8xf32>
    %4 = vector.shape_cast %3 : vector<1x5x8xf32> to vector<5x8xf32>
    %5 = arith.truncf %4 : vector<5x8xf32> to vector<5x8xbf16>
    %c0_4 = arith.constant 0 : index
    %c0_5 = arith.constant 0 : index
    %c64 = arith.constant 64 : index
    %6 = vector.load %arg1[%c0_4, %c0_5, %c64] : memref<1x5x96xf32, #tpu.memory_space<vmem>>, vector<1x5x8xf32>
    %7 = vector.shape_cast %6 : vector<1x5x8xf32> to vector<5x8xf32>
    %8 = arith.truncf %7 : vector<5x8xf32> to vector<5x8xbf16>
    %cst = arith.constant dense<0.000000e+00> : vector<5x5xf32>
    %9 = tpu.matmul %2, %5, %cst {dimension_numbers = #tpu.dot_dimension_numbers<[1], [1], [0], [0], [0, 0, 1, 0], [], []>} : vector<5x8xbf16>, vector<5x8xbf16>, vector<5x5xf32> -> vector<5x5xf32>
    %cst_6 = arith.constant 0.353553385 : f32
    %10 = vector.broadcast %cst_6 : f32 to vector<5x5xf32>
    %11 = arith.mulf %9, %10 : vector<5x5xf32>
    %cst_7 = arith.constant dense<0xFF800000> : vector<5xf32>
    %12 = vector.multi_reduction <maximumf>, %11, %cst_7 [1] : vector<5x5xf32> to vector<5xf32>
    %13 = vector.shape_cast %12 : vector<5xf32> to vector<5x1xf32>
    %14 = vector.broadcast %13 : vector<5x1xf32> to vector<5x5xf32>
    %15 = arith.subf %11, %14 : vector<5x5xf32>
    %16 = math.exp %15 : vector<5x5xf32>
    %cst_8 = arith.constant dense<0.000000e+00> : vector<5xf32>
    %17 = vector.multi_reduction <add>, %16, %cst_8 [1] : vector<5x5xf32> to vector<5xf32>
    %18 = vector.shape_cast %17 : vector<5xf32> to vector<5x1xf32>
    %19 = tpu.reciprocal %18 {approx = true} : vector<5x1xf32> -> vector<5x1xf32>
    %20 = vector.broadcast %19 : vector<5x1xf32> to vector<5x5xf32>
    %21 = arith.mulf %16, %20 : vector<5x5xf32>
    %22 = arith.truncf %21 : vector<5x5xf32> to vector<5x5xbf16>
    %cst_9 = arith.constant dense<0.000000e+00> : vector<5x8xf32>
    %23 = tpu.matmul %22, %8, %cst_9 {dimension_numbers = #tpu.dot_dimension_numbers<[1], [0], [0], [1], [0, 0, 1, 1], [], []>} : vector<5x5xbf16>, vector<5x8xbf16>, vector<5x8xf32> -> vector<5x8xf32>
    %c0_10 = arith.constant 0 : index
    %c0_11 = arith.constant 0 : index
    %c0_12 = arith.constant 0 : index
    %24 = vector.load %arg2[%c0_10, %c0_11, %c0_12] : memref<1x5x32xf32, #tpu.memory_space<vmem>>, vector<1x5x8xf32>
    %25 = vector.shape_cast %24 : vector<1x5x8xf32> to vector<5x8xf32>
    %26 = vector.shape_cast %23 : vector<5x8xf32> to vector<1x5x8xf32>
    tpu.vector_store %arg2[%c0_10, %c0_11, %c0_12], %26 {strides = array<i32>} : memref<1x5x32xf32, #tpu.memory_space<vmem>>, vector<1x5x8xf32>,
    %c0_13 = arith.constant 0 : index
    %c0_14 = arith.constant 0 : index
    %c8 = arith.constant 8 : index
    %27 = vector.load %arg1[%c0_13, %c0_14, %c8] : memref<1x5x96xf32, #tpu.memory_space<vmem>>, vector<1x5x8xf32>
    %28 = vector.shape_cast %27 : vector<1x5x8xf32> to vector<5x8xf32>
    %29 = arith.truncf %28 : vector<5x8xf32> to vector<5x8xbf16>
    %c0_15 = arith.constant 0 : index
    %c0_16 = arith.constant 0 : index
    %c40 = arith.constant 40 : index
    %30 = vector.load %arg1[%c0_15, %c0_16, %c40] : memref<1x5x96xf32, #tpu.memory_space<vmem>>, vector<1x5x8xf32>
    %31 = vector.shape_cast %30 : vector<1x5x8xf32> to vector<5x8xf32>
    %32 = arith.truncf %31 : vector<5x8xf32> to vector<5x8xbf16>
    %c0_17 = arith.constant 0 : index
    %c0_18 = arith.constant 0 : index
    %c72 = arith.constant 72 : index
    %33 = vector.load %arg1[%c0_17, %c0_18, %c72] : memref<1x5x96xf32, #tpu.memory_space<vmem>>, vector<1x5x8xf32>
    %34 = vector.shape_cast %33 : vector<1x5x8xf32> to vector<5x8xf32>
    %35 = arith.truncf %34 : vector<5x8xf32> to vector<5x8xbf16>
    %cst_19 = arith.constant dense<0.000000e+00> : vector<5x5xf32>
    %36 = tpu.matmul %29, %32, %cst_19 {dimension_numbers = #tpu.dot_dimension_numbers<[1], [1], [0], [0], [0, 0, 1, 0], [], []>} : vector<5x8xbf16>, vector<5x8xbf16>, vector<5x5xf32> -> vector<5x5xf32>
    %cst_20 = arith.constant 0.353553385 : f32
    %37 = vector.broadcast %cst_20 : f32 to vector<5x5xf32>
    %38 = arith.mulf %36, %37 : vector<5x5xf32>
    %cst_21 = arith.constant dense<0xFF800000> : vector<5xf32>
    %39 = vector.multi_reduction <maximumf>, %38, %cst_21 [1] : vector<5x5xf32> to vector<5xf32>
    %40 = vector.shape_cast %39 : vector<5xf32> to vector<5x1xf32>
    %41 = vector.broadcast %40 : vector<5x1xf32> to vector<5x5xf32>
    %42 = arith.subf %38, %41 : vector<5x5xf32>
    %43 = math.exp %42 : vector<5x5xf32>
    %cst_22 = arith.constant dense<0.000000e+00> : vector<5xf32>
    %44 = vector.multi_reduction <add>, %43, %cst_22 [1] : vector<5x5xf32> to vector<5xf32>
    %45 = vector.shape_cast %44 : vector<5xf32> to vector<5x1xf32>
    %46 = tpu.reciprocal %45 {approx = true} : vector<5x1xf32> -> vector<5x1xf32>
    %47 = vector.broadcast %46 : vector<5x1xf32> to vector<5x5xf32>
    %48 = arith.mulf %43, %47 : vector<5x5xf32>
    %49 = arith.truncf %48 : vector<5x5xf32> to vector<5x5xbf16>
    %cst_23 = arith.constant dense<0.000000e+00> : vector<5x8xf32>
    %50 = tpu.matmul %49, %35, %cst_23 {dimension_numbers = #tpu.dot_dimension_numbers<[1], [0], [0], [1], [0, 0, 1, 1], [], []>} : vector<5x5xbf16>, vector<5x8xbf16>, vector<5x8xf32> -> vector<5x8xf32>
    %c0_24 = arith.constant 0 : index
    %c0_25 = arith.constant 0 : index
    %c8_26 = arith.constant 8 : index
    %51 = vector.load %arg2[%c0_24, %c0_25, %c8_26] : memref<1x5x32xf32, #tpu.memory_space<vmem>>, vector<1x5x8xf32>
    %52 = vector.shape_cast %51 : vector<1x5x8xf32> to vector<5x8xf32>
    %53 = vector.shape_cast %50 : vector<5x8xf32> to vector<1x5x8xf32>
    tpu.vector_store %arg2[%c0_24, %c0_25, %c8_26], %53 {strides = array<i32>} : memref<1x5x32xf32, #tpu.memory_space<vmem>>, vector<1x5x8xf32>,
    %c0_27 = arith.constant 0 : index
    %c0_28 = arith.constant 0 : index
    %c16 = arith.constant 16 : index
    %54 = vector.load %arg1[%c0_27, %c0_28, %c16] : memref<1x5x96xf32, #tpu.memory_space<vmem>>, vector<1x5x8xf32>
    %55 = vector.shape_cast %54 : vector<1x5x8xf32> to vector<5x8xf32>
    %56 = arith.truncf %55 : vector<5x8xf32> to vector<5x8xbf16>
    %c0_29 = arith.constant 0 : index
    %c0_30 = arith.constant 0 : index
    %c48 = arith.constant 48 : index
    %57 = vector.load %arg1[%c0_29, %c0_30, %c48] : memref<1x5x96xf32, #tpu.memory_space<vmem>>, vector<1x5x8xf32>
    %58 = vector.shape_cast %57 : vector<1x5x8xf32> to vector<5x8xf32>
    %59 = arith.truncf %58 : vector<5x8xf32> to vector<5x8xbf16>
    %c0_31 = arith.constant 0 : index
    %c0_32 = arith.constant 0 : index
    %c80 = arith.constant 80 : index
    %60 = vector.load %arg1[%c0_31, %c0_32, %c80] : memref<1x5x96xf32, #tpu.memory_space<vmem>>, vector<1x5x8xf32>
    %61 = vector.shape_cast %60 : vector<1x5x8xf32> to vector<5x8xf32>
    %62 = arith.truncf %61 : vector<5x8xf32> to vector<5x8xbf16>
    %cst_33 = arith.constant dense<0.000000e+00> : vector<5x5xf32>
    %63 = tpu.matmul %56, %59, %cst_33 {dimension_numbers = #tpu.dot_dimension_numbers<[1], [1], [0], [0], [0, 0, 1, 0], [], []>} : vector<5x8xbf16>, vector<5x8xbf16>, vector<5x5xf32> -> vector<5x5xf32>
    %cst_34 = arith.constant 0.353553385 : f32
    %64 = vector.broadcast %cst_34 : f32 to vector<5x5xf32>
    %65 = arith.mulf %63, %64 : vector<5x5xf32>
    %cst_35 = arith.constant dense<0xFF800000> : vector<5xf32>
    %66 = vector.multi_reduction <maximumf>, %65, %cst_35 [1] : vector<5x5xf32> to vector<5xf32>
    %67 = vector.shape_cast %66 : vector<5xf32> to vector<5x1xf32>
    %68 = vector.broadcast %67 : vector<5x1xf32> to vector<5x5xf32>
    %69 = arith.subf %65, %68 : vector<5x5xf32>
    %70 = math.exp %69 : vector<5x5xf32>
    %cst_36 = arith.constant dense<0.000000e+00> : vector<5xf32>
    %71 = vector.multi_reduction <add>, %70, %cst_36 [1] : vector<5x5xf32> to vector<5xf32>
    %72 = vector.shape_cast %71 : vector<5xf32> to vector<5x1xf32>
    %73 = tpu.reciprocal %72 {approx = true} : vector<5x1xf32> -> vector<5x1xf32>
    %74 = vector.broadcast %73 : vector<5x1xf32> to vector<5x5xf32>
    %75 = arith.mulf %70, %74 : vector<5x5xf32>
    %76 = arith.truncf %75 : vector<5x5xf32> to vector<5x5xbf16>
    %cst_37 = arith.constant dense<0.000000e+00> : vector<5x8xf32>
    %77 = tpu.matmul %76, %62, %cst_37 {dimension_numbers = #tpu.dot_dimension_numbers<[1], [0], [0], [1], [0, 0, 1, 1], [], []>} : vector<5x5xbf16>, vector<5x8xbf16>, vector<5x8xf32> -> vector<5x8xf32>
    %c0_38 = arith.constant 0 : index
    %c0_39 = arith.constant 0 : index
    %c16_40 = arith.constant 16 : index
    %78 = vector.load %arg2[%c0_38, %c0_39, %c16_40] : memref<1x5x32xf32, #tpu.memory_space<vmem>>, vector<1x5x8xf32>
    %79 = vector.shape_cast %78 : vector<1x5x8xf32> to vector<5x8xf32>
    %80 = vector.shape_cast %77 : vector<5x8xf32> to vector<1x5x8xf32>
    tpu.vector_store %arg2[%c0_38, %c0_39, %c16_40], %80 {strides = array<i32>} : memref<1x5x32xf32, #tpu.memory_space<vmem>>, vector<1x5x8xf32>,
    %c0_41 = arith.constant 0 : index
    %c0_42 = arith.constant 0 : index
    %c24 = arith.constant 24 : index
    %81 = vector.load %arg1[%c0_41, %c0_42, %c24] : memref<1x5x96xf32, #tpu.memory_space<vmem>>, vector<1x5x8xf32>
    %82 = vector.shape_cast %81 : vector<1x5x8xf32> to vector<5x8xf32>
    %83 = arith.truncf %82 : vector<5x8xf32> to vector<5x8xbf16>
    %c0_43 = arith.constant 0 : index
    %c0_44 = arith.constant 0 : index
    %c56 = arith.constant 56 : index
    %84 = vector.load %arg1[%c0_43, %c0_44, %c56] : memref<1x5x96xf32, #tpu.memory_space<vmem>>, vector<1x5x8xf32>
    %85 = vector.shape_cast %84 : vector<1x5x8xf32> to vector<5x8xf32>
    %86 = arith.truncf %85 : vector<5x8xf32> to vector<5x8xbf16>
    %c0_45 = arith.constant 0 : index
    %c0_46 = arith.constant 0 : index
    %c88 = arith.constant 88 : index
    %87 = vector.load %arg1[%c0_45, %c0_46, %c88] : memref<1x5x96xf32, #tpu.memory_space<vmem>>, vector<1x5x8xf32>
    %88 = vector.shape_cast %87 : vector<1x5x8xf32> to vector<5x8xf32>
    %89 = arith.truncf %88 : vector<5x8xf32> to vector<5x8xbf16>
    %cst_47 = arith.constant dense<0.000000e+00> : vector<5x5xf32>
    %90 = tpu.matmul %83, %86, %cst_47 {dimension_numbers = #tpu.dot_dimension_numbers<[1], [1], [0], [0], [0, 0, 1, 0], [], []>} : vector<5x8xbf16>, vector<5x8xbf16>, vector<5x5xf32> -> vector<5x5xf32>
    %cst_48 = arith.constant 0.353553385 : f32
    %91 = vector.broadcast %cst_48 : f32 to vector<5x5xf32>
    %92 = arith.mulf %90, %91 : vector<5x5xf32>
    %cst_49 = arith.constant dense<0xFF800000> : vector<5xf32>
    %93 = vector.multi_reduction <maximumf>, %92, %cst_49 [1] : vector<5x5xf32> to vector<5xf32>
    %94 = vector.shape_cast %93 : vector<5xf32> to vector<5x1xf32>
    %95 = vector.broadcast %94 : vector<5x1xf32> to vector<5x5xf32>
    %96 = arith.subf %92, %95 : vector<5x5xf32>
    %97 = math.exp %96 : vector<5x5xf32>
    %cst_50 = arith.constant dense<0.000000e+00> : vector<5xf32>
    %98 = vector.multi_reduction <add>, %97, %cst_50 [1] : vector<5x5xf32> to vector<5xf32>
    %99 = vector.shape_cast %98 : vector<5xf32> to vector<5x1xf32>
    %100 = tpu.reciprocal %99 {approx = true} : vector<5x1xf32> -> vector<5x1xf32>
    %101 = vector.broadcast %100 : vector<5x1xf32> to vector<5x5xf32>
    %102 = arith.mulf %97, %101 : vector<5x5xf32>
    %103 = arith.truncf %102 : vector<5x5xf32> to vector<5x5xbf16>
    %cst_51 = arith.constant dense<0.000000e+00> : vector<5x8xf32>
    %104 = tpu.matmul %103, %89, %cst_51 {dimension_numbers = #tpu.dot_dimension_numbers<[1], [0], [0], [1], [0, 0, 1, 1], [], []>} : vector<5x5xbf16>, vector<5x8xbf16>, vector<5x8xf32> -> vector<5x8xf32>
    %c0_52 = arith.constant 0 : index
    %c0_53 = arith.constant 0 : index
    %c24_54 = arith.constant 24 : index
    %105 = vector.load %arg2[%c0_52, %c0_53, %c24_54] : memref<1x5x32xf32, #tpu.memory_space<vmem>>, vector<1x5x8xf32>
    %106 = vector.shape_cast %105 : vector<1x5x8xf32> to vector<5x8xf32>
    %107 = vector.shape_cast %104 : vector<5x8xf32> to vector<1x5x8xf32>
    tpu.vector_store %arg2[%c0_52, %c0_53, %c24_54], %107 {strides = array<i32>} : memref<1x5x32xf32, #tpu.memory_space<vmem>>, vector<1x5x8xf32>,
    return
  }
  func.func @transform_0(%arg0: i32) -> (i32, i32, i32) {
    %c0_i32 = arith.constant 0 : i32
    %c0_i32_0 = arith.constant 0 : i32
    %c0_i32_1 = arith.constant 0 : i32
    return %arg0, %c0_i32, %c0_i32_0 : i32, i32, i32
  }
  func.func @transform_1(%arg0: i32) -> (i32, i32, i32) {
    %c0_i32 = arith.constant 0 : i32
    %c0_i32_0 = arith.constant 0 : i32
    %c0_i32_1 = arith.constant 0 : i32
    return %arg0, %c0_i32, %c0_i32_0 : i32, i32, i32
  }
}

module attributes {stable_mosaic.version = 11 : i64} {
  func.func @_linear_kernel(%arg0: i32, %arg1: i32, %arg2: i32, %arg3: memref<10x32xf32, #tpu.memory_space<vmem>>, %arg4: memref<32x128xbf16, #tpu.memory_space<vmem>>, %arg5: memref<1x32xf32, #tpu.memory_space<vmem>>, %arg6: memref<1x32xf32, #tpu.memory_space<vmem>>, %arg7: memref<1x128xf32, #tpu.memory_space<vmem>>, %arg8: memref<10x128xf32, #tpu.memory_space<vmem>>, %arg9: memref<10x128xf32, #tpu.memory_space<vmem>>) attributes {dimension_semantics = [#tpu.dimension_semantics<parallel>, #tpu.dimension_semantics<parallel>, #tpu.dimension_semantics<arbitrary>], iteration_bounds = array<i64: 1, 1, 1>, scalar_prefetch = 0 : i64, scratch_operands = 1 : i64, tpu.core_type = #tpu.core_type<tc>, window_params = [{transform_indices = @transform_0, window_bounds = array<i64: 10, 32>}, {transform_indices = @transform_1, window_bounds = array<i64: 32, 128>}, {transform_indices = @transform_2, window_bounds = array<i64: 1, 32>}, {transform_indices = @transform_3, window_bounds = array<i64: 1, 32>}, {transform_indices = @transform_4, window_bounds = array<i64: 1, 128>}, {transform_indices = @transform_5, window_bounds = array<i64: 10, 128>}]} {
    %c0_i32 = arith.constant 0 : i32
    %0 = arith.cmpi eq, %arg2, %c0_i32 : i32
    %1 = arith.extui %0 : i1 to i32
    %c0_i32_0 = arith.constant 0 : i32
    %2 = arith.cmpi ne, %1, %c0_i32_0 : i32
    scf.if %2 {
      %cst_19 = arith.constant 0.000000e+00 : f32
      %35 = vector.broadcast %cst_19 : f32 to vector<10x128xf32>
      %c0_20 = arith.constant 0 : index
      %c0_21 = arith.constant 0 : index
      %36 = vector.load %arg9[%c0_20, %c0_21] : memref<10x128xf32, #tpu.memory_space<vmem>>, vector<10x128xf32>
      tpu.vector_store %arg9[%c0_20, %c0_21], %35 {strides = array<i32>} : memref<10x128xf32, #tpu.memory_space<vmem>>, vector<10x128xf32>,
    } else {
    }
    %c0 = arith.constant 0 : index
    %c0_1 = arith.constant 0 : index
    %3 = vector.load %arg3[%c0, %c0_1] : memref<10x32xf32, #tpu.memory_space<vmem>>, vector<10x32xf32>
    %cst = arith.constant dense<0.000000e+00> : vector<10xf32>
    %4 = vector.multi_reduction <add>, %3, %cst [1] : vector<10x32xf32> to vector<10xf32>
    %5 = vector.shape_cast %4 : vector<10xf32> to vector<10x1xf32>
    %cst_2 = arith.constant 3.200000e+01 : f32
    %6 = vector.broadcast %cst_2 : f32 to vector<10x1xf32>
    %7 = arith.divf %5, %6 : vector<10x1xf32>
    %8 = vector.broadcast %7 : vector<10x1xf32> to vector<10x32xf32>
    %9 = arith.subf %3, %8 : vector<10x32xf32>
    %10 = arith.mulf %9, %9 : vector<10x32xf32>
    %cst_3 = arith.constant dense<0.000000e+00> : vector<10xf32>
    %11 = vector.multi_reduction <add>, %10, %cst_3 [1] : vector<10x32xf32> to vector<10xf32>
    %12 = vector.shape_cast %11 : vector<10xf32> to vector<10x1xf32>
    %cst_4 = arith.constant 3.200000e+01 : f32
    %13 = vector.broadcast %cst_4 : f32 to vector<10x1xf32>
    %14 = arith.divf %12, %13 : vector<10x1xf32>
    %cst_5 = arith.constant 9.99999974E-6 : f32
    %15 = vector.broadcast %cst_5 : f32 to vector<10x1xf32>
    %16 = arith.addf %14, %15 : vector<10x1xf32>
    %17 = math.rsqrt %16 : vector<10x1xf32>
    %18 = vector.broadcast %17 : vector<10x1xf32> to vector<10x32xf32>
    %19 = arith.mulf %9, %18 : vector<10x32xf32>
    %c0_6 = arith.constant 0 : index
    %c0_7 = arith.constant 0 : index
    %20 = vector.load %arg5[%c0_6, %c0_7] : memref<1x32xf32, #tpu.memory_space<vmem>>, vector<1x32xf32>
    %21 = vector.broadcast %20 : vector<1x32xf32> to vector<10x32xf32>
    %22 = arith.mulf %19, %21 : vector<10x32xf32>
    %c0_8 = arith.constant 0 : index
    %c0_9 = arith.constant 0 : index
    %23 = vector.load %arg6[%c0_8, %c0_9] : memref<1x32xf32, #tpu.memory_space<vmem>>, vector<1x32xf32>
    %24 = vector.broadcast %23 : vector<1x32xf32> to vector<10x32xf32>
    %25 = arith.addf %22, %24 : vector<10x32xf32>
    %26 = arith.truncf %25 : vector<10x32xf32> to vector<10x32xbf16>
    %c0_10 = arith.constant 0 : index
    %c0_11 = arith.constant 0 : index
    %27 = vector.load %arg9[%c0_10, %c0_11] : memref<10x128xf32, #tpu.memory_space<vmem>>, vector<10x128xf32>
    %c0_12 = arith.constant 0 : index
    %c0_13 = arith.constant 0 : index
    %28 = vector.load %arg4[%c0_12, %c0_13] : memref<32x128xbf16, #tpu.memory_space<vmem>>, vector<32x128xbf16>
    %cst_14 = arith.constant dense<0.000000e+00> : vector<10x128xf32>
    %29 = tpu.matmul %26, %28, %cst_14 {dimension_numbers = #tpu.dot_dimension_numbers<[1], [0], [0], [1], [0, 0, 1, 1], [], []>} : vector<10x32xbf16>, vector<32x128xbf16>, vector<10x128xf32> -> vector<10x128xf32>
    %30 = arith.addf %27, %29 : vector<10x128xf32>
    %c0_15 = arith.constant 0 : index
    %c0_16 = arith.constant 0 : index
    %31 = vector.load %arg9[%c0_15, %c0_16] : memref<10x128xf32, #tpu.memory_space<vmem>>, vector<10x128xf32>
    tpu.vector_store %arg9[%c0_15, %c0_16], %30 {strides = array<i32>} : memref<10x128xf32, #tpu.memory_space<vmem>>, vector<10x128xf32>,
    %c0_i32_17 = arith.constant 0 : i32
    %32 = arith.cmpi eq, %arg2, %c0_i32_17 : i32
    %33 = arith.extui %32 : i1 to i32
    %c0_i32_18 = arith.constant 0 : i32
    %34 = arith.cmpi ne, %33, %c0_i32_18 : i32
    scf.if %34 {
      %c0_19 = arith.constant 0 : index
      %c0_20 = arith.constant 0 : index
      %35 = vector.load %arg9[%c0_19, %c0_20] : memref<10x128xf32, #tpu.memory_space<vmem>>, vector<10x128xf32>
      %c0_21 = arith.constant 0 : index
      %c0_22 = arith.constant 0 : index
      %36 = vector.load %arg7[%c0_21, %c0_22] : memref<1x128xf32, #tpu.memory_space<vmem>>, vector<1x128xf32>
      %37 = vector.broadcast %36 : vector<1x128xf32> to vector<10x128xf32>
      %38 = arith.addf %35, %37 : vector<10x128xf32>
      %cst_23 = arith.constant 1.702000e+00 : f32
      %39 = vector.broadcast %cst_23 : f32 to vector<10x128xf32>
      %40 = arith.mulf %39, %38 : vector<10x128xf32>
      %41 = arith.negf %40 : vector<10x128xf32>
      %42 = math.exp %41 : vector<10x128xf32>
      %cst_24 = arith.constant 1.000000e+00 : f32
      %43 = vector.broadcast %cst_24 : f32 to vector<10x128xf32>
      %44 = arith.addf %43, %42 : vector<10x128xf32>
      %45 = arith.divf %43, %44 : vector<10x128xf32>
      %46 = arith.mulf %38, %45 : vector<10x128xf32>
      %c0_25 = arith.constant 0 : index
      %c0_26 = arith.constant 0 : index
      %47 = vector.load %arg8[%c0_25, %c0_26] : memref<10x128xf32, #tpu.memory_space<vmem>>, vector<10x128xf32>
      tpu.vector_store %arg8[%c0_25, %c0_26], %46 {strides = array<i32>} : memref<10x128xf32, #tpu.memory_space<vmem>>, vector<10x128xf32>,
    } else {
    }
    return
  }
  func.func @transform_0(%arg0: i32, %arg1: i32, %arg2: i32) -> (i32, i32) {
    %c0_i32 = arith.constant 0 : i32
    return %arg0, %arg2 : i32, i32
  }
  func.func @transform_1(%arg0: i32, %arg1: i32, %arg2: i32) -> (i32, i32) {
    %c0_i32 = arith.constant 0 : i32
    return %arg2, %arg1 : i32, i32
  }
  func.func @transform_2(%arg0: i32, %arg1: i32, %arg2: i32) -> (i32, i32) {
    %c0_i32 = arith.constant 0 : i32
    %c0_i32_0 = arith.constant 0 : i32
    return %c0_i32, %arg2 : i32, i32
  }
  func.func @transform_3(%arg0: i32, %arg1: i32, %arg2: i32) -> (i32, i32) {
    %c0_i32 = arith.constant 0 : i32
    %c0_i32_0 = arith.constant 0 : i32
    return %c0_i32, %arg2 : i32, i32
  }
  func.func @transform_4(%arg0: i32, %arg1: i32, %arg2: i32) -> (i32, i32) {
    %c0_i32 = arith.constant 0 : i32
    %c0_i32_0 = arith.constant 0 : i32
    return %c0_i32, %arg1 : i32, i32
  }
  func.func @transform_5(%arg0: i32, %arg1: i32, %arg2: i32) -> (i32, i32) {
    %c0_i32 = arith.constant 0 : i32
    return %arg0, %arg1 : i32, i32
  }
}

module attributes {stable_mosaic.version = 11 : i64} {
  func.func @_linear_kernel(%arg0: i32, %arg1: i32, %arg2: i32, %arg3: memref<10x128xf32, #tpu.memory_space<vmem>>, %arg4: memref<128x32xbf16, #tpu.memory_space<vmem>>, %arg5: memref<1x32xf32, #tpu.memory_space<vmem>>, %arg6: memref<10x32xf32, #tpu.memory_space<vmem>>, %arg7: memref<10x32xf32, #tpu.memory_space<vmem>>, %arg8: memref<10x32xf32, #tpu.memory_space<vmem>>) attributes {dimension_semantics = [#tpu.dimension_semantics<parallel>, #tpu.dimension_semantics<parallel>, #tpu.dimension_semantics<arbitrary>], iteration_bounds = array<i64: 1, 1, 1>, scalar_prefetch = 0 : i64, scratch_operands = 1 : i64, tpu.core_type = #tpu.core_type<tc>, window_params = [{transform_indices = @transform_0, window_bounds = array<i64: 10, 128>}, {transform_indices = @transform_1, window_bounds = array<i64: 128, 32>}, {transform_indices = @transform_2, window_bounds = array<i64: 1, 32>}, {transform_indices = @transform_3, window_bounds = array<i64: 10, 32>}, {transform_indices = @transform_4, window_bounds = array<i64: 10, 32>}]} {
    %c0_i32 = arith.constant 0 : i32
    %0 = arith.cmpi eq, %arg2, %c0_i32 : i32
    %1 = arith.extui %0 : i1 to i32
    %c0_i32_0 = arith.constant 0 : i32
    %2 = arith.cmpi ne, %1, %c0_i32_0 : i32
    scf.if %2 {
      %cst_10 = arith.constant 0.000000e+00 : f32
      %13 = vector.broadcast %cst_10 : f32 to vector<10x32xf32>
      %c0_11 = arith.constant 0 : index
      %c0_12 = arith.constant 0 : index
      %14 = vector.load %arg8[%c0_11, %c0_12] : memref<10x32xf32, #tpu.memory_space<vmem>>, vector<10x32xf32>
      tpu.vector_store %arg8[%c0_11, %c0_12], %13 {strides = array<i32>} : memref<10x32xf32, #tpu.memory_space<vmem>>, vector<10x32xf32>,
    } else {
    }
    %c0 = arith.constant 0 : index
    %c0_1 = arith.constant 0 : index
    %3 = vector.load %arg3[%c0, %c0_1] : memref<10x128xf32, #tpu.memory_space<vmem>>, vector<10x128xf32>
    %4 = arith.truncf %3 : vector<10x128xf32> to vector<10x128xbf16>
    %c0_2 = arith.constant 0 : index
    %c0_3 = arith.constant 0 : index
    %5 = vector.load %arg8[%c0_2, %c0_3] : memref<10x32xf32, #tpu.memory_space<vmem>>, vector<10x32xf32>
    %c0_4 = arith.constant 0 : index
    %c0_5 = arith.constant 0 : index
    %6 = vector.load %arg4[%c0_4, %c0_5] : memref<128x32xbf16, #tpu.memory_space<vmem>>, vector<128x32xbf16>
    %cst = arith.constant dense<0.000000e+00> : vector<10x32xf32>
    %7 = tpu.matmul %4, %6, %cst {dimension_numbers = #tpu.dot_dimension_numbers<[1], [0], [0], [1], [0, 0, 1, 1], [], []>} : vector<10x128xbf16>, vector<128x32xbf16>, vector<10x32xf32> -> vector<10x32xf32>
    %8 = arith.addf %5, %7 : vector<10x32xf32>
    %c0_6 = arith.constant 0 : index
    %c0_7 = arith.constant 0 : index
    %9 = vector.load %arg8[%c0_6, %c0_7] : memref<10x32xf32, #tpu.memory_space<vmem>>, vector<10x32xf32>
    tpu.vector_store %arg8[%c0_6, %c0_7], %8 {strides = array<i32>} : memref<10x32xf32, #tpu.memory_space<vmem>>, vector<10x32xf32>,
    %c0_i32_8 = arith.constant 0 : i32
    %10 = arith.cmpi eq, %arg2, %c0_i32_8 : i32
    %11 = arith.extui %10 : i1 to i32
    %c0_i32_9 = arith.constant 0 : i32
    %12 = arith.cmpi ne, %11, %c0_i32_9 : i32
    scf.if %12 {
      %c0_10 = arith.constant 0 : index
      %c0_11 = arith.constant 0 : index
      %13 = vector.load %arg8[%c0_10, %c0_11] : memref<10x32xf32, #tpu.memory_space<vmem>>, vector<10x32xf32>
      %c0_12 = arith.constant 0 : index
      %c0_13 = arith.constant 0 : index
      %14 = vector.load %arg5[%c0_12, %c0_13] : memref<1x32xf32, #tpu.memory_space<vmem>>, vector<1x32xf32>
      %15 = vector.broadcast %14 : vector<1x32xf32> to vector<10x32xf32>
      %16 = arith.addf %13, %15 : vector<10x32xf32>
      %c0_14 = arith.constant 0 : index
      %c0_15 = arith.constant 0 : index
      %17 = vector.load %arg6[%c0_14, %c0_15] : memref<10x32xf32, #tpu.memory_space<vmem>>, vector<10x32xf32>
      %18 = arith.addf %16, %17 : vector<10x32xf32>
      %c0_16 = arith.constant 0 : index
      %c0_17 = arith.constant 0 : index
      %19 = vector.load %arg7[%c0_16, %c0_17] : memref<10x32xf32, #tpu.memory_space<vmem>>, vector<10x32xf32>
      tpu.vector_store %arg7[%c0_16, %c0_17], %18 {strides = array<i32>} : memref<10x32xf32, #tpu.memory_space<vmem>>, vector<10x32xf32>,
    } else {
    }
    return
  }
  func.func @transform_0(%arg0: i32, %arg1: i32, %arg2: i32) -> (i32, i32) {
    %c0_i32 = arith.constant 0 : i32
    return %arg0, %arg2 : i32, i32
  }
  func.func @transform_1(%arg0: i32, %arg1: i32, %arg2: i32) -> (i32, i32) {
    %c0_i32 = arith.constant 0 : i32
    return %arg2, %arg1 : i32, i32
  }
  func.func @transform_2(%arg0: i32, %arg1: i32, %arg2: i32) -> (i32, i32) {
    %c0_i32 = arith.constant 0 : i32
    %c0_i32_0 = arith.constant 0 : i32
    return %c0_i32, %arg1 : i32, i32
  }
  func.func @transform_3(%arg0: i32, %arg1: i32, %arg2: i32) -> (i32, i32) {
    %c0_i32 = arith.constant 0 : i32
    return %arg0, %arg1 : i32, i32
  }
  func.func @transform_4(%arg0: i32, %arg1: i32, %arg2: i32) -> (i32, i32) {
    %c0_i32 = arith.constant 0 : i32
    return %arg0, %arg1 : i32, i32
  }
}

module attributes {stable_mosaic.version = 11 : i64} {
  func.func @_linear_kernel(%arg0: i32, %arg1: i32, %arg2: i32, %arg3: memref<10x32xf32, #tpu.memory_space<vmem>>, %arg4: memref<32x32xbf16, #tpu.memory_space<vmem>>, %arg5: memref<1x32xf32, #tpu.memory_space<vmem>>, %arg6: memref<10x32xf32, #tpu.memory_space<vmem>>, %arg7: memref<10x32xf32, #tpu.memory_space<vmem>>, %arg8: memref<10x32xf32, #tpu.memory_space<vmem>>) attributes {dimension_semantics = [#tpu.dimension_semantics<parallel>, #tpu.dimension_semantics<parallel>, #tpu.dimension_semantics<arbitrary>], iteration_bounds = array<i64: 1, 1, 1>, scalar_prefetch = 0 : i64, scratch_operands = 1 : i64, tpu.core_type = #tpu.core_type<tc>, window_params = [{transform_indices = @transform_0, window_bounds = array<i64: 10, 32>}, {transform_indices = @transform_1, window_bounds = array<i64: 32, 32>}, {transform_indices = @transform_2, window_bounds = array<i64: 1, 32>}, {transform_indices = @transform_3, window_bounds = array<i64: 10, 32>}, {transform_indices = @transform_4, window_bounds = array<i64: 10, 32>}]} {
    %c0_i32 = arith.constant 0 : i32
    %0 = arith.cmpi eq, %arg2, %c0_i32 : i32
    %1 = arith.extui %0 : i1 to i32
    %c0_i32_0 = arith.constant 0 : i32
    %2 = arith.cmpi ne, %1, %c0_i32_0 : i32
    scf.if %2 {
      %cst_10 = arith.constant 0.000000e+00 : f32
      %13 = vector.broadcast %cst_10 : f32 to vector<10x32xf32>
      %c0_11 = arith.constant 0 : index
      %c0_12 = arith.constant 0 : index
      %14 = vector.load %arg8[%c0_11, %c0_12] : memref<10x32xf32, #tpu.memory_space<vmem>>, vector<10x32xf32>
      tpu.vector_store %arg8[%c0_11, %c0_12], %13 {strides = array<i32>} : memref<10x32xf32, #tpu.memory_space<vmem>>, vector<10x32xf32>,
    } else {
    }
    %c0 = arith.constant 0 : index
    %c0_1 = arith.constant 0 : index
    %3 = vector.load %arg3[%c0, %c0_1] : memref<10x32xf32, #tpu.memory_space<vmem>>, vector<10x32xf32>
    %4 = arith.truncf %3 : vector<10x32xf32> to vector<10x32xbf16>
    %c0_2 = arith.constant 0 : index
    %c0_3 = arith.constant 0 : index
    %5 = vector.load %arg8[%c0_2, %c0_3] : memref<10x32xf32, #tpu.memory_space<vmem>>, vector<10x32xf32>
    %c0_4 = arith.constant 0 : index
    %c0_5 = arith.constant 0 : index
    %6 = vector.load %arg4[%c0_4, %c0_5] : memref<32x32xbf16, #tpu.memory_space<vmem>>, vector<32x32xbf16>
    %cst = arith.constant dense<0.000000e+00> : vector<10x32xf32>
    %7 = tpu.matmul %4, %6, %cst {dimension_numbers = #tpu.dot_dimension_numbers<[1], [0], [0], [1], [0, 0, 1, 1], [], []>} : vector<10x32xbf16>, vector<32x32xbf16>, vector<10x32xf32> -> vector<10x32xf32>
    %8 = arith.addf %5, %7 : vector<10x32xf32>
    %c0_6 = arith.constant 0 : index
    %c0_7 = arith.constant 0 : index
    %9 = vector.load %arg8[%c0_6, %c0_7] : memref<10x32xf32, #tpu.memory_space<vmem>>, vector<10x32xf32>
    tpu.vector_store %arg8[%c0_6, %c0_7], %8 {strides = array<i32>} : memref<10x32xf32, #tpu.memory_space<vmem>>, vector<10x32xf32>,
    %c0_i32_8 = arith.constant 0 : i32
    %10 = arith.cmpi eq, %arg2, %c0_i32_8 : i32
    %11 = arith.extui %10 : i1 to i32
    %c0_i32_9 = arith.constant 0 : i32
    %12 = arith.cmpi ne, %11, %c0_i32_9 : i32
    scf.if %12 {
      %c0_10 = arith.constant 0 : index
      %c0_11 = arith.constant 0 : index
      %13 = vector.load %arg8[%c0_10, %c0_11] : memref<10x32xf32, #tpu.memory_space<vmem>>, vector<10x32xf32>
      %c0_12 = arith.constant 0 : index
      %c0_13 = arith.constant 0 : index
      %14 = vector.load %arg5[%c0_12, %c0_13] : memref<1x32xf32, #tpu.memory_space<vmem>>, vector<1x32xf32>
      %15 = vector.broadcast %14 : vector<1x32xf32> to vector<10x32xf32>
      %16 = arith.addf %13, %15 : vector<10x32xf32>
      %c0_14 = arith.constant 0 : index
      %c0_15 = arith.constant 0 : index
      %17 = vector.load %arg6[%c0_14, %c0_15] : memref<10x32xf32, #tpu.memory_space<vmem>>, vector<10x32xf32>
      %18 = arith.addf %16, %17 : vector<10x32xf32>
      %c0_16 = arith.constant 0 : index
      %c0_17 = arith.constant 0 : index
      %19 = vector.load %arg7[%c0_16, %c0_17] : memref<10x32xf32, #tpu.memory_space<vmem>>, vector<10x32xf32>
      tpu.vector_store %arg7[%c0_16, %c0_17], %18 {strides = array<i32>} : memref<10x32xf32, #tpu.memory_space<vmem>>, vector<10x32xf32>,
    } else {
    }
    return
  }
  func.func @transform_0(%arg0: i32, %arg1: i32, %arg2: i32) -> (i32, i32) {
    %c0_i32 = arith.constant 0 : i32
    return %arg0, %arg2 : i32, i32
  }
  func.func @transform_1(%arg0: i32, %arg1: i32, %arg2: i32) -> (i32, i32) {
    %c0_i32 = arith.constant 0 : i32
    return %arg2, %arg1 : i32, i32
  }
  func.func @transform_2(%arg0: i32, %arg1: i32, %arg2: i32) -> (i32, i32) {
    %c0_i32 = arith.constant 0 : i32
    %c0_i32_0 = arith.constant 0 : i32
    return %c0_i32, %arg1 : i32, i32
  }
  func.func @transform_3(%arg0: i32, %arg1: i32, %arg2: i32) -> (i32, i32) {
    %c0_i32 = arith.constant 0 : i32
    return %arg0, %arg1 : i32, i32
  }
  func.func @transform_4(%arg0: i32, %arg1: i32, %arg2: i32) -> (i32, i32) {
    %c0_i32 = arith.constant 0 : i32
    return %arg0, %arg1 : i32, i32
  }
}

module attributes {stable_mosaic.version = 11 : i64} {
  func.func @_linear_kernel(%arg0: i32, %arg1: i32, %arg2: i32, %arg3: memref<2x32xf32, #tpu.memory_space<vmem>>, %arg4: memref<32x16xbf16, #tpu.memory_space<vmem>>, %arg5: memref<1x32xf32, #tpu.memory_space<vmem>>, %arg6: memref<1x32xf32, #tpu.memory_space<vmem>>, %arg7: memref<2x16xf32, #tpu.memory_space<vmem>>, %arg8: memref<2x16xf32, #tpu.memory_space<vmem>>) attributes {dimension_semantics = [#tpu.dimension_semantics<parallel>, #tpu.dimension_semantics<parallel>, #tpu.dimension_semantics<arbitrary>], iteration_bounds = array<i64: 1, 1, 1>, scalar_prefetch = 0 : i64, scratch_operands = 1 : i64, tpu.core_type = #tpu.core_type<tc>, window_params = [{transform_indices = @transform_0, window_bounds = array<i64: 2, 32>}, {transform_indices = @transform_1, window_bounds = array<i64: 32, 16>}, {transform_indices = @transform_2, window_bounds = array<i64: 1, 32>}, {transform_indices = @transform_3, window_bounds = array<i64: 1, 32>}, {transform_indices = @transform_4, window_bounds = array<i64: 2, 16>}]} {
    %c0_i32 = arith.constant 0 : i32
    %0 = arith.cmpi eq, %arg2, %c0_i32 : i32
    %1 = arith.extui %0 : i1 to i32
    %c0_i32_0 = arith.constant 0 : i32
    %2 = arith.cmpi ne, %1, %c0_i32_0 : i32
    scf.if %2 {
      %cst_19 = arith.constant 0.000000e+00 : f32
      %35 = vector.broadcast %cst_19 : f32 to vector<2x16xf32>
      %c0_20 = arith.constant 0 : index
      %c0_21 = arith.constant 0 : index
      %36 = vector.load %arg8[%c0_20, %c0_21] : memref<2x16xf32, #tpu.memory_space<vmem>>, vector<2x16xf32>
      tpu.vector_store %arg8[%c0_20, %c0_21], %35 {strides = array<i32>} : memref<2x16xf32, #tpu.memory_space<vmem>>, vector<2x16xf32>,
    } else {
    }
    %c0 = arith.constant 0 : index
    %c0_1 = arith.constant 0 : index
    %3 = vector.load %arg3[%c0, %c0_1] : memref<2x32xf32, #tpu.memory_space<vmem>>, vector<2x32xf32>
    %cst = arith.constant dense<0.000000e+00> : vector<2xf32>
    %4 = vector.multi_reduction <add>, %3, %cst [1] : vector<2x32xf32> to vector<2xf32>
    %5 = vector.shape_cast %4 : vector<2xf32> to vector<2x1xf32>
    %cst_2 = arith.constant 3.200000e+01 : f32
    %6 = vector.broadcast %cst_2 : f32 to vector<2x1xf32>
    %7 = arith.divf %5, %6 : vector<2x1xf32>
    %8 = vector.broadcast %7 : vector<2x1xf32> to vector<2x32xf32>
    %9 = arith.subf %3, %8 : vector<2x32xf32>
    %10 = arith.mulf %9, %9 : vector<2x32xf32>
    %cst_3 = arith.constant dense<0.000000e+00> : vector<2xf32>
    %11 = vector.multi_reduction <add>, %10, %cst_3 [1] : vector<2x32xf32> to vector<2xf32>
    %12 = vector.shape_cast %11 : vector<2xf32> to vector<2x1xf32>
    %cst_4 = arith.constant 3.200000e+01 : f32
    %13 = vector.broadcast %cst_4 : f32 to vector<2x1xf32>
    %14 = arith.divf %12, %13 : vector<2x1xf32>
    %cst_5 = arith.constant 9.99999974E-6 : f32
    %15 = vector.broadcast %cst_5 : f32 to vector<2x1xf32>
    %16 = arith.addf %14, %15 : vector<2x1xf32>
    %17 = math.rsqrt %16 : vector<2x1xf32>
    %18 = vector.broadcast %17 : vector<2x1xf32> to vector<2x32xf32>
    %19 = arith.mulf %9, %18 : vector<2x32xf32>
    %c0_6 = arith.constant 0 : index
    %c0_7 = arith.constant 0 : index
    %20 = vector.load %arg5[%c0_6, %c0_7] : memref<1x32xf32, #tpu.memory_space<vmem>>, vector<1x32xf32>
    %21 = vector.broadcast %20 : vector<1x32xf32> to vector<2x32xf32>
    %22 = arith.mulf %19, %21 : vector<2x32xf32>
    %c0_8 = arith.constant 0 : index
    %c0_9 = arith.constant 0 : index
    %23 = vector.load %arg6[%c0_8, %c0_9] : memref<1x32xf32, #tpu.memory_space<vmem>>, vector<1x32xf32>
    %24 = vector.broadcast %23 : vector<1x32xf32> to vector<2x32xf32>
    %25 = arith.addf %22, %24 : vector<2x32xf32>
    %26 = arith.truncf %25 : vector<2x32xf32> to vector<2x32xbf16>
    %c0_10 = arith.constant 0 : index
    %c0_11 = arith.constant 0 : index
    %27 = vector.load %arg8[%c0_10, %c0_11] : memref<2x16xf32, #tpu.memory_space<vmem>>, vector<2x16xf32>
    %c0_12 = arith.constant 0 : index
    %c0_13 = arith.constant 0 : index
    %28 = vector.load %arg4[%c0_12, %c0_13] : memref<32x16xbf16, #tpu.memory_space<vmem>>, vector<32x16xbf16>
    %cst_14 = arith.constant dense<0.000000e+00> : vector<2x16xf32>
    %29 = tpu.matmul %26, %28, %cst_14 {dimension_numbers = #tpu.dot_dimension_numbers<[1], [0], [0], [1], [0, 0, 1, 1], [], []>} : vector<2x32xbf16>, vector<32x16xbf16>, vector<2x16xf32> -> vector<2x16xf32>
    %30 = arith.addf %27, %29 : vector<2x16xf32>
    %c0_15 = arith.constant 0 : index
    %c0_16 = arith.constant 0 : index
    %31 = vector.load %arg8[%c0_15, %c0_16] : memref<2x16xf32, #tpu.memory_space<vmem>>, vector<2x16xf32>
    tpu.vector_store %arg8[%c0_15, %c0_16], %30 {strides = array<i32>} : memref<2x16xf32, #tpu.memory_space<vmem>>, vector<2x16xf32>,
    %c0_i32_17 = arith.constant 0 : i32
    %32 = arith.cmpi eq, %arg2, %c0_i32_17 : i32
    %33 = arith.extui %32 : i1 to i32
    %c0_i32_18 = arith.constant 0 : i32
    %34 = arith.cmpi ne, %33, %c0_i32_18 : i32
    scf.if %34 {
      %c0_19 = arith.constant 0 : index
      %c0_20 = arith.constant 0 : index
      %35 = vector.load %arg8[%c0_19, %c0_20] : memref<2x16xf32, #tpu.memory_space<vmem>>, vector<2x16xf32>
      %c0_21 = arith.constant 0 : index
      %c0_22 = arith.constant 0 : index
      %36 = vector.load %arg7[%c0_21, %c0_22] : memref<2x16xf32, #tpu.memory_space<vmem>>, vector<2x16xf32>
      tpu.vector_store %arg7[%c0_21, %c0_22], %35 {strides = array<i32>} : memref<2x16xf32, #tpu.memory_space<vmem>>, vector<2x16xf32>,
    } else {
    }
    return
  }
  func.func @transform_0(%arg0: i32, %arg1: i32, %arg2: i32) -> (i32, i32) {
    %c0_i32 = arith.constant 0 : i32
    return %arg0, %arg2 : i32, i32
  }
  func.func @transform_1(%arg0: i32, %arg1: i32, %arg2: i32) -> (i32, i32) {
    %c0_i32 = arith.constant 0 : i32
    return %arg2, %arg1 : i32, i32
  }
  func.func @transform_2(%arg0: i32, %arg1: i32, %arg2: i32) -> (i32, i32) {
    %c0_i32 = arith.constant 0 : i32
    %c0_i32_0 = arith.constant 0 : i32
    return %c0_i32, %arg2 : i32, i32
  }
  func.func @transform_3(%arg0: i32, %arg1: i32, %arg2: i32) -> (i32, i32) {
    %c0_i32 = arith.constant 0 : i32
    %c0_i32_0 = arith.constant 0 : i32
    return %c0_i32, %arg2 : i32, i32
  }
  func.func @transform_4(%arg0: i32, %arg1: i32, %arg2: i32) -> (i32, i32) {
    %c0_i32 = arith.constant 0 : i32
    return %arg0, %arg1 : i32, i32
  }
}

module attributes {stable_mosaic.version = 11 : i64} {
  func.func @_linear_kernel(%arg0: i32, %arg1: i32, %arg2: i32, %arg3: memref<48x32xf32, #tpu.memory_space<vmem>>, %arg4: memref<32x96xbf16, #tpu.memory_space<vmem>>, %arg5: memref<1x32xf32, #tpu.memory_space<vmem>>, %arg6: memref<1x32xf32, #tpu.memory_space<vmem>>, %arg7: memref<1x96xf32, #tpu.memory_space<vmem>>, %arg8: memref<48x96xf32, #tpu.memory_space<vmem>>, %arg9: memref<48x96xf32, #tpu.memory_space<vmem>>) attributes {dimension_semantics = [#tpu.dimension_semantics<parallel>, #tpu.dimension_semantics<parallel>, #tpu.dimension_semantics<arbitrary>], iteration_bounds = array<i64: 1, 1, 1>, scalar_prefetch = 0 : i64, scratch_operands = 1 : i64, tpu.core_type = #tpu.core_type<tc>, window_params = [{transform_indices = @transform_0, window_bounds = array<i64: 48, 32>}, {transform_indices = @transform_1, window_bounds = array<i64: 32, 96>}, {transform_indices = @transform_2, window_bounds = array<i64: 1, 32>}, {transform_indices = @transform_3, window_bounds = array<i64: 1, 32>}, {transform_indices = @transform_4, window_bounds = array<i64: 1, 96>}, {transform_indices = @transform_5, window_bounds = array<i64: 48, 96>}]} {
    %c0_i32 = arith.constant 0 : i32
    %0 = arith.cmpi eq, %arg2, %c0_i32 : i32
    %1 = arith.extui %0 : i1 to i32
    %c0_i32_0 = arith.constant 0 : i32
    %2 = arith.cmpi ne, %1, %c0_i32_0 : i32
    scf.if %2 {
      %cst_19 = arith.constant 0.000000e+00 : f32
      %35 = vector.broadcast %cst_19 : f32 to vector<48x96xf32>
      %c0_20 = arith.constant 0 : index
      %c0_21 = arith.constant 0 : index
      %36 = vector.load %arg9[%c0_20, %c0_21] : memref<48x96xf32, #tpu.memory_space<vmem>>, vector<48x96xf32>
      tpu.vector_store %arg9[%c0_20, %c0_21], %35 {strides = array<i32>} : memref<48x96xf32, #tpu.memory_space<vmem>>, vector<48x96xf32>,
    } else {
    }
    %c0 = arith.constant 0 : index
    %c0_1 = arith.constant 0 : index
    %3 = vector.load %arg3[%c0, %c0_1] : memref<48x32xf32, #tpu.memory_space<vmem>>, vector<48x32xf32>
    %cst = arith.constant dense<0.000000e+00> : vector<48xf32>
    %4 = vector.multi_reduction <add>, %3, %cst [1] : vector<48x32xf32> to vector<48xf32>
    %5 = vector.shape_cast %4 : vector<48xf32> to vector<48x1xf32>
    %cst_2 = arith.constant 3.200000e+01 : f32
    %6 = vector.broadcast %cst_2 : f32 to vector<48x1xf32>
    %7 = arith.divf %5, %6 : vector<48x1xf32>
    %8 = vector.broadcast %7 : vector<48x1xf32> to vector<48x32xf32>
    %9 = arith.subf %3, %8 : vector<48x32xf32>
    %10 = arith.mulf %9, %9 : vector<48x32xf32>
    %cst_3 = arith.constant dense<0.000000e+00> : vector<48xf32>
    %11 = vector.multi_reduction <add>, %10, %cst_3 [1] : vector<48x32xf32> to vector<48xf32>
    %12 = vector.shape_cast %11 : vector<48xf32> to vector<48x1xf32>
    %cst_4 = arith.constant 3.200000e+01 : f32
    %13 = vector.broadcast %cst_4 : f32 to vector<48x1xf32>
    %14 = arith.divf %12, %13 : vector<48x1xf32>
    %cst_5 = arith.constant 9.99999974E-6 : f32
    %15 = vector.broadcast %cst_5 : f32 to vector<48x1xf32>
    %16 = arith.addf %14, %15 : vector<48x1xf32>
    %17 = math.rsqrt %16 : vector<48x1xf32>
    %18 = vector.broadcast %17 : vector<48x1xf32> to vector<48x32xf32>
    %19 = arith.mulf %9, %18 : vector<48x32xf32>
    %c0_6 = arith.constant 0 : index
    %c0_7 = arith.constant 0 : index
    %20 = vector.load %arg5[%c0_6, %c0_7] : memref<1x32xf32, #tpu.memory_space<vmem>>, vector<1x32xf32>
    %21 = vector.broadcast %20 : vector<1x32xf32> to vector<48x32xf32>
    %22 = arith.mulf %19, %21 : vector<48x32xf32>
    %c0_8 = arith.constant 0 : index
    %c0_9 = arith.constant 0 : index
    %23 = vector.load %arg6[%c0_8, %c0_9] : memref<1x32xf32, #tpu.memory_space<vmem>>, vector<1x32xf32>
    %24 = vector.broadcast %23 : vector<1x32xf32> to vector<48x32xf32>
    %25 = arith.addf %22, %24 : vector<48x32xf32>
    %26 = arith.truncf %25 : vector<48x32xf32> to vector<48x32xbf16>
    %c0_10 = arith.constant 0 : index
    %c0_11 = arith.constant 0 : index
    %27 = vector.load %arg9[%c0_10, %c0_11] : memref<48x96xf32, #tpu.memory_space<vmem>>, vector<48x96xf32>
    %c0_12 = arith.constant 0 : index
    %c0_13 = arith.constant 0 : index
    %28 = vector.load %arg4[%c0_12, %c0_13] : memref<32x96xbf16, #tpu.memory_space<vmem>>, vector<32x96xbf16>
    %cst_14 = arith.constant dense<0.000000e+00> : vector<48x96xf32>
    %29 = tpu.matmul %26, %28, %cst_14 {dimension_numbers = #tpu.dot_dimension_numbers<[1], [0], [0], [1], [0, 0, 1, 1], [], []>} : vector<48x32xbf16>, vector<32x96xbf16>, vector<48x96xf32> -> vector<48x96xf32>
    %30 = arith.addf %27, %29 : vector<48x96xf32>
    %c0_15 = arith.constant 0 : index
    %c0_16 = arith.constant 0 : index
    %31 = vector.load %arg9[%c0_15, %c0_16] : memref<48x96xf32, #tpu.memory_space<vmem>>, vector<48x96xf32>
    tpu.vector_store %arg9[%c0_15, %c0_16], %30 {strides = array<i32>} : memref<48x96xf32, #tpu.memory_space<vmem>>, vector<48x96xf32>,
    %c0_i32_17 = arith.constant 0 : i32
    %32 = arith.cmpi eq, %arg2, %c0_i32_17 : i32
    %33 = arith.extui %32 : i1 to i32
    %c0_i32_18 = arith.constant 0 : i32
    %34 = arith.cmpi ne, %33, %c0_i32_18 : i32
    scf.if %34 {
      %c0_19 = arith.constant 0 : index
      %c0_20 = arith.constant 0 : index
      %35 = vector.load %arg9[%c0_19, %c0_20] : memref<48x96xf32, #tpu.memory_space<vmem>>, vector<48x96xf32>
      %c0_21 = arith.constant 0 : index
      %c0_22 = arith.constant 0 : index
      %36 = vector.load %arg7[%c0_21, %c0_22] : memref<1x96xf32, #tpu.memory_space<vmem>>, vector<1x96xf32>
      %37 = vector.broadcast %36 : vector<1x96xf32> to vector<48x96xf32>
      %38 = arith.addf %35, %37 : vector<48x96xf32>
      %c0_23 = arith.constant 0 : index
      %c0_24 = arith.constant 0 : index
      %39 = vector.load %arg8[%c0_23, %c0_24] : memref<48x96xf32, #tpu.memory_space<vmem>>, vector<48x96xf32>
      tpu.vector_store %arg8[%c0_23, %c0_24], %38 {strides = array<i32>} : memref<48x96xf32, #tpu.memory_space<vmem>>, vector<48x96xf32>,
    } else {
    }
    return
  }
  func.func @transform_0(%arg0: i32, %arg1: i32, %arg2: i32) -> (i32, i32) {
    %c0_i32 = arith.constant 0 : i32
    return %arg0, %arg2 : i32, i32
  }
  func.func @transform_1(%arg0: i32, %arg1: i32, %arg2: i32) -> (i32, i32) {
    %c0_i32 = arith.constant 0 : i32
    return %arg2, %arg1 : i32, i32
  }
  func.func @transform_2(%arg0: i32, %arg1: i32, %arg2: i32) -> (i32, i32) {
    %c0_i32 = arith.constant 0 : i32
    %c0_i32_0 = arith.constant 0 : i32
    return %c0_i32, %arg2 : i32, i32
  }
  func.func @transform_3(%arg0: i32, %arg1: i32, %arg2: i32) -> (i32, i32) {
    %c0_i32 = arith.constant 0 : i32
    %c0_i32_0 = arith.constant 0 : i32
    return %c0_i32, %arg2 : i32, i32
  }
  func.func @transform_4(%arg0: i32, %arg1: i32, %arg2: i32) -> (i32, i32) {
    %c0_i32 = arith.constant 0 : i32
    %c0_i32_0 = arith.constant 0 : i32
    return %c0_i32, %arg1 : i32, i32
  }
  func.func @transform_5(%arg0: i32, %arg1: i32, %arg2: i32) -> (i32, i32) {
    %c0_i32 = arith.constant 0 : i32
    return %arg0, %arg1 : i32, i32
  }
}

module attributes {stable_mosaic.version = 11 : i64} {
  func.func @_attn_kernel(%arg0: i32, %arg1: memref<1x16x96xf32, #tpu.memory_space<vmem>>, %arg2: memref<1x16x32xf32, #tpu.memory_space<vmem>>) attributes {dimension_semantics = [#tpu.dimension_semantics<parallel>], iteration_bounds = array<i64: 3>, scalar_prefetch = 0 : i64, scratch_operands = 0 : i64, tpu.core_type = #tpu.core_type<tc>, window_params = [{transform_indices = @transform_0, window_bounds = array<i64: 1, 16, 96>}, {transform_indices = @transform_1, window_bounds = array<i64: 1, 16, 32>}]} {
    %0 = tpu.iota {dimensions = array<i32: 0>} : vector<16x16xi32>
    %1 = tpu.iota {dimensions = array<i32: 1>} : vector<16x16xi32>
    %2 = arith.cmpi sle, %1, %0 : vector<16x16xi32>
    %cst = arith.constant 0.000000e+00 : f32
    %cst_0 = arith.constant -1.000000e+30 : f32
    %3 = vector.broadcast %cst : f32 to vector<16x16xf32>
    %4 = vector.broadcast %cst_0 : f32 to vector<16x16xf32>
    %5 = arith.select %2, %3, %4 : vector<16x16xi1>, vector<16x16xf32>
    %c0 = arith.constant 0 : index
    %c0_1 = arith.constant 0 : index
    %c0_2 = arith.constant 0 : index
    %6 = vector.load %arg1[%c0, %c0_1, %c0_2] : memref<1x16x96xf32, #tpu.memory_space<vmem>>, vector<1x16x8xf32>
    %7 = vector.shape_cast %6 : vector<1x16x8xf32> to vector<16x8xf32>
    %8 = arith.truncf %7 : vector<16x8xf32> to vector<16x8xbf16>
    %c0_3 = arith.constant 0 : index
    %c0_4 = arith.constant 0 : index
    %c32 = arith.constant 32 : index
    %9 = vector.load %arg1[%c0_3, %c0_4, %c32] : memref<1x16x96xf32, #tpu.memory_space<vmem>>, vector<1x16x8xf32>
    %10 = vector.shape_cast %9 : vector<1x16x8xf32> to vector<16x8xf32>
    %11 = arith.truncf %10 : vector<16x8xf32> to vector<16x8xbf16>
    %c0_5 = arith.constant 0 : index
    %c0_6 = arith.constant 0 : index
    %c64 = arith.constant 64 : index
    %12 = vector.load %arg1[%c0_5, %c0_6, %c64] : memref<1x16x96xf32, #tpu.memory_space<vmem>>, vector<1x16x8xf32>
    %13 = vector.shape_cast %12 : vector<1x16x8xf32> to vector<16x8xf32>
    %14 = arith.truncf %13 : vector<16x8xf32> to vector<16x8xbf16>
    %cst_7 = arith.constant dense<0.000000e+00> : vector<16x16xf32>
    %15 = tpu.matmul %8, %11, %cst_7 {dimension_numbers = #tpu.dot_dimension_numbers<[1], [1], [0], [0], [0, 0, 1, 0], [], []>} : vector<16x8xbf16>, vector<16x8xbf16>, vector<16x16xf32> -> vector<16x16xf32>
    %cst_8 = arith.constant 0.353553385 : f32
    %16 = vector.broadcast %cst_8 : f32 to vector<16x16xf32>
    %17 = arith.mulf %15, %16 : vector<16x16xf32>
    %18 = arith.addf %17, %5 : vector<16x16xf32>
    %cst_9 = arith.constant dense<0xFF800000> : vector<16xf32>
    %19 = vector.multi_reduction <maximumf>, %18, %cst_9 [1] : vector<16x16xf32> to vector<16xf32>
    %20 = vector.shape_cast %19 : vector<16xf32> to vector<16x1xf32>
    %21 = vector.broadcast %20 : vector<16x1xf32> to vector<16x16xf32>
    %22 = arith.subf %18, %21 : vector<16x16xf32>
    %23 = math.exp %22 : vector<16x16xf32>
    %cst_10 = arith.constant dense<0.000000e+00> : vector<16xf32>
    %24 = vector.multi_reduction <add>, %23, %cst_10 [1] : vector<16x16xf32> to vector<16xf32>
    %25 = vector.shape_cast %24 : vector<16xf32> to vector<16x1xf32>
    %26 = tpu.reciprocal %25 {approx = true} : vector<16x1xf32> -> vector<16x1xf32>
    %27 = vector.broadcast %26 : vector<16x1xf32> to vector<16x16xf32>
    %28 = arith.mulf %23, %27 : vector<16x16xf32>
    %29 = arith.truncf %28 : vector<16x16xf32> to vector<16x16xbf16>
    %cst_11 = arith.constant dense<0.000000e+00> : vector<16x8xf32>
    %30 = tpu.matmul %29, %14, %cst_11 {dimension_numbers = #tpu.dot_dimension_numbers<[1], [0], [0], [1], [0, 0, 1, 1], [], []>} : vector<16x16xbf16>, vector<16x8xbf16>, vector<16x8xf32> -> vector<16x8xf32>
    %c0_12 = arith.constant 0 : index
    %c0_13 = arith.constant 0 : index
    %c0_14 = arith.constant 0 : index
    %31 = vector.load %arg2[%c0_12, %c0_13, %c0_14] : memref<1x16x32xf32, #tpu.memory_space<vmem>>, vector<1x16x8xf32>
    %32 = vector.shape_cast %31 : vector<1x16x8xf32> to vector<16x8xf32>
    %33 = vector.shape_cast %30 : vector<16x8xf32> to vector<1x16x8xf32>
    tpu.vector_store %arg2[%c0_12, %c0_13, %c0_14], %33 {strides = array<i32>} : memref<1x16x32xf32, #tpu.memory_space<vmem>>, vector<1x16x8xf32>,
    %c0_15 = arith.constant 0 : index
    %c0_16 = arith.constant 0 : index
    %c8 = arith.constant 8 : index
    %34 = vector.load %arg1[%c0_15, %c0_16, %c8] : memref<1x16x96xf32, #tpu.memory_space<vmem>>, vector<1x16x8xf32>
    %35 = vector.shape_cast %34 : vector<1x16x8xf32> to vector<16x8xf32>
    %36 = arith.truncf %35 : vector<16x8xf32> to vector<16x8xbf16>
    %c0_17 = arith.constant 0 : index
    %c0_18 = arith.constant 0 : index
    %c40 = arith.constant 40 : index
    %37 = vector.load %arg1[%c0_17, %c0_18, %c40] : memref<1x16x96xf32, #tpu.memory_space<vmem>>, vector<1x16x8xf32>
    %38 = vector.shape_cast %37 : vector<1x16x8xf32> to vector<16x8xf32>
    %39 = arith.truncf %38 : vector<16x8xf32> to vector<16x8xbf16>
    %c0_19 = arith.constant 0 : index
    %c0_20 = arith.constant 0 : index
    %c72 = arith.constant 72 : index
    %40 = vector.load %arg1[%c0_19, %c0_20, %c72] : memref<1x16x96xf32, #tpu.memory_space<vmem>>, vector<1x16x8xf32>
    %41 = vector.shape_cast %40 : vector<1x16x8xf32> to vector<16x8xf32>
    %42 = arith.truncf %41 : vector<16x8xf32> to vector<16x8xbf16>
    %cst_21 = arith.constant dense<0.000000e+00> : vector<16x16xf32>
    %43 = tpu.matmul %36, %39, %cst_21 {dimension_numbers = #tpu.dot_dimension_numbers<[1], [1], [0], [0], [0, 0, 1, 0], [], []>} : vector<16x8xbf16>, vector<16x8xbf16>, vector<16x16xf32> -> vector<16x16xf32>
    %cst_22 = arith.constant 0.353553385 : f32
    %44 = vector.broadcast %cst_22 : f32 to vector<16x16xf32>
    %45 = arith.mulf %43, %44 : vector<16x16xf32>
    %46 = arith.addf %45, %5 : vector<16x16xf32>
    %cst_23 = arith.constant dense<0xFF800000> : vector<16xf32>
    %47 = vector.multi_reduction <maximumf>, %46, %cst_23 [1] : vector<16x16xf32> to vector<16xf32>
    %48 = vector.shape_cast %47 : vector<16xf32> to vector<16x1xf32>
    %49 = vector.broadcast %48 : vector<16x1xf32> to vector<16x16xf32>
    %50 = arith.subf %46, %49 : vector<16x16xf32>
    %51 = math.exp %50 : vector<16x16xf32>
    %cst_24 = arith.constant dense<0.000000e+00> : vector<16xf32>
    %52 = vector.multi_reduction <add>, %51, %cst_24 [1] : vector<16x16xf32> to vector<16xf32>
    %53 = vector.shape_cast %52 : vector<16xf32> to vector<16x1xf32>
    %54 = tpu.reciprocal %53 {approx = true} : vector<16x1xf32> -> vector<16x1xf32>
    %55 = vector.broadcast %54 : vector<16x1xf32> to vector<16x16xf32>
    %56 = arith.mulf %51, %55 : vector<16x16xf32>
    %57 = arith.truncf %56 : vector<16x16xf32> to vector<16x16xbf16>
    %cst_25 = arith.constant dense<0.000000e+00> : vector<16x8xf32>
    %58 = tpu.matmul %57, %42, %cst_25 {dimension_numbers = #tpu.dot_dimension_numbers<[1], [0], [0], [1], [0, 0, 1, 1], [], []>} : vector<16x16xbf16>, vector<16x8xbf16>, vector<16x8xf32> -> vector<16x8xf32>
    %c0_26 = arith.constant 0 : index
    %c0_27 = arith.constant 0 : index
    %c8_28 = arith.constant 8 : index
    %59 = vector.load %arg2[%c0_26, %c0_27, %c8_28] : memref<1x16x32xf32, #tpu.memory_space<vmem>>, vector<1x16x8xf32>
    %60 = vector.shape_cast %59 : vector<1x16x8xf32> to vector<16x8xf32>
    %61 = vector.shape_cast %58 : vector<16x8xf32> to vector<1x16x8xf32>
    tpu.vector_store %arg2[%c0_26, %c0_27, %c8_28], %61 {strides = array<i32>} : memref<1x16x32xf32, #tpu.memory_space<vmem>>, vector<1x16x8xf32>,
    %c0_29 = arith.constant 0 : index
    %c0_30 = arith.constant 0 : index
    %c16 = arith.constant 16 : index
    %62 = vector.load %arg1[%c0_29, %c0_30, %c16] : memref<1x16x96xf32, #tpu.memory_space<vmem>>, vector<1x16x8xf32>
    %63 = vector.shape_cast %62 : vector<1x16x8xf32> to vector<16x8xf32>
    %64 = arith.truncf %63 : vector<16x8xf32> to vector<16x8xbf16>
    %c0_31 = arith.constant 0 : index
    %c0_32 = arith.constant 0 : index
    %c48 = arith.constant 48 : index
    %65 = vector.load %arg1[%c0_31, %c0_32, %c48] : memref<1x16x96xf32, #tpu.memory_space<vmem>>, vector<1x16x8xf32>
    %66 = vector.shape_cast %65 : vector<1x16x8xf32> to vector<16x8xf32>
    %67 = arith.truncf %66 : vector<16x8xf32> to vector<16x8xbf16>
    %c0_33 = arith.constant 0 : index
    %c0_34 = arith.constant 0 : index
    %c80 = arith.constant 80 : index
    %68 = vector.load %arg1[%c0_33, %c0_34, %c80] : memref<1x16x96xf32, #tpu.memory_space<vmem>>, vector<1x16x8xf32>
    %69 = vector.shape_cast %68 : vector<1x16x8xf32> to vector<16x8xf32>
    %70 = arith.truncf %69 : vector<16x8xf32> to vector<16x8xbf16>
    %cst_35 = arith.constant dense<0.000000e+00> : vector<16x16xf32>
    %71 = tpu.matmul %64, %67, %cst_35 {dimension_numbers = #tpu.dot_dimension_numbers<[1], [1], [0], [0], [0, 0, 1, 0], [], []>} : vector<16x8xbf16>, vector<16x8xbf16>, vector<16x16xf32> -> vector<16x16xf32>
    %cst_36 = arith.constant 0.353553385 : f32
    %72 = vector.broadcast %cst_36 : f32 to vector<16x16xf32>
    %73 = arith.mulf %71, %72 : vector<16x16xf32>
    %74 = arith.addf %73, %5 : vector<16x16xf32>
    %cst_37 = arith.constant dense<0xFF800000> : vector<16xf32>
    %75 = vector.multi_reduction <maximumf>, %74, %cst_37 [1] : vector<16x16xf32> to vector<16xf32>
    %76 = vector.shape_cast %75 : vector<16xf32> to vector<16x1xf32>
    %77 = vector.broadcast %76 : vector<16x1xf32> to vector<16x16xf32>
    %78 = arith.subf %74, %77 : vector<16x16xf32>
    %79 = math.exp %78 : vector<16x16xf32>
    %cst_38 = arith.constant dense<0.000000e+00> : vector<16xf32>
    %80 = vector.multi_reduction <add>, %79, %cst_38 [1] : vector<16x16xf32> to vector<16xf32>
    %81 = vector.shape_cast %80 : vector<16xf32> to vector<16x1xf32>
    %82 = tpu.reciprocal %81 {approx = true} : vector<16x1xf32> -> vector<16x1xf32>
    %83 = vector.broadcast %82 : vector<16x1xf32> to vector<16x16xf32>
    %84 = arith.mulf %79, %83 : vector<16x16xf32>
    %85 = arith.truncf %84 : vector<16x16xf32> to vector<16x16xbf16>
    %cst_39 = arith.constant dense<0.000000e+00> : vector<16x8xf32>
    %86 = tpu.matmul %85, %70, %cst_39 {dimension_numbers = #tpu.dot_dimension_numbers<[1], [0], [0], [1], [0, 0, 1, 1], [], []>} : vector<16x16xbf16>, vector<16x8xbf16>, vector<16x8xf32> -> vector<16x8xf32>
    %c0_40 = arith.constant 0 : index
    %c0_41 = arith.constant 0 : index
    %c16_42 = arith.constant 16 : index
    %87 = vector.load %arg2[%c0_40, %c0_41, %c16_42] : memref<1x16x32xf32, #tpu.memory_space<vmem>>, vector<1x16x8xf32>
    %88 = vector.shape_cast %87 : vector<1x16x8xf32> to vector<16x8xf32>
    %89 = vector.shape_cast %86 : vector<16x8xf32> to vector<1x16x8xf32>
    tpu.vector_store %arg2[%c0_40, %c0_41, %c16_42], %89 {strides = array<i32>} : memref<1x16x32xf32, #tpu.memory_space<vmem>>, vector<1x16x8xf32>,
    %c0_43 = arith.constant 0 : index
    %c0_44 = arith.constant 0 : index
    %c24 = arith.constant 24 : index
    %90 = vector.load %arg1[%c0_43, %c0_44, %c24] : memref<1x16x96xf32, #tpu.memory_space<vmem>>, vector<1x16x8xf32>
    %91 = vector.shape_cast %90 : vector<1x16x8xf32> to vector<16x8xf32>
    %92 = arith.truncf %91 : vector<16x8xf32> to vector<16x8xbf16>
    %c0_45 = arith.constant 0 : index
    %c0_46 = arith.constant 0 : index
    %c56 = arith.constant 56 : index
    %93 = vector.load %arg1[%c0_45, %c0_46, %c56] : memref<1x16x96xf32, #tpu.memory_space<vmem>>, vector<1x16x8xf32>
    %94 = vector.shape_cast %93 : vector<1x16x8xf32> to vector<16x8xf32>
    %95 = arith.truncf %94 : vector<16x8xf32> to vector<16x8xbf16>
    %c0_47 = arith.constant 0 : index
    %c0_48 = arith.constant 0 : index
    %c88 = arith.constant 88 : index
    %96 = vector.load %arg1[%c0_47, %c0_48, %c88] : memref<1x16x96xf32, #tpu.memory_space<vmem>>, vector<1x16x8xf32>
    %97 = vector.shape_cast %96 : vector<1x16x8xf32> to vector<16x8xf32>
    %98 = arith.truncf %97 : vector<16x8xf32> to vector<16x8xbf16>
    %cst_49 = arith.constant dense<0.000000e+00> : vector<16x16xf32>
    %99 = tpu.matmul %92, %95, %cst_49 {dimension_numbers = #tpu.dot_dimension_numbers<[1], [1], [0], [0], [0, 0, 1, 0], [], []>} : vector<16x8xbf16>, vector<16x8xbf16>, vector<16x16xf32> -> vector<16x16xf32>
    %cst_50 = arith.constant 0.353553385 : f32
    %100 = vector.broadcast %cst_50 : f32 to vector<16x16xf32>
    %101 = arith.mulf %99, %100 : vector<16x16xf32>
    %102 = arith.addf %101, %5 : vector<16x16xf32>
    %cst_51 = arith.constant dense<0xFF800000> : vector<16xf32>
    %103 = vector.multi_reduction <maximumf>, %102, %cst_51 [1] : vector<16x16xf32> to vector<16xf32>
    %104 = vector.shape_cast %103 : vector<16xf32> to vector<16x1xf32>
    %105 = vector.broadcast %104 : vector<16x1xf32> to vector<16x16xf32>
    %106 = arith.subf %102, %105 : vector<16x16xf32>
    %107 = math.exp %106 : vector<16x16xf32>
    %cst_52 = arith.constant dense<0.000000e+00> : vector<16xf32>
    %108 = vector.multi_reduction <add>, %107, %cst_52 [1] : vector<16x16xf32> to vector<16xf32>
    %109 = vector.shape_cast %108 : vector<16xf32> to vector<16x1xf32>
    %110 = tpu.reciprocal %109 {approx = true} : vector<16x1xf32> -> vector<16x1xf32>
    %111 = vector.broadcast %110 : vector<16x1xf32> to vector<16x16xf32>
    %112 = arith.mulf %107, %111 : vector<16x16xf32>
    %113 = arith.truncf %112 : vector<16x16xf32> to vector<16x16xbf16>
    %cst_53 = arith.constant dense<0.000000e+00> : vector<16x8xf32>
    %114 = tpu.matmul %113, %98, %cst_53 {dimension_numbers = #tpu.dot_dimension_numbers<[1], [0], [0], [1], [0, 0, 1, 1], [], []>} : vector<16x16xbf16>, vector<16x8xbf16>, vector<16x8xf32> -> vector<16x8xf32>
    %c0_54 = arith.constant 0 : index
    %c0_55 = arith.constant 0 : index
    %c24_56 = arith.constant 24 : index
    %115 = vector.load %arg2[%c0_54, %c0_55, %c24_56] : memref<1x16x32xf32, #tpu.memory_space<vmem>>, vector<1x16x8xf32>
    %116 = vector.shape_cast %115 : vector<1x16x8xf32> to vector<16x8xf32>
    %117 = vector.shape_cast %114 : vector<16x8xf32> to vector<1x16x8xf32>
    tpu.vector_store %arg2[%c0_54, %c0_55, %c24_56], %117 {strides = array<i32>} : memref<1x16x32xf32, #tpu.memory_space<vmem>>, vector<1x16x8xf32>,
    return
  }
  func.func @transform_0(%arg0: i32) -> (i32, i32, i32) {
    %c0_i32 = arith.constant 0 : i32
    %c0_i32_0 = arith.constant 0 : i32
    %c0_i32_1 = arith.constant 0 : i32
    return %arg0, %c0_i32, %c0_i32_0 : i32, i32, i32
  }
  func.func @transform_1(%arg0: i32) -> (i32, i32, i32) {
    %c0_i32 = arith.constant 0 : i32
    %c0_i32_0 = arith.constant 0 : i32
    %c0_i32_1 = arith.constant 0 : i32
    return %arg0, %c0_i32, %c0_i32_0 : i32, i32, i32
  }
}

module attributes {stable_mosaic.version = 11 : i64} {
  func.func @_linear_kernel(%arg0: i32, %arg1: i32, %arg2: i32, %arg3: memref<48x32xf32, #tpu.memory_space<vmem>>, %arg4: memref<32x32xbf16, #tpu.memory_space<vmem>>, %arg5: memref<1x32xf32, #tpu.memory_space<vmem>>, %arg6: memref<48x32xf32, #tpu.memory_space<vmem>>, %arg7: memref<48x32xf32, #tpu.memory_space<vmem>>, %arg8: memref<48x32xf32, #tpu.memory_space<vmem>>) attributes {dimension_semantics = [#tpu.dimension_semantics<parallel>, #tpu.dimension_semantics<parallel>, #tpu.dimension_semantics<arbitrary>], iteration_bounds = array<i64: 1, 1, 1>, scalar_prefetch = 0 : i64, scratch_operands = 1 : i64, tpu.core_type = #tpu.core_type<tc>, window_params = [{transform_indices = @transform_0, window_bounds = array<i64: 48, 32>}, {transform_indices = @transform_1, window_bounds = array<i64: 32, 32>}, {transform_indices = @transform_2, window_bounds = array<i64: 1, 32>}, {transform_indices = @transform_3, window_bounds = array<i64: 48, 32>}, {transform_indices = @transform_4, window_bounds = array<i64: 48, 32>}]} {
    %c0_i32 = arith.constant 0 : i32
    %0 = arith.cmpi eq, %arg2, %c0_i32 : i32
    %1 = arith.extui %0 : i1 to i32
    %c0_i32_0 = arith.constant 0 : i32
    %2 = arith.cmpi ne, %1, %c0_i32_0 : i32
    scf.if %2 {
      %cst_10 = arith.constant 0.000000e+00 : f32
      %13 = vector.broadcast %cst_10 : f32 to vector<48x32xf32>
      %c0_11 = arith.constant 0 : index
      %c0_12 = arith.constant 0 : index
      %14 = vector.load %arg8[%c0_11, %c0_12] : memref<48x32xf32, #tpu.memory_space<vmem>>, vector<48x32xf32>
      tpu.vector_store %arg8[%c0_11, %c0_12], %13 {strides = array<i32>} : memref<48x32xf32, #tpu.memory_space<vmem>>, vector<48x32xf32>,
    } else {
    }
    %c0 = arith.constant 0 : index
    %c0_1 = arith.constant 0 : index
    %3 = vector.load %arg3[%c0, %c0_1] : memref<48x32xf32, #tpu.memory_space<vmem>>, vector<48x32xf32>
    %4 = arith.truncf %3 : vector<48x32xf32> to vector<48x32xbf16>
    %c0_2 = arith.constant 0 : index
    %c0_3 = arith.constant 0 : index
    %5 = vector.load %arg8[%c0_2, %c0_3] : memref<48x32xf32, #tpu.memory_space<vmem>>, vector<48x32xf32>
    %c0_4 = arith.constant 0 : index
    %c0_5 = arith.constant 0 : index
    %6 = vector.load %arg4[%c0_4, %c0_5] : memref<32x32xbf16, #tpu.memory_space<vmem>>, vector<32x32xbf16>
    %cst = arith.constant dense<0.000000e+00> : vector<48x32xf32>
    %7 = tpu.matmul %4, %6, %cst {dimension_numbers = #tpu.dot_dimension_numbers<[1], [0], [0], [1], [0, 0, 1, 1], [], []>} : vector<48x32xbf16>, vector<32x32xbf16>, vector<48x32xf32> -> vector<48x32xf32>
    %8 = arith.addf %5, %7 : vector<48x32xf32>
    %c0_6 = arith.constant 0 : index
    %c0_7 = arith.constant 0 : index
    %9 = vector.load %arg8[%c0_6, %c0_7] : memref<48x32xf32, #tpu.memory_space<vmem>>, vector<48x32xf32>
    tpu.vector_store %arg8[%c0_6, %c0_7], %8 {strides = array<i32>} : memref<48x32xf32, #tpu.memory_space<vmem>>, vector<48x32xf32>,
    %c0_i32_8 = arith.constant 0 : i32
    %10 = arith.cmpi eq, %arg2, %c0_i32_8 : i32
    %11 = arith.extui %10 : i1 to i32
    %c0_i32_9 = arith.constant 0 : i32
    %12 = arith.cmpi ne, %11, %c0_i32_9 : i32
    scf.if %12 {
      %c0_10 = arith.constant 0 : index
      %c0_11 = arith.constant 0 : index
      %13 = vector.load %arg8[%c0_10, %c0_11] : memref<48x32xf32, #tpu.memory_space<vmem>>, vector<48x32xf32>
      %c0_12 = arith.constant 0 : index
      %c0_13 = arith.constant 0 : index
      %14 = vector.load %arg5[%c0_12, %c0_13] : memref<1x32xf32, #tpu.memory_space<vmem>>, vector<1x32xf32>
      %15 = vector.broadcast %14 : vector<1x32xf32> to vector<48x32xf32>
      %16 = arith.addf %13, %15 : vector<48x32xf32>
      %c0_14 = arith.constant 0 : index
      %c0_15 = arith.constant 0 : index
      %17 = vector.load %arg6[%c0_14, %c0_15] : memref<48x32xf32, #tpu.memory_space<vmem>>, vector<48x32xf32>
      %18 = arith.addf %16, %17 : vector<48x32xf32>
      %c0_16 = arith.constant 0 : index
      %c0_17 = arith.constant 0 : index
      %19 = vector.load %arg7[%c0_16, %c0_17] : memref<48x32xf32, #tpu.memory_space<vmem>>, vector<48x32xf32>
      tpu.vector_store %arg7[%c0_16, %c0_17], %18 {strides = array<i32>} : memref<48x32xf32, #tpu.memory_space<vmem>>, vector<48x32xf32>,
    } else {
    }
    return
  }
  func.func @transform_0(%arg0: i32, %arg1: i32, %arg2: i32) -> (i32, i32) {
    %c0_i32 = arith.constant 0 : i32
    return %arg0, %arg2 : i32, i32
  }
  func.func @transform_1(%arg0: i32, %arg1: i32, %arg2: i32) -> (i32, i32) {
    %c0_i32 = arith.constant 0 : i32
    return %arg2, %arg1 : i32, i32
  }
  func.func @transform_2(%arg0: i32, %arg1: i32, %arg2: i32) -> (i32, i32) {
    %c0_i32 = arith.constant 0 : i32
    %c0_i32_0 = arith.constant 0 : i32
    return %c0_i32, %arg1 : i32, i32
  }
  func.func @transform_3(%arg0: i32, %arg1: i32, %arg2: i32) -> (i32, i32) {
    %c0_i32 = arith.constant 0 : i32
    return %arg0, %arg1 : i32, i32
  }
  func.func @transform_4(%arg0: i32, %arg1: i32, %arg2: i32) -> (i32, i32) {
    %c0_i32 = arith.constant 0 : i32
    return %arg0, %arg1 : i32, i32
  }
}

module attributes {stable_mosaic.version = 11 : i64} {
  func.func @_linear_kernel(%arg0: i32, %arg1: i32, %arg2: i32, %arg3: memref<48x32xf32, #tpu.memory_space<vmem>>, %arg4: memref<32x128xbf16, #tpu.memory_space<vmem>>, %arg5: memref<1x32xf32, #tpu.memory_space<vmem>>, %arg6: memref<1x32xf32, #tpu.memory_space<vmem>>, %arg7: memref<1x128xf32, #tpu.memory_space<vmem>>, %arg8: memref<48x128xf32, #tpu.memory_space<vmem>>, %arg9: memref<48x128xf32, #tpu.memory_space<vmem>>) attributes {dimension_semantics = [#tpu.dimension_semantics<parallel>, #tpu.dimension_semantics<parallel>, #tpu.dimension_semantics<arbitrary>], iteration_bounds = array<i64: 1, 1, 1>, scalar_prefetch = 0 : i64, scratch_operands = 1 : i64, tpu.core_type = #tpu.core_type<tc>, window_params = [{transform_indices = @transform_0, window_bounds = array<i64: 48, 32>}, {transform_indices = @transform_1, window_bounds = array<i64: 32, 128>}, {transform_indices = @transform_2, window_bounds = array<i64: 1, 32>}, {transform_indices = @transform_3, window_bounds = array<i64: 1, 32>}, {transform_indices = @transform_4, window_bounds = array<i64: 1, 128>}, {transform_indices = @transform_5, window_bounds = array<i64: 48, 128>}]} {
    %c0_i32 = arith.constant 0 : i32
    %0 = arith.cmpi eq, %arg2, %c0_i32 : i32
    %1 = arith.extui %0 : i1 to i32
    %c0_i32_0 = arith.constant 0 : i32
    %2 = arith.cmpi ne, %1, %c0_i32_0 : i32
    scf.if %2 {
      %cst_19 = arith.constant 0.000000e+00 : f32
      %35 = vector.broadcast %cst_19 : f32 to vector<48x128xf32>
      %c0_20 = arith.constant 0 : index
      %c0_21 = arith.constant 0 : index
      %36 = vector.load %arg9[%c0_20, %c0_21] : memref<48x128xf32, #tpu.memory_space<vmem>>, vector<48x128xf32>
      tpu.vector_store %arg9[%c0_20, %c0_21], %35 {strides = array<i32>} : memref<48x128xf32, #tpu.memory_space<vmem>>, vector<48x128xf32>,
    } else {
    }
    %c0 = arith.constant 0 : index
    %c0_1 = arith.constant 0 : index
    %3 = vector.load %arg3[%c0, %c0_1] : memref<48x32xf32, #tpu.memory_space<vmem>>, vector<48x32xf32>
    %cst = arith.constant dense<0.000000e+00> : vector<48xf32>
    %4 = vector.multi_reduction <add>, %3, %cst [1] : vector<48x32xf32> to vector<48xf32>
    %5 = vector.shape_cast %4 : vector<48xf32> to vector<48x1xf32>
    %cst_2 = arith.constant 3.200000e+01 : f32
    %6 = vector.broadcast %cst_2 : f32 to vector<48x1xf32>
    %7 = arith.divf %5, %6 : vector<48x1xf32>
    %8 = vector.broadcast %7 : vector<48x1xf32> to vector<48x32xf32>
    %9 = arith.subf %3, %8 : vector<48x32xf32>
    %10 = arith.mulf %9, %9 : vector<48x32xf32>
    %cst_3 = arith.constant dense<0.000000e+00> : vector<48xf32>
    %11 = vector.multi_reduction <add>, %10, %cst_3 [1] : vector<48x32xf32> to vector<48xf32>
    %12 = vector.shape_cast %11 : vector<48xf32> to vector<48x1xf32>
    %cst_4 = arith.constant 3.200000e+01 : f32
    %13 = vector.broadcast %cst_4 : f32 to vector<48x1xf32>
    %14 = arith.divf %12, %13 : vector<48x1xf32>
    %cst_5 = arith.constant 9.99999974E-6 : f32
    %15 = vector.broadcast %cst_5 : f32 to vector<48x1xf32>
    %16 = arith.addf %14, %15 : vector<48x1xf32>
    %17 = math.rsqrt %16 : vector<48x1xf32>
    %18 = vector.broadcast %17 : vector<48x1xf32> to vector<48x32xf32>
    %19 = arith.mulf %9, %18 : vector<48x32xf32>
    %c0_6 = arith.constant 0 : index
    %c0_7 = arith.constant 0 : index
    %20 = vector.load %arg5[%c0_6, %c0_7] : memref<1x32xf32, #tpu.memory_space<vmem>>, vector<1x32xf32>
    %21 = vector.broadcast %20 : vector<1x32xf32> to vector<48x32xf32>
    %22 = arith.mulf %19, %21 : vector<48x32xf32>
    %c0_8 = arith.constant 0 : index
    %c0_9 = arith.constant 0 : index
    %23 = vector.load %arg6[%c0_8, %c0_9] : memref<1x32xf32, #tpu.memory_space<vmem>>, vector<1x32xf32>
    %24 = vector.broadcast %23 : vector<1x32xf32> to vector<48x32xf32>
    %25 = arith.addf %22, %24 : vector<48x32xf32>
    %26 = arith.truncf %25 : vector<48x32xf32> to vector<48x32xbf16>
    %c0_10 = arith.constant 0 : index
    %c0_11 = arith.constant 0 : index
    %27 = vector.load %arg9[%c0_10, %c0_11] : memref<48x128xf32, #tpu.memory_space<vmem>>, vector<48x128xf32>
    %c0_12 = arith.constant 0 : index
    %c0_13 = arith.constant 0 : index
    %28 = vector.load %arg4[%c0_12, %c0_13] : memref<32x128xbf16, #tpu.memory_space<vmem>>, vector<32x128xbf16>
    %cst_14 = arith.constant dense<0.000000e+00> : vector<48x128xf32>
    %29 = tpu.matmul %26, %28, %cst_14 {dimension_numbers = #tpu.dot_dimension_numbers<[1], [0], [0], [1], [0, 0, 1, 1], [], []>} : vector<48x32xbf16>, vector<32x128xbf16>, vector<48x128xf32> -> vector<48x128xf32>
    %30 = arith.addf %27, %29 : vector<48x128xf32>
    %c0_15 = arith.constant 0 : index
    %c0_16 = arith.constant 0 : index
    %31 = vector.load %arg9[%c0_15, %c0_16] : memref<48x128xf32, #tpu.memory_space<vmem>>, vector<48x128xf32>
    tpu.vector_store %arg9[%c0_15, %c0_16], %30 {strides = array<i32>} : memref<48x128xf32, #tpu.memory_space<vmem>>, vector<48x128xf32>,
    %c0_i32_17 = arith.constant 0 : i32
    %32 = arith.cmpi eq, %arg2, %c0_i32_17 : i32
    %33 = arith.extui %32 : i1 to i32
    %c0_i32_18 = arith.constant 0 : i32
    %34 = arith.cmpi ne, %33, %c0_i32_18 : i32
    scf.if %34 {
      %c0_19 = arith.constant 0 : index
      %c0_20 = arith.constant 0 : index
      %35 = vector.load %arg9[%c0_19, %c0_20] : memref<48x128xf32, #tpu.memory_space<vmem>>, vector<48x128xf32>
      %c0_21 = arith.constant 0 : index
      %c0_22 = arith.constant 0 : index
      %36 = vector.load %arg7[%c0_21, %c0_22] : memref<1x128xf32, #tpu.memory_space<vmem>>, vector<1x128xf32>
      %37 = vector.broadcast %36 : vector<1x128xf32> to vector<48x128xf32>
      %38 = arith.addf %35, %37 : vector<48x128xf32>
      %cst_23 = arith.constant 1.702000e+00 : f32
      %39 = vector.broadcast %cst_23 : f32 to vector<48x128xf32>
      %40 = arith.mulf %39, %38 : vector<48x128xf32>
      %41 = arith.negf %40 : vector<48x128xf32>
      %42 = math.exp %41 : vector<48x128xf32>
      %cst_24 = arith.constant 1.000000e+00 : f32
      %43 = vector.broadcast %cst_24 : f32 to vector<48x128xf32>
      %44 = arith.addf %43, %42 : vector<48x128xf32>
      %45 = arith.divf %43, %44 : vector<48x128xf32>
      %46 = arith.mulf %38, %45 : vector<48x128xf32>
      %c0_25 = arith.constant 0 : index
      %c0_26 = arith.constant 0 : index
      %47 = vector.load %arg8[%c0_25, %c0_26] : memref<48x128xf32, #tpu.memory_space<vmem>>, vector<48x128xf32>
      tpu.vector_store %arg8[%c0_25, %c0_26], %46 {strides = array<i32>} : memref<48x128xf32, #tpu.memory_space<vmem>>, vector<48x128xf32>,
    } else {
    }
    return
  }
  func.func @transform_0(%arg0: i32, %arg1: i32, %arg2: i32) -> (i32, i32) {
    %c0_i32 = arith.constant 0 : i32
    return %arg0, %arg2 : i32, i32
  }
  func.func @transform_1(%arg0: i32, %arg1: i32, %arg2: i32) -> (i32, i32) {
    %c0_i32 = arith.constant 0 : i32
    return %arg2, %arg1 : i32, i32
  }
  func.func @transform_2(%arg0: i32, %arg1: i32, %arg2: i32) -> (i32, i32) {
    %c0_i32 = arith.constant 0 : i32
    %c0_i32_0 = arith.constant 0 : i32
    return %c0_i32, %arg2 : i32, i32
  }
  func.func @transform_3(%arg0: i32, %arg1: i32, %arg2: i32) -> (i32, i32) {
    %c0_i32 = arith.constant 0 : i32
    %c0_i32_0 = arith.constant 0 : i32
    return %c0_i32, %arg2 : i32, i32
  }
  func.func @transform_4(%arg0: i32, %arg1: i32, %arg2: i32) -> (i32, i32) {
    %c0_i32 = arith.constant 0 : i32
    %c0_i32_0 = arith.constant 0 : i32
    return %c0_i32, %arg1 : i32, i32
  }
  func.func @transform_5(%arg0: i32, %arg1: i32, %arg2: i32) -> (i32, i32) {
    %c0_i32 = arith.constant 0 : i32
    return %arg0, %arg1 : i32, i32
  }
}

module attributes {stable_mosaic.version = 11 : i64} {
  func.func @_linear_kernel(%arg0: i32, %arg1: i32, %arg2: i32, %arg3: memref<48x128xf32, #tpu.memory_space<vmem>>, %arg4: memref<128x32xbf16, #tpu.memory_space<vmem>>, %arg5: memref<1x32xf32, #tpu.memory_space<vmem>>, %arg6: memref<48x32xf32, #tpu.memory_space<vmem>>, %arg7: memref<48x32xf32, #tpu.memory_space<vmem>>, %arg8: memref<48x32xf32, #tpu.memory_space<vmem>>) attributes {dimension_semantics = [#tpu.dimension_semantics<parallel>, #tpu.dimension_semantics<parallel>, #tpu.dimension_semantics<arbitrary>], iteration_bounds = array<i64: 1, 1, 1>, scalar_prefetch = 0 : i64, scratch_operands = 1 : i64, tpu.core_type = #tpu.core_type<tc>, window_params = [{transform_indices = @transform_0, window_bounds = array<i64: 48, 128>}, {transform_indices = @transform_1, window_bounds = array<i64: 128, 32>}, {transform_indices = @transform_2, window_bounds = array<i64: 1, 32>}, {transform_indices = @transform_3, window_bounds = array<i64: 48, 32>}, {transform_indices = @transform_4, window_bounds = array<i64: 48, 32>}]} {
    %c0_i32 = arith.constant 0 : i32
    %0 = arith.cmpi eq, %arg2, %c0_i32 : i32
    %1 = arith.extui %0 : i1 to i32
    %c0_i32_0 = arith.constant 0 : i32
    %2 = arith.cmpi ne, %1, %c0_i32_0 : i32
    scf.if %2 {
      %cst_10 = arith.constant 0.000000e+00 : f32
      %13 = vector.broadcast %cst_10 : f32 to vector<48x32xf32>
      %c0_11 = arith.constant 0 : index
      %c0_12 = arith.constant 0 : index
      %14 = vector.load %arg8[%c0_11, %c0_12] : memref<48x32xf32, #tpu.memory_space<vmem>>, vector<48x32xf32>
      tpu.vector_store %arg8[%c0_11, %c0_12], %13 {strides = array<i32>} : memref<48x32xf32, #tpu.memory_space<vmem>>, vector<48x32xf32>,
    } else {
    }
    %c0 = arith.constant 0 : index
    %c0_1 = arith.constant 0 : index
    %3 = vector.load %arg3[%c0, %c0_1] : memref<48x128xf32, #tpu.memory_space<vmem>>, vector<48x128xf32>
    %4 = arith.truncf %3 : vector<48x128xf32> to vector<48x128xbf16>
    %c0_2 = arith.constant 0 : index
    %c0_3 = arith.constant 0 : index
    %5 = vector.load %arg8[%c0_2, %c0_3] : memref<48x32xf32, #tpu.memory_space<vmem>>, vector<48x32xf32>
    %c0_4 = arith.constant 0 : index
    %c0_5 = arith.constant 0 : index
    %6 = vector.load %arg4[%c0_4, %c0_5] : memref<128x32xbf16, #tpu.memory_space<vmem>>, vector<128x32xbf16>
    %cst = arith.constant dense<0.000000e+00> : vector<48x32xf32>
    %7 = tpu.matmul %4, %6, %cst {dimension_numbers = #tpu.dot_dimension_numbers<[1], [0], [0], [1], [0, 0, 1, 1], [], []>} : vector<48x128xbf16>, vector<128x32xbf16>, vector<48x32xf32> -> vector<48x32xf32>
    %8 = arith.addf %5, %7 : vector<48x32xf32>
    %c0_6 = arith.constant 0 : index
    %c0_7 = arith.constant 0 : index
    %9 = vector.load %arg8[%c0_6, %c0_7] : memref<48x32xf32, #tpu.memory_space<vmem>>, vector<48x32xf32>
    tpu.vector_store %arg8[%c0_6, %c0_7], %8 {strides = array<i32>} : memref<48x32xf32, #tpu.memory_space<vmem>>, vector<48x32xf32>,
    %c0_i32_8 = arith.constant 0 : i32
    %10 = arith.cmpi eq, %arg2, %c0_i32_8 : i32
    %11 = arith.extui %10 : i1 to i32
    %c0_i32_9 = arith.constant 0 : i32
    %12 = arith.cmpi ne, %11, %c0_i32_9 : i32
    scf.if %12 {
      %c0_10 = arith.constant 0 : index
      %c0_11 = arith.constant 0 : index
      %13 = vector.load %arg8[%c0_10, %c0_11] : memref<48x32xf32, #tpu.memory_space<vmem>>, vector<48x32xf32>
      %c0_12 = arith.constant 0 : index
      %c0_13 = arith.constant 0 : index
      %14 = vector.load %arg5[%c0_12, %c0_13] : memref<1x32xf32, #tpu.memory_space<vmem>>, vector<1x32xf32>
      %15 = vector.broadcast %14 : vector<1x32xf32> to vector<48x32xf32>
      %16 = arith.addf %13, %15 : vector<48x32xf32>
      %c0_14 = arith.constant 0 : index
      %c0_15 = arith.constant 0 : index
      %17 = vector.load %arg6[%c0_14, %c0_15] : memref<48x32xf32, #tpu.memory_space<vmem>>, vector<48x32xf32>
      %18 = arith.addf %16, %17 : vector<48x32xf32>
      %c0_16 = arith.constant 0 : index
      %c0_17 = arith.constant 0 : index
      %19 = vector.load %arg7[%c0_16, %c0_17] : memref<48x32xf32, #tpu.memory_space<vmem>>, vector<48x32xf32>
      tpu.vector_store %arg7[%c0_16, %c0_17], %18 {strides = array<i32>} : memref<48x32xf32, #tpu.memory_space<vmem>>, vector<48x32xf32>,
    } else {
    }
    return
  }
  func.func @transform_0(%arg0: i32, %arg1: i32, %arg2: i32) -> (i32, i32) {
    %c0_i32 = arith.constant 0 : i32
    return %arg0, %arg2 : i32, i32
  }
  func.func @transform_1(%arg0: i32, %arg1: i32, %arg2: i32) -> (i32, i32) {
    %c0_i32 = arith.constant 0 : i32
    return %arg2, %arg1 : i32, i32
  }
  func.func @transform_2(%arg0: i32, %arg1: i32, %arg2: i32) -> (i32, i32) {
    %c0_i32 = arith.constant 0 : i32
    %c0_i32_0 = arith.constant 0 : i32
    return %c0_i32, %arg1 : i32, i32
  }
  func.func @transform_3(%arg0: i32, %arg1: i32, %arg2: i32) -> (i32, i32) {
    %c0_i32 = arith.constant 0 : i32
    return %arg0, %arg1 : i32, i32
  }
  func.func @transform_4(%arg0: i32, %arg1: i32, %arg2: i32) -> (i32, i32) {
    %c0_i32 = arith.constant 0 : i32
    return %arg0, %arg1 : i32, i32
  }
}

module attributes {stable_mosaic.version = 11 : i64} {
  func.func @_linear_kernel(%arg0: i32, %arg1: i32, %arg2: i32, %arg3: memref<3x32xf32, #tpu.memory_space<vmem>>, %arg4: memref<32x16xbf16, #tpu.memory_space<vmem>>, %arg5: memref<1x32xf32, #tpu.memory_space<vmem>>, %arg6: memref<1x32xf32, #tpu.memory_space<vmem>>, %arg7: memref<3x16xf32, #tpu.memory_space<vmem>>, %arg8: memref<3x16xf32, #tpu.memory_space<vmem>>) attributes {dimension_semantics = [#tpu.dimension_semantics<parallel>, #tpu.dimension_semantics<parallel>, #tpu.dimension_semantics<arbitrary>], iteration_bounds = array<i64: 1, 1, 1>, scalar_prefetch = 0 : i64, scratch_operands = 1 : i64, tpu.core_type = #tpu.core_type<tc>, window_params = [{transform_indices = @transform_0, window_bounds = array<i64: 3, 32>}, {transform_indices = @transform_1, window_bounds = array<i64: 32, 16>}, {transform_indices = @transform_2, window_bounds = array<i64: 1, 32>}, {transform_indices = @transform_3, window_bounds = array<i64: 1, 32>}, {transform_indices = @transform_4, window_bounds = array<i64: 3, 16>}]} {
    %c0_i32 = arith.constant 0 : i32
    %0 = arith.cmpi eq, %arg2, %c0_i32 : i32
    %1 = arith.extui %0 : i1 to i32
    %c0_i32_0 = arith.constant 0 : i32
    %2 = arith.cmpi ne, %1, %c0_i32_0 : i32
    scf.if %2 {
      %cst_19 = arith.constant 0.000000e+00 : f32
      %35 = vector.broadcast %cst_19 : f32 to vector<3x16xf32>
      %c0_20 = arith.constant 0 : index
      %c0_21 = arith.constant 0 : index
      %36 = vector.load %arg8[%c0_20, %c0_21] : memref<3x16xf32, #tpu.memory_space<vmem>>, vector<3x16xf32>
      tpu.vector_store %arg8[%c0_20, %c0_21], %35 {strides = array<i32>} : memref<3x16xf32, #tpu.memory_space<vmem>>, vector<3x16xf32>,
    } else {
    }
    %c0 = arith.constant 0 : index
    %c0_1 = arith.constant 0 : index
    %3 = vector.load %arg3[%c0, %c0_1] : memref<3x32xf32, #tpu.memory_space<vmem>>, vector<3x32xf32>
    %cst = arith.constant dense<0.000000e+00> : vector<3xf32>
    %4 = vector.multi_reduction <add>, %3, %cst [1] : vector<3x32xf32> to vector<3xf32>
    %5 = vector.shape_cast %4 : vector<3xf32> to vector<3x1xf32>
    %cst_2 = arith.constant 3.200000e+01 : f32
    %6 = vector.broadcast %cst_2 : f32 to vector<3x1xf32>
    %7 = arith.divf %5, %6 : vector<3x1xf32>
    %8 = vector.broadcast %7 : vector<3x1xf32> to vector<3x32xf32>
    %9 = arith.subf %3, %8 : vector<3x32xf32>
    %10 = arith.mulf %9, %9 : vector<3x32xf32>
    %cst_3 = arith.constant dense<0.000000e+00> : vector<3xf32>
    %11 = vector.multi_reduction <add>, %10, %cst_3 [1] : vector<3x32xf32> to vector<3xf32>
    %12 = vector.shape_cast %11 : vector<3xf32> to vector<3x1xf32>
    %cst_4 = arith.constant 3.200000e+01 : f32
    %13 = vector.broadcast %cst_4 : f32 to vector<3x1xf32>
    %14 = arith.divf %12, %13 : vector<3x1xf32>
    %cst_5 = arith.constant 9.99999974E-6 : f32
    %15 = vector.broadcast %cst_5 : f32 to vector<3x1xf32>
    %16 = arith.addf %14, %15 : vector<3x1xf32>
    %17 = math.rsqrt %16 : vector<3x1xf32>
    %18 = vector.broadcast %17 : vector<3x1xf32> to vector<3x32xf32>
    %19 = arith.mulf %9, %18 : vector<3x32xf32>
    %c0_6 = arith.constant 0 : index
    %c0_7 = arith.constant 0 : index
    %20 = vector.load %arg5[%c0_6, %c0_7] : memref<1x32xf32, #tpu.memory_space<vmem>>, vector<1x32xf32>
    %21 = vector.broadcast %20 : vector<1x32xf32> to vector<3x32xf32>
    %22 = arith.mulf %19, %21 : vector<3x32xf32>
    %c0_8 = arith.constant 0 : index
    %c0_9 = arith.constant 0 : index
    %23 = vector.load %arg6[%c0_8, %c0_9] : memref<1x32xf32, #tpu.memory_space<vmem>>, vector<1x32xf32>
    %24 = vector.broadcast %23 : vector<1x32xf32> to vector<3x32xf32>
    %25 = arith.addf %22, %24 : vector<3x32xf32>
    %26 = arith.truncf %25 : vector<3x32xf32> to vector<3x32xbf16>
    %c0_10 = arith.constant 0 : index
    %c0_11 = arith.constant 0 : index
    %27 = vector.load %arg8[%c0_10, %c0_11] : memref<3x16xf32, #tpu.memory_space<vmem>>, vector<3x16xf32>
    %c0_12 = arith.constant 0 : index
    %c0_13 = arith.constant 0 : index
    %28 = vector.load %arg4[%c0_12, %c0_13] : memref<32x16xbf16, #tpu.memory_space<vmem>>, vector<32x16xbf16>
    %cst_14 = arith.constant dense<0.000000e+00> : vector<3x16xf32>
    %29 = tpu.matmul %26, %28, %cst_14 {dimension_numbers = #tpu.dot_dimension_numbers<[1], [0], [0], [1], [0, 0, 1, 1], [], []>} : vector<3x32xbf16>, vector<32x16xbf16>, vector<3x16xf32> -> vector<3x16xf32>
    %30 = arith.addf %27, %29 : vector<3x16xf32>
    %c0_15 = arith.constant 0 : index
    %c0_16 = arith.constant 0 : index
    %31 = vector.load %arg8[%c0_15, %c0_16] : memref<3x16xf32, #tpu.memory_space<vmem>>, vector<3x16xf32>
    tpu.vector_store %arg8[%c0_15, %c0_16], %30 {strides = array<i32>} : memref<3x16xf32, #tpu.memory_space<vmem>>, vector<3x16xf32>,
    %c0_i32_17 = arith.constant 0 : i32
    %32 = arith.cmpi eq, %arg2, %c0_i32_17 : i32
    %33 = arith.extui %32 : i1 to i32
    %c0_i32_18 = arith.constant 0 : i32
    %34 = arith.cmpi ne, %33, %c0_i32_18 : i32
    scf.if %34 {
      %c0_19 = arith.constant 0 : index
      %c0_20 = arith.constant 0 : index
      %35 = vector.load %arg8[%c0_19, %c0_20] : memref<3x16xf32, #tpu.memory_space<vmem>>, vector<3x16xf32>
      %c0_21 = arith.constant 0 : index
      %c0_22 = arith.constant 0 : index
      %36 = vector.load %arg7[%c0_21, %c0_22] : memref<3x16xf32, #tpu.memory_space<vmem>>, vector<3x16xf32>
      tpu.vector_store %arg7[%c0_21, %c0_22], %35 {strides = array<i32>} : memref<3x16xf32, #tpu.memory_space<vmem>>, vector<3x16xf32>,
    } else {
    }
    return
  }
  func.func @transform_0(%arg0: i32, %arg1: i32, %arg2: i32) -> (i32, i32) {
    %c0_i32 = arith.constant 0 : i32
    return %arg0, %arg2 : i32, i32
  }
  func.func @transform_1(%arg0: i32, %arg1: i32, %arg2: i32) -> (i32, i32) {
    %c0_i32 = arith.constant 0 : i32
    return %arg2, %arg1 : i32, i32
  }
  func.func @transform_2(%arg0: i32, %arg1: i32, %arg2: i32) -> (i32, i32) {
    %c0_i32 = arith.constant 0 : i32
    %c0_i32_0 = arith.constant 0 : i32
    return %c0_i32, %arg2 : i32, i32
  }
  func.func @transform_3(%arg0: i32, %arg1: i32, %arg2: i32) -> (i32, i32) {
    %c0_i32 = arith.constant 0 : i32
    %c0_i32_0 = arith.constant 0 : i32
    return %c0_i32, %arg2 : i32, i32
  }
  func.func @transform_4(%arg0: i32, %arg1: i32, %arg2: i32) -> (i32, i32) {
    %c0_i32 = arith.constant 0 : i32
    return %arg0, %arg1 : i32, i32
  }
}

module attributes {stable_mosaic.version = 11 : i64} {
  func.func @_clip_head_kernel(%arg0: memref<1x1xf32, #tpu.memory_space<smem>>, %arg1: memref<2x16xf32, #tpu.memory_space<vmem>>, %arg2: memref<128x16xf32, #tpu.memory_space<vmem>>, %arg3: memref<2x128xf32, #tpu.memory_space<vmem>>) attributes {dimension_semantics = [], scalar_prefetch = 0 : i64, scratch_operands = 0 : i64, tpu.core_type = #tpu.core_type<tc>} {
    %c0 = arith.constant 0 : index
    %c0_0 = arith.constant 0 : index
    %0 = vector.load %arg1[%c0, %c0_0] : memref<2x16xf32, #tpu.memory_space<vmem>>, vector<2x16xf32>
    %c0_1 = arith.constant 0 : index
    %c0_2 = arith.constant 0 : index
    %1 = vector.load %arg2[%c0_1, %c0_2] : memref<128x16xf32, #tpu.memory_space<vmem>>, vector<128x16xf32>
    %2 = arith.mulf %0, %0 : vector<2x16xf32>
    %cst = arith.constant dense<0.000000e+00> : vector<2xf32>
    %3 = vector.multi_reduction <add>, %2, %cst [1] : vector<2x16xf32> to vector<2xf32>
    %4 = vector.shape_cast %3 : vector<2xf32> to vector<2x1xf32>
    %cst_3 = arith.constant 9.99999996E-13 : f32
    %5 = vector.broadcast %cst_3 : f32 to vector<2x1xf32>
    %6 = arith.addf %4, %5 : vector<2x1xf32>
    %7 = math.rsqrt %6 : vector<2x1xf32>
    %8 = vector.broadcast %7 : vector<2x1xf32> to vector<2x16xf32>
    %9 = arith.mulf %0, %8 : vector<2x16xf32>
    %10 = arith.mulf %1, %1 : vector<128x16xf32>
    %cst_4 = arith.constant dense<0.000000e+00> : vector<128xf32>
    %11 = vector.multi_reduction <add>, %10, %cst_4 [1] : vector<128x16xf32> to vector<128xf32>
    %12 = vector.shape_cast %11 : vector<128xf32> to vector<128x1xf32>
    %cst_5 = arith.constant 9.99999996E-13 : f32
    %13 = vector.broadcast %cst_5 : f32 to vector<128x1xf32>
    %14 = arith.addf %12, %13 : vector<128x1xf32>
    %15 = math.rsqrt %14 : vector<128x1xf32>
    %16 = vector.broadcast %15 : vector<128x1xf32> to vector<128x16xf32>
    %17 = arith.mulf %1, %16 : vector<128x16xf32>
    %c0_6 = arith.constant 0 : index
    %c0_7 = arith.constant 0 : index
    %18 = memref.load %arg0[%c0_6, %c0_7] : memref<1x1xf32, #tpu.memory_space<smem>>
    %19 = math.exp %18 : f32
    %cst_8 = arith.constant dense<0.000000e+00> : vector<2x128xf32>
    %20 = tpu.matmul %9, %17, %cst_8 {dimension_numbers = #tpu.dot_dimension_numbers<[1], [1], [0], [0], [0, 0, 1, 0], [], []>} : vector<2x16xf32>, vector<128x16xf32>, vector<2x128xf32> -> vector<2x128xf32>
    %21 = vector.broadcast %19 : f32 to vector<2x128xf32>
    %22 = arith.mulf %21, %20 : vector<2x128xf32>
    %c0_9 = arith.constant 0 : index
    %c0_10 = arith.constant 0 : index
    %23 = vector.load %arg3[%c0_9, %c0_10] : memref<2x128xf32, #tpu.memory_space<vmem>>, vector<2x128xf32>
    tpu.vector_store %arg3[%c0_9, %c0_10], %22 {strides = array<i32>} : memref<2x128xf32, #tpu.memory_space<vmem>>, vector<2x128xf32>,
    return
  }
}

</mosaic_0001>

<llo_original>
// kernel: _lambda_.27
$region0: #{_lambda_.27}
  #allocation0 [shape = 'u32[]', space=smem, size = 0x4, offset = 0x4, fixed_abs, tag = 'smem constant byte address 0x4 - core index']
  #allocation1 [shape = 'u32[144,128]{1,0:T(1,128)}', space=vmem, size = 0x12000, scoped, tag = 'internal scratch']
  #allocation2 [shape = 'f32[10,96]{1,0:T(8,128)}', space=vmem, size = 0x2000, scoped, tag = 'scratch operand']
  %s0 = inlined_call_operand.vmem [shape: f32[10,32], index: 0, kind: input, shape index: {}]
  %s1 = inlined_call_operand.vmem [shape: bf16[32,96], index: 1, kind: input, shape index: {}]
  %s2 = inlined_call_operand.vmem [shape: f32[1,32], index: 2, kind: input, shape index: {}]
  %s3 = inlined_call_operand.vmem [shape: f32[1,32], index: 3, kind: input, shape index: {}]
  %s4 = inlined_call_operand.vmem [shape: f32[1,96], index: 4, kind: input, shape index: {}]
  %s5 = inlined_call_operand.vmem [shape: f32[10,96], index: 5, kind: output, shape index: {}]
  %s6 = sld [smem:[#allocation0]]
  $region38: #{_lambda_.27} parent=0
    _
  %s8 = ssub.s32 1, %s6
  %s9 = scalar_select 0, %s8, %s6
  // Predicated region
  $region2: #{_lambda_.27} parent=0 // pred_check
    _
  $region3: #{_lambda_.27} parent=0 // pred_check_branch
    %11 = sbr.rel (0) target = $region5
  $region4: #{_lambda_.27} parent=0 // pred_region
    _
  $region5: #{_lambda_.27} parent=0 // pred_fallthru
    _
  // Predicated region
  $region6: #{_lambda_.27} parent=0 // pred_check
    _
  $region7: #{_lambda_.27} parent=0 // pred_check_branch
    %13 = sbr.rel (0) target = $region9
  $region8: #{_lambda_.27} parent=0 // pred_region
    _
  $region9: #{_lambda_.27} parent=0 // pred_fallthru
    _
  // Predicated region
  $region10: #{_lambda_.27} parent=0 // pred_check
    _
  $region11: #{_lambda_.27} parent=0 // pred_check_branch
    %15 = sbr.rel (0) target = $region13
  $region12: #{_lambda_.27} parent=0 // pred_region
    _
  $region13: #{_lambda_.27} parent=0 // pred_fallthru
    _
  // Predicated region
  $region14: #{_lambda_.27} parent=0 // pred_check
    _
  $region15: #{_lambda_.27} parent=0 // pred_check_branch
    %17 = sbr.rel (0) target = $region17
  $region16: #{_lambda_.27} parent=0 // pred_region
    _
  $region17: #{_lambda_.27} parent=0 // pred_fallthru
    _
  // Predicated region
  $region18: #{_lambda_.27} parent=0 // pred_check
    _
  $region19: #{_lambda_.27} parent=0 // pred_check_branch
    %19 = sbr.rel (0) target = $region21
  $region20: #{_lambda_.27} parent=0 // pred_region
    _
  $region21: #{_lambda_.27} parent=0 // pred_fallthru
    _
  %p21 = scmp.eq.s32.totalorder 0, 0
  // Predicated region
  $region22: #{_lambda_.27} parent=0 // pred_check
    %p22 = pneg %p21
  $region23: #{_lambda_.27} parent=0 // pred_check_branch
    %24 = sbr.rel (%p22) target = $region25
  $region24: #{_lambda_.27} parent=0 // pred_region
    %vm25 = vcmask 785408
    %26 = vst.msk [vmem:[#allocation2] sm:$0xff] %vm25, 0.0
    %vm27 = vcmask 779264
    %28 = vst.msk [vmem:[#allocation2 + $0x8] sm:$0x3] %vm27, 0.0
  $region25: #{_lambda_.27} parent=0 // pred_fallthru
    _
  %v29 = vld [vmem:[%s0] sm:$0xff]
  %v30 = vld [vmem:[%s0 + $0x8] sm:$0x3]
  %vm31 = vcmask 261120
  %v32 = vsel %vm31, %v29, 0.0
  %33 = vadd.xlane.f32.xlu0 %v32
  %v34 = vpop.xlane.xlu0 %33
  %vm35 = vcmask 254976
  %v36 = vsel %vm35, %v30, 0.0
  %37 = vadd.xlane.f32.xlu0 %v36
  %v38 = vpop.xlane.xlu0 %37
  %v39 = vrcp.pop 32.0
  %v40 = vmul.f32 %v34, %v39
  %v41 = vmul.f32 %v38, %v39
  %v42 = vsub.f32 %v29, %v40
  %v43 = vsub.f32 %v30, %v41
  %v44 = vmul.f32 %v42, %v42
  %v45 = vmul.f32 %v43, %v43
  %v46 = vsel %vm31, %v44, 0.0
  %47 = vadd.xlane.f32.xlu0 %v46
  %v48 = vpop.xlane.xlu0 %47
  %v49 = vsel %vm35, %v45, 0.0
  %50 = vadd.xlane.f32.xlu0 %v49
  %v51 = vpop.xlane.xlu0 %50
  %v52 = vmul.f32 %v48, %v39
  %v53 = vmul.f32 %v51, %v39
  %v54 = vadd.f32 %v52, 1e-05
  %v55 = vadd.f32 %v53, 1e-05
  %v56 = vrsqrt.pop %v54
  %v57 = vrsqrt.pop %v55
  %v58 = vmul.f32 %v42, %v56
  %v59 = vmul.f32 %v43, %v57
  %v60 = vld [vmem:[%s2] sm:$0x1]
  %v62 = vlaneseq
  %v63 = vshrl.u32 %v62, 7
  %v64 = vsub.s32 0, %v63
  %v65 = vrot.slane %v60, %v64
  %v67 = vmul.f32 %v58, %v65
  %v68 = vmul.f32 %v59, %v65
  %v69 = vld [vmem:[%s3] sm:$0x1]
  %v71 = vlaneseq
  %v72 = vshrl.u32 %v71, 7
  %v73 = vsub.s32 0, %v72
  %v74 = vrot.slane %v69, %v73
  %v76 = vadd.f32 %v67, %v74
  %v77 = vadd.f32 %v68, %v74
  %v78 = vpack.c.bf16 %v77, %v76
  %v79 = vld [vmem:[#allocation2] sm:$0xff]
  %v80 = vld [vmem:[#allocation2 + $0x8] sm:$0x3]
  %v81 = vld [vmem:[%s1] sm:$0xf]
  %v82 = vld [vmem:[%s1 + $0x4] sm:$0xf]
  %v83 = vld [vmem:[%s1 + $0x8] sm:$0xf]
  %v84 = vld [vmem:[%s1 + $0xc] sm:$0xf]
  %v89 = vunpack.c.l.b16 %v81
  %v90 = vunpack.c.l.b16 %v82
  %v91 = vunpack.c.l.b16 %v83
  %v92 = vunpack.c.l.b16 %v84
  %v93 = vpack.c.b16 %v90, %v89
  %v94 = vpack.c.b16 %v92, %v91
  %v98 = vsel %vm31, %v78, 0
  %100 = vmatprep.subr.bf16.mxu0 0
  %101 = vmatpush1.bf16.msra.mxu0 0
  %102 = vmatprep.subr.bf16.mxu0 0
  %103 = vmatpush1.bf16.msra.mxu0 0
  %104 = vmatprep.subr.bf16.mxu0 0
  %105 = vmatpush1.bf16.msra.mxu0 0
  %106 = vmatprep.subr.bf16.mxu0 0
  %107 = vmatpush1.bf16.msra.mxu0 0
  %108 = vmatprep.subr.bf16.mxu0 0
  %109 = vmatpush1.bf16.msra.mxu0 0
  %110 = vmatprep.subr.bf16.mxu0 0
  %111 = vmatpush1.bf16.msra.mxu0 0
  %112 = vmatprep.subr.bf16.mxu0 0
  %113 = vmatpush1.bf16.msra.mxu0 %v94
  %114 = vmatprep.subr.bf16.mxu0 0
  %115 = vmatpush1.bf16.msra.mxu0 %v93
  %116 = vmatprep.subr.bf16.mxu0 0
  %117 = vmatpush2.bf16.msra.mxu0 0
  %118 = vmatprep.subr.bf16.mxu0 0
  %119 = vmatpush2.bf16.msra.mxu0 0
  %120 = vmatprep.subr.bf16.mxu0 0
  %121 = vmatpush2.bf16.msra.mxu0 0
  %122 = vmatprep.subr.bf16.mxu0 0
  %123 = vmatpush2.bf16.msra.mxu0 0
  %124 = vmatprep.subr.bf16.mxu0 0
  %125 = vmatpush2.bf16.msra.mxu0 0
  %126 = vmatprep.subr.bf16.mxu0 0
  %127 = vmatpush2.bf16.msra.mxu0 0
  %128 = vmatprep.subr.bf16.mxu0 0
  %129 = vmatpush2.bf16.msra.mxu0 0
  %130 = vmatprep.subr.bf16.mxu0 0
  %131 = vmatpush2.bf16.msra.mxu0 0
  %132 = vmatprep.mubr.bf16.mxu0 0
  %133 = vmatmul.mubr.bf16.gmra.mxu0 %v98
  %v134 = vpop.f32.mrf.mxu0
  %v135 = vadd.f32 0.0, %v134
  %v136 = vpop.f32.mrf.mxu0
  %v137 = vpop.f32.mrf.mxu0
  %v138 = vadd.f32 0.0, %v137
  %v139 = vpop.f32.mrf.mxu0
  %140 = vdwg.mxu0
  %v141 = vadd.f32 %v79, %v135
  %v142 = vadd.f32 %v80, %v138
  %vm143 = vcmask 785408
  %144 = vst.msk [vmem:[#allocation2] sm:$0xff] %vm143, %v141
  %vm145 = vcmask 779264
  %146 = vst.msk [vmem:[#allocation2 + $0x8] sm:$0x3] %vm145, %v142
  // Predicated region
  $region26: #{_lambda_.27} parent=0 // pred_check
    %p147 = pneg %p21
  $region27: #{_lambda_.27} parent=0 // pred_check_branch
    %149 = sbr.rel (%p147) target = $region29
  $region28: #{_lambda_.27} parent=0 // pred_region
    %v150 = vld [vmem:[#allocation2] sm:$0xff]
    %v151 = vld [vmem:[#allocation2 + $0x8] sm:$0x3]
    %v152 = vld [vmem:[%s4] sm:$0x1]
    %v154 = vlaneseq
    %v155 = vshrl.u32 %v154, 7
    %v156 = vsub.s32 0, %v155
    %v157 = vrot.slane %v152, %v156
    %v159 = vadd.f32 %v150, %v157
    %v160 = vadd.f32 %v151, %v157
    %161 = vst.msk [vmem:[%s5] sm:$0xff] %vm143, %v159
    %162 = vst.msk [vmem:[%s5 + $0x8] sm:$0x3] %vm145, %v160
  $region29: #{_lambda_.27} parent=0 // pred_fallthru
    _
  // Predicated region
  $region30: #{_lambda_.27} parent=0 // pred_check
    _
  $region31: #{_lambda_.27} parent=0 // pred_check_branch
    %164 = sbr.rel (0) target = $region33
  $region32: #{_lambda_.27} parent=0 // pred_region
    _
  $region33: #{_lambda_.27} parent=0 // pred_fallthru
    _
  // Predicated region
  $region34: #{_lambda_.27} parent=0 // pred_check
    _
  $region35: #{_lambda_.27} parent=0 // pred_check_branch
    %166 = sbr.rel (0) target = $region37
  $region36: #{_lambda_.27} parent=0 // pred_region
    _
  $region37: #{_lambda_.27} parent=0 // pred_fallthru
    _

// kernel: _lambda_.26
$region0: #{_lambda_.26}
  #allocation0 [shape = 'u32[]', space=smem, size = 0x4, offset = 0x4, fixed_abs, tag = 'smem constant byte address 0x4 - core index']
  #allocation1 [shape = 'u32[144,128]{1,0:T(1,128)}', space=vmem, size = 0x12000, scoped, tag = 'internal scratch']
  %s0 = inlined_call_operand.vmem [shape: f32[2,5,32], index: 0, kind: input, shape index: {}]
  %s1 = inlined_call_operand.vmem [shape: f32[5,32], index: 1, kind: input, shape index: {}]
  %s2 = inlined_call_operand.vmem [shape: f32[1,32], index: 2, kind: input, shape index: {}]
  %s3 = inlined_call_operand.vmem [shape: f32[1,32], index: 3, kind: input, shape index: {}]
  %s4 = inlined_call_operand.vmem [shape: f32[2,5,32], index: 4, kind: output, shape index: {}]
  %s5 = sld [smem:[#allocation0]]
  $region49: #{_lambda_.26} parent=0
    _
  %s7 = ssub.s32 1, %s5
  %s8 = scalar_select 0, %s7, %s5
  loop: start=0, step=1, limit=4
  $region2: #{_lambda_.26} parent=0 // loop_pre_header
    _
  $region3: #{_lambda_.26} parent=0 // loop_header
    %s10 = sphi 0, %s14
    %p11 = scmp.ge.s32.totalorder %s10, 4
    %s20 = sphi 0, %s22
    %s23 = sphi 0, %s20
    %s24 = sphi 0, %s23
    %s40 = sphi 0, %s24
    %s44 = sphi 0, %s44
    %s46 = sphi 0, %s44
    %s47 = sphi 0, %s46
    %s61 = sphi 0, %s47
    %s65 = sphi 0, %s65
    %s67 = sphi 0, %s65
    %s68 = sphi 0, %s67
    %s82 = sphi 0, %s68
    %s86 = sphi 0, %s86
    %s88 = sphi 0, %s86
    %s89 = sphi 0, %s88
    %s103 = sphi 0, %s89
    %s109 = sphi 0, %s111
    %s112 = sphi 0, %s109
    %s113 = sphi 0, %s112
    %s129 = sphi 0, %s113
  $region4: #{_lambda_.26} parent=0 // loop_header_branch
    %13 = sbr.rel (%p11) target = $region8
  $region5: #{_lambda_.26} parent=0 // loop_body
    %s15 = ssub.s32 %s10, 1
    %s16 = ssub.s32 %s10, 2
    %s17 = sadd.s32 %s10, 1
    %s18 = ssub.s32 %s10, %s17
    %p19 = scmp.eq.s32.totalorder %s18, 0
    %s21 = sadd.s32 %s20, 1
    %s22 = scalar_select %p19, %s20, %s21
    %p25 = pneg %p19
    %p26 = scmp.eq.s32.totalorder %s10, 1
    %p27 = por %p25, %p26
    %p28 = scmp.ne.s32.totalorder %s20, %s23
    %p29 = scmp.eq.s32.totalorder %s10, 0
    %p30 = por %p28, %p29
    %p31 = scmp.ne.s32.totalorder %s20, %s23
    %p32 = scmp.eq.s32.totalorder %s15, 1
    %p33 = por %p31, %p32
    %p34 = scmp.ne.s32.totalorder %s23, %s24
    %p35 = scmp.eq.s32.totalorder %s15, 0
    %p36 = por %p34, %p35
    %p37 = scmp.ne.s32.totalorder %s23, %s24
    %p38 = scmp.eq.s32.totalorder %s16, 1
    %p39 = por %p37, %p38
    %p41 = scmp.ne.s32.totalorder %s24, %s40
    %p42 = scmp.eq.s32.totalorder %s16, 0
    %p43 = por %p41, %p42
    %s45 = sadd.s32 %s44, 1
    %p48 = scmp.eq.s32.totalorder %s10, 1
    %p49 = scmp.ne.s32.totalorder %s44, %s46
    %p50 = scmp.eq.s32.totalorder %s10, 0
    %p51 = por %p49, %p50
    %p52 = scmp.ne.s32.totalorder %s44, %s46
    %p53 = scmp.eq.s32.totalorder %s15, 1
    %p54 = por %p52, %p53
    %p55 = scmp.ne.s32.totalorder %s46, %s47
    %p56 = scmp.eq.s32.totalorder %s15, 0
    %p57 = por %p55, %p56
    %p58 = scmp.ne.s32.totalorder %s46, %s47
    %p59 = scmp.eq.s32.totalorder %s16, 1
    %p60 = por %p58, %p59
    %p62 = scmp.ne.s32.totalorder %s47, %s61
    %p63 = scmp.eq.s32.totalorder %s16, 0
    %p64 = por %p62, %p63
    %s66 = sadd.s32 %s65, 1
    %p69 = scmp.eq.s32.totalorder %s10, 1
    %p70 = scmp.ne.s32.totalorder %s65, %s67
    %p71 = scmp.eq.s32.totalorder %s10, 0
    %p72 = por %p70, %p71
    %p73 = scmp.ne.s32.totalorder %s65, %s67
    %p74 = scmp.eq.s32.totalorder %s15, 1
    %p75 = por %p73, %p74
    %p76 = scmp.ne.s32.totalorder %s67, %s68
    %p77 = scmp.eq.s32.totalorder %s15, 0
    %p78 = por %p76, %p77
    %p79 = scmp.ne.s32.totalorder %s67, %s68
    %p80 = scmp.eq.s32.totalorder %s16, 1
    %p81 = por %p79, %p80
    %p83 = scmp.ne.s32.totalorder %s68, %s82
    %p84 = scmp.eq.s32.totalorder %s16, 0
    %p85 = por %p83, %p84
    %s87 = sadd.s32 %s86, 1
    %p90 = scmp.eq.s32.totalorder %s10, 1
    %p91 = scmp.ne.s32.totalorder %s86, %s88
    %p92 = scmp.eq.s32.totalorder %s10, 0
    %p93 = por %p91, %p92
    %p94 = scmp.ne.s32.totalorder %s86, %s88
    %p95 = scmp.eq.s32.totalorder %s15, 1
    %p96 = por %p94, %p95
    %p97 = scmp.ne.s32.totalorder %s88, %s89
    %p98 = scmp.eq.s32.totalorder %s15, 0
    %p99 = por %p97, %p98
    %p100 = scmp.ne.s32.totalorder %s88, %s89
    %p101 = scmp.eq.s32.totalorder %s16, 1
    %p102 = por %p100, %p101
    %p104 = scmp.ne.s32.totalorder %s89, %s103
    %p105 = scmp.eq.s32.totalorder %s16, 0
    %p106 = por %p104, %p105
    %s107 = ssub.s32 %s10, %s17
    %p108 = scmp.eq.s32.totalorder %s107, 0
    %s110 = sadd.s32 %s109, 1
    %s111 = scalar_select %p108, %s109, %s110
    %p114 = pneg %p108
    %p115 = scmp.eq.s32.totalorder %s10, 1
    %p116 = por %p114, %p115
    %p117 = scmp.ne.s32.totalorder %s109, %s112
    %p118 = scmp.eq.s32.totalorder %s10, 0
    %p119 = por %p117, %p118
    %p120 = scmp.ne.s32.totalorder %s109, %s112
    %p121 = scmp.eq.s32.totalorder %s15, 1
    %p122 = por %p120, %p121
    %p123 = scmp.ne.s32.totalorder %s112, %s113
    %p124 = scmp.eq.s32.totalorder %s15, 0
    %p125 = por %p123, %p124
    %p126 = scmp.ne.s32.totalorder %s112, %s113
    %p127 = scmp.eq.s32.totalorder %s16, 1
    %p128 = por %p126, %p127
    %p130 = scmp.ne.s32.totalorder %s113, %s129
    %p131 = scmp.eq.s32.totalorder %s16, 0
    %p132 = por %p130, %p131
    %p133 = scmp.le.s32.totalorder 1, %s10
    %p134 = scmp.lt.s32.totalorder %s10, 3
    %p135 = pnand %p133, %p134
    %p136 = pneg %p135
    // Predicated region
    $region9: #{_lambda_.26} parent=5 // pred_check
      _
    $region10: #{_lambda_.26} parent=5 // pred_check_branch
      %138 = sbr.rel (%p135) target = $region12
    $region11: #{_lambda_.26} parent=5 // pred_region
      %s139 = ssub.s32 %s10, 1
      // Predicated region
      $region13: #{_lambda_.26} parent=11 // pred_check
        %p140 = pneg %p57
      $region14: #{_lambda_.26} parent=11 // pred_check_branch
        %142 = sbr.rel (%p140) target = $region16
      $region15: #{_lambda_.26} parent=11 // pred_region
        _
      $region16: #{_lambda_.26} parent=11 // pred_fallthru
        _
      // Predicated region
      $region17: #{_lambda_.26} parent=11 // pred_check
        %p143 = pneg %p78
      $region18: #{_lambda_.26} parent=11 // pred_check_branch
        %145 = sbr.rel (%p143) target = $region20
      $region19: #{_lambda_.26} parent=11 // pred_region
        _
      $region20: #{_lambda_.26} parent=11 // pred_fallthru
        _
      // Predicated region
      $region21: #{_lambda_.26} parent=11 // pred_check
        %p146 = pneg %p99
      $region22: #{_lambda_.26} parent=11 // pred_check_branch
        %148 = sbr.rel (%p146) target = $region24
      $region23: #{_lambda_.26} parent=11 // pred_region
        _
      $region24: #{_lambda_.26} parent=11 // pred_fallthru
        _
    $region12: #{_lambda_.26} parent=5 // pred_fallthru
      _
    %p149 = scmp.lt.s32.totalorder %s10, 2
    // Predicated region
    $region25: #{_lambda_.26} parent=5 // pred_check
      %p150 = pneg %p149
    $region26: #{_lambda_.26} parent=5 // pred_check_branch
      %152 = sbr.rel (%p150) target = $region28
    $region27: #{_lambda_.26} parent=5 // pred_region
      // Predicated region
      $region29: #{_lambda_.26} parent=27 // pred_check
        %p153 = pneg %p30
      $region30: #{_lambda_.26} parent=27 // pred_check_branch
        %155 = sbr.rel (%p153) target = $region32
      $region31: #{_lambda_.26} parent=27 // pred_region
        %p156 = scmp.lt.s32.totalorder %s10, 1
        %s157 = scalar_select %p156, %s10, 1
        %s158 = smul.addr %s157, 8
        %s159 = scalar_lea.vmem %s0, %s158
      $region32: #{_lambda_.26} parent=27 // pred_fallthru
        _
    $region28: #{_lambda_.26} parent=5 // pred_fallthru
      _
    %p160 = scmp.le.s32.totalorder 1, %s10
    %p161 = scmp.lt.s32.totalorder %s10, 3
    %p162 = pnand %p160, %p161
    %p163 = pneg %p162
    // Predicated region
    $region33: #{_lambda_.26} parent=5 // pred_check
      _
    $region34: #{_lambda_.26} parent=5 // pred_check_branch
      %165 = sbr.rel (%p162) target = $region36
    $region35: #{_lambda_.26} parent=5 // pred_region
      %s166 = ssub.s32 %s10, 1
      %p167 = scmp.lt.s32.totalorder %s15, 1
      %s168 = scalar_select %p167, %s15, 1
      %s169 = smul.addr %s168, 8
      %s170 = scalar_lea.vmem %s0, %s169
      %p171 = pneg %p36
      %p172 = pneg %p33
      %p173 = pneg %p57
      %p174 = pneg %p54
      %p175 = pneg %p78
      %p176 = pneg %p75
      %p177 = pneg %p99
      %p178 = pneg %p96
      %p179 = pneg %p125
      %p180 = pneg %p122
      %p181 = scmp.lt.s32.totalorder %s15, 1
      %s182 = scalar_select %p181, %s15, 1
      %s183 = smul.addr %s182, 8
      %s184 = scalar_lea.vmem %s4, %s183
      %p185 = scmp.lt.s32.totalorder %s15, 1
      %s186 = scalar_select %p185, %s15, 1
      %s187 = smul.addr %s186, 8
      %s188 = scalar_lea.vmem %s0, %s187
      %p189 = scmp.lt.s32.totalorder %s15, 1
      %s190 = scalar_select %p189, %s15, 1
      %s191 = smul.addr %s190, 8
      %s192 = scalar_lea.vmem %s4, %s191
      %v193 = vld [vmem:[%s188] sm:$0x1f]
      %v194 = vld [vmem:[%s1] sm:$0x1f]
      %v195 = vadd.f32 %v193, %v194
      %vm196 = vcmask 258048
      %v197 = vsel %vm196, %v195, 0.0
      %198 = vadd.xlane.f32.xlu0 %v197
      %v199 = vpop.xlane.xlu0 %198
      %v200 = vrcp.pop 32.0
      %v201 = vmul.f32 %v199, %v200
      %v202 = vsub.f32 %v195, %v201
      %v203 = vmul.f32 %v202, %v202
      %v204 = vsel %vm196, %v203, 0.0
      %205 = vadd.xlane.f32.xlu0 %v204
      %v206 = vpop.xlane.xlu0 %205
      %v207 = vmul.f32 %v206, %v200
      %v208 = vadd.f32 %v207, 1e-05
      %v209 = vrsqrt.pop %v208
      %v210 = vmul.f32 %v202, %v209
      %v211 = vld [vmem:[%s2] sm:$0x1]
      %v213 = vlaneseq
      %v214 = vshrl.u32 %v213, 7
      %v215 = vsub.s32 0, %v214
      %v216 = vrot.slane %v211, %v215
      %v218 = vmul.f32 %v210, %v216
      %v219 = vld [vmem:[%s3] sm:$0x1]
      %v221 = vlaneseq
      %v222 = vshrl.u32 %v221, 7
      %v223 = vsub.s32 0, %v222
      %v224 = vrot.slane %v219, %v223
      %v226 = vadd.f32 %v218, %v224
      %227 = vst.msk [vmem:[%s192] sm:$0x1f] %vm196, %v226
      %p228 = scmp.lt.s32.totalorder %s15, 1
      %s229 = scalar_select %p228, %s15, 1
      %s230 = smul.addr %s229, 8
      %s231 = scalar_lea.vmem %s4, %s230
      // Predicated region
      $region37: #{_lambda_.26} parent=35 // pred_check
        %p232 = pneg %p122
      $region38: #{_lambda_.26} parent=35 // pred_check_branch
        %234 = sbr.rel (%p232) target = $region40
      $region39: #{_lambda_.26} parent=35 // pred_region
        _
      $region40: #{_lambda_.26} parent=35 // pred_fallthru
        _
    $region36: #{_lambda_.26} parent=5 // pred_fallthru
      _
    %p235 = scmp.le.s32.totalorder 2, %s10
    // Predicated region
    $region41: #{_lambda_.26} parent=5 // pred_check
      %p236 = pneg %p235
    $region42: #{_lambda_.26} parent=5 // pred_check_branch
      %238 = sbr.rel (%p236) target = $region44
    $region43: #{_lambda_.26} parent=5 // pred_region
      %s239 = ssub.s32 %s10, 2
      // Predicated region
      $region45: #{_lambda_.26} parent=43 // pred_check
        %p240 = pneg %p128
      $region46: #{_lambda_.26} parent=43 // pred_check_branch
        %242 = sbr.rel (%p240) target = $region48
      $region47: #{_lambda_.26} parent=43 // pred_region
        %p243 = scmp.lt.s32.totalorder %s16, 1
        %s244 = scalar_select %p243, %s16, 1
        %s245 = smul.addr %s244, 8
        %s246 = scalar_lea.vmem %s4, %s245
      $region48: #{_lambda_.26} parent=43 // pred_fallthru
        _
    $region44: #{_lambda_.26} parent=5 // pred_fallthru
      _
  $region6: #{_lambda_.26} parent=0 // loop_footer
    %s14 = sadd.s32 1, %s10
  $region7: #{_lambda_.26} parent=0 // loop_footer_branch
    %9 = sbr.rel target = $region3
  $region8: #{_lambda_.26} parent=0 // loop_exit
    _

// kernel: _lambda_.25
$region0: #{_lambda_.25}
  #allocation0 [shape = 'u32[]', space=smem, size = 0x4, offset = 0x4, fixed_abs, tag = 'smem constant byte address 0x4 - core index']
  #allocation1 [shape = 'u32[144,128]{1,0:T(1,128)}', space=vmem, size = 0x12000, scoped, tag = 'internal scratch']
  #allocation2 [shape = 'f32[8,32]{1,0:T(8,128)}', space=vmem, size = 0x1000, scoped, tag = 'scratch operand']
  %s0 = inlined_call_operand.vmem [shape: f32[8,192], index: 0, kind: input, shape index: {}]
  %s1 = inlined_call_operand.vmem [shape: bf16[192,32], index: 1, kind: input, shape index: {}]
  %s2 = inlined_call_operand.vmem [shape: f32[8,32], index: 2, kind: output, shape index: {}]
  %s3 = sld [smem:[#allocation0]]
  $region26: #{_lambda_.25} parent=0
    _
  %s5 = ssub.s32 1, %s3
  %s6 = scalar_select 0, %s5, %s3
  // Predicated region
  $region2: #{_lambda_.25} parent=0 // pred_check
    _
  $region3: #{_lambda_.25} parent=0 // pred_check_branch
    %8 = sbr.rel (0) target = $region5
  $region4: #{_lambda_.25} parent=0 // pred_region
    _
  $region5: #{_lambda_.25} parent=0 // pred_fallthru
    _
  // Predicated region
  $region6: #{_lambda_.25} parent=0 // pred_check
    _
  $region7: #{_lambda_.25} parent=0 // pred_check_branch
    %10 = sbr.rel (0) target = $region9
  $region8: #{_lambda_.25} parent=0 // pred_region
    _
  $region9: #{_lambda_.25} parent=0 // pred_fallthru
    _
  %p12 = scmp.eq.s32.totalorder 0, 0
  // Predicated region
  $region10: #{_lambda_.25} parent=0 // pred_check
    %p13 = pneg %p12
  $region11: #{_lambda_.25} parent=0 // pred_check_branch
    %15 = sbr.rel (%p13) target = $region13
  $region12: #{_lambda_.25} parent=0 // pred_region
    %vm16 = vcmask 261120
    %17 = vst.msk [vmem:[#allocation2] sm:$0xff] %vm16, 0.0
  $region13: #{_lambda_.25} parent=0 // pred_fallthru
    _
  %v18 = vld [vmem:[%s0] sm:$0xff]
  %v19 = vld [vmem:[%s0 + $0x8] sm:$0xff]
  %v20 = vpack.c.bf16 %v18, %v18
  %v21 = vpack.c.bf16 %v19, %v19
  %v22 = vld [vmem:[#allocation2] sm:$0xff]
  %v23 = vld [vmem:[%s1] sm:$0xf]
  %v24 = vld [vmem:[%s1 + $0x4] sm:$0xf]
  %v25 = vld [vmem:[%s1 + $0x8] sm:$0xf]
  %v26 = vld [vmem:[%s1 + $0xc] sm:$0xf]
  %v27 = vld [vmem:[%s1 + $0x10] sm:$0xf]
  %v28 = vld [vmem:[%s1 + $0x14] sm:$0xf]
  %v29 = vld [vmem:[%s1 + $0x18] sm:$0xf]
  %v30 = vld [vmem:[%s1 + $0x1c] sm:$0xf]
  %v31 = vld [vmem:[%s1 + $0x20] sm:$0xf]
  %v32 = vld [vmem:[%s1 + $0x24] sm:$0xf]
  %v33 = vld [vmem:[%s1 + $0x28] sm:$0xf]
  %v34 = vld [vmem:[%s1 + $0x2c] sm:$0xf]
  %v35 = vld [vmem:[%s1 + $0x30] sm:$0xf]
  %v36 = vld [vmem:[%s1 + $0x34] sm:$0xf]
  %v37 = vld [vmem:[%s1 + $0x38] sm:$0xf]
  %v38 = vld [vmem:[%s1 + $0x3c] sm:$0xf]
  %v39 = vld [vmem:[%s1 + $0x40] sm:$0xf]
  %v40 = vld [vmem:[%s1 + $0x44] sm:$0xf]
  %v41 = vld [vmem:[%s1 + $0x48] sm:$0xf]
  %v42 = vld [vmem:[%s1 + $0x4c] sm:$0xf]
  %v43 = vld [vmem:[%s1 + $0x50] sm:$0xf]
  %v44 = vld [vmem:[%s1 + $0x54] sm:$0xf]
  %v45 = vld [vmem:[%s1 + $0x58] sm:$0xf]
  %v46 = vld [vmem:[%s1 + $0x5c] sm:$0xf]
  %v71 = vunpack.c.l.b16 %v23
  %v72 = vunpack.c.l.b16 %v24
  %v73 = vunpack.c.l.b16 %v25
  %v74 = vunpack.c.l.b16 %v26
  %v75 = vunpack.c.l.b16 %v27
  %v76 = vunpack.c.l.b16 %v28
  %v77 = vunpack.c.l.b16 %v29
  %v78 = vunpack.c.l.b16 %v30
  %v79 = vunpack.c.l.b16 %v31
  %v80 = vunpack.c.l.b16 %v32
  %v81 = vunpack.c.l.b16 %v33
  %v82 = vunpack.c.l.b16 %v34
  %v83 = vunpack.c.l.b16 %v35
  %v84 = vunpack.c.l.b16 %v36
  %v85 = vunpack.c.l.b16 %v37
  %v86 = vunpack.c.l.b16 %v38
  %v87 = vunpack.c.l.b16 %v39
  %v88 = vunpack.c.l.b16 %v40
  %v89 = vunpack.c.l.b16 %v41
  %v90 = vunpack.c.l.b16 %v42
  %v91 = vunpack.c.l.b16 %v43
  %v92 = vunpack.c.l.b16 %v44
  %v93 = vunpack.c.l.b16 %v45
  %v94 = vunpack.c.l.b16 %v46
  %v95 = vpack.c.b16 %v72, %v71
  %v96 = vpack.c.b16 %v74, %v73
  %v97 = vpack.c.b16 %v76, %v75
  %v98 = vpack.c.b16 %v78, %v77
  %v99 = vpack.c.b16 %v80, %v79
  %v100 = vpack.c.b16 %v82, %v81
  %v101 = vpack.c.b16 %v84, %v83
  %v102 = vpack.c.b16 %v86, %v85
  %v103 = vpack.c.b16 %v88, %v87
  %v104 = vpack.c.b16 %v90, %v89
  %v105 = vpack.c.b16 %v92, %v91
  %v106 = vpack.c.b16 %v94, %v93
  %vm119 = vcmask 523264
  %v121 = vsel %vm119, %v21, 0
  %123 = vmatprep.subr.bf16.mxu0 0
  %124 = vmatpush1.bf16.msra.mxu0 %v102
  %125 = vmatprep.subr.bf16.mxu0 0
  %126 = vmatpush1.bf16.msra.mxu0 %v101
  %127 = vmatprep.subr.bf16.mxu0 0
  %128 = vmatpush1.bf16.msra.mxu0 %v100
  %129 = vmatprep.subr.bf16.mxu0 0
  %130 = vmatpush1.bf16.msra.mxu0 %v99
  %131 = vmatprep.subr.bf16.mxu0 0
  %132 = vmatpush1.bf16.msra.mxu0 %v98
  %133 = vmatprep.subr.bf16.mxu0 0
  %134 = vmatpush1.bf16.msra.mxu0 %v97
  %135 = vmatprep.subr.bf16.mxu0 0
  %136 = vmatpush1.bf16.msra.mxu0 %v96
  %137 = vmatprep.subr.bf16.mxu0 0
  %138 = vmatpush1.bf16.msra.mxu0 %v95
  %139 = vmatprep.subr.bf16.mxu0 0
  %140 = vmatpush2.bf16.msra.mxu0 0
  %141 = vmatprep.subr.bf16.mxu0 0
  %142 = vmatpush2.bf16.msra.mxu0 0
  %143 = vmatprep.subr.bf16.mxu0 0
  %144 = vmatpush2.bf16.msra.mxu0 0
  %145 = vmatprep.subr.bf16.mxu0 0
  %146 = vmatpush2.bf16.msra.mxu0 0
  %147 = vmatprep.subr.bf16.mxu0 0
  %148 = vmatpush2.bf16.msra.mxu0 %v106
  %149 = vmatprep.subr.bf16.mxu0 0
  %150 = vmatpush2.bf16.msra.mxu0 %v105
  %151 = vmatprep.subr.bf16.mxu0 0
  %152 = vmatpush2.bf16.msra.mxu0 %v104
  %153 = vmatprep.subr.bf16.mxu0 0
  %154 = vmatpush2.bf16.msra.mxu0 %v103
  %155 = vmatprep.mubr.bf16.mxu0 %v121
  %156 = vmatmul.mubr.bf16.gmra.mxu0 %v20
  %v157 = vpop.f32.mrf.mxu0
  %v158 = vadd.f32 0.0, %v157
  %v159 = vpop.f32.mrf.mxu0
  %v160 = vpop.f32.mrf.mxu0
  %v161 = vpop.f32.mrf.mxu0
  %162 = vdwg.mxu0
  %v163 = vadd.f32 %v22, %v158
  %vm164 = vcmask 261120
  %165 = vst.msk [vmem:[#allocation2] sm:$0xff] %vm164, %v163
  // Predicated region
  $region14: #{_lambda_.25} parent=0 // pred_check
    %p166 = pneg %p12
  $region15: #{_lambda_.25} parent=0 // pred_check_branch
    %168 = sbr.rel (%p166) target = $region17
  $region16: #{_lambda_.25} parent=0 // pred_region
    %v169 = vld [vmem:[#allocation2] sm:$0xff]
    %170 = vst.msk [vmem:[%s2] sm:$0xff] %vm164, %v169
  $region17: #{_lambda_.25} parent=0 // pred_fallthru
    _
  // Predicated region
  $region18: #{_lambda_.25} parent=0 // pred_check
    _
  $region19: #{_lambda_.25} parent=0 // pred_check_branch
    %172 = sbr.rel (0) target = $region21
  $region20: #{_lambda_.25} parent=0 // pred_region
    _
  $region21: #{_lambda_.25} parent=0 // pred_fallthru
    _
  // Predicated region
  $region22: #{_lambda_.25} parent=0 // pred_check
    _
  $region23: #{_lambda_.25} parent=0 // pred_check_branch
    %174 = sbr.rel (0) target = $region25
  $region24: #{_lambda_.25} parent=0 // pred_region
    _
  $region25: #{_lambda_.25} parent=0 // pred_fallthru
    _

// kernel: _lambda_.28
$region0: #{_lambda_.28}
  #allocation0 [shape = 'u32[]', space=smem, size = 0x4, offset = 0x4, fixed_abs, tag = 'smem constant byte address 0x4 - core index']
  #allocation1 [shape = 'u32[144,128]{1,0:T(1,128)}', space=vmem, size = 0x12000, scoped, tag = 'internal scratch']
  %s0 = inlined_call_operand.vmem [shape: f32[2,5,96], index: 0, kind: input, shape index: {}]
  %s1 = inlined_call_operand.vmem [shape: f32[2,5,32], index: 1, kind: output, shape index: {}]
  %s2 = sld [smem:[#allocation0]]
  $region37: #{_lambda_.28} parent=0
    _
  %s4 = ssub.s32 1, %s2
  %s5 = scalar_select 0, %s4, %s2
  loop: start=0, step=1, limit=4
  $region2: #{_lambda_.28} parent=0 // loop_pre_header
    _
  $region3: #{_lambda_.28} parent=0 // loop_header
    %s7 = sphi 0, %s11
    %p8 = scmp.ge.s32.totalorder %s7, 4
    %s17 = sphi 0, %s19
    %s20 = sphi 0, %s17
    %s21 = sphi 0, %s20
    %s37 = sphi 0, %s21
    %s43 = sphi 0, %s45
    %s46 = sphi 0, %s43
    %s47 = sphi 0, %s46
    %s63 = sphi 0, %s47
  $region4: #{_lambda_.28} parent=0 // loop_header_branch
    %10 = sbr.rel (%p8) target = $region8
  $region5: #{_lambda_.28} parent=0 // loop_body
    %s12 = ssub.s32 %s7, 1
    %s13 = ssub.s32 %s7, 2
    %s14 = sadd.s32 %s7, 1
    %s15 = ssub.s32 %s7, %s14
    %p16 = scmp.eq.s32.totalorder %s15, 0
    %s18 = sadd.s32 %s17, 1
    %s19 = scalar_select %p16, %s17, %s18
    %p22 = pneg %p16
    %p23 = scmp.eq.s32.totalorder %s7, 1
    %p24 = por %p22, %p23
    %p25 = scmp.ne.s32.totalorder %s17, %s20
    %p26 = scmp.eq.s32.totalorder %s7, 0
    %p27 = por %p25, %p26
    %p28 = scmp.ne.s32.totalorder %s17, %s20
    %p29 = scmp.eq.s32.totalorder %s12, 1
    %p30 = por %p28, %p29
    %p31 = scmp.ne.s32.totalorder %s20, %s21
    %p32 = scmp.eq.s32.totalorder %s12, 0
    %p33 = por %p31, %p32
    %p34 = scmp.ne.s32.totalorder %s20, %s21
    %p35 = scmp.eq.s32.totalorder %s13, 1
    %p36 = por %p34, %p35
    %p38 = scmp.ne.s32.totalorder %s21, %s37
    %p39 = scmp.eq.s32.totalorder %s13, 0
    %p40 = por %p38, %p39
    %s41 = ssub.s32 %s7, %s14
    %p42 = scmp.eq.s32.totalorder %s41, 0
    %s44 = sadd.s32 %s43, 1
    %s45 = scalar_select %p42, %s43, %s44
    %p48 = pneg %p42
    %p49 = scmp.eq.s32.totalorder %s7, 1
    %p50 = por %p48, %p49
    %p51 = scmp.ne.s32.totalorder %s43, %s46
    %p52 = scmp.eq.s32.totalorder %s7, 0
    %p53 = por %p51, %p52
    %p54 = scmp.ne.s32.totalorder %s43, %s46
    %p55 = scmp.eq.s32.totalorder %s12, 1
    %p56 = por %p54, %p55
    %p57 = scmp.ne.s32.totalorder %s46, %s47
    %p58 = scmp.eq.s32.totalorder %s12, 0
    %p59 = por %p57, %p58
    %p60 = scmp.ne.s32.totalorder %s46, %s47
    %p61 = scmp.eq.s32.totalorder %s13, 1
    %p62 = por %p60, %p61
    %p64 = scmp.ne.s32.totalorder %s47, %s63
    %p65 = scmp.eq.s32.totalorder %s13, 0
    %p66 = por %p64, %p65
    %p67 = scmp.le.s32.totalorder 1, %s7
    %p68 = scmp.lt.s32.totalorder %s7, 3
    %p69 = pnand %p67, %p68
    %p70 = pneg %p69
    // Predicated region
    $region9: #{_lambda_.28} parent=5 // pred_check
      _
    $region10: #{_lambda_.28} parent=5 // pred_check_branch
      %72 = sbr.rel (%p69) target = $region12
    $region11: #{_lambda_.28} parent=5 // pred_region
      %s73 = ssub.s32 %s7, 1
    $region12: #{_lambda_.28} parent=5 // pred_fallthru
      _
    %p74 = scmp.lt.s32.totalorder %s7, 2
    // Predicated region
    $region13: #{_lambda_.28} parent=5 // pred_check
      %p75 = pneg %p74
    $region14: #{_lambda_.28} parent=5 // pred_check_branch
      %77 = sbr.rel (%p75) target = $region16
    $region15: #{_lambda_.28} parent=5 // pred_region
      // Predicated region
      $region17: #{_lambda_.28} parent=15 // pred_check
        %p78 = pneg %p27
      $region18: #{_lambda_.28} parent=15 // pred_check_branch
        %80 = sbr.rel (%p78) target = $region20
      $region19: #{_lambda_.28} parent=15 // pred_region
        %p81 = scmp.lt.s32.totalorder %s7, 1
        %s82 = scalar_select %p81, %s7, 1
        %s83 = smul.addr %s82, 8
        %s84 = scalar_lea.vmem %s0, %s83
      $region20: #{_lambda_.28} parent=15 // pred_fallthru
        _
    $region16: #{_lambda_.28} parent=5 // pred_fallthru
      _
    %p85 = scmp.le.s32.totalorder 1, %s7
    %p86 = scmp.lt.s32.totalorder %s7, 3
    %p87 = pnand %p85, %p86
    %p88 = pneg %p87
    // Predicated region
    $region21: #{_lambda_.28} parent=5 // pred_check
      _
    $region22: #{_lambda_.28} parent=5 // pred_check_branch
      %90 = sbr.rel (%p87) target = $region24
    $region23: #{_lambda_.28} parent=5 // pred_region
      %s91 = ssub.s32 %s7, 1
      %p92 = scmp.lt.s32.totalorder %s12, 1
      %s93 = scalar_select %p92, %s12, 1
      %s94 = smul.addr %s93, 8
      %s95 = scalar_lea.vmem %s0, %s94
      %p96 = pneg %p33
      %p97 = pneg %p30
      %p98 = pneg %p59
      %p99 = pneg %p56
      %p100 = scmp.lt.s32.totalorder %s12, 1
      %s101 = scalar_select %p100, %s12, 1
      %s102 = smul.addr %s101, 8
      %s103 = scalar_lea.vmem %s1, %s102
      %p104 = scmp.lt.s32.totalorder %s12, 1
      %s105 = scalar_select %p104, %s12, 1
      %s106 = smul.addr %s105, 8
      %s107 = scalar_lea.vmem %s0, %s106
      %p108 = scmp.lt.s32.totalorder %s12, 1
      %s109 = scalar_select %p108, %s12, 1
      %s110 = smul.addr %s109, 8
      %s111 = scalar_lea.vmem %s1, %s110
      %v113 = vld [vmem:[%s107] sm:$0x1f]
      %v114 = vpack.c.bf16 %v113, %v113
      %116 = vrot.lane.b32.xlu0 %v114, 96
      %v117 = vpop.permute.xlu0 %116
      %vm118 = vcmask 64512
      %v120 = vsel %vm118, %v114, 0
      %v123 = vsel %vm118, %v117, 0
      %125 = vmatprep.subr.bf16.mxu0 0
      %126 = vmatpush1.bf16.xpose.msra.mxu0 0
      %127 = vmatprep.subr.bf16.mxu0 0
      %128 = vmatpush1.bf16.xpose.msra.mxu0 0
      %129 = vmatprep.subr.bf16.mxu0 0
      %130 = vmatpush1.bf16.xpose.msra.mxu0 0
      %131 = vmatprep.subr.bf16.mxu0 0
      %132 = vmatpush1.bf16.xpose.msra.mxu0 0
      %133 = vmatprep.subr.bf16.mxu0 0
      %134 = vmatpush1.bf16.xpose.msra.mxu0 0
      %135 = vmatprep.subr.bf16.mxu0 0
      %136 = vmatpush1.bf16.xpose.msra.mxu0 0
      %137 = vmatprep.subr.bf16.mxu0 0
      %138 = vmatpush1.bf16.xpose.msra.mxu0 0
      %139 = vmatprep.subr.bf16.mxu0 0
      %140 = vmatpush1.bf16.xpose.msra.mxu0 %v123
      %141 = vmatprep.subr.bf16.mxu0 0
      %142 = vmatpush2.bf16.xpose.msra.mxu0 0
      %143 = vmatprep.subr.bf16.mxu0 0
      %144 = vmatpush2.bf16.xpose.msra.mxu0 0
      %145 = vmatprep.subr.bf16.mxu0 0
      %146 = vmatpush2.bf16.xpose.msra.mxu0 0
      %147 = vmatprep.subr.bf16.mxu0 0
      %148 = vmatpush2.bf16.xpose.msra.mxu0 0
      %149 = vmatprep.subr.bf16.mxu0 0
      %150 = vmatpush2.bf16.xpose.msra.mxu0 0
      %151 = vmatprep.subr.bf16.mxu0 0
      %152 = vmatpush2.bf16.xpose.msra.mxu0 0
      %153 = vmatprep.subr.bf16.mxu0 0
      %154 = vmatpush2.bf16.xpose.msra.mxu0 0
      %155 = vmatprep.subr.bf16.mxu0 0
      %156 = vmatpush2.bf16.xpose.msra.mxu0 0
      %157 = vmatprep.mubr.bf16.mxu0 0
      %158 = vmatmul.mubr.bf16.gmra.mxu0 %v120
      %v159 = vpop.f32.mrf.mxu0
      %v160 = vadd.f32 0.0, %v159
      %v161 = vpop.f32.mrf.mxu0
      %v162 = vpop.f32.mrf.mxu0
      %v163 = vpop.f32.mrf.mxu0
      %164 = vdwg.mxu0
      %v165 = vmul.f32 %v160, 0.35355338
      %vm166 = vcmask 36864
      %v167 = vsel %vm166, %v165, -inf
      %168 = vmax.xlane.f32.xlu0 %v167
      %v169 = vpop.xlane.xlu0 %168
      %v170 = vsub.f32 %v165, %v169
      %v171 = vmul.f32 %v170, 1.442695
      %v172 = vpow.pop %v171
      %v173 = vsel %vm166, %v172, 0.0
      %174 = vadd.xlane.f32.xlu0 %v173
      %v175 = vpop.xlane.xlu0 %174
      %v176 = vrcp.pop %v175
      %v177 = vmul.f32 %v172, %v176
      %v178 = vpack.c.bf16 %v177, %v177
      %179 = vrot.lane.b32.xlu0 %v114, 64
      %v180 = vpop.permute.xlu0 %179
      %vm181 = vcmask 39936
      %v183 = vsel %vm181, %v178, 0
      %vm185 = vcmask 1041408
      %vm186 = vcmask 1042432
      %v187 = vsel %vm185, 4294967295, 65535
      %v188 = vsel %vm186, %v187, 0
      %v190 = vand.u32 %v180, %v188
      %192 = vmatprep.subr.bf16.mxu0 0
      %193 = vmatpush1.bf16.msra.mxu0 0
      %194 = vmatprep.subr.bf16.mxu0 0
      %195 = vmatpush1.bf16.msra.mxu0 0
      %196 = vmatprep.subr.bf16.mxu0 0
      %197 = vmatpush1.bf16.msra.mxu0 0
      %198 = vmatprep.subr.bf16.mxu0 0
      %199 = vmatpush1.bf16.msra.mxu0 0
      %200 = vmatprep.subr.bf16.mxu0 0
      %201 = vmatpush1.bf16.msra.mxu0 0
      %202 = vmatprep.subr.bf16.mxu0 0
      %203 = vmatpush1.bf16.msra.mxu0 0
      %204 = vmatprep.subr.bf16.mxu0 0
      %205 = vmatpush1.bf16.msra.mxu0 0
      %206 = vmatprep.subr.bf16.mxu0 0
      %207 = vmatpush1.bf16.msra.mxu0 %v190
      %208 = vmatprep.subr.bf16.mxu0 0
      %209 = vmatpush2.bf16.msra.mxu0 0
      %210 = vmatprep.subr.bf16.mxu0 0
      %211 = vmatpush2.bf16.msra.mxu0 0
      %212 = vmatprep.subr.bf16.mxu0 0
      %213 = vmatpush2.bf16.msra.mxu0 0
      %214 = vmatprep.subr.bf16.mxu0 0
      %215 = vmatpush2.bf16.msra.mxu0 0
      %216 = vmatprep.subr.bf16.mxu0 0
      %217 = vmatpush2.bf16.msra.mxu0 0
      %218 = vmatprep.subr.bf16.mxu0 0
      %219 = vmatpush2.bf16.msra.mxu0 0
      %220 = vmatprep.subr.bf16.mxu0 0
      %221 = vmatpush2.bf16.msra.mxu0 0
      %222 = vmatprep.subr.bf16.mxu0 0
      %223 = vmatpush2.bf16.msra.mxu0 0
      %224 = vmatprep.mubr.bf16.mxu0 0
      %225 = vmatmul.mubr.bf16.gmra.mxu0 %v183
      %v226 = vpop.f32.mrf.mxu0
      %v227 = vadd.f32 0.0, %v226
      %v228 = vpop.f32.mrf.mxu0
      %v229 = vpop.f32.mrf.mxu0
      %v230 = vpop.f32.mrf.mxu0
      %231 = vdwg.mxu0
      %vm232 = vcmask 61440
      %233 = vst.msk [vmem:[%s111] sm:$0x1f] %vm232, %v227
      %v234 = vld [vmem:[%s107] sm:$0x1f]
      %v235 = vpack.c.bf16 %v234, %v234
      %237 = vrot.lane.b32.xlu0 %v235, 120
      %v238 = vpop.permute.xlu0 %237
      %239 = vrot.lane.b32.xlu0 %v235, 88
      %v240 = vpop.permute.xlu0 %239
      %v242 = vsel %vm118, %v238, 0
      %v245 = vsel %vm118, %v240, 0
      %247 = vmatprep.subr.bf16.mxu0 0
      %248 = vmatpush1.bf16.xpose.msra.mxu0 0
      %249 = vmatprep.subr.bf16.mxu0 0
      %250 = vmatpush1.bf16.xpose.msra.mxu0 0
      %251 = vmatprep.subr.bf16.mxu0 0
      %252 = vmatpush1.bf16.xpose.msra.mxu0 0
      %253 = vmatprep.subr.bf16.mxu0 0
      %254 = vmatpush1.bf16.xpose.msra.mxu0 0
      %255 = vmatprep.subr.bf16.mxu0 0
      %256 = vmatpush1.bf16.xpose.msra.mxu0 0
      %257 = vmatprep.subr.bf16.mxu0 0
      %258 = vmatpush1.bf16.xpose.msra.mxu0 0
      %259 = vmatprep.subr.bf16.mxu0 0
      %260 = vmatpush1.bf16.xpose.msra.mxu0 0
      %261 = vmatprep.subr.bf16.mxu0 0
      %262 = vmatpush1.bf16.xpose.msra.mxu0 %v245
      %263 = vmatprep.subr.bf16.mxu0 0
      %264 = vmatpush2.bf16.xpose.msra.mxu0 0
      %265 = vmatprep.subr.bf16.mxu0 0
      %266 = vmatpush2.bf16.xpose.msra.mxu0 0
      %267 = vmatprep.subr.bf16.mxu0 0
      %268 = vmatpush2.bf16.xpose.msra.mxu0 0
      %269 = vmatprep.subr.bf16.mxu0 0
      %270 = vmatpush2.bf16.xpose.msra.mxu0 0
      %271 = vmatprep.subr.bf16.mxu0 0
      %272 = vmatpush2.bf16.xpose.msra.mxu0 0
      %273 = vmatprep.subr.bf16.mxu0 0
      %274 = vmatpush2.bf16.xpose.msra.mxu0 0
      %275 = vmatprep.subr.bf16.mxu0 0
      %276 = vmatpush2.bf16.xpose.msra.mxu0 0
      %277 = vmatprep.subr.bf16.mxu0 0
      %278 = vmatpush2.bf16.xpose.msra.mxu0 0
      %279 = vmatprep.mubr.bf16.mxu0 0
      %280 = vmatmul.mubr.bf16.gmra.mxu0 %v242
      %v281 = vpop.f32.mrf.mxu0
      %v282 = vadd.f32 0.0, %v281
      %v283 = vpop.f32.mrf.mxu0
      %v284 = vpop.f32.mrf.mxu0
      %v285 = vpop.f32.mrf.mxu0
      %286 = vdwg.mxu0
      %v287 = vmul.f32 %v282, 0.35355338
      %v288 = vsel %vm166, %v287, -inf
      %289 = vmax.xlane.f32.xlu0 %v288
      %v290 = vpop.xlane.xlu0 %289
      %v291 = vsub.f32 %v287, %v290
      %v292 = vmul.f32 %v291, 1.442695
      %v293 = vpow.pop %v292
      %v294 = vsel %vm166, %v293, 0.0
      %295 = vadd.xlane.f32.xlu0 %v294
      %v296 = vpop.xlane.xlu0 %295
      %v297 = vrcp.pop %v296
      %v298 = vmul.f32 %v293, %v297
      %v299 = vpack.c.bf16 %v298, %v298
      %300 = vrot.lane.b32.xlu0 %v235, 56
      %v301 = vpop.permute.xlu0 %300
      %v303 = vsel %vm181, %v299, 0
      %v306 = vand.u32 %v301, %v188
      %308 = vmatprep.subr.bf16.mxu0 0
      %309 = vmatpush1.bf16.msra.mxu0 0
      %310 = vmatprep.subr.bf16.mxu0 0
      %311 = vmatpush1.bf16.msra.mxu0 0
      %312 = vmatprep.subr.bf16.mxu0 0
      %313 = vmatpush1.bf16.msra.mxu0 0
      %314 = vmatprep.subr.bf16.mxu0 0
      %315 = vmatpush1.bf16.msra.mxu0 0
      %316 = vmatprep.subr.bf16.mxu0 0
      %317 = vmatpush1.bf16.msra.mxu0 0
      %318 = vmatprep.subr.bf16.mxu0 0
      %319 = vmatpush1.bf16.msra.mxu0 0
      %320 = vmatprep.subr.bf16.mxu0 0
      %321 = vmatpush1.bf16.msra.mxu0 0
      %322 = vmatprep.subr.bf16.mxu0 0
      %323 = vmatpush1.bf16.msra.mxu0 %v306
      %324 = vmatprep.subr.bf16.mxu0 0
      %325 = vmatpush2.bf16.msra.mxu0 0
      %326 = vmatprep.subr.bf16.mxu0 0
      %327 = vmatpush2.bf16.msra.mxu0 0
      %328 = vmatprep.subr.bf16.mxu0 0
      %329 = vmatpush2.bf16.msra.mxu0 0
      %330 = vmatprep.subr.bf16.mxu0 0
      %331 = vmatpush2.bf16.msra.mxu0 0
      %332 = vmatprep.subr.bf16.mxu0 0
      %333 = vmatpush2.bf16.msra.mxu0 0
      %334 = vmatprep.subr.bf16.mxu0 0
      %335 = vmatpush2.bf16.msra.mxu0 0
      %336 = vmatprep.subr.bf16.mxu0 0
      %337 = vmatpush2.bf16.msra.mxu0 0
      %338 = vmatprep.subr.bf16.mxu0 0
      %339 = vmatpush2.bf16.msra.mxu0 0
      %340 = vmatprep.mubr.bf16.mxu0 0
      %341 = vmatmul.mubr.bf16.gmra.mxu0 %v303
      %v342 = vpop.f32.mrf.mxu0
      %v343 = vadd.f32 0.0, %v342
      %v344 = vpop.f32.mrf.mxu0
      %v345 = vpop.f32.mrf.mxu0
      %v346 = vpop.f32.mrf.mxu0
      %347 = vdwg.mxu0
      %349 = vrot.lane.b32.xlu0 %v343, 8
      %v350 = vpop.permute.xlu0 %349
      %vm352 = vcmask 127040
      %353 = vst.msk [vmem:[%s111] sm:$0x1f] %vm352, %v350
      %v354 = vld [vmem:[%s107] sm:$0x1f]
      %v355 = vpack.c.bf16 %v354, %v354
      %357 = vrot.lane.b32.xlu0 %v355, 112
      %v358 = vpop.permute.xlu0 %357
      %359 = vrot.lane.b32.xlu0 %v355, 80
      %v360 = vpop.permute.xlu0 %359
      %v362 = vsel %vm118, %v358, 0
      %v365 = vsel %vm118, %v360, 0
      %367 = vmatprep.subr.bf16.mxu0 0
      %368 = vmatpush1.bf16.xpose.msra.mxu0 0
      %369 = vmatprep.subr.bf16.mxu0 0
      %370 = vmatpush1.bf16.xpose.msra.mxu0 0
      %371 = vmatprep.subr.bf16.mxu0 0
      %372 = vmatpush1.bf16.xpose.msra.mxu0 0
      %373 = vmatprep.subr.bf16.mxu0 0
      %374 = vmatpush1.bf16.xpose.msra.mxu0 0
      %375 = vmatprep.subr.bf16.mxu0 0
      %376 = vmatpush1.bf16.xpose.msra.mxu0 0
      %377 = vmatprep.subr.bf16.mxu0 0
      %378 = vmatpush1.bf16.xpose.msra.mxu0 0
      %379 = vmatprep.subr.bf16.mxu0 0
      %380 = vmatpush1.bf16.xpose.msra.mxu0 0
      %381 = vmatprep.subr.bf16.mxu0 0
      %382 = vmatpush1.bf16.xpose.msra.mxu0 %v365
      %383 = vmatprep.subr.bf16.mxu0 0
      %384 = vmatpush2.bf16.xpose.msra.mxu0 0
      %385 = vmatprep.subr.bf16.mxu0 0
      %386 = vmatpush2.bf16.xpose.msra.mxu0 0
      %387 = vmatprep.subr.bf16.mxu0 0
      %388 = vmatpush2.bf16.xpose.msra.mxu0 0
      %389 = vmatprep.subr.bf16.mxu0 0
      %390 = vmatpush2.bf16.xpose.msra.mxu0 0
      %391 = vmatprep.subr.bf16.mxu0 0
      %392 = vmatpush2.bf16.xpose.msra.mxu0 0
      %393 = vmatprep.subr.bf16.mxu0 0
      %394 = vmatpush2.bf16.xpose.msra.mxu0 0
      %395 = vmatprep.subr.bf16.mxu0 0
      %396 = vmatpush2.bf16.xpose.msra.mxu0 0
      %397 = vmatprep.subr.bf16.mxu0 0
      %398 = vmatpush2.bf16.xpose.msra.mxu0 0
      %399 = vmatprep.mubr.bf16.mxu0 0
      %400 = vmatmul.mubr.bf16.gmra.mxu0 %v362
      %v401 = vpop.f32.mrf.mxu0
      %v402 = vadd.f32 0.0, %v401
      %v403 = vpop.f32.mrf.mxu0
      %v404 = vpop.f32.mrf.mxu0
      %v405 = vpop.f32.mrf.mxu0
      %406 = vdwg.mxu0
      %v407 = vmul.f32 %v402, 0.35355338
      %v408 = vsel %vm166, %v407, -inf
      %409 = vmax.xlane.f32.xlu0 %v408
      %v410 = vpop.xlane.xlu0 %409
      %v411 = vsub.f32 %v407, %v410
      %v412 = vmul.f32 %v411, 1.442695
      %v413 = vpow.pop %v412
      %v414 = vsel %vm166, %v413, 0.0
      %415 = vadd.xlane.f32.xlu0 %v414
      %v416 = vpop.xlane.xlu0 %415
      %v417 = vrcp.pop %v416
      %v418 = vmul.f32 %v413, %v417
      %v419 = vpack.c.bf16 %v418, %v418
      %420 = vrot.lane.b32.xlu0 %v355, 48
      %v421 = vpop.permute.xlu0 %420
      %v423 = vsel %vm181, %v419, 0
      %v426 = vand.u32 %v421, %v188
      %428 = vmatprep.subr.bf16.mxu0 0
      %429 = vmatpush1.bf16.msra.mxu0 0
      %430 = vmatprep.subr.bf16.mxu0 0
      %431 = vmatpush1.bf16.msra.mxu0 0
      %432 = vmatprep.subr.bf16.mxu0 0
      %433 = vmatpush1.bf16.msra.mxu0 0
      %434 = vmatprep.subr.bf16.mxu0 0
      %435 = vmatpush1.bf16.msra.mxu0 0
      %436 = vmatprep.subr.bf16.mxu0 0
      %437 = vmatpush1.bf16.msra.mxu0 0
      %438 = vmatprep.subr.bf16.mxu0 0
      %439 = vmatpush1.bf16.msra.mxu0 0
      %440 = vmatprep.subr.bf16.mxu0 0
      %441 = vmatpush1.bf16.msra.mxu0 0
      %442 = vmatprep.subr.bf16.mxu0 0
      %443 = vmatpush1.bf16.msra.mxu0 %v426
      %444 = vmatprep.subr.bf16.mxu0 0
      %445 = vmatpush2.bf16.msra.mxu0 0
      %446 = vmatprep.subr.bf16.mxu0 0
      %447 = vmatpush2.bf16.msra.mxu0 0
      %448 = vmatprep.subr.bf16.mxu0 0
      %449 = vmatpush2.bf16.msra.mxu0 0
      %450 = vmatprep.subr.bf16.mxu0 0
      %451 = vmatpush2.bf16.msra.mxu0 0
      %452 = vmatprep.subr.bf16.mxu0 0
      %453 = vmatpush2.bf16.msra.mxu0 0
      %454 = vmatprep.subr.bf16.mxu0 0
      %455 = vmatpush2.bf16.msra.mxu0 0
      %456 = vmatprep.subr.bf16.mxu0 0
      %457 = vmatpush2.bf16.msra.mxu0 0
      %458 = vmatprep.subr.bf16.mxu0 0
      %459 = vmatpush2.bf16.msra.mxu0 0
      %460 = vmatprep.mubr.bf16.mxu0 0
      %461 = vmatmul.mubr.bf16.gmra.mxu0 %v423
      %v462 = vpop.f32.mrf.mxu0
      %v463 = vadd.f32 0.0, %v462
      %v464 = vpop.f32.mrf.mxu0
      %v465 = vpop.f32.mrf.mxu0
      %v466 = vpop.f32.mrf.mxu0
      %467 = vdwg.mxu0
      %469 = vrot.lane.b32.xlu0 %v463, 16
      %v470 = vpop.permute.xlu0 %469
      %vm472 = vcmask 192640
      %473 = vst.msk [vmem:[%s111] sm:$0x1f] %vm472, %v470
      %v474 = vld [vmem:[%s107] sm:$0x1f]
      %v475 = vpack.c.bf16 %v474, %v474
      %477 = vrot.lane.b32.xlu0 %v475, 104
      %v478 = vpop.permute.xlu0 %477
      %479 = vrot.lane.b32.xlu0 %v475, 72
      %v480 = vpop.permute.xlu0 %479
      %v482 = vsel %vm118, %v478, 0
      %v485 = vsel %vm118, %v480, 0
      %487 = vmatprep.subr.bf16.mxu0 0
      %488 = vmatpush1.bf16.xpose.msra.mxu0 0
      %489 = vmatprep.subr.bf16.mxu0 0
      %490 = vmatpush1.bf16.xpose.msra.mxu0 0
      %491 = vmatprep.subr.bf16.mxu0 0
      %492 = vmatpush1.bf16.xpose.msra.mxu0 0
      %493 = vmatprep.subr.bf16.mxu0 0
      %494 = vmatpush1.bf16.xpose.msra.mxu0 0
      %495 = vmatprep.subr.bf16.mxu0 0
      %496 = vmatpush1.bf16.xpose.msra.mxu0 0
      %497 = vmatprep.subr.bf16.mxu0 0
      %498 = vmatpush1.bf16.xpose.msra.mxu0 0
      %499 = vmatprep.subr.bf16.mxu0 0
      %500 = vmatpush1.bf16.xpose.msra.mxu0 0
      %501 = vmatprep.subr.bf16.mxu0 0
      %502 = vmatpush1.bf16.xpose.msra.mxu0 %v485
      %503 = vmatprep.subr.bf16.mxu0 0
      %504 = vmatpush2.bf16.xpose.msra.mxu0 0
      %505 = vmatprep.subr.bf16.mxu0 0
      %506 = vmatpush2.bf16.xpose.msra.mxu0 0
      %507 = vmatprep.subr.bf16.mxu0 0
      %508 = vmatpush2.bf16.xpose.msra.mxu0 0
      %509 = vmatprep.subr.bf16.mxu0 0
      %510 = vmatpush2.bf16.xpose.msra.mxu0 0
      %511 = vmatprep.subr.bf16.mxu0 0
      %512 = vmatpush2.bf16.xpose.msra.mxu0 0
      %513 = vmatprep.subr.bf16.mxu0 0
      %514 = vmatpush2.bf16.xpose.msra.mxu0 0
      %515 = vmatprep.subr.bf16.mxu0 0
      %516 = vmatpush2.bf16.xpose.msra.mxu0 0
      %517 = vmatprep.subr.bf16.mxu0 0
      %518 = vmatpush2.bf16.xpose.msra.mxu0 0
      %519 = vmatprep.mubr.bf16.mxu0 0
      %520 = vmatmul.mubr.bf16.gmra.mxu0 %v482
      %v521 = vpop.f32.mrf.mxu0
      %v522 = vadd.f32 0.0, %v521
      %v523 = vpop.f32.mrf.mxu0
      %v524 = vpop.f32.mrf.mxu0
      %v525 = vpop.f32.mrf.mxu0
      %526 = vdwg.mxu0
      %v527 = vmul.f32 %v522, 0.35355338
      %v528 = vsel %vm166, %v527, -inf
      %529 = vmax.xlane.f32.xlu0 %v528
      %v530 = vpop.xlane.xlu0 %529
      %v531 = vsub.f32 %v527, %v530
      %v532 = vmul.f32 %v531, 1.442695
      %v533 = vpow.pop %v532
      %v534 = vsel %vm166, %v533, 0.0
      %535 = vadd.xlane.f32.xlu0 %v534
      %v536 = vpop.xlane.xlu0 %535
      %v537 = vrcp.pop %v536
      %v538 = vmul.f32 %v533, %v537
      %v539 = vpack.c.bf16 %v538, %v538
      %540 = vrot.lane.b32.xlu0 %v475, 40
      %v541 = vpop.permute.xlu0 %540
      %v543 = vsel %vm181, %v539, 0
      %v546 = vand.u32 %v541, %v188
      %548 = vmatprep.subr.bf16.mxu0 0
      %549 = vmatpush1.bf16.msra.mxu0 0
      %550 = vmatprep.subr.bf16.mxu0 0
      %551 = vmatpush1.bf16.msra.mxu0 0
      %552 = vmatprep.subr.bf16.mxu0 0
      %553 = vmatpush1.bf16.msra.mxu0 0
      %554 = vmatprep.subr.bf16.mxu0 0
      %555 = vmatpush1.bf16.msra.mxu0 0
      %556 = vmatprep.subr.bf16.mxu0 0
      %557 = vmatpush1.bf16.msra.mxu0 0
      %558 = vmatprep.subr.bf16.mxu0 0
      %559 = vmatpush1.bf16.msra.mxu0 0
      %560 = vmatprep.subr.bf16.mxu0 0
      %561 = vmatpush1.bf16.msra.mxu0 0
      %562 = vmatprep.subr.bf16.mxu0 0
      %563 = vmatpush1.bf16.msra.mxu0 %v546
      %564 = vmatprep.subr.bf16.mxu0 0
      %565 = vmatpush2.bf16.msra.mxu0 0
      %566 = vmatprep.subr.bf16.mxu0 0
      %567 = vmatpush2.bf16.msra.mxu0 0
      %568 = vmatprep.subr.bf16.mxu0 0
      %569 = vmatpush2.bf16.msra.mxu0 0
      %570 = vmatprep.subr.bf16.mxu0 0
      %571 = vmatpush2.bf16.msra.mxu0 0
      %572 = vmatprep.subr.bf16.mxu0 0
      %573 = vmatpush2.bf16.msra.mxu0 0
      %574 = vmatprep.subr.bf16.mxu0 0
      %575 = vmatpush2.bf16.msra.mxu0 0
      %576 = vmatprep.subr.bf16.mxu0 0
      %577 = vmatpush2.bf16.msra.mxu0 0
      %578 = vmatprep.subr.bf16.mxu0 0
      %579 = vmatpush2.bf16.msra.mxu0 0
      %580 = vmatprep.mubr.bf16.mxu0 0
      %581 = vmatmul.mubr.bf16.gmra.mxu0 %v543
      %v582 = vpop.f32.mrf.mxu0
      %v583 = vadd.f32 0.0, %v582
      %v584 = vpop.f32.mrf.mxu0
      %v585 = vpop.f32.mrf.mxu0
      %v586 = vpop.f32.mrf.mxu0
      %587 = vdwg.mxu0
      %589 = vrot.lane.b32.xlu0 %v583, 24
      %v590 = vpop.permute.xlu0 %589
      %vm592 = vcmask 258240
      %593 = vst.msk [vmem:[%s111] sm:$0x1f] %vm592, %v590
      %p594 = scmp.lt.s32.totalorder %s12, 1
      %s595 = scalar_select %p594, %s12, 1
      %s596 = smul.addr %s595, 8
      %s597 = scalar_lea.vmem %s1, %s596
      // Predicated region
      $region25: #{_lambda_.28} parent=23 // pred_check
        %p598 = pneg %p56
      $region26: #{_lambda_.28} parent=23 // pred_check_branch
        %600 = sbr.rel (%p598) target = $region28
      $region27: #{_lambda_.28} parent=23 // pred_region
        _
      $region28: #{_lambda_.28} parent=23 // pred_fallthru
        _
    $region24: #{_lambda_.28} parent=5 // pred_fallthru
      _
    %p601 = scmp.le.s32.totalorder 2, %s7
    // Predicated region
    $region29: #{_lambda_.28} parent=5 // pred_check
      %p602 = pneg %p601
    $region30: #{_lambda_.28} parent=5 // pred_check_branch
      %604 = sbr.rel (%p602) target = $region32
    $region31: #{_lambda_.28} parent=5 // pred_region
      %s605 = ssub.s32 %s7, 2
      // Predicated region
      $region33: #{_lambda_.28} parent=31 // pred_check
        %p606 = pneg %p62
      $region34: #{_lambda_.28} parent=31 // pred_check_branch
        %608 = sbr.rel (%p606) target = $region36
      $region35: #{_lambda_.28} parent=31 // pred_region
        %p609 = scmp.lt.s32.totalorder %s13, 1
        %s610 = scalar_select %p609, %s13, 1
        %s611 = smul.addr %s610, 8
        %s612 = scalar_lea.vmem %s1, %s611
      $region36: #{_lambda_.28} parent=31 // pred_fallthru
        _
    $region32: #{_lambda_.28} parent=5 // pred_fallthru
      _
  $region6: #{_lambda_.28} parent=0 // loop_footer
    %s11 = sadd.s32 1, %s7
  $region7: #{_lambda_.28} parent=0 // loop_footer_branch
    %6 = sbr.rel target = $region3
  $region8: #{_lambda_.28} parent=0 // loop_exit
    _

// kernel: _lambda_.30
$region0: #{_lambda_.30}
  #allocation0 [shape = 'u32[]', space=smem, size = 0x4, offset = 0x4, fixed_abs, tag = 'smem constant byte address 0x4 - core index']
  #allocation1 [shape = 'u32[144,128]{1,0:T(1,128)}', space=vmem, size = 0x12000, scoped, tag = 'internal scratch']
  #allocation2 [shape = 'f32[10,128]{1,0:T(8,128)}', space=vmem, size = 0x2000, scoped, tag = 'scratch operand']
  %s0 = inlined_call_operand.vmem [shape: f32[10,32], index: 0, kind: input, shape index: {}]
  %s1 = inlined_call_operand.vmem [shape: bf16[32,128], index: 1, kind: input, shape index: {}]
  %s2 = inlined_call_operand.vmem [shape: f32[1,32], index: 2, kind: input, shape index: {}]
  %s3 = inlined_call_operand.vmem [shape: f32[1,32], index: 3, kind: input, shape index: {}]
  %s4 = inlined_call_operand.vmem [shape: f32[1,128], index: 4, kind: input, shape index: {}]
  %s5 = inlined_call_operand.vmem [shape: f32[10,128], index: 5, kind: output, shape index: {}]
  %s6 = sld [smem:[#allocation0]]
  $region38: #{_lambda_.30} parent=0
    _
  %s8 = ssub.s32 1, %s6
  %s9 = scalar_select 0, %s8, %s6
  // Predicated region
  $region2: #{_lambda_.30} parent=0 // pred_check
    _
  $region3: #{_lambda_.30} parent=0 // pred_check_branch
    %11 = sbr.rel (0) target = $region5
  $region4: #{_lambda_.30} parent=0 // pred_region
    _
  $region5: #{_lambda_.30} parent=0 // pred_fallthru
    _
  // Predicated region
  $region6: #{_lambda_.30} parent=0 // pred_check
    _
  $region7: #{_lambda_.30} parent=0 // pred_check_branch
    %13 = sbr.rel (0) target = $region9
  $region8: #{_lambda_.30} parent=0 // pred_region
    _
  $region9: #{_lambda_.30} parent=0 // pred_fallthru
    _
  // Predicated region
  $region10: #{_lambda_.30} parent=0 // pred_check
    _
  $region11: #{_lambda_.30} parent=0 // pred_check_branch
    %15 = sbr.rel (0) target = $region13
  $region12: #{_lambda_.30} parent=0 // pred_region
    _
  $region13: #{_lambda_.30} parent=0 // pred_fallthru
    _
  // Predicated region
  $region14: #{_lambda_.30} parent=0 // pred_check
    _
  $region15: #{_lambda_.30} parent=0 // pred_check_branch
    %17 = sbr.rel (0) target = $region17
  $region16: #{_lambda_.30} parent=0 // pred_region
    _
  $region17: #{_lambda_.30} parent=0 // pred_fallthru
    _
  // Predicated region
  $region18: #{_lambda_.30} parent=0 // pred_check
    _
  $region19: #{_lambda_.30} parent=0 // pred_check_branch
    %19 = sbr.rel (0) target = $region21
  $region20: #{_lambda_.30} parent=0 // pred_region
    _
  $region21: #{_lambda_.30} parent=0 // pred_fallthru
    _
  %p21 = scmp.eq.s32.totalorder 0, 0
  // Predicated region
  $region22: #{_lambda_.30} parent=0 // pred_check
    %p22 = pneg %p21
  $region23: #{_lambda_.30} parent=0 // pred_check_branch
    %24 = sbr.rel (%p22) target = $region25
  $region24: #{_lambda_.30} parent=0 // pred_region
    %25 = vst [vmem:[#allocation2] sm:$0xff] 0.0
    %26 = vst [vmem:[#allocation2 + $0x8] sm:$0x3] 0.0
  $region25: #{_lambda_.30} parent=0 // pred_fallthru
    _
  %v27 = vld [vmem:[%s0] sm:$0xff]
  %v28 = vld [vmem:[%s0 + $0x8] sm:$0x3]
  %vm29 = vcmask 261120
  %v30 = vsel %vm29, %v27, 0.0
  %31 = vadd.xlane.f32.xlu0 %v30
  %v32 = vpop.xlane.xlu0 %31
  %vm33 = vcmask 254976
  %v34 = vsel %vm33, %v28, 0.0
  %35 = vadd.xlane.f32.xlu0 %v34
  %v36 = vpop.xlane.xlu0 %35
  %v37 = vrcp.pop 32.0
  %v38 = vmul.f32 %v32, %v37
  %v39 = vmul.f32 %v36, %v37
  %v40 = vsub.f32 %v27, %v38
  %v41 = vsub.f32 %v28, %v39
  %v42 = vmul.f32 %v40, %v40
  %v43 = vmul.f32 %v41, %v41
  %v44 = vsel %vm29, %v42, 0.0
  %45 = vadd.xlane.f32.xlu0 %v44
  %v46 = vpop.xlane.xlu0 %45
  %v47 = vsel %vm33, %v43, 0.0
  %48 = vadd.xlane.f32.xlu0 %v47
  %v49 = vpop.xlane.xlu0 %48
  %v50 = vmul.f32 %v46, %v37
  %v51 = vmul.f32 %v49, %v37
  %v52 = vadd.f32 %v50, 1e-05
  %v53 = vadd.f32 %v51, 1e-05
  %v54 = vrsqrt.pop %v52
  %v55 = vrsqrt.pop %v53
  %v56 = vmul.f32 %v40, %v54
  %v57 = vmul.f32 %v41, %v55
  %v58 = vld [vmem:[%s2] sm:$0x1]
  %v60 = vlaneseq
  %v61 = vshrl.u32 %v60, 7
  %v62 = vsub.s32 0, %v61
  %v63 = vrot.slane %v58, %v62
  %v65 = vmul.f32 %v56, %v63
  %v66 = vmul.f32 %v57, %v63
  %v67 = vld [vmem:[%s3] sm:$0x1]
  %v69 = vlaneseq
  %v70 = vshrl.u32 %v69, 7
  %v71 = vsub.s32 0, %v70
  %v72 = vrot.slane %v67, %v71
  %v74 = vadd.f32 %v65, %v72
  %v75 = vadd.f32 %v66, %v72
  %v76 = vpack.c.bf16 %v75, %v74
  %v77 = vld [vmem:[#allocation2] sm:$0xff]
  %v78 = vld [vmem:[#allocation2 + $0x8] sm:$0x3]
  %v79 = vld [vmem:[%s1] sm:$0xf]
  %v80 = vld [vmem:[%s1 + $0x4] sm:$0xf]
  %v81 = vld [vmem:[%s1 + $0x8] sm:$0xf]
  %v82 = vld [vmem:[%s1 + $0xc] sm:$0xf]
  %v87 = vunpack.c.l.b16 %v79
  %v88 = vunpack.c.l.b16 %v80
  %v89 = vunpack.c.l.b16 %v81
  %v90 = vunpack.c.l.b16 %v82
  %v91 = vpack.c.b16 %v88, %v87
  %v92 = vpack.c.b16 %v90, %v89
  %v96 = vsel %vm29, %v76, 0
  %98 = vmatprep.subr.bf16.mxu0 0
  %99 = vmatpush1.bf16.msra.mxu0 0
  %100 = vmatprep.subr.bf16.mxu0 0
  %101 = vmatpush1.bf16.msra.mxu0 0
  %102 = vmatprep.subr.bf16.mxu0 0
  %103 = vmatpush1.bf16.msra.mxu0 0
  %104 = vmatprep.subr.bf16.mxu0 0
  %105 = vmatpush1.bf16.msra.mxu0 0
  %106 = vmatprep.subr.bf16.mxu0 0
  %107 = vmatpush1.bf16.msra.mxu0 0
  %108 = vmatprep.subr.bf16.mxu0 0
  %109 = vmatpush1.bf16.msra.mxu0 0
  %110 = vmatprep.subr.bf16.mxu0 0
  %111 = vmatpush1.bf16.msra.mxu0 %v92
  %112 = vmatprep.subr.bf16.mxu0 0
  %113 = vmatpush1.bf16.msra.mxu0 %v91
  %114 = vmatprep.subr.bf16.mxu0 0
  %115 = vmatpush2.bf16.msra.mxu0 0
  %116 = vmatprep.subr.bf16.mxu0 0
  %117 = vmatpush2.bf16.msra.mxu0 0
  %118 = vmatprep.subr.bf16.mxu0 0
  %119 = vmatpush2.bf16.msra.mxu0 0
  %120 = vmatprep.subr.bf16.mxu0 0
  %121 = vmatpush2.bf16.msra.mxu0 0
  %122 = vmatprep.subr.bf16.mxu0 0
  %123 = vmatpush2.bf16.msra.mxu0 0
  %124 = vmatprep.subr.bf16.mxu0 0
  %125 = vmatpush2.bf16.msra.mxu0 0
  %126 = vmatprep.subr.bf16.mxu0 0
  %127 = vmatpush2.bf16.msra.mxu0 0
  %128 = vmatprep.subr.bf16.mxu0 0
  %129 = vmatpush2.bf16.msra.mxu0 0
  %130 = vmatprep.mubr.bf16.mxu0 0
  %131 = vmatmul.mubr.bf16.gmra.mxu0 %v96
  %v132 = vpop.f32.mrf.mxu0
  %v133 = vadd.f32 0.0, %v132
  %v134 = vpop.f32.mrf.mxu0
  %v135 = vpop.f32.mrf.mxu0
  %v136 = vadd.f32 0.0, %v135
  %v137 = vpop.f32.mrf.mxu0
  %138 = vdwg.mxu0
  %v139 = vadd.f32 %v77, %v133
  %v140 = vadd.f32 %v78, %v136
  %141 = vst [vmem:[#allocation2] sm:$0xff] %v139
  %142 = vst [vmem:[#allocation2 + $0x8] sm:$0x3] %v140
  // Predicated region
  $region26: #{_lambda_.30} parent=0 // pred_check
    %p143 = pneg %p21
  $region27: #{_lambda_.30} parent=0 // pred_check_branch
    %145 = sbr.rel (%p143) target = $region29
  $region28: #{_lambda_.30} parent=0 // pred_region
    %v146 = vld [vmem:[#allocation2] sm:$0xff]
    %v147 = vld [vmem:[#allocation2 + $0x8] sm:$0x3]
    %v148 = vld [vmem:[%s4] sm:$0x1]
    %v150 = vlaneseq
    %v151 = vshrl.u32 %v150, 7
    %v152 = vsub.s32 0, %v151
    %v153 = vrot.slane %v148, %v152
    %v155 = vadd.f32 %v146, %v153
    %v156 = vadd.f32 %v147, %v153
    %v157 = vmul.f32 %v155, 1.702
    %v158 = vmul.f32 %v156, 1.702
    %v159 = vxor.u32 %v157, 2147483648
    %v160 = vxor.u32 %v158, 2147483648
    %v161 = vmul.f32 %v159, 1.442695
    %v162 = vpow.pop %v161
    %v163 = vmul.f32 %v160, 1.442695
    %v164 = vpow.pop %v163
    %v165 = vadd.f32 %v162, 1.0
    %v166 = vadd.f32 %v164, 1.0
    %v167 = vrcp.pop %v165
    %v168 = vmul.f32 1.0, %v167
    %v169 = vrcp.pop %v166
    %v170 = vmul.f32 1.0, %v169
    %v171 = vmul.f32 %v155, %v168
    %v172 = vmul.f32 %v156, %v170
    %173 = vst [vmem:[%s5] sm:$0xff] %v171
    %174 = vst [vmem:[%s5 + $0x8] sm:$0x3] %v172
  $region29: #{_lambda_.30} parent=0 // pred_fallthru
    _
  // Predicated region
  $region30: #{_lambda_.30} parent=0 // pred_check
    _
  $region31: #{_lambda_.30} parent=0 // pred_check_branch
    %176 = sbr.rel (0) target = $region33
  $region32: #{_lambda_.30} parent=0 // pred_region
    _
  $region33: #{_lambda_.30} parent=0 // pred_fallthru
    _
  // Predicated region
  $region34: #{_lambda_.30} parent=0 // pred_check
    _
  $region35: #{_lambda_.30} parent=0 // pred_check_branch
    %178 = sbr.rel (0) target = $region37
  $region36: #{_lambda_.30} parent=0 // pred_region
    _
  $region37: #{_lambda_.30} parent=0 // pred_fallthru
    _

// kernel: _lambda_.29
$region0: #{_lambda_.29}
  #allocation0 [shape = 'u32[]', space=smem, size = 0x4, offset = 0x4, fixed_abs, tag = 'smem constant byte address 0x4 - core index']
  #allocation1 [shape = 'u32[144,128]{1,0:T(1,128)}', space=vmem, size = 0x12000, scoped, tag = 'internal scratch']
  #allocation2 [shape = 'f32[10,32]{1,0:T(8,128)}', space=vmem, size = 0x2000, scoped, tag = 'scratch operand']
  %s0 = inlined_call_operand.vmem [shape: f32[10,32], index: 0, kind: input, shape index: {}]
  %s1 = inlined_call_operand.vmem [shape: bf16[32,32], index: 1, kind: input, shape index: {}]
  %s2 = inlined_call_operand.vmem [shape: f32[1,32], index: 2, kind: input, shape index: {}]
  %s3 = inlined_call_operand.vmem [shape: f32[10,32], index: 3, kind: input, shape index: {}]
  %s4 = inlined_call_operand.vmem [shape: f32[10,32], index: 4, kind: output, shape index: {}]
  %s5 = sld [smem:[#allocation0]]
  $region34: #{_lambda_.29} parent=0
    _
  %s7 = ssub.s32 1, %s5
  %s8 = scalar_select 0, %s7, %s5
  // Predicated region
  $region2: #{_lambda_.29} parent=0 // pred_check
    _
  $region3: #{_lambda_.29} parent=0 // pred_check_branch
    %10 = sbr.rel (0) target = $region5
  $region4: #{_lambda_.29} parent=0 // pred_region
    _
  $region5: #{_lambda_.29} parent=0 // pred_fallthru
    _
  // Predicated region
  $region6: #{_lambda_.29} parent=0 // pred_check
    _
  $region7: #{_lambda_.29} parent=0 // pred_check_branch
    %12 = sbr.rel (0) target = $region9
  $region8: #{_lambda_.29} parent=0 // pred_region
    _
  $region9: #{_lambda_.29} parent=0 // pred_fallthru
    _
  // Predicated region
  $region10: #{_lambda_.29} parent=0 // pred_check
    _
  $region11: #{_lambda_.29} parent=0 // pred_check_branch
    %14 = sbr.rel (0) target = $region13
  $region12: #{_lambda_.29} parent=0 // pred_region
    _
  $region13: #{_lambda_.29} parent=0 // pred_fallthru
    _
  // Predicated region
  $region14: #{_lambda_.29} parent=0 // pred_check
    _
  $region15: #{_lambda_.29} parent=0 // pred_check_branch
    %16 = sbr.rel (0) target = $region17
  $region16: #{_lambda_.29} parent=0 // pred_region
    _
  $region17: #{_lambda_.29} parent=0 // pred_fallthru
    _
  %p18 = scmp.eq.s32.totalorder 0, 0
  // Predicated region
  $region18: #{_lambda_.29} parent=0 // pred_check
    %p19 = pneg %p18
  $region19: #{_lambda_.29} parent=0 // pred_check_branch
    %21 = sbr.rel (%p19) target = $region21
  $region20: #{_lambda_.29} parent=0 // pred_region
    %vm22 = vcmask 261120
    %23 = vst.msk [vmem:[#allocation2] sm:$0xff] %vm22, 0.0
    %vm24 = vcmask 254976
    %25 = vst.msk [vmem:[#allocation2 + $0x8] sm:$0x3] %vm24, 0.0
  $region21: #{_lambda_.29} parent=0 // pred_fallthru
    _
  %v26 = vld [vmem:[%s0] sm:$0xff]
  %v27 = vld [vmem:[%s0 + $0x8] sm:$0x3]
  %v28 = vpack.c.bf16 %v27, %v26
  %v29 = vld [vmem:[#allocation2] sm:$0xff]
  %v30 = vld [vmem:[#allocation2 + $0x8] sm:$0x3]
  %v31 = vld [vmem:[%s1] sm:$0xf]
  %v32 = vld [vmem:[%s1 + $0x4] sm:$0xf]
  %v33 = vld [vmem:[%s1 + $0x8] sm:$0xf]
  %v34 = vld [vmem:[%s1 + $0xc] sm:$0xf]
  %v39 = vunpack.c.l.b16 %v31
  %v40 = vunpack.c.l.b16 %v32
  %v41 = vunpack.c.l.b16 %v33
  %v42 = vunpack.c.l.b16 %v34
  %v43 = vpack.c.b16 %v40, %v39
  %v44 = vpack.c.b16 %v42, %v41
  %vm47 = vcmask 261120
  %v49 = vsel %vm47, %v28, 0
  %51 = vmatprep.subr.bf16.mxu0 0
  %52 = vmatpush1.bf16.msra.mxu0 0
  %53 = vmatprep.subr.bf16.mxu0 0
  %54 = vmatpush1.bf16.msra.mxu0 0
  %55 = vmatprep.subr.bf16.mxu0 0
  %56 = vmatpush1.bf16.msra.mxu0 0
  %57 = vmatprep.subr.bf16.mxu0 0
  %58 = vmatpush1.bf16.msra.mxu0 0
  %59 = vmatprep.subr.bf16.mxu0 0
  %60 = vmatpush1.bf16.msra.mxu0 0
  %61 = vmatprep.subr.bf16.mxu0 0
  %62 = vmatpush1.bf16.msra.mxu0 0
  %63 = vmatprep.subr.bf16.mxu0 0
  %64 = vmatpush1.bf16.msra.mxu0 %v44
  %65 = vmatprep.subr.bf16.mxu0 0
  %66 = vmatpush1.bf16.msra.mxu0 %v43
  %67 = vmatprep.subr.bf16.mxu0 0
  %68 = vmatpush2.bf16.msra.mxu0 0
  %69 = vmatprep.subr.bf16.mxu0 0
  %70 = vmatpush2.bf16.msra.mxu0 0
  %71 = vmatprep.subr.bf16.mxu0 0
  %72 = vmatpush2.bf16.msra.mxu0 0
  %73 = vmatprep.subr.bf16.mxu0 0
  %74 = vmatpush2.bf16.msra.mxu0 0
  %75 = vmatprep.subr.bf16.mxu0 0
  %76 = vmatpush2.bf16.msra.mxu0 0
  %77 = vmatprep.subr.bf16.mxu0 0
  %78 = vmatpush2.bf16.msra.mxu0 0
  %79 = vmatprep.subr.bf16.mxu0 0
  %80 = vmatpush2.bf16.msra.mxu0 0
  %81 = vmatprep.subr.bf16.mxu0 0
  %82 = vmatpush2.bf16.msra.mxu0 0
  %83 = vmatprep.mubr.bf16.mxu0 0
  %84 = vmatmul.mubr.bf16.gmra.mxu0 %v49
  %v85 = vpop.f32.mrf.mxu0
  %v86 = vadd.f32 0.0, %v85
  %v87 = vpop.f32.mrf.mxu0
  %v88 = vpop.f32.mrf.mxu0
  %v89 = vadd.f32 0.0, %v88
  %v90 = vpop.f32.mrf.mxu0
  %91 = vdwg.mxu0
  %v92 = vadd.f32 %v29, %v86
  %v93 = vadd.f32 %v30, %v89
  %94 = vst.msk [vmem:[#allocation2] sm:$0xff] %vm47, %v92
  %vm95 = vcmask 254976
  %96 = vst.msk [vmem:[#allocation2 + $0x8] sm:$0x3] %vm95, %v93
  // Predicated region
  $region22: #{_lambda_.29} parent=0 // pred_check
    %p97 = pneg %p18
  $region23: #{_lambda_.29} parent=0 // pred_check_branch
    %99 = sbr.rel (%p97) target = $region25
  $region24: #{_lambda_.29} parent=0 // pred_region
    %v100 = vld [vmem:[#allocation2] sm:$0xff]
    %v101 = vld [vmem:[#allocation2 + $0x8] sm:$0x3]
    %v102 = vld [vmem:[%s2] sm:$0x1]
    %v104 = vlaneseq
    %v105 = vshrl.u32 %v104, 7
    %v106 = vsub.s32 0, %v105
    %v107 = vrot.slane %v102, %v106
    %v109 = vadd.f32 %v100, %v107
    %v110 = vadd.f32 %v101, %v107
    %v111 = vld [vmem:[%s3] sm:$0xff]
    %v112 = vld [vmem:[%s3 + $0x8] sm:$0x3]
    %v113 = vadd.f32 %v109, %v111
    %v114 = vadd.f32 %v110, %v112
    %115 = vst.msk [vmem:[%s4] sm:$0xff] %vm47, %v113
    %116 = vst.msk [vmem:[%s4 + $0x8] sm:$0x3] %vm95, %v114
  $region25: #{_lambda_.29} parent=0 // pred_fallthru
    _
  // Predicated region
  $region26: #{_lambda_.29} parent=0 // pred_check
    _
  $region27: #{_lambda_.29} parent=0 // pred_check_branch
    %118 = sbr.rel (0) target = $region29
  $region28: #{_lambda_.29} parent=0 // pred_region
    _
  $region29: #{_lambda_.29} parent=0 // pred_fallthru
    _
  // Predicated region
  $region30: #{_lambda_.29} parent=0 // pred_check
    _
  $region31: #{_lambda_.29} parent=0 // pred_check_branch
    %120 = sbr.rel (0) target = $region33
  $region32: #{_lambda_.29} parent=0 // pred_region
    _
  $region33: #{_lambda_.29} parent=0 // pred_fallthru
    _

// kernel: _lambda_.31
$region0: #{_lambda_.31}
  #allocation0 [shape = 'u32[]', space=smem, size = 0x4, offset = 0x4, fixed_abs, tag = 'smem constant byte address 0x4 - core index']
  #allocation1 [shape = 'u32[144,128]{1,0:T(1,128)}', space=vmem, size = 0x12000, scoped, tag = 'internal scratch']
  #allocation2 [shape = 'f32[10,32]{1,0:T(8,128)}', space=vmem, size = 0x2000, scoped, tag = 'scratch operand']
  %s0 = inlined_call_operand.vmem [shape: f32[10,128], index: 0, kind: input, shape index: {}]
  %s1 = inlined_call_operand.vmem [shape: bf16[128,32], index: 1, kind: input, shape index: {}]
  %s2 = inlined_call_operand.vmem [shape: f32[1,32], index: 2, kind: input, shape index: {}]
  %s3 = inlined_call_operand.vmem [shape: f32[10,32], index: 3, kind: input, shape index: {}]
  %s4 = inlined_call_operand.vmem [shape: f32[10,32], index: 4, kind: output, shape index: {}]
  %s5 = sld [smem:[#allocation0]]
  $region34: #{_lambda_.31} parent=0
    _
  %s7 = ssub.s32 1, %s5
  %s8 = scalar_select 0, %s7, %s5
  // Predicated region
  $region2: #{_lambda_.31} parent=0 // pred_check
    _
  $region3: #{_lambda_.31} parent=0 // pred_check_branch
    %10 = sbr.rel (0) target = $region5
  $region4: #{_lambda_.31} parent=0 // pred_region
    _
  $region5: #{_lambda_.31} parent=0 // pred_fallthru
    _
  // Predicated region
  $region6: #{_lambda_.31} parent=0 // pred_check
    _
  $region7: #{_lambda_.31} parent=0 // pred_check_branch
    %12 = sbr.rel (0) target = $region9
  $region8: #{_lambda_.31} parent=0 // pred_region
    _
  $region9: #{_lambda_.31} parent=0 // pred_fallthru
    _
  // Predicated region
  $region10: #{_lambda_.31} parent=0 // pred_check
    _
  $region11: #{_lambda_.31} parent=0 // pred_check_branch
    %14 = sbr.rel (0) target = $region13
  $region12: #{_lambda_.31} parent=0 // pred_region
    _
  $region13: #{_lambda_.31} parent=0 // pred_fallthru
    _
  // Predicated region
  $region14: #{_lambda_.31} parent=0 // pred_check
    _
  $region15: #{_lambda_.31} parent=0 // pred_check_branch
    %16 = sbr.rel (0) target = $region17
  $region16: #{_lambda_.31} parent=0 // pred_region
    _
  $region17: #{_lambda_.31} parent=0 // pred_fallthru
    _
  %p18 = scmp.eq.s32.totalorder 0, 0
  // Predicated region
  $region18: #{_lambda_.31} parent=0 // pred_check
    %p19 = pneg %p18
  $region19: #{_lambda_.31} parent=0 // pred_check_branch
    %21 = sbr.rel (%p19) target = $region21
  $region20: #{_lambda_.31} parent=0 // pred_region
    %vm22 = vcmask 261120
    %23 = vst.msk [vmem:[#allocation2] sm:$0xff] %vm22, 0.0
    %vm24 = vcmask 254976
    %25 = vst.msk [vmem:[#allocation2 + $0x8] sm:$0x3] %vm24, 0.0
  $region21: #{_lambda_.31} parent=0 // pred_fallthru
    _
  %v26 = vld [vmem:[%s0] sm:$0xff]
  %v27 = vld [vmem:[%s0 + $0x8] sm:$0x3]
  %v28 = vpack.c.bf16 %v27, %v26
  %v29 = vld [vmem:[#allocation2] sm:$0xff]
  %v30 = vld [vmem:[#allocation2 + $0x8] sm:$0x3]
  %v31 = vld [vmem:[%s1] sm:$0xf]
  %v32 = vld [vmem:[%s1 + $0x4] sm:$0xf]
  %v33 = vld [vmem:[%s1 + $0x8] sm:$0xf]
  %v34 = vld [vmem:[%s1 + $0xc] sm:$0xf]
  %v35 = vld [vmem:[%s1 + $0x10] sm:$0xf]
  %v36 = vld [vmem:[%s1 + $0x14] sm:$0xf]
  %v37 = vld [vmem:[%s1 + $0x18] sm:$0xf]
  %v38 = vld [vmem:[%s1 + $0x1c] sm:$0xf]
  %v39 = vld [vmem:[%s1 + $0x20] sm:$0xf]
  %v40 = vld [vmem:[%s1 + $0x24] sm:$0xf]
  %v41 = vld [vmem:[%s1 + $0x28] sm:$0xf]
  %v42 = vld [vmem:[%s1 + $0x2c] sm:$0xf]
  %v43 = vld [vmem:[%s1 + $0x30] sm:$0xf]
  %v44 = vld [vmem:[%s1 + $0x34] sm:$0xf]
  %v45 = vld [vmem:[%s1 + $0x38] sm:$0xf]
  %v46 = vld [vmem:[%s1 + $0x3c] sm:$0xf]
  %v63 = vunpack.c.l.b16 %v31
  %v64 = vunpack.c.l.b16 %v32
  %v65 = vunpack.c.l.b16 %v33
  %v66 = vunpack.c.l.b16 %v34
  %v67 = vunpack.c.l.b16 %v35
  %v68 = vunpack.c.l.b16 %v36
  %v69 = vunpack.c.l.b16 %v37
  %v70 = vunpack.c.l.b16 %v38
  %v71 = vunpack.c.l.b16 %v39
  %v72 = vunpack.c.l.b16 %v40
  %v73 = vunpack.c.l.b16 %v41
  %v74 = vunpack.c.l.b16 %v42
  %v75 = vunpack.c.l.b16 %v43
  %v76 = vunpack.c.l.b16 %v44
  %v77 = vunpack.c.l.b16 %v45
  %v78 = vunpack.c.l.b16 %v46
  %v79 = vpack.c.b16 %v64, %v63
  %v80 = vpack.c.b16 %v66, %v65
  %v81 = vpack.c.b16 %v68, %v67
  %v82 = vpack.c.b16 %v70, %v69
  %v83 = vpack.c.b16 %v72, %v71
  %v84 = vpack.c.b16 %v74, %v73
  %v85 = vpack.c.b16 %v76, %v75
  %v86 = vpack.c.b16 %v78, %v77
  %95 = vmatprep.subr.bf16.mxu0 0
  %96 = vmatpush1.bf16.msra.mxu0 %v86
  %97 = vmatprep.subr.bf16.mxu0 0
  %98 = vmatpush1.bf16.msra.mxu0 %v85
  %99 = vmatprep.subr.bf16.mxu0 0
  %100 = vmatpush1.bf16.msra.mxu0 %v84
  %101 = vmatprep.subr.bf16.mxu0 0
  %102 = vmatpush1.bf16.msra.mxu0 %v83
  %103 = vmatprep.subr.bf16.mxu0 0
  %104 = vmatpush1.bf16.msra.mxu0 %v82
  %105 = vmatprep.subr.bf16.mxu0 0
  %106 = vmatpush1.bf16.msra.mxu0 %v81
  %107 = vmatprep.subr.bf16.mxu0 0
  %108 = vmatpush1.bf16.msra.mxu0 %v80
  %109 = vmatprep.subr.bf16.mxu0 0
  %110 = vmatpush1.bf16.msra.mxu0 %v79
  %111 = vmatprep.subr.bf16.mxu0 0
  %112 = vmatpush2.bf16.msra.mxu0 0
  %113 = vmatprep.subr.bf16.mxu0 0
  %114 = vmatpush2.bf16.msra.mxu0 0
  %115 = vmatprep.subr.bf16.mxu0 0
  %116 = vmatpush2.bf16.msra.mxu0 0
  %117 = vmatprep.subr.bf16.mxu0 0
  %118 = vmatpush2.bf16.msra.mxu0 0
  %119 = vmatprep.subr.bf16.mxu0 0
  %120 = vmatpush2.bf16.msra.mxu0 0
  %121 = vmatprep.subr.bf16.mxu0 0
  %122 = vmatpush2.bf16.msra.mxu0 0
  %123 = vmatprep.subr.bf16.mxu0 0
  %124 = vmatpush2.bf16.msra.mxu0 0
  %125 = vmatprep.subr.bf16.mxu0 0
  %126 = vmatpush2.bf16.msra.mxu0 0
  %127 = vmatprep.mubr.bf16.mxu0 0
  %128 = vmatmul.mubr.bf16.gmra.mxu0 %v28
  %v129 = vpop.f32.mrf.mxu0
  %v130 = vadd.f32 0.0, %v129
  %v131 = vpop.f32.mrf.mxu0
  %v132 = vpop.f32.mrf.mxu0
  %v133 = vadd.f32 0.0, %v132
  %v134 = vpop.f32.mrf.mxu0
  %135 = vdwg.mxu0
  %v136 = vadd.f32 %v29, %v130
  %v137 = vadd.f32 %v30, %v133
  %vm138 = vcmask 261120
  %139 = vst.msk [vmem:[#allocation2] sm:$0xff] %vm138, %v136
  %vm140 = vcmask 254976
  %141 = vst.msk [vmem:[#allocation2 + $0x8] sm:$0x3] %vm140, %v137
  // Predicated region
  $region22: #{_lambda_.31} parent=0 // pred_check
    %p142 = pneg %p18
  $region23: #{_lambda_.31} parent=0 // pred_check_branch
    %144 = sbr.rel (%p142) target = $region25
  $region24: #{_lambda_.31} parent=0 // pred_region
    %v145 = vld [vmem:[#allocation2] sm:$0xff]
    %v146 = vld [vmem:[#allocation2 + $0x8] sm:$0x3]
    %v147 = vld [vmem:[%s2] sm:$0x1]
    %v149 = vlaneseq
    %v150 = vshrl.u32 %v149, 7
    %v151 = vsub.s32 0, %v150
    %v152 = vrot.slane %v147, %v151
    %v154 = vadd.f32 %v145, %v152
    %v155 = vadd.f32 %v146, %v152
    %v156 = vld [vmem:[%s3] sm:$0xff]
    %v157 = vld [vmem:[%s3 + $0x8] sm:$0x3]
    %v158 = vadd.f32 %v154, %v156
    %v159 = vadd.f32 %v155, %v157
    %160 = vst.msk [vmem:[%s4] sm:$0xff] %vm138, %v158
    %161 = vst.msk [vmem:[%s4 + $0x8] sm:$0x3] %vm140, %v159
  $region25: #{_lambda_.31} parent=0 // pred_fallthru
    _
  // Predicated region
  $region26: #{_lambda_.31} parent=0 // pred_check
    _
  $region27: #{_lambda_.31} parent=0 // pred_check_branch
    %163 = sbr.rel (0) target = $region29
  $region28: #{_lambda_.31} parent=0 // pred_region
    _
  $region29: #{_lambda_.31} parent=0 // pred_fallthru
    _
  // Predicated region
  $region30: #{_lambda_.31} parent=0 // pred_check
    _
  $region31: #{_lambda_.31} parent=0 // pred_check_branch
    %165 = sbr.rel (0) target = $region33
  $region32: #{_lambda_.31} parent=0 // pred_region
    _
  $region33: #{_lambda_.31} parent=0 // pred_fallthru
    _

// kernel: _lambda_.37
$region0: #{_lambda_.37}
  #allocation0 [shape = 'u32[]', space=smem, size = 0x4, offset = 0x4, fixed_abs, tag = 'smem constant byte address 0x4 - core index']
  #allocation1 [shape = 'u32[144,128]{1,0:T(1,128)}', space=vmem, size = 0x12000, scoped, tag = 'internal scratch']
  #allocation2 [shape = 'f32[2,16]{1,0:T(2,128)}', space=vmem, size = 0x400, scoped, tag = 'scratch operand']
  %s0 = inlined_call_operand.vmem [shape: f32[2,32], index: 0, kind: input, shape index: {}]
  %s1 = inlined_call_operand.vmem [shape: bf16[32,16], index: 1, kind: input, shape index: {}]
  %s2 = inlined_call_operand.vmem [shape: f32[1,32], index: 2, kind: input, shape index: {}]
  %s3 = inlined_call_operand.vmem [shape: f32[1,32], index: 3, kind: input, shape index: {}]
  %s4 = inlined_call_operand.vmem [shape: f32[2,16], index: 4, kind: output, shape index: {}]
  %s5 = sld [smem:[#allocation0]]
  $region34: #{_lambda_.37} parent=0
    _
  %s7 = ssub.s32 1, %s5
  %s8 = scalar_select 0, %s7, %s5
  // Predicated region
  $region2: #{_lambda_.37} parent=0 // pred_check
    _
  $region3: #{_lambda_.37} parent=0 // pred_check_branch
    %10 = sbr.rel (0) target = $region5
  $region4: #{_lambda_.37} parent=0 // pred_region
    _
  $region5: #{_lambda_.37} parent=0 // pred_fallthru
    _
  // Predicated region
  $region6: #{_lambda_.37} parent=0 // pred_check
    _
  $region7: #{_lambda_.37} parent=0 // pred_check_branch
    %12 = sbr.rel (0) target = $region9
  $region8: #{_lambda_.37} parent=0 // pred_region
    _
  $region9: #{_lambda_.37} parent=0 // pred_fallthru
    _
  // Predicated region
  $region10: #{_lambda_.37} parent=0 // pred_check
    _
  $region11: #{_lambda_.37} parent=0 // pred_check_branch
    %14 = sbr.rel (0) target = $region13
  $region12: #{_lambda_.37} parent=0 // pred_region
    _
  $region13: #{_lambda_.37} parent=0 // pred_fallthru
    _
  // Predicated region
  $region14: #{_lambda_.37} parent=0 // pred_check
    _
  $region15: #{_lambda_.37} parent=0 // pred_check_branch
    %16 = sbr.rel (0) target = $region17
  $region16: #{_lambda_.37} parent=0 // pred_region
    _
  $region17: #{_lambda_.37} parent=0 // pred_fallthru
    _
  %p18 = scmp.eq.s32.totalorder 0, 0
  // Predicated region
  $region18: #{_lambda_.37} parent=0 // pred_check
    %p19 = pneg %p18
  $region19: #{_lambda_.37} parent=0 // pred_check_branch
    %21 = sbr.rel (%p19) target = $region21
  $region20: #{_lambda_.37} parent=0 // pred_region
    %vm22 = vcmask 123904
    %23 = vst.msk [vmem:[#allocation2] sm:$0x3] %vm22, 0.0
  $region21: #{_lambda_.37} parent=0 // pred_fallthru
    _
  %v24 = vld [vmem:[%s0] sm:$0x3]
  %vm25 = vcmask 254976
  %v26 = vsel %vm25, %v24, 0.0
  %27 = vadd.xlane.f32.xlu0 %v26
  %v28 = vpop.xlane.xlu0 %27
  %v29 = vrcp.pop 32.0
  %v30 = vmul.f32 %v28, %v29
  %v31 = vsub.f32 %v24, %v30
  %v32 = vmul.f32 %v31, %v31
  %v33 = vsel %vm25, %v32, 0.0
  %34 = vadd.xlane.f32.xlu0 %v33
  %v35 = vpop.xlane.xlu0 %34
  %v36 = vmul.f32 %v35, %v29
  %v37 = vadd.f32 %v36, 1e-05
  %v38 = vrsqrt.pop %v37
  %v39 = vmul.f32 %v31, %v38
  %v40 = vld [vmem:[%s2] sm:$0x1]
  %v42 = vlaneseq
  %v43 = vshrl.u32 %v42, 7
  %v44 = vsub.s32 0, %v43
  %v45 = vrot.slane %v40, %v44
  %v47 = vmul.f32 %v39, %v45
  %v48 = vld [vmem:[%s3] sm:$0x1]
  %v50 = vlaneseq
  %v51 = vshrl.u32 %v50, 7
  %v52 = vsub.s32 0, %v51
  %v53 = vrot.slane %v48, %v52
  %v55 = vadd.f32 %v47, %v53
  %v56 = vpack.c.bf16 %v55, %v55
  %v57 = vld [vmem:[#allocation2] sm:$0x3]
  %v58 = vld [vmem:[%s1] sm:$0xf]
  %v59 = vld [vmem:[%s1 + $0x4] sm:$0xf]
  %v60 = vld [vmem:[%s1 + $0x8] sm:$0xf]
  %v61 = vld [vmem:[%s1 + $0xc] sm:$0xf]
  %v66 = vunpack.c.l.b16 %v58
  %v67 = vunpack.c.l.b16 %v59
  %v68 = vunpack.c.l.b16 %v60
  %v69 = vunpack.c.l.b16 %v61
  %v70 = vpack.c.b16 %v67, %v66
  %v71 = vpack.c.b16 %v69, %v68
  %vm74 = vcmask 261120
  %v76 = vsel %vm74, %v56, 0
  %78 = vmatprep.subr.bf16.mxu0 0
  %79 = vmatpush1.bf16.msra.mxu0 0
  %80 = vmatprep.subr.bf16.mxu0 0
  %81 = vmatpush1.bf16.msra.mxu0 0
  %82 = vmatprep.subr.bf16.mxu0 0
  %83 = vmatpush1.bf16.msra.mxu0 0
  %84 = vmatprep.subr.bf16.mxu0 0
  %85 = vmatpush1.bf16.msra.mxu0 0
  %86 = vmatprep.subr.bf16.mxu0 0
  %87 = vmatpush1.bf16.msra.mxu0 0
  %88 = vmatprep.subr.bf16.mxu0 0
  %89 = vmatpush1.bf16.msra.mxu0 0
  %90 = vmatprep.subr.bf16.mxu0 0
  %91 = vmatpush1.bf16.msra.mxu0 %v71
  %92 = vmatprep.subr.bf16.mxu0 0
  %93 = vmatpush1.bf16.msra.mxu0 %v70
  %94 = vmatprep.subr.bf16.mxu0 0
  %95 = vmatpush2.bf16.msra.mxu0 0
  %96 = vmatprep.subr.bf16.mxu0 0
  %97 = vmatpush2.bf16.msra.mxu0 0
  %98 = vmatprep.subr.bf16.mxu0 0
  %99 = vmatpush2.bf16.msra.mxu0 0
  %100 = vmatprep.subr.bf16.mxu0 0
  %101 = vmatpush2.bf16.msra.mxu0 0
  %102 = vmatprep.subr.bf16.mxu0 0
  %103 = vmatpush2.bf16.msra.mxu0 0
  %104 = vmatprep.subr.bf16.mxu0 0
  %105 = vmatpush2.bf16.msra.mxu0 0
  %106 = vmatprep.subr.bf16.mxu0 0
  %107 = vmatpush2.bf16.msra.mxu0 0
  %108 = vmatprep.subr.bf16.mxu0 0
  %109 = vmatpush2.bf16.msra.mxu0 0
  %110 = vmatprep.mubr.bf16.mxu0 0
  %111 = vmatmul.mubr.bf16.gmra.mxu0 %v76
  %v112 = vpop.f32.mrf.mxu0
  %v113 = vadd.f32 0.0, %v112
  %v114 = vpop.f32.mrf.mxu0
  %v115 = vpop.f32.mrf.mxu0
  %v116 = vpop.f32.mrf.mxu0
  %117 = vdwg.mxu0
  %v118 = vadd.f32 %v57, %v113
  %vm119 = vcmask 123904
  %120 = vst.msk [vmem:[#allocation2] sm:$0x3] %vm119, %v118
  // Predicated region
  $region22: #{_lambda_.37} parent=0 // pred_check
    %p121 = pneg %p18
  $region23: #{_lambda_.37} parent=0 // pred_check_branch
    %123 = sbr.rel (%p121) target = $region25
  $region24: #{_lambda_.37} parent=0 // pred_region
    %v124 = vld [vmem:[#allocation2] sm:$0x3]
    %125 = vst.msk [vmem:[%s4] sm:$0x3] %vm119, %v124
  $region25: #{_lambda_.37} parent=0 // pred_fallthru
    _
  // Predicated region
  $region26: #{_lambda_.37} parent=0 // pred_check
    _
  $region27: #{_lambda_.37} parent=0 // pred_check_branch
    %127 = sbr.rel (0) target = $region29
  $region28: #{_lambda_.37} parent=0 // pred_region
    _
  $region29: #{_lambda_.37} parent=0 // pred_fallthru
    _
  // Predicated region
  $region30: #{_lambda_.37} parent=0 // pred_check
    _
  $region31: #{_lambda_.37} parent=0 // pred_check_branch
    %129 = sbr.rel (0) target = $region33
  $region32: #{_lambda_.37} parent=0 // pred_region
    _
  $region33: #{_lambda_.37} parent=0 // pred_fallthru
    _

// kernel: _lambda_.38
$region0: #{_lambda_.38}
  #allocation0 [shape = 'u32[]', space=smem, size = 0x4, offset = 0x4, fixed_abs, tag = 'smem constant byte address 0x4 - core index']
  #allocation1 [shape = 'u32[144,128]{1,0:T(1,128)}', space=vmem, size = 0x12000, scoped, tag = 'internal scratch']
  #allocation2 [shape = 'f32[48,96]{1,0:T(8,128)}', space=vmem, size = 0x6000, scoped, tag = 'scratch operand']
  %s0 = inlined_call_operand.vmem [shape: f32[48,32], index: 0, kind: input, shape index: {}]
  %s1 = inlined_call_operand.vmem [shape: bf16[32,96], index: 1, kind: input, shape index: {}]
  %s2 = inlined_call_operand.vmem [shape: f32[1,32], index: 2, kind: input, shape index: {}]
  %s3 = inlined_call_operand.vmem [shape: f32[1,32], index: 3, kind: input, shape index: {}]
  %s4 = inlined_call_operand.vmem [shape: f32[1,96], index: 4, kind: input, shape index: {}]
  %s5 = inlined_call_operand.vmem [shape: f32[48,96], index: 5, kind: output, shape index: {}]
  %s6 = sld [smem:[#allocation0]]
  $region38: #{_lambda_.38} parent=0
    _
  %s8 = ssub.s32 1, %s6
  %s9 = scalar_select 0, %s8, %s6
  // Predicated region
  $region2: #{_lambda_.38} parent=0 // pred_check
    _
  $region3: #{_lambda_.38} parent=0 // pred_check_branch
    %11 = sbr.rel (0) target = $region5
  $region4: #{_lambda_.38} parent=0 // pred_region
    _
  $region5: #{_lambda_.38} parent=0 // pred_fallthru
    _
  // Predicated region
  $region6: #{_lambda_.38} parent=0 // pred_check
    _
  $region7: #{_lambda_.38} parent=0 // pred_check_branch
    %13 = sbr.rel (0) target = $region9
  $region8: #{_lambda_.38} parent=0 // pred_region
    _
  $region9: #{_lambda_.38} parent=0 // pred_fallthru
    _
  // Predicated region
  $region10: #{_lambda_.38} parent=0 // pred_check
    _
  $region11: #{_lambda_.38} parent=0 // pred_check_branch
    %15 = sbr.rel (0) target = $region13
  $region12: #{_lambda_.38} parent=0 // pred_region
    _
  $region13: #{_lambda_.38} parent=0 // pred_fallthru
    _
  // Predicated region
  $region14: #{_lambda_.38} parent=0 // pred_check
    _
  $region15: #{_lambda_.38} parent=0 // pred_check_branch
    %17 = sbr.rel (0) target = $region17
  $region16: #{_lambda_.38} parent=0 // pred_region
    _
  $region17: #{_lambda_.38} parent=0 // pred_fallthru
    _
  // Predicated region
  $region18: #{_lambda_.38} parent=0 // pred_check
    _
  $region19: #{_lambda_.38} parent=0 // pred_check_branch
    %19 = sbr.rel (0) target = $region21
  $region20: #{_lambda_.38} parent=0 // pred_region
    _
  $region21: #{_lambda_.38} parent=0 // pred_fallthru
    _
  %p21 = scmp.eq.s32.totalorder 0, 0
  // Predicated region
  $region22: #{_lambda_.38} parent=0 // pred_check
    %p22 = pneg %p21
  $region23: #{_lambda_.38} parent=0 // pred_check_branch
    %24 = sbr.rel (%p22) target = $region25
  $region24: #{_lambda_.38} parent=0 // pred_region
    %vm25 = vcmask 785408
    %26 = vst.msk [vmem:[#allocation2] sm:$0xff] %vm25, 0.0
    %27 = vst.msk [vmem:[#allocation2 + $0x8] sm:$0xff] %vm25, 0.0
    %28 = vst.msk [vmem:[#allocation2 + $0x10] sm:$0xff] %vm25, 0.0
    %29 = vst.msk [vmem:[#allocation2 + $0x18] sm:$0xff] %vm25, 0.0
    %30 = vst.msk [vmem:[#allocation2 + $0x20] sm:$0xff] %vm25, 0.0
    %31 = vst.msk [vmem:[#allocation2 + $0x28] sm:$0xff] %vm25, 0.0
  $region25: #{_lambda_.38} parent=0 // pred_fallthru
    _
  %v32 = vld [vmem:[%s0] sm:$0xff]
  %v33 = vld [vmem:[%s0 + $0x8] sm:$0xff]
  %v34 = vld [vmem:[%s0 + $0x10] sm:$0xff]
  %v35 = vld [vmem:[%s0 + $0x18] sm:$0xff]
  %v36 = vld [vmem:[%s0 + $0x20] sm:$0xff]
  %v37 = vld [vmem:[%s0 + $0x28] sm:$0xff]
  %vm38 = vcmask 261120
  %v39 = vsel %vm38, %v32, 0.0
  %40 = vadd.xlane.f32.xlu0 %v39
  %v41 = vpop.xlane.xlu0 %40
  %v42 = vsel %vm38, %v33, 0.0
  %43 = vadd.xlane.f32.xlu0 %v42
  %v44 = vpop.xlane.xlu0 %43
  %v45 = vsel %vm38, %v34, 0.0
  %46 = vadd.xlane.f32.xlu0 %v45
  %v47 = vpop.xlane.xlu0 %46
  %v48 = vsel %vm38, %v35, 0.0
  %49 = vadd.xlane.f32.xlu0 %v48
  %v50 = vpop.xlane.xlu0 %49
  %v51 = vsel %vm38, %v36, 0.0
  %52 = vadd.xlane.f32.xlu0 %v51
  %v53 = vpop.xlane.xlu0 %52
  %v54 = vsel %vm38, %v37, 0.0
  %55 = vadd.xlane.f32.xlu0 %v54
  %v56 = vpop.xlane.xlu0 %55
  %v57 = vrcp.pop 32.0
  %v58 = vmul.f32 %v41, %v57
  %v59 = vmul.f32 %v44, %v57
  %v60 = vmul.f32 %v47, %v57
  %v61 = vmul.f32 %v50, %v57
  %v62 = vmul.f32 %v53, %v57
  %v63 = vmul.f32 %v56, %v57
  %v64 = vsub.f32 %v32, %v58
  %v65 = vsub.f32 %v33, %v59
  %v66 = vsub.f32 %v34, %v60
  %v67 = vsub.f32 %v35, %v61
  %v68 = vsub.f32 %v36, %v62
  %v69 = vsub.f32 %v37, %v63
  %v70 = vmul.f32 %v64, %v64
  %v71 = vmul.f32 %v65, %v65
  %v72 = vmul.f32 %v66, %v66
  %v73 = vmul.f32 %v67, %v67
  %v74 = vmul.f32 %v68, %v68
  %v75 = vmul.f32 %v69, %v69
  %v76 = vsel %vm38, %v70, 0.0
  %77 = vadd.xlane.f32.xlu0 %v76
  %v78 = vpop.xlane.xlu0 %77
  %v79 = vsel %vm38, %v71, 0.0
  %80 = vadd.xlane.f32.xlu0 %v79
  %v81 = vpop.xlane.xlu0 %80
  %v82 = vsel %vm38, %v72, 0.0
  %83 = vadd.xlane.f32.xlu0 %v82
  %v84 = vpop.xlane.xlu0 %83
  %v85 = vsel %vm38, %v73, 0.0
  %86 = vadd.xlane.f32.xlu0 %v85
  %v87 = vpop.xlane.xlu0 %86
  %v88 = vsel %vm38, %v74, 0.0
  %89 = vadd.xlane.f32.xlu0 %v88
  %v90 = vpop.xlane.xlu0 %89
  %v91 = vsel %vm38, %v75, 0.0
  %92 = vadd.xlane.f32.xlu0 %v91
  %v93 = vpop.xlane.xlu0 %92
  %v94 = vmul.f32 %v78, %v57
  %v95 = vmul.f32 %v81, %v57
  %v96 = vmul.f32 %v84, %v57
  %v97 = vmul.f32 %v87, %v57
  %v98 = vmul.f32 %v90, %v57
  %v99 = vmul.f32 %v93, %v57
  %v100 = vadd.f32 %v94, 1e-05
  %v101 = vadd.f32 %v95, 1e-05
  %v102 = vadd.f32 %v96, 1e-05
  %v103 = vadd.f32 %v97, 1e-05
  %v104 = vadd.f32 %v98, 1e-05
  %v105 = vadd.f32 %v99, 1e-05
  %v106 = vrsqrt.pop %v100
  %v107 = vrsqrt.pop %v101
  %v108 = vrsqrt.pop %v102
  %v109 = vrsqrt.pop %v103
  %v110 = vrsqrt.pop %v104
  %v111 = vrsqrt.pop %v105
  %v112 = vmul.f32 %v64, %v106
  %v113 = vmul.f32 %v65, %v107
  %v114 = vmul.f32 %v66, %v108
  %v115 = vmul.f32 %v67, %v109
  %v116 = vmul.f32 %v68, %v110
  %v117 = vmul.f32 %v69, %v111
  %v118 = vld [vmem:[%s2] sm:$0x1]
  %v120 = vlaneseq
  %v121 = vshrl.u32 %v120, 7
  %v122 = vsub.s32 0, %v121
  %v123 = vrot.slane %v118, %v122
  %v125 = vmul.f32 %v112, %v123
  %v126 = vmul.f32 %v113, %v123
  %v127 = vmul.f32 %v114, %v123
  %v128 = vmul.f32 %v115, %v123
  %v129 = vmul.f32 %v116, %v123
  %v130 = vmul.f32 %v117, %v123
  %v131 = vld [vmem:[%s3] sm:$0x1]
  %v133 = vlaneseq
  %v134 = vshrl.u32 %v133, 7
  %v135 = vsub.s32 0, %v134
  %v136 = vrot.slane %v131, %v135
  %v138 = vadd.f32 %v125, %v136
  %v139 = vadd.f32 %v126, %v136
  %v140 = vadd.f32 %v127, %v136
  %v141 = vadd.f32 %v128, %v136
  %v142 = vadd.f32 %v129, %v136
  %v143 = vadd.f32 %v130, %v136
  %v144 = vpack.c.bf16 %v139, %v138
  %v145 = vpack.c.bf16 %v141, %v140
  %v146 = vpack.c.bf16 %v143, %v142
  %v147 = vld [vmem:[#allocation2] sm:$0xff]
  %v148 = vld [vmem:[#allocation2 + $0x8] sm:$0xff]
  %v149 = vld [vmem:[#allocation2 + $0x10] sm:$0xff]
  %v150 = vld [vmem:[#allocation2 + $0x18] sm:$0xff]
  %v151 = vld [vmem:[#allocation2 + $0x20] sm:$0xff]
  %v152 = vld [vmem:[#allocation2 + $0x28] sm:$0xff]
  %v153 = vld [vmem:[%s1] sm:$0xf]
  %v154 = vld [vmem:[%s1 + $0x4] sm:$0xf]
  %v155 = vld [vmem:[%s1 + $0x8] sm:$0xf]
  %v156 = vld [vmem:[%s1 + $0xc] sm:$0xf]
  %v161 = vunpack.c.l.b16 %v153
  %v162 = vunpack.c.l.b16 %v154
  %v163 = vunpack.c.l.b16 %v155
  %v164 = vunpack.c.l.b16 %v156
  %v165 = vpack.c.b16 %v162, %v161
  %v166 = vpack.c.b16 %v164, %v163
  %v170 = vsel %vm38, %v144, 0
  %v173 = vsel %vm38, %v145, 0
  %v176 = vsel %vm38, %v146, 0
  %178 = vmatprep.subr.bf16.mxu0 0
  %179 = vmatpush1.bf16.msra.mxu0 0
  %180 = vmatprep.subr.bf16.mxu0 0
  %181 = vmatpush1.bf16.msra.mxu0 0
  %182 = vmatprep.subr.bf16.mxu0 0
  %183 = vmatpush1.bf16.msra.mxu0 0
  %184 = vmatprep.subr.bf16.mxu0 0
  %185 = vmatpush1.bf16.msra.mxu0 0
  %186 = vmatprep.subr.bf16.mxu0 0
  %187 = vmatpush1.bf16.msra.mxu0 0
  %188 = vmatprep.subr.bf16.mxu0 0
  %189 = vmatpush1.bf16.msra.mxu0 0
  %190 = vmatprep.subr.bf16.mxu0 0
  %191 = vmatpush1.bf16.msra.mxu0 %v166
  %192 = vmatprep.subr.bf16.mxu0 0
  %193 = vmatpush1.bf16.msra.mxu0 %v165
  %194 = vmatprep.subr.bf16.mxu0 0
  %195 = vmatpush2.bf16.msra.mxu0 0
  %196 = vmatprep.subr.bf16.mxu0 0
  %197 = vmatpush2.bf16.msra.mxu0 0
  %198 = vmatprep.subr.bf16.mxu0 0
  %199 = vmatpush2.bf16.msra.mxu0 0
  %200 = vmatprep.subr.bf16.mxu0 0
  %201 = vmatpush2.bf16.msra.mxu0 0
  %202 = vmatprep.subr.bf16.mxu0 0
  %203 = vmatpush2.bf16.msra.mxu0 0
  %204 = vmatprep.subr.bf16.mxu0 0
  %205 = vmatpush2.bf16.msra.mxu0 0
  %206 = vmatprep.subr.bf16.mxu0 0
  %207 = vmatpush2.bf16.msra.mxu0 0
  %208 = vmatprep.subr.bf16.mxu0 0
  %209 = vmatpush2.bf16.msra.mxu0 0
  %210 = vmatprep.mubr.bf16.mxu0 0
  %211 = vmatmul.mubr.bf16.gmra.mxu0 %v170
  %v212 = vpop.f32.mrf.mxu0
  %v213 = vadd.f32 0.0, %v212
  %v214 = vpop.f32.mrf.mxu0
  %v215 = vpop.f32.mrf.mxu0
  %v216 = vadd.f32 0.0, %v215
  %v217 = vpop.f32.mrf.mxu0
  %218 = vmatprep.mubr.bf16.mxu0 0
  %219 = vmatmul.mubr.bf16.gmra.mxu0 %v173
  %v220 = vpop.f32.mrf.mxu0
  %v221 = vadd.f32 0.0, %v220
  %v222 = vpop.f32.mrf.mxu0
  %v223 = vpop.f32.mrf.mxu0
  %v224 = vadd.f32 0.0, %v223
  %v225 = vpop.f32.mrf.mxu0
  %226 = vmatprep.mubr.bf16.mxu0 0
  %227 = vmatmul.mubr.bf16.gmra.mxu0 %v176
  %v228 = vpop.f32.mrf.mxu0
  %v229 = vadd.f32 0.0, %v228
  %v230 = vpop.f32.mrf.mxu0
  %v231 = vpop.f32.mrf.mxu0
  %v232 = vadd.f32 0.0, %v231
  %v233 = vpop.f32.mrf.mxu0
  %234 = vdwg.mxu0
  %v235 = vadd.f32 %v147, %v213
  %v236 = vadd.f32 %v148, %v216
  %v237 = vadd.f32 %v149, %v221
  %v238 = vadd.f32 %v150, %v224
  %v239 = vadd.f32 %v151, %v229
  %v240 = vadd.f32 %v152, %v232
  %vm241 = vcmask 785408
  %242 = vst.msk [vmem:[#allocation2] sm:$0xff] %vm241, %v235
  %243 = vst.msk [vmem:[#allocation2 + $0x8] sm:$0xff] %vm241, %v236
  %244 = vst.msk [vmem:[#allocation2 + $0x10] sm:$0xff] %vm241, %v237
  %245 = vst.msk [vmem:[#allocation2 + $0x18] sm:$0xff] %vm241, %v238
  %246 = vst.msk [vmem:[#allocation2 + $0x20] sm:$0xff] %vm241, %v239
  %247 = vst.msk [vmem:[#allocation2 + $0x28] sm:$0xff] %vm241, %v240
  // Predicated region
  $region26: #{_lambda_.38} parent=0 // pred_check
    %p248 = pneg %p21
  $region27: #{_lambda_.38} parent=0 // pred_check_branch
    %250 = sbr.rel (%p248) target = $region29
  $region28: #{_lambda_.38} parent=0 // pred_region
    %v251 = vld [vmem:[#allocation2] sm:$0xff]
    %v252 = vld [vmem:[#allocation2 + $0x8] sm:$0xff]
    %v253 = vld [vmem:[#allocation2 + $0x10] sm:$0xff]
    %v254 = vld [vmem:[#allocation2 + $0x18] sm:$0xff]
    %v255 = vld [vmem:[#allocation2 + $0x20] sm:$0xff]
    %v256 = vld [vmem:[#allocation2 + $0x28] sm:$0xff]
    %v257 = vld [vmem:[%s4] sm:$0x1]
    %v259 = vlaneseq
    %v260 = vshrl.u32 %v259, 7
    %v261 = vsub.s32 0, %v260
    %v262 = vrot.slane %v257, %v261
    %v264 = vadd.f32 %v251, %v262
    %v265 = vadd.f32 %v252, %v262
    %v266 = vadd.f32 %v253, %v262
    %v267 = vadd.f32 %v254, %v262
    %v268 = vadd.f32 %v255, %v262
    %v269 = vadd.f32 %v256, %v262
    %270 = vst.msk [vmem:[%s5] sm:$0xff] %vm241, %v264
    %271 = vst.msk [vmem:[%s5 + $0x8] sm:$0xff] %vm241, %v265
    %272 = vst.msk [vmem:[%s5 + $0x10] sm:$0xff] %vm241, %v266
    %273 = vst.msk [vmem:[%s5 + $0x18] sm:$0xff] %vm241, %v267
    %274 = vst.msk [vmem:[%s5 + $0x20] sm:$0xff] %vm241, %v268
    %275 = vst.msk [vmem:[%s5 + $0x28] sm:$0xff] %vm241, %v269
  $region29: #{_lambda_.38} parent=0 // pred_fallthru
    _
  // Predicated region
  $region30: #{_lambda_.38} parent=0 // pred_check
    _
  $region31: #{_lambda_.38} parent=0 // pred_check_branch
    %277 = sbr.rel (0) target = $region33
  $region32: #{_lambda_.38} parent=0 // pred_region
    _
  $region33: #{_lambda_.38} parent=0 // pred_fallthru
    _
  // Predicated region
  $region34: #{_lambda_.38} parent=0 // pred_check
    _
  $region35: #{_lambda_.38} parent=0 // pred_check_branch
    %279 = sbr.rel (0) target = $region37
  $region36: #{_lambda_.38} parent=0 // pred_region
    _
  $region37: #{_lambda_.38} parent=0 // pred_fallthru
    _

// kernel: _lambda_.40
$region0: #{_lambda_.40}
  #allocation0 [shape = 'u32[]', space=smem, size = 0x4, offset = 0x4, fixed_abs, tag = 'smem constant byte address 0x4 - core index']
  #allocation1 [shape = 'u32[144,128]{1,0:T(1,128)}', space=vmem, size = 0x12000, scoped, tag = 'internal scratch']
  #allocation2 [shape = 'f32[48,32]{1,0:T(8,128)}', space=vmem, size = 0x6000, scoped, tag = 'scratch operand']
  %s0 = inlined_call_operand.vmem [shape: f32[48,32], index: 0, kind: input, shape index: {}]
  %s1 = inlined_call_operand.vmem [shape: bf16[32,32], index: 1, kind: input, shape index: {}]
  %s2 = inlined_call_operand.vmem [shape: f32[1,32], index: 2, kind: input, shape index: {}]
  %s3 = inlined_call_operand.vmem [shape: f32[48,32], index: 3, kind: input, shape index: {}]
  %s4 = inlined_call_operand.vmem [shape: f32[48,32], index: 4, kind: output, shape index: {}]
  %s5 = sld [smem:[#allocation0]]
  $region34: #{_lambda_.40} parent=0
    _
  %s7 = ssub.s32 1, %s5
  %s8 = scalar_select 0, %s7, %s5
  // Predicated region
  $region2: #{_lambda_.40} parent=0 // pred_check
    _
  $region3: #{_lambda_.40} parent=0 // pred_check_branch
    %10 = sbr.rel (0) target = $region5
  $region4: #{_lambda_.40} parent=0 // pred_region
    _
  $region5: #{_lambda_.40} parent=0 // pred_fallthru
    _
  // Predicated region
  $region6: #{_lambda_.40} parent=0 // pred_check
    _
  $region7: #{_lambda_.40} parent=0 // pred_check_branch
    %12 = sbr.rel (0) target = $region9
  $region8: #{_lambda_.40} parent=0 // pred_region
    _
  $region9: #{_lambda_.40} parent=0 // pred_fallthru
    _
  // Predicated region
  $region10: #{_lambda_.40} parent=0 // pred_check
    _
  $region11: #{_lambda_.40} parent=0 // pred_check_branch
    %14 = sbr.rel (0) target = $region13
  $region12: #{_lambda_.40} parent=0 // pred_region
    _
  $region13: #{_lambda_.40} parent=0 // pred_fallthru
    _
  // Predicated region
  $region14: #{_lambda_.40} parent=0 // pred_check
    _
  $region15: #{_lambda_.40} parent=0 // pred_check_branch
    %16 = sbr.rel (0) target = $region17
  $region16: #{_lambda_.40} parent=0 // pred_region
    _
  $region17: #{_lambda_.40} parent=0 // pred_fallthru
    _
  %p18 = scmp.eq.s32.totalorder 0, 0
  // Predicated region
  $region18: #{_lambda_.40} parent=0 // pred_check
    %p19 = pneg %p18
  $region19: #{_lambda_.40} parent=0 // pred_check_branch
    %21 = sbr.rel (%p19) target = $region21
  $region20: #{_lambda_.40} parent=0 // pred_region
    %vm22 = vcmask 261120
    %23 = vst.msk [vmem:[#allocation2] sm:$0xff] %vm22, 0.0
    %24 = vst.msk [vmem:[#allocation2 + $0x8] sm:$0xff] %vm22, 0.0
    %25 = vst.msk [vmem:[#allocation2 + $0x10] sm:$0xff] %vm22, 0.0
    %26 = vst.msk [vmem:[#allocation2 + $0x18] sm:$0xff] %vm22, 0.0
    %27 = vst.msk [vmem:[#allocation2 + $0x20] sm:$0xff] %vm22, 0.0
    %28 = vst.msk [vmem:[#allocation2 + $0x28] sm:$0xff] %vm22, 0.0
  $region21: #{_lambda_.40} parent=0 // pred_fallthru
    _
  %v29 = vld [vmem:[%s0] sm:$0xff]
  %v30 = vld [vmem:[%s0 + $0x8] sm:$0xff]
  %v31 = vld [vmem:[%s0 + $0x10] sm:$0xff]
  %v32 = vld [vmem:[%s0 + $0x18] sm:$0xff]
  %v33 = vld [vmem:[%s0 + $0x20] sm:$0xff]
  %v34 = vld [vmem:[%s0 + $0x28] sm:$0xff]
  %v35 = vpack.c.bf16 %v30, %v29
  %v36 = vpack.c.bf16 %v32, %v31
  %v37 = vpack.c.bf16 %v34, %v33
  %v38 = vld [vmem:[#allocation2] sm:$0xff]
  %v39 = vld [vmem:[#allocation2 + $0x8] sm:$0xff]
  %v40 = vld [vmem:[#allocation2 + $0x10] sm:$0xff]
  %v41 = vld [vmem:[#allocation2 + $0x18] sm:$0xff]
  %v42 = vld [vmem:[#allocation2 + $0x20] sm:$0xff]
  %v43 = vld [vmem:[#allocation2 + $0x28] sm:$0xff]
  %v44 = vld [vmem:[%s1] sm:$0xf]
  %v45 = vld [vmem:[%s1 + $0x4] sm:$0xf]
  %v46 = vld [vmem:[%s1 + $0x8] sm:$0xf]
  %v47 = vld [vmem:[%s1 + $0xc] sm:$0xf]
  %v52 = vunpack.c.l.b16 %v44
  %v53 = vunpack.c.l.b16 %v45
  %v54 = vunpack.c.l.b16 %v46
  %v55 = vunpack.c.l.b16 %v47
  %v56 = vpack.c.b16 %v53, %v52
  %v57 = vpack.c.b16 %v55, %v54
  %vm60 = vcmask 261120
  %v62 = vsel %vm60, %v35, 0
  %v65 = vsel %vm60, %v36, 0
  %v68 = vsel %vm60, %v37, 0
  %70 = vmatprep.subr.bf16.mxu0 0
  %71 = vmatpush1.bf16.msra.mxu0 0
  %72 = vmatprep.subr.bf16.mxu0 0
  %73 = vmatpush1.bf16.msra.mxu0 0
  %74 = vmatprep.subr.bf16.mxu0 0
  %75 = vmatpush1.bf16.msra.mxu0 0
  %76 = vmatprep.subr.bf16.mxu0 0
  %77 = vmatpush1.bf16.msra.mxu0 0
  %78 = vmatprep.subr.bf16.mxu0 0
  %79 = vmatpush1.bf16.msra.mxu0 0
  %80 = vmatprep.subr.bf16.mxu0 0
  %81 = vmatpush1.bf16.msra.mxu0 0
  %82 = vmatprep.subr.bf16.mxu0 0
  %83 = vmatpush1.bf16.msra.mxu0 %v57
  %84 = vmatprep.subr.bf16.mxu0 0
  %85 = vmatpush1.bf16.msra.mxu0 %v56
  %86 = vmatprep.subr.bf16.mxu0 0
  %87 = vmatpush2.bf16.msra.mxu0 0
  %88 = vmatprep.subr.bf16.mxu0 0
  %89 = vmatpush2.bf16.msra.mxu0 0
  %90 = vmatprep.subr.bf16.mxu0 0
  %91 = vmatpush2.bf16.msra.mxu0 0
  %92 = vmatprep.subr.bf16.mxu0 0
  %93 = vmatpush2.bf16.msra.mxu0 0
  %94 = vmatprep.subr.bf16.mxu0 0
  %95 = vmatpush2.bf16.msra.mxu0 0
  %96 = vmatprep.subr.bf16.mxu0 0
  %97 = vmatpush2.bf16.msra.mxu0 0
  %98 = vmatprep.subr.bf16.mxu0 0
  %99 = vmatpush2.bf16.msra.mxu0 0
  %100 = vmatprep.subr.bf16.mxu0 0
  %101 = vmatpush2.bf16.msra.mxu0 0
  %102 = vmatprep.mubr.bf16.mxu0 0
  %103 = vmatmul.mubr.bf16.gmra.mxu0 %v62
  %v104 = vpop.f32.mrf.mxu0
  %v105 = vadd.f32 0.0, %v104
  %v106 = vpop.f32.mrf.mxu0
  %v107 = vpop.f32.mrf.mxu0
  %v108 = vadd.f32 0.0, %v107
  %v109 = vpop.f32.mrf.mxu0
  %110 = vmatprep.mubr.bf16.mxu0 0
  %111 = vmatmul.mubr.bf16.gmra.mxu0 %v65
  %v112 = vpop.f32.mrf.mxu0
  %v113 = vadd.f32 0.0, %v112
  %v114 = vpop.f32.mrf.mxu0
  %v115 = vpop.f32.mrf.mxu0
  %v116 = vadd.f32 0.0, %v115
  %v117 = vpop.f32.mrf.mxu0
  %118 = vmatprep.mubr.bf16.mxu0 0
  %119 = vmatmul.mubr.bf16.gmra.mxu0 %v68
  %v120 = vpop.f32.mrf.mxu0
  %v121 = vadd.f32 0.0, %v120
  %v122 = vpop.f32.mrf.mxu0
  %v123 = vpop.f32.mrf.mxu0
  %v124 = vadd.f32 0.0, %v123
  %v125 = vpop.f32.mrf.mxu0
  %126 = vdwg.mxu0
  %v127 = vadd.f32 %v38, %v105
  %v128 = vadd.f32 %v39, %v108
  %v129 = vadd.f32 %v40, %v113
  %v130 = vadd.f32 %v41, %v116
  %v131 = vadd.f32 %v42, %v121
  %v132 = vadd.f32 %v43, %v124
  %133 = vst.msk [vmem:[#allocation2] sm:$0xff] %vm60, %v127
  %134 = vst.msk [vmem:[#allocation2 + $0x8] sm:$0xff] %vm60, %v128
  %135 = vst.msk [vmem:[#allocation2 + $0x10] sm:$0xff] %vm60, %v129
  %136 = vst.msk [vmem:[#allocation2 + $0x18] sm:$0xff] %vm60, %v130
  %137 = vst.msk [vmem:[#allocation2 + $0x20] sm:$0xff] %vm60, %v131
  %138 = vst.msk [vmem:[#allocation2 + $0x28] sm:$0xff] %vm60, %v132
  // Predicated region
  $region22: #{_lambda_.40} parent=0 // pred_check
    %p139 = pneg %p18
  $region23: #{_lambda_.40} parent=0 // pred_check_branch
    %141 = sbr.rel (%p139) target = $region25
  $region24: #{_lambda_.40} parent=0 // pred_region
    %v142 = vld [vmem:[#allocation2] sm:$0xff]
    %v143 = vld [vmem:[#allocation2 + $0x8] sm:$0xff]
    %v144 = vld [vmem:[#allocation2 + $0x10] sm:$0xff]
    %v145 = vld [vmem:[#allocation2 + $0x18] sm:$0xff]
    %v146 = vld [vmem:[#allocation2 + $0x20] sm:$0xff]
    %v147 = vld [vmem:[#allocation2 + $0x28] sm:$0xff]
    %v148 = vld [vmem:[%s2] sm:$0x1]
    %v150 = vlaneseq
    %v151 = vshrl.u32 %v150, 7
    %v152 = vsub.s32 0, %v151
    %v153 = vrot.slane %v148, %v152
    %v155 = vadd.f32 %v142, %v153
    %v156 = vadd.f32 %v143, %v153
    %v157 = vadd.f32 %v144, %v153
    %v158 = vadd.f32 %v145, %v153
    %v159 = vadd.f32 %v146, %v153
    %v160 = vadd.f32 %v147, %v153
    %v161 = vld [vmem:[%s3] sm:$0xff]
    %v162 = vld [vmem:[%s3 + $0x8] sm:$0xff]
    %v163 = vld [vmem:[%s3 + $0x10] sm:$0xff]
    %v164 = vld [vmem:[%s3 + $0x18] sm:$0xff]
    %v165 = vld [vmem:[%s3 + $0x20] sm:$0xff]
    %v166 = vld [vmem:[%s3 + $0x28] sm:$0xff]
    %v167 = vadd.f32 %v155, %v161
    %v168 = vadd.f32 %v156, %v162
    %v169 = vadd.f32 %v157, %v163
    %v170 = vadd.f32 %v158, %v164
    %v171 = vadd.f32 %v159, %v165
    %v172 = vadd.f32 %v160, %v166
    %173 = vst.msk [vmem:[%s4] sm:$0xff] %vm60, %v167
    %174 = vst.msk [vmem:[%s4 + $0x8] sm:$0xff] %vm60, %v168
    %175 = vst.msk [vmem:[%s4 + $0x10] sm:$0xff] %vm60, %v169
    %176 = vst.msk [vmem:[%s4 + $0x18] sm:$0xff] %vm60, %v170
    %177 = vst.msk [vmem:[%s4 + $0x20] sm:$0xff] %vm60, %v171
    %178 = vst.msk [vmem:[%s4 + $0x28] sm:$0xff] %vm60, %v172
  $region25: #{_lambda_.40} parent=0 // pred_fallthru
    _
  // Predicated region
  $region26: #{_lambda_.40} parent=0 // pred_check
    _
  $region27: #{_lambda_.40} parent=0 // pred_check_branch
    %180 = sbr.rel (0) target = $region29
  $region28: #{_lambda_.40} parent=0 // pred_region
    _
  $region29: #{_lambda_.40} parent=0 // pred_fallthru
    _
  // Predicated region
  $region30: #{_lambda_.40} parent=0 // pred_check
    _
  $region31: #{_lambda_.40} parent=0 // pred_check_branch
    %182 = sbr.rel (0) target = $region33
  $region32: #{_lambda_.40} parent=0 // pred_region
    _
  $region33: #{_lambda_.40} parent=0 // pred_fallthru
    _

// kernel: _lambda_.41
$region0: #{_lambda_.41}
  #allocation0 [shape = 'u32[]', space=smem, size = 0x4, offset = 0x4, fixed_abs, tag = 'smem constant byte address 0x4 - core index']
  #allocation1 [shape = 'u32[144,128]{1,0:T(1,128)}', space=vmem, size = 0x12000, scoped, tag = 'internal scratch']
  #allocation2 [shape = 'f32[48,128]{1,0:T(8,128)}', space=vmem, size = 0x6000, scoped, tag = 'scratch operand']
  %s0 = inlined_call_operand.vmem [shape: f32[48,32], index: 0, kind: input, shape index: {}]
  %s1 = inlined_call_operand.vmem [shape: bf16[32,128], index: 1, kind: input, shape index: {}]
  %s2 = inlined_call_operand.vmem [shape: f32[1,32], index: 2, kind: input, shape index: {}]
  %s3 = inlined_call_operand.vmem [shape: f32[1,32], index: 3, kind: input, shape index: {}]
  %s4 = inlined_call_operand.vmem [shape: f32[1,128], index: 4, kind: input, shape index: {}]
  %s5 = inlined_call_operand.vmem [shape: f32[48,128], index: 5, kind: output, shape index: {}]
  %s6 = sld [smem:[#allocation0]]
  $region38: #{_lambda_.41} parent=0
    _
  %s8 = ssub.s32 1, %s6
  %s9 = scalar_select 0, %s8, %s6
  // Predicated region
  $region2: #{_lambda_.41} parent=0 // pred_check
    _
  $region3: #{_lambda_.41} parent=0 // pred_check_branch
    %11 = sbr.rel (0) target = $region5
  $region4: #{_lambda_.41} parent=0 // pred_region
    _
  $region5: #{_lambda_.41} parent=0 // pred_fallthru
    _
  // Predicated region
  $region6: #{_lambda_.41} parent=0 // pred_check
    _
  $region7: #{_lambda_.41} parent=0 // pred_check_branch
    %13 = sbr.rel (0) target = $region9
  $region8: #{_lambda_.41} parent=0 // pred_region
    _
  $region9: #{_lambda_.41} parent=0 // pred_fallthru
    _
  // Predicated region
  $region10: #{_lambda_.41} parent=0 // pred_check
    _
  $region11: #{_lambda_.41} parent=0 // pred_check_branch
    %15 = sbr.rel (0) target = $region13
  $region12: #{_lambda_.41} parent=0 // pred_region
    _
  $region13: #{_lambda_.41} parent=0 // pred_fallthru
    _
  // Predicated region
  $region14: #{_lambda_.41} parent=0 // pred_check
    _
  $region15: #{_lambda_.41} parent=0 // pred_check_branch
    %17 = sbr.rel (0) target = $region17
  $region16: #{_lambda_.41} parent=0 // pred_region
    _
  $region17: #{_lambda_.41} parent=0 // pred_fallthru
    _
  // Predicated region
  $region18: #{_lambda_.41} parent=0 // pred_check
    _
  $region19: #{_lambda_.41} parent=0 // pred_check_branch
    %19 = sbr.rel (0) target = $region21
  $region20: #{_lambda_.41} parent=0 // pred_region
    _
  $region21: #{_lambda_.41} parent=0 // pred_fallthru
    _
  %p21 = scmp.eq.s32.totalorder 0, 0
  // Predicated region
  $region22: #{_lambda_.41} parent=0 // pred_check
    %p22 = pneg %p21
  $region23: #{_lambda_.41} parent=0 // pred_check_branch
    %24 = sbr.rel (%p22) target = $region25
  $region24: #{_lambda_.41} parent=0 // pred_region
    %25 = vst [vmem:[#allocation2] sm:$0xff] 0.0
    %26 = vst [vmem:[#allocation2 + $0x8] sm:$0xff] 0.0
    %27 = vst [vmem:[#allocation2 + $0x10] sm:$0xff] 0.0
    %28 = vst [vmem:[#allocation2 + $0x18] sm:$0xff] 0.0
    %29 = vst [vmem:[#allocation2 + $0x20] sm:$0xff] 0.0
    %30 = vst [vmem:[#allocation2 + $0x28] sm:$0xff] 0.0
  $region25: #{_lambda_.41} parent=0 // pred_fallthru
    _
  %v31 = vld [vmem:[%s0] sm:$0xff]
  %v32 = vld [vmem:[%s0 + $0x8] sm:$0xff]
  %v33 = vld [vmem:[%s0 + $0x10] sm:$0xff]
  %v34 = vld [vmem:[%s0 + $0x18] sm:$0xff]
  %v35 = vld [vmem:[%s0 + $0x20] sm:$0xff]
  %v36 = vld [vmem:[%s0 + $0x28] sm:$0xff]
  %vm37 = vcmask 261120
  %v38 = vsel %vm37, %v31, 0.0
  %39 = vadd.xlane.f32.xlu0 %v38
  %v40 = vpop.xlane.xlu0 %39
  %v41 = vsel %vm37, %v32, 0.0
  %42 = vadd.xlane.f32.xlu0 %v41
  %v43 = vpop.xlane.xlu0 %42
  %v44 = vsel %vm37, %v33, 0.0
  %45 = vadd.xlane.f32.xlu0 %v44
  %v46 = vpop.xlane.xlu0 %45
  %v47 = vsel %vm37, %v34, 0.0
  %48 = vadd.xlane.f32.xlu0 %v47
  %v49 = vpop.xlane.xlu0 %48
  %v50 = vsel %vm37, %v35, 0.0
  %51 = vadd.xlane.f32.xlu0 %v50
  %v52 = vpop.xlane.xlu0 %51
  %v53 = vsel %vm37, %v36, 0.0
  %54 = vadd.xlane.f32.xlu0 %v53
  %v55 = vpop.xlane.xlu0 %54
  %v56 = vrcp.pop 32.0
  %v57 = vmul.f32 %v40, %v56
  %v58 = vmul.f32 %v43, %v56
  %v59 = vmul.f32 %v46, %v56
  %v60 = vmul.f32 %v49, %v56
  %v61 = vmul.f32 %v52, %v56
  %v62 = vmul.f32 %v55, %v56
  %v63 = vsub.f32 %v31, %v57
  %v64 = vsub.f32 %v32, %v58
  %v65 = vsub.f32 %v33, %v59
  %v66 = vsub.f32 %v34, %v60
  %v67 = vsub.f32 %v35, %v61
  %v68 = vsub.f32 %v36, %v62
  %v69 = vmul.f32 %v63, %v63
  %v70 = vmul.f32 %v64, %v64
  %v71 = vmul.f32 %v65, %v65
  %v72 = vmul.f32 %v66, %v66
  %v73 = vmul.f32 %v67, %v67
  %v74 = vmul.f32 %v68, %v68
  %v75 = vsel %vm37, %v69, 0.0
  %76 = vadd.xlane.f32.xlu0 %v75
  %v77 = vpop.xlane.xlu0 %76
  %v78 = vsel %vm37, %v70, 0.0
  %79 = vadd.xlane.f32.xlu0 %v78
  %v80 = vpop.xlane.xlu0 %79
  %v81 = vsel %vm37, %v71, 0.0
  %82 = vadd.xlane.f32.xlu0 %v81
  %v83 = vpop.xlane.xlu0 %82
  %v84 = vsel %vm37, %v72, 0.0
  %85 = vadd.xlane.f32.xlu0 %v84
  %v86 = vpop.xlane.xlu0 %85
  %v87 = vsel %vm37, %v73, 0.0
  %88 = vadd.xlane.f32.xlu0 %v87
  %v89 = vpop.xlane.xlu0 %88
  %v90 = vsel %vm37, %v74, 0.0
  %91 = vadd.xlane.f32.xlu0 %v90
  %v92 = vpop.xlane.xlu0 %91
  %v93 = vmul.f32 %v77, %v56
  %v94 = vmul.f32 %v80, %v56
  %v95 = vmul.f32 %v83, %v56
  %v96 = vmul.f32 %v86, %v56
  %v97 = vmul.f32 %v89, %v56
  %v98 = vmul.f32 %v92, %v56
  %v99 = vadd.f32 %v93, 1e-05
  %v100 = vadd.f32 %v94, 1e-05
  %v101 = vadd.f32 %v95, 1e-05
  %v102 = vadd.f32 %v96, 1e-05
  %v103 = vadd.f32 %v97, 1e-05
  %v104 = vadd.f32 %v98, 1e-05
  %v105 = vrsqrt.pop %v99
  %v106 = vrsqrt.pop %v100
  %v107 = vrsqrt.pop %v101
  %v108 = vrsqrt.pop %v102
  %v109 = vrsqrt.pop %v103
  %v110 = vrsqrt.pop %v104
  %v111 = vmul.f32 %v63, %v105
  %v112 = vmul.f32 %v64, %v106
  %v113 = vmul.f32 %v65, %v107
  %v114 = vmul.f32 %v66, %v108
  %v115 = vmul.f32 %v67, %v109
  %v116 = vmul.f32 %v68, %v110
  %v117 = vld [vmem:[%s2] sm:$0x1]
  %v119 = vlaneseq
  %v120 = vshrl.u32 %v119, 7
  %v121 = vsub.s32 0, %v120
  %v122 = vrot.slane %v117, %v121
  %v124 = vmul.f32 %v111, %v122
  %v125 = vmul.f32 %v112, %v122
  %v126 = vmul.f32 %v113, %v122
  %v127 = vmul.f32 %v114, %v122
  %v128 = vmul.f32 %v115, %v122
  %v129 = vmul.f32 %v116, %v122
  %v130 = vld [vmem:[%s3] sm:$0x1]
  %v132 = vlaneseq
  %v133 = vshrl.u32 %v132, 7
  %v134 = vsub.s32 0, %v133
  %v135 = vrot.slane %v130, %v134
  %v137 = vadd.f32 %v124, %v135
  %v138 = vadd.f32 %v125, %v135
  %v139 = vadd.f32 %v126, %v135
  %v140 = vadd.f32 %v127, %v135
  %v141 = vadd.f32 %v128, %v135
  %v142 = vadd.f32 %v129, %v135
  %v143 = vpack.c.bf16 %v138, %v137
  %v144 = vpack.c.bf16 %v140, %v139
  %v145 = vpack.c.bf16 %v142, %v141
  %v146 = vld [vmem:[#allocation2] sm:$0xff]
  %v147 = vld [vmem:[#allocation2 + $0x8] sm:$0xff]
  %v148 = vld [vmem:[#allocation2 + $0x10] sm:$0xff]
  %v149 = vld [vmem:[#allocation2 + $0x18] sm:$0xff]
  %v150 = vld [vmem:[#allocation2 + $0x20] sm:$0xff]
  %v151 = vld [vmem:[#allocation2 + $0x28] sm:$0xff]
  %v152 = vld [vmem:[%s1] sm:$0xf]
  %v153 = vld [vmem:[%s1 + $0x4] sm:$0xf]
  %v154 = vld [vmem:[%s1 + $0x8] sm:$0xf]
  %v155 = vld [vmem:[%s1 + $0xc] sm:$0xf]
  %v160 = vunpack.c.l.b16 %v152
  %v161 = vunpack.c.l.b16 %v153
  %v162 = vunpack.c.l.b16 %v154
  %v163 = vunpack.c.l.b16 %v155
  %v164 = vpack.c.b16 %v161, %v160
  %v165 = vpack.c.b16 %v163, %v162
  %v169 = vsel %vm37, %v143, 0
  %v172 = vsel %vm37, %v144, 0
  %v175 = vsel %vm37, %v145, 0
  %177 = vmatprep.subr.bf16.mxu0 0
  %178 = vmatpush1.bf16.msra.mxu0 0
  %179 = vmatprep.subr.bf16.mxu0 0
  %180 = vmatpush1.bf16.msra.mxu0 0
  %181 = vmatprep.subr.bf16.mxu0 0
  %182 = vmatpush1.bf16.msra.mxu0 0
  %183 = vmatprep.subr.bf16.mxu0 0
  %184 = vmatpush1.bf16.msra.mxu0 0
  %185 = vmatprep.subr.bf16.mxu0 0
  %186 = vmatpush1.bf16.msra.mxu0 0
  %187 = vmatprep.subr.bf16.mxu0 0
  %188 = vmatpush1.bf16.msra.mxu0 0
  %189 = vmatprep.subr.bf16.mxu0 0
  %190 = vmatpush1.bf16.msra.mxu0 %v165
  %191 = vmatprep.subr.bf16.mxu0 0
  %192 = vmatpush1.bf16.msra.mxu0 %v164
  %193 = vmatprep.subr.bf16.mxu0 0
  %194 = vmatpush2.bf16.msra.mxu0 0
  %195 = vmatprep.subr.bf16.mxu0 0
  %196 = vmatpush2.bf16.msra.mxu0 0
  %197 = vmatprep.subr.bf16.mxu0 0
  %198 = vmatpush2.bf16.msra.mxu0 0
  %199 = vmatprep.subr.bf16.mxu0 0
  %200 = vmatpush2.bf16.msra.mxu0 0
  %201 = vmatprep.subr.bf16.mxu0 0
  %202 = vmatpush2.bf16.msra.mxu0 0
  %203 = vmatprep.subr.bf16.mxu0 0
  %204 = vmatpush2.bf16.msra.mxu0 0
  %205 = vmatprep.subr.bf16.mxu0 0
  %206 = vmatpush2.bf16.msra.mxu0 0
  %207 = vmatprep.subr.bf16.mxu0 0
  %208 = vmatpush2.bf16.msra.mxu0 0
  %209 = vmatprep.mubr.bf16.mxu0 0
  %210 = vmatmul.mubr.bf16.gmra.mxu0 %v169
  %v211 = vpop.f32.mrf.mxu0
  %v212 = vadd.f32 0.0, %v211
  %v213 = vpop.f32.mrf.mxu0
  %v214 = vpop.f32.mrf.mxu0
  %v215 = vadd.f32 0.0, %v214
  %v216 = vpop.f32.mrf.mxu0
  %217 = vmatprep.mubr.bf16.mxu0 0
  %218 = vmatmul.mubr.bf16.gmra.mxu0 %v172
  %v219 = vpop.f32.mrf.mxu0
  %v220 = vadd.f32 0.0, %v219
  %v221 = vpop.f32.mrf.mxu0
  %v222 = vpop.f32.mrf.mxu0
  %v223 = vadd.f32 0.0, %v222
  %v224 = vpop.f32.mrf.mxu0
  %225 = vmatprep.mubr.bf16.mxu0 0
  %226 = vmatmul.mubr.bf16.gmra.mxu0 %v175
  %v227 = vpop.f32.mrf.mxu0
  %v228 = vadd.f32 0.0, %v227
  %v229 = vpop.f32.mrf.mxu0
  %v230 = vpop.f32.mrf.mxu0
  %v231 = vadd.f32 0.0, %v230
  %v232 = vpop.f32.mrf.mxu0
  %233 = vdwg.mxu0
  %v234 = vadd.f32 %v146, %v212
  %v235 = vadd.f32 %v147, %v215
  %v236 = vadd.f32 %v148, %v220
  %v237 = vadd.f32 %v149, %v223
  %v238 = vadd.f32 %v150, %v228
  %v239 = vadd.f32 %v151, %v231
  %240 = vst [vmem:[#allocation2] sm:$0xff] %v234
  %241 = vst [vmem:[#allocation2 + $0x8] sm:$0xff] %v235
  %242 = vst [vmem:[#allocation2 + $0x10] sm:$0xff] %v236
  %243 = vst [vmem:[#allocation2 + $0x18] sm:$0xff] %v237
  %244 = vst [vmem:[#allocation2 + $0x20] sm:$0xff] %v238
  %245 = vst [vmem:[#allocation2 + $0x28] sm:$0xff] %v239
  // Predicated region
  $region26: #{_lambda_.41} parent=0 // pred_check
    %p246 = pneg %p21
  $region27: #{_lambda_.41} parent=0 // pred_check_branch
    %248 = sbr.rel (%p246) target = $region29
  $region28: #{_lambda_.41} parent=0 // pred_region
    %v249 = vld [vmem:[#allocation2] sm:$0xff]
    %v250 = vld [vmem:[#allocation2 + $0x8] sm:$0xff]
    %v251 = vld [vmem:[#allocation2 + $0x10] sm:$0xff]
    %v252 = vld [vmem:[#allocation2 + $0x18] sm:$0xff]
    %v253 = vld [vmem:[#allocation2 + $0x20] sm:$0xff]
    %v254 = vld [vmem:[#allocation2 + $0x28] sm:$0xff]
    %v255 = vld [vmem:[%s4] sm:$0x1]
    %v257 = vlaneseq
    %v258 = vshrl.u32 %v257, 7
    %v259 = vsub.s32 0, %v258
    %v260 = vrot.slane %v255, %v259
    %v262 = vadd.f32 %v249, %v260
    %v263 = vadd.f32 %v250, %v260
    %v264 = vadd.f32 %v251, %v260
    %v265 = vadd.f32 %v252, %v260
    %v266 = vadd.f32 %v253, %v260
    %v267 = vadd.f32 %v254, %v260
    %v268 = vmul.f32 %v262, 1.702
    %v269 = vmul.f32 %v263, 1.702
    %v270 = vmul.f32 %v264, 1.702
    %v271 = vmul.f32 %v265, 1.702
    %v272 = vmul.f32 %v266, 1.702
    %v273 = vmul.f32 %v267, 1.702
    %v274 = vxor.u32 %v268, 2147483648
    %v275 = vxor.u32 %v269, 2147483648
    %v276 = vxor.u32 %v270, 2147483648
    %v277 = vxor.u32 %v271, 2147483648
    %v278 = vxor.u32 %v272, 2147483648
    %v279 = vxor.u32 %v273, 2147483648
    %v280 = vmul.f32 %v274, 1.442695
    %v281 = vpow.pop %v280
    %v282 = vmul.f32 %v275, 1.442695
    %v283 = vpow.pop %v282
    %v284 = vmul.f32 %v276, 1.442695
    %v285 = vpow.pop %v284
    %v286 = vmul.f32 %v277, 1.442695
    %v287 = vpow.pop %v286
    %v288 = vmul.f32 %v278, 1.442695
    %v289 = vpow.pop %v288
    %v290 = vmul.f32 %v279, 1.442695
    %v291 = vpow.pop %v290
    %v292 = vadd.f32 %v281, 1.0
    %v293 = vadd.f32 %v283, 1.0
    %v294 = vadd.f32 %v285, 1.0
    %v295 = vadd.f32 %v287, 1.0
    %v296 = vadd.f32 %v289, 1.0
    %v297 = vadd.f32 %v291, 1.0
    %v298 = vrcp.pop %v292
    %v299 = vmul.f32 1.0, %v298
    %v300 = vrcp.pop %v293
    %v301 = vmul.f32 1.0, %v300
    %v302 = vrcp.pop %v294
    %v303 = vmul.f32 1.0, %v302
    %v304 = vrcp.pop %v295
    %v305 = vmul.f32 1.0, %v304
    %v306 = vrcp.pop %v296
    %v307 = vmul.f32 1.0, %v306
    %v308 = vrcp.pop %v297
    %v309 = vmul.f32 1.0, %v308
    %v310 = vmul.f32 %v262, %v299
    %v311 = vmul.f32 %v263, %v301
    %v312 = vmul.f32 %v264, %v303
    %v313 = vmul.f32 %v265, %v305
    %v314 = vmul.f32 %v266, %v307
    %v315 = vmul.f32 %v267, %v309
    %316 = vst [vmem:[%s5] sm:$0xff] %v310
    %317 = vst [vmem:[%s5 + $0x8] sm:$0xff] %v311
    %318 = vst [vmem:[%s5 + $0x10] sm:$0xff] %v312
    %319 = vst [vmem:[%s5 + $0x18] sm:$0xff] %v313
    %320 = vst [vmem:[%s5 + $0x20] sm:$0xff] %v314
    %321 = vst [vmem:[%s5 + $0x28] sm:$0xff] %v315
  $region29: #{_lambda_.41} parent=0 // pred_fallthru
    _
  // Predicated region
  $region30: #{_lambda_.41} parent=0 // pred_check
    _
  $region31: #{_lambda_.41} parent=0 // pred_check_branch
    %323 = sbr.rel (0) target = $region33
  $region32: #{_lambda_.41} parent=0 // pred_region
    _
  $region33: #{_lambda_.41} parent=0 // pred_fallthru
    _
  // Predicated region
  $region34: #{_lambda_.41} parent=0 // pred_check
    _
  $region35: #{_lambda_.41} parent=0 // pred_check_branch
    %325 = sbr.rel (0) target = $region37
  $region36: #{_lambda_.41} parent=0 // pred_region
    _
  $region37: #{_lambda_.41} parent=0 // pred_fallthru
    _

// kernel: _lambda_.39
$region0: #{_lambda_.39}
  #allocation0 [shape = 'u32[]', space=smem, size = 0x4, offset = 0x4, fixed_abs, tag = 'smem constant byte address 0x4 - core index']
  #allocation1 [shape = 'u32[144,128]{1,0:T(1,128)}', space=vmem, size = 0x12000, scoped, tag = 'internal scratch']
  %s0 = inlined_call_operand.vmem [shape: f32[3,16,96], index: 0, kind: input, shape index: {}]
  %s1 = inlined_call_operand.vmem [shape: f32[3,16,32], index: 1, kind: output, shape index: {}]
  %s2 = sld [smem:[#allocation0]]
  $region37: #{_lambda_.39} parent=0
    _
  %s4 = ssub.s32 1, %s2
  %s5 = scalar_select 0, %s4, %s2
  loop: start=0, step=1, limit=5
  $region2: #{_lambda_.39} parent=0 // loop_pre_header
    _
  $region3: #{_lambda_.39} parent=0 // loop_header
    %s7 = sphi 0, %s11
    %p8 = scmp.ge.s32.totalorder %s7, 5
    %s17 = sphi 0, %s19
    %s20 = sphi 0, %s17
    %s21 = sphi 0, %s20
    %s37 = sphi 0, %s21
    %s43 = sphi 0, %s45
    %s46 = sphi 0, %s43
    %s47 = sphi 0, %s46
    %s63 = sphi 0, %s47
  $region4: #{_lambda_.39} parent=0 // loop_header_branch
    %10 = sbr.rel (%p8) target = $region8
  $region5: #{_lambda_.39} parent=0 // loop_body
    %s12 = ssub.s32 %s7, 1
    %s13 = ssub.s32 %s7, 2
    %s14 = sadd.s32 %s7, 1
    %s15 = ssub.s32 %s7, %s14
    %p16 = scmp.eq.s32.totalorder %s15, 0
    %s18 = sadd.s32 %s17, 1
    %s19 = scalar_select %p16, %s17, %s18
    %p22 = pneg %p16
    %p23 = scmp.eq.s32.totalorder %s7, 2
    %p24 = por %p22, %p23
    %p25 = scmp.ne.s32.totalorder %s17, %s20
    %p26 = scmp.eq.s32.totalorder %s7, 0
    %p27 = por %p25, %p26
    %p28 = scmp.ne.s32.totalorder %s17, %s20
    %p29 = scmp.eq.s32.totalorder %s12, 2
    %p30 = por %p28, %p29
    %p31 = scmp.ne.s32.totalorder %s20, %s21
    %p32 = scmp.eq.s32.totalorder %s12, 0
    %p33 = por %p31, %p32
    %p34 = scmp.ne.s32.totalorder %s20, %s21
    %p35 = scmp.eq.s32.totalorder %s13, 2
    %p36 = por %p34, %p35
    %p38 = scmp.ne.s32.totalorder %s21, %s37
    %p39 = scmp.eq.s32.totalorder %s13, 0
    %p40 = por %p38, %p39
    %s41 = ssub.s32 %s7, %s14
    %p42 = scmp.eq.s32.totalorder %s41, 0
    %s44 = sadd.s32 %s43, 1
    %s45 = scalar_select %p42, %s43, %s44
    %p48 = pneg %p42
    %p49 = scmp.eq.s32.totalorder %s7, 2
    %p50 = por %p48, %p49
    %p51 = scmp.ne.s32.totalorder %s43, %s46
    %p52 = scmp.eq.s32.totalorder %s7, 0
    %p53 = por %p51, %p52
    %p54 = scmp.ne.s32.totalorder %s43, %s46
    %p55 = scmp.eq.s32.totalorder %s12, 2
    %p56 = por %p54, %p55
    %p57 = scmp.ne.s32.totalorder %s46, %s47
    %p58 = scmp.eq.s32.totalorder %s12, 0
    %p59 = por %p57, %p58
    %p60 = scmp.ne.s32.totalorder %s46, %s47
    %p61 = scmp.eq.s32.totalorder %s13, 2
    %p62 = por %p60, %p61
    %p64 = scmp.ne.s32.totalorder %s47, %s63
    %p65 = scmp.eq.s32.totalorder %s13, 0
    %p66 = por %p64, %p65
    %p67 = scmp.le.s32.totalorder 1, %s7
    %p68 = scmp.lt.s32.totalorder %s7, 4
    %p69 = pnand %p67, %p68
    %p70 = pneg %p69
    // Predicated region
    $region9: #{_lambda_.39} parent=5 // pred_check
      _
    $region10: #{_lambda_.39} parent=5 // pred_check_branch
      %72 = sbr.rel (%p69) target = $region12
    $region11: #{_lambda_.39} parent=5 // pred_region
      %s73 = ssub.s32 %s7, 1
    $region12: #{_lambda_.39} parent=5 // pred_fallthru
      _
    %p74 = scmp.lt.s32.totalorder %s7, 3
    // Predicated region
    $region13: #{_lambda_.39} parent=5 // pred_check
      %p75 = pneg %p74
    $region14: #{_lambda_.39} parent=5 // pred_check_branch
      %77 = sbr.rel (%p75) target = $region16
    $region15: #{_lambda_.39} parent=5 // pred_region
      // Predicated region
      $region17: #{_lambda_.39} parent=15 // pred_check
        %p78 = pneg %p27
      $region18: #{_lambda_.39} parent=15 // pred_check_branch
        %80 = sbr.rel (%p78) target = $region20
      $region19: #{_lambda_.39} parent=15 // pred_region
        %p81 = scmp.lt.s32.totalorder %s7, 2
        %s82 = scalar_select %p81, %s7, 2
        %s83 = smul.addr %s82, 2
        %s84 = smul.addr %s83, 8
        %s85 = scalar_lea.vmem %s0, %s84
      $region20: #{_lambda_.39} parent=15 // pred_fallthru
        _
    $region16: #{_lambda_.39} parent=5 // pred_fallthru
      _
    %p86 = scmp.le.s32.totalorder 1, %s7
    %p87 = scmp.lt.s32.totalorder %s7, 4
    %p88 = pnand %p86, %p87
    %p89 = pneg %p88
    // Predicated region
    $region21: #{_lambda_.39} parent=5 // pred_check
      _
    $region22: #{_lambda_.39} parent=5 // pred_check_branch
      %91 = sbr.rel (%p88) target = $region24
    $region23: #{_lambda_.39} parent=5 // pred_region
      %s92 = ssub.s32 %s7, 1
      %p93 = scmp.lt.s32.totalorder %s12, 2
      %s94 = scalar_select %p93, %s12, 2
      %s95 = smul.addr %s94, 2
      %s96 = smul.addr %s95, 8
      %s97 = scalar_lea.vmem %s0, %s96
      %p98 = pneg %p33
      %p99 = pneg %p30
      %p100 = pneg %p59
      %p101 = pneg %p56
      %p102 = scmp.lt.s32.totalorder %s12, 2
      %s103 = scalar_select %p102, %s12, 2
      %s104 = smul.addr %s103, 2
      %s105 = smul.addr %s104, 8
      %s106 = scalar_lea.vmem %s1, %s105
      %p107 = scmp.lt.s32.totalorder %s12, 2
      %s108 = scalar_select %p107, %s12, 2
      %s109 = smul.addr %s108, 2
      %s110 = smul.addr %s109, 8
      %s111 = scalar_lea.vmem %s0, %s110
      %p112 = scmp.lt.s32.totalorder %s12, 2
      %s113 = scalar_select %p112, %s12, 2
      %s114 = smul.addr %s113, 2
      %s115 = smul.addr %s114, 8
      %s116 = scalar_lea.vmem %s1, %s115
      %v118 = vlaneseq
      %v119 = vshrl.u32 %v118, 7
      %v120 = vadd.s32 %v119, 8
      %v121 = vlaneseq
      %v122 = vand.u32 %v121, 127
      %vm123 = vcmp.le.s32.totalorder %v122, %v119
      %vm124 = vcmp.le.s32.totalorder %v122, %v120
      %v125 = vsel %vm123, 0.0, -1e+30
      %v126 = vsel %vm124, 0.0, -1e+30
      %v127 = vld [vmem:[%s111] sm:$0xff]
      %v128 = vld [vmem:[%s111 + $0x8] sm:$0xff]
      %v129 = vpack.c.bf16 %v128, %v127
      %131 = vrot.lane.b32.xlu0 %v129, 96
      %v132 = vpop.permute.xlu0 %131
      %vm133 = vcmask 64512
      %v135 = vsel %vm133, %v129, 0
      %v138 = vsel %vm133, %v132, 0
      %140 = vmatprep.subr.bf16.mxu0 0
      %141 = vmatpush1.bf16.xpose.msra.mxu0 0
      %142 = vmatprep.subr.bf16.mxu0 0
      %143 = vmatpush1.bf16.xpose.msra.mxu0 0
      %144 = vmatprep.subr.bf16.mxu0 0
      %145 = vmatpush1.bf16.xpose.msra.mxu0 0
      %146 = vmatprep.subr.bf16.mxu0 0
      %147 = vmatpush1.bf16.xpose.msra.mxu0 0
      %148 = vmatprep.subr.bf16.mxu0 0
      %149 = vmatpush1.bf16.xpose.msra.mxu0 0
      %150 = vmatprep.subr.bf16.mxu0 0
      %151 = vmatpush1.bf16.xpose.msra.mxu0 0
      %152 = vmatprep.subr.bf16.mxu0 0
      %153 = vmatpush1.bf16.xpose.msra.mxu0 0
      %154 = vmatprep.subr.bf16.mxu0 0
      %155 = vmatpush1.bf16.xpose.msra.mxu0 %v138
      %156 = vmatprep.subr.bf16.mxu0 0
      %157 = vmatpush2.bf16.xpose.msra.mxu0 0
      %158 = vmatprep.subr.bf16.mxu0 0
      %159 = vmatpush2.bf16.xpose.msra.mxu0 0
      %160 = vmatprep.subr.bf16.mxu0 0
      %161 = vmatpush2.bf16.xpose.msra.mxu0 0
      %162 = vmatprep.subr.bf16.mxu0 0
      %163 = vmatpush2.bf16.xpose.msra.mxu0 0
      %164 = vmatprep.subr.bf16.mxu0 0
      %165 = vmatpush2.bf16.xpose.msra.mxu0 0
      %166 = vmatprep.subr.bf16.mxu0 0
      %167 = vmatpush2.bf16.xpose.msra.mxu0 0
      %168 = vmatprep.subr.bf16.mxu0 0
      %169 = vmatpush2.bf16.xpose.msra.mxu0 0
      %170 = vmatprep.subr.bf16.mxu0 0
      %171 = vmatpush2.bf16.xpose.msra.mxu0 0
      %172 = vmatprep.mubr.bf16.mxu0 0
      %173 = vmatmul.mubr.bf16.gmra.mxu0 %v135
      %v174 = vpop.f32.mrf.mxu0
      %v175 = vadd.f32 0.0, %v174
      %v176 = vpop.f32.mrf.mxu0
      %v177 = vpop.f32.mrf.mxu0
      %v178 = vadd.f32 0.0, %v177
      %v179 = vpop.f32.mrf.mxu0
      %180 = vdwg.mxu0
      %v181 = vmul.f32 %v175, 0.35355338
      %v182 = vmul.f32 %v178, 0.35355338
      %v183 = vadd.f32 %v181, %v125
      %v184 = vadd.f32 %v182, %v126
      %vm185 = vcmask 130048
      %v186 = vsel %vm185, %v183, -inf
      %187 = vmax.xlane.f32.xlu0 %v186
      %v188 = vpop.xlane.xlu0 %187
      %v189 = vsel %vm185, %v184, -inf
      %190 = vmax.xlane.f32.xlu0 %v189
      %v191 = vpop.xlane.xlu0 %190
      %v192 = vsub.f32 %v183, %v188
      %v193 = vsub.f32 %v184, %v191
      %v194 = vmul.f32 %v192, 1.442695
      %v195 = vpow.pop %v194
      %v196 = vmul.f32 %v193, 1.442695
      %v197 = vpow.pop %v196
      %v198 = vsel %vm185, %v195, 0.0
      %199 = vadd.xlane.f32.xlu0 %v198
      %v200 = vpop.xlane.xlu0 %199
      %v201 = vsel %vm185, %v197, 0.0
      %202 = vadd.xlane.f32.xlu0 %v201
      %v203 = vpop.xlane.xlu0 %202
      %v204 = vrcp.pop %v200
      %v205 = vrcp.pop %v203
      %v206 = vmul.f32 %v195, %v204
      %v207 = vmul.f32 %v197, %v205
      %v208 = vpack.c.bf16 %v207, %v206
      %209 = vrot.lane.b32.xlu0 %v129, 64
      %v210 = vpop.permute.xlu0 %209
      %v213 = vsel %vm185, %v208, 0
      %215 = vmatprep.subr.bf16.mxu0 0
      %216 = vmatpush1.bf16.msra.mxu0 0
      %217 = vmatprep.subr.bf16.mxu0 0
      %218 = vmatpush1.bf16.msra.mxu0 0
      %219 = vmatprep.subr.bf16.mxu0 0
      %220 = vmatpush1.bf16.msra.mxu0 0
      %221 = vmatprep.subr.bf16.mxu0 0
      %222 = vmatpush1.bf16.msra.mxu0 0
      %223 = vmatprep.subr.bf16.mxu0 0
      %224 = vmatpush1.bf16.msra.mxu0 0
      %225 = vmatprep.subr.bf16.mxu0 0
      %226 = vmatpush1.bf16.msra.mxu0 0
      %227 = vmatprep.subr.bf16.mxu0 0
      %228 = vmatpush1.bf16.msra.mxu0 0
      %229 = vmatprep.subr.bf16.mxu0 0
      %230 = vmatpush1.bf16.msra.mxu0 %v210
      %231 = vmatprep.subr.bf16.mxu0 0
      %232 = vmatpush2.bf16.msra.mxu0 0
      %233 = vmatprep.subr.bf16.mxu0 0
      %234 = vmatpush2.bf16.msra.mxu0 0
      %235 = vmatprep.subr.bf16.mxu0 0
      %236 = vmatpush2.bf16.msra.mxu0 0
      %237 = vmatprep.subr.bf16.mxu0 0
      %238 = vmatpush2.bf16.msra.mxu0 0
      %239 = vmatprep.subr.bf16.mxu0 0
      %240 = vmatpush2.bf16.msra.mxu0 0
      %241 = vmatprep.subr.bf16.mxu0 0
      %242 = vmatpush2.bf16.msra.mxu0 0
      %243 = vmatprep.subr.bf16.mxu0 0
      %244 = vmatpush2.bf16.msra.mxu0 0
      %245 = vmatprep.subr.bf16.mxu0 0
      %246 = vmatpush2.bf16.msra.mxu0 0
      %247 = vmatprep.mubr.bf16.mxu0 0
      %248 = vmatmul.mubr.bf16.gmra.mxu0 %v213
      %v249 = vpop.f32.mrf.mxu0
      %v250 = vadd.f32 0.0, %v249
      %v251 = vpop.f32.mrf.mxu0
      %v252 = vpop.f32.mrf.mxu0
      %v253 = vadd.f32 0.0, %v252
      %v254 = vpop.f32.mrf.mxu0
      %255 = vdwg.mxu0
      %256 = vst.msk [vmem:[%s116] sm:$0xff] %vm133, %v250
      %257 = vst.msk [vmem:[%s116 + $0x8] sm:$0xff] %vm133, %v253
      %v258 = vld [vmem:[%s111] sm:$0xff]
      %v259 = vld [vmem:[%s111 + $0x8] sm:$0xff]
      %v260 = vpack.c.bf16 %v259, %v258
      %262 = vrot.lane.b32.xlu0 %v260, 120
      %v263 = vpop.permute.xlu0 %262
      %264 = vrot.lane.b32.xlu0 %v260, 88
      %v265 = vpop.permute.xlu0 %264
      %v267 = vsel %vm133, %v263, 0
      %v270 = vsel %vm133, %v265, 0
      %272 = vmatprep.subr.bf16.mxu0 0
      %273 = vmatpush1.bf16.xpose.msra.mxu0 0
      %274 = vmatprep.subr.bf16.mxu0 0
      %275 = vmatpush1.bf16.xpose.msra.mxu0 0
      %276 = vmatprep.subr.bf16.mxu0 0
      %277 = vmatpush1.bf16.xpose.msra.mxu0 0
      %278 = vmatprep.subr.bf16.mxu0 0
      %279 = vmatpush1.bf16.xpose.msra.mxu0 0
      %280 = vmatprep.subr.bf16.mxu0 0
      %281 = vmatpush1.bf16.xpose.msra.mxu0 0
      %282 = vmatprep.subr.bf16.mxu0 0
      %283 = vmatpush1.bf16.xpose.msra.mxu0 0
      %284 = vmatprep.subr.bf16.mxu0 0
      %285 = vmatpush1.bf16.xpose.msra.mxu0 0
      %286 = vmatprep.subr.bf16.mxu0 0
      %287 = vmatpush1.bf16.xpose.msra.mxu0 %v270
      %288 = vmatprep.subr.bf16.mxu0 0
      %289 = vmatpush2.bf16.xpose.msra.mxu0 0
      %290 = vmatprep.subr.bf16.mxu0 0
      %291 = vmatpush2.bf16.xpose.msra.mxu0 0
      %292 = vmatprep.subr.bf16.mxu0 0
      %293 = vmatpush2.bf16.xpose.msra.mxu0 0
      %294 = vmatprep.subr.bf16.mxu0 0
      %295 = vmatpush2.bf16.xpose.msra.mxu0 0
      %296 = vmatprep.subr.bf16.mxu0 0
      %297 = vmatpush2.bf16.xpose.msra.mxu0 0
      %298 = vmatprep.subr.bf16.mxu0 0
      %299 = vmatpush2.bf16.xpose.msra.mxu0 0
      %300 = vmatprep.subr.bf16.mxu0 0
      %301 = vmatpush2.bf16.xpose.msra.mxu0 0
      %302 = vmatprep.subr.bf16.mxu0 0
      %303 = vmatpush2.bf16.xpose.msra.mxu0 0
      %304 = vmatprep.mubr.bf16.mxu0 0
      %305 = vmatmul.mubr.bf16.gmra.mxu0 %v267
      %v306 = vpop.f32.mrf.mxu0
      %v307 = vadd.f32 0.0, %v306
      %v308 = vpop.f32.mrf.mxu0
      %v309 = vpop.f32.mrf.mxu0
      %v310 = vadd.f32 0.0, %v309
      %v311 = vpop.f32.mrf.mxu0
      %312 = vdwg.mxu0
      %v313 = vmul.f32 %v307, 0.35355338
      %v314 = vmul.f32 %v310, 0.35355338
      %v315 = vadd.f32 %v313, %v125
      %v316 = vadd.f32 %v314, %v126
      %v317 = vsel %vm185, %v315, -inf
      %318 = vmax.xlane.f32.xlu0 %v317
      %v319 = vpop.xlane.xlu0 %318
      %v320 = vsel %vm185, %v316, -inf
      %321 = vmax.xlane.f32.xlu0 %v320
      %v322 = vpop.xlane.xlu0 %321
      %v323 = vsub.f32 %v315, %v319
      %v324 = vsub.f32 %v316, %v322
      %v325 = vmul.f32 %v323, 1.442695
      %v326 = vpow.pop %v325
      %v327 = vmul.f32 %v324, 1.442695
      %v328 = vpow.pop %v327
      %v329 = vsel %vm185, %v326, 0.0
      %330 = vadd.xlane.f32.xlu0 %v329
      %v331 = vpop.xlane.xlu0 %330
      %v332 = vsel %vm185, %v328, 0.0
      %333 = vadd.xlane.f32.xlu0 %v332
      %v334 = vpop.xlane.xlu0 %333
      %v335 = vrcp.pop %v331
      %v336 = vrcp.pop %v334
      %v337 = vmul.f32 %v326, %v335
      %v338 = vmul.f32 %v328, %v336
      %v339 = vpack.c.bf16 %v338, %v337
      %340 = vrot.lane.b32.xlu0 %v260, 56
      %v341 = vpop.permute.xlu0 %340
      %v344 = vsel %vm185, %v339, 0
      %346 = vmatprep.subr.bf16.mxu0 0
      %347 = vmatpush1.bf16.msra.mxu0 0
      %348 = vmatprep.subr.bf16.mxu0 0
      %349 = vmatpush1.bf16.msra.mxu0 0
      %350 = vmatprep.subr.bf16.mxu0 0
      %351 = vmatpush1.bf16.msra.mxu0 0
      %352 = vmatprep.subr.bf16.mxu0 0
      %353 = vmatpush1.bf16.msra.mxu0 0
      %354 = vmatprep.subr.bf16.mxu0 0
      %355 = vmatpush1.bf16.msra.mxu0 0
      %356 = vmatprep.subr.bf16.mxu0 0
      %357 = vmatpush1.bf16.msra.mxu0 0
      %358 = vmatprep.subr.bf16.mxu0 0
      %359 = vmatpush1.bf16.msra.mxu0 0
      %360 = vmatprep.subr.bf16.mxu0 0
      %361 = vmatpush1.bf16.msra.mxu0 %v341
      %362 = vmatprep.subr.bf16.mxu0 0
      %363 = vmatpush2.bf16.msra.mxu0 0
      %364 = vmatprep.subr.bf16.mxu0 0
      %365 = vmatpush2.bf16.msra.mxu0 0
      %366 = vmatprep.subr.bf16.mxu0 0
      %367 = vmatpush2.bf16.msra.mxu0 0
      %368 = vmatprep.subr.bf16.mxu0 0
      %369 = vmatpush2.bf16.msra.mxu0 0
      %370 = vmatprep.subr.bf16.mxu0 0
      %371 = vmatpush2.bf16.msra.mxu0 0
      %372 = vmatprep.subr.bf16.mxu0 0
      %373 = vmatpush2.bf16.msra.mxu0 0
      %374 = vmatprep.subr.bf16.mxu0 0
      %375 = vmatpush2.bf16.msra.mxu0 0
      %376 = vmatprep.subr.bf16.mxu0 0
      %377 = vmatpush2.bf16.msra.mxu0 0
      %378 = vmatprep.mubr.bf16.mxu0 0
      %379 = vmatmul.mubr.bf16.gmra.mxu0 %v344
      %v380 = vpop.f32.mrf.mxu0
      %v381 = vadd.f32 0.0, %v380
      %v382 = vpop.f32.mrf.mxu0
      %v383 = vpop.f32.mrf.mxu0
      %v384 = vadd.f32 0.0, %v383
      %v385 = vpop.f32.mrf.mxu0
      %386 = vdwg.mxu0
      %389 = vrot.lane.b32.xlu0 %v381, 8
      %v390 = vpop.permute.xlu0 %389
      %391 = vrot.lane.b32.xlu0 %v384, 8
      %v392 = vpop.permute.xlu0 %391
      %vm395 = vcmask 130112
      %396 = vst.msk [vmem:[%s116] sm:$0xff] %vm395, %v390
      %397 = vst.msk [vmem:[%s116 + $0x8] sm:$0xff] %vm395, %v392
      %v398 = vld [vmem:[%s111] sm:$0xff]
      %v399 = vld [vmem:[%s111 + $0x8] sm:$0xff]
      %v400 = vpack.c.bf16 %v399, %v398
      %402 = vrot.lane.b32.xlu0 %v400, 112
      %v403 = vpop.permute.xlu0 %402
      %404 = vrot.lane.b32.xlu0 %v400, 80
      %v405 = vpop.permute.xlu0 %404
      %v407 = vsel %vm133, %v403, 0
      %v410 = vsel %vm133, %v405, 0
      %412 = vmatprep.subr.bf16.mxu0 0
      %413 = vmatpush1.bf16.xpose.msra.mxu0 0
      %414 = vmatprep.subr.bf16.mxu0 0
      %415 = vmatpush1.bf16.xpose.msra.mxu0 0
      %416 = vmatprep.subr.bf16.mxu0 0
      %417 = vmatpush1.bf16.xpose.msra.mxu0 0
      %418 = vmatprep.subr.bf16.mxu0 0
      %419 = vmatpush1.bf16.xpose.msra.mxu0 0
      %420 = vmatprep.subr.bf16.mxu0 0
      %421 = vmatpush1.bf16.xpose.msra.mxu0 0
      %422 = vmatprep.subr.bf16.mxu0 0
      %423 = vmatpush1.bf16.xpose.msra.mxu0 0
      %424 = vmatprep.subr.bf16.mxu0 0
      %425 = vmatpush1.bf16.xpose.msra.mxu0 0
      %426 = vmatprep.subr.bf16.mxu0 0
      %427 = vmatpush1.bf16.xpose.msra.mxu0 %v410
      %428 = vmatprep.subr.bf16.mxu0 0
      %429 = vmatpush2.bf16.xpose.msra.mxu0 0
      %430 = vmatprep.subr.bf16.mxu0 0
      %431 = vmatpush2.bf16.xpose.msra.mxu0 0
      %432 = vmatprep.subr.bf16.mxu0 0
      %433 = vmatpush2.bf16.xpose.msra.mxu0 0
      %434 = vmatprep.subr.bf16.mxu0 0
      %435 = vmatpush2.bf16.xpose.msra.mxu0 0
      %436 = vmatprep.subr.bf16.mxu0 0
      %437 = vmatpush2.bf16.xpose.msra.mxu0 0
      %438 = vmatprep.subr.bf16.mxu0 0
      %439 = vmatpush2.bf16.xpose.msra.mxu0 0
      %440 = vmatprep.subr.bf16.mxu0 0
      %441 = vmatpush2.bf16.xpose.msra.mxu0 0
      %442 = vmatprep.subr.bf16.mxu0 0
      %443 = vmatpush2.bf16.xpose.msra.mxu0 0
      %444 = vmatprep.mubr.bf16.mxu0 0
      %445 = vmatmul.mubr.bf16.gmra.mxu0 %v407
      %v446 = vpop.f32.mrf.mxu0
      %v447 = vadd.f32 0.0, %v446
      %v448 = vpop.f32.mrf.mxu0
      %v449 = vpop.f32.mrf.mxu0
      %v450 = vadd.f32 0.0, %v449
      %v451 = vpop.f32.mrf.mxu0
      %452 = vdwg.mxu0
      %v453 = vmul.f32 %v447, 0.35355338
      %v454 = vmul.f32 %v450, 0.35355338
      %v455 = vadd.f32 %v453, %v125
      %v456 = vadd.f32 %v454, %v126
      %v457 = vsel %vm185, %v455, -inf
      %458 = vmax.xlane.f32.xlu0 %v457
      %v459 = vpop.xlane.xlu0 %458
      %v460 = vsel %vm185, %v456, -inf
      %461 = vmax.xlane.f32.xlu0 %v460
      %v462 = vpop.xlane.xlu0 %461
      %v463 = vsub.f32 %v455, %v459
      %v464 = vsub.f32 %v456, %v462
      %v465 = vmul.f32 %v463, 1.442695
      %v466 = vpow.pop %v465
      %v467 = vmul.f32 %v464, 1.442695
      %v468 = vpow.pop %v467
      %v469 = vsel %vm185, %v466, 0.0
      %470 = vadd.xlane.f32.xlu0 %v469
      %v471 = vpop.xlane.xlu0 %470
      %v472 = vsel %vm185, %v468, 0.0
      %473 = vadd.xlane.f32.xlu0 %v472
      %v474 = vpop.xlane.xlu0 %473
      %v475 = vrcp.pop %v471
      %v476 = vrcp.pop %v474
      %v477 = vmul.f32 %v466, %v475
      %v478 = vmul.f32 %v468, %v476
      %v479 = vpack.c.bf16 %v478, %v477
      %480 = vrot.lane.b32.xlu0 %v400, 48
      %v481 = vpop.permute.xlu0 %480
      %v484 = vsel %vm185, %v479, 0
      %486 = vmatprep.subr.bf16.mxu0 0
      %487 = vmatpush1.bf16.msra.mxu0 0
      %488 = vmatprep.subr.bf16.mxu0 0
      %489 = vmatpush1.bf16.msra.mxu0 0
      %490 = vmatprep.subr.bf16.mxu0 0
      %491 = vmatpush1.bf16.msra.mxu0 0
      %492 = vmatprep.subr.bf16.mxu0 0
      %493 = vmatpush1.bf16.msra.mxu0 0
      %494 = vmatprep.subr.bf16.mxu0 0
      %495 = vmatpush1.bf16.msra.mxu0 0
      %496 = vmatprep.subr.bf16.mxu0 0
      %497 = vmatpush1.bf16.msra.mxu0 0
      %498 = vmatprep.subr.bf16.mxu0 0
      %499 = vmatpush1.bf16.msra.mxu0 0
      %500 = vmatprep.subr.bf16.mxu0 0
      %501 = vmatpush1.bf16.msra.mxu0 %v481
      %502 = vmatprep.subr.bf16.mxu0 0
      %503 = vmatpush2.bf16.msra.mxu0 0
      %504 = vmatprep.subr.bf16.mxu0 0
      %505 = vmatpush2.bf16.msra.mxu0 0
      %506 = vmatprep.subr.bf16.mxu0 0
      %507 = vmatpush2.bf16.msra.mxu0 0
      %508 = vmatprep.subr.bf16.mxu0 0
      %509 = vmatpush2.bf16.msra.mxu0 0
      %510 = vmatprep.subr.bf16.mxu0 0
      %511 = vmatpush2.bf16.msra.mxu0 0
      %512 = vmatprep.subr.bf16.mxu0 0
      %513 = vmatpush2.bf16.msra.mxu0 0
      %514 = vmatprep.subr.bf16.mxu0 0
      %515 = vmatpush2.bf16.msra.mxu0 0
      %516 = vmatprep.subr.bf16.mxu0 0
      %517 = vmatpush2.bf16.msra.mxu0 0
      %518 = vmatprep.mubr.bf16.mxu0 0
      %519 = vmatmul.mubr.bf16.gmra.mxu0 %v484
      %v520 = vpop.f32.mrf.mxu0
      %v521 = vadd.f32 0.0, %v520
      %v522 = vpop.f32.mrf.mxu0
      %v523 = vpop.f32.mrf.mxu0
      %v524 = vadd.f32 0.0, %v523
      %v525 = vpop.f32.mrf.mxu0
      %526 = vdwg.mxu0
      %529 = vrot.lane.b32.xlu0 %v521, 16
      %v530 = vpop.permute.xlu0 %529
      %531 = vrot.lane.b32.xlu0 %v524, 16
      %v532 = vpop.permute.xlu0 %531
      %vm535 = vcmask 195712
      %536 = vst.msk [vmem:[%s116] sm:$0xff] %vm535, %v530
      %537 = vst.msk [vmem:[%s116 + $0x8] sm:$0xff] %vm535, %v532
      %v538 = vld [vmem:[%s111] sm:$0xff]
      %v539 = vld [vmem:[%s111 + $0x8] sm:$0xff]
      %v540 = vpack.c.bf16 %v539, %v538
      %542 = vrot.lane.b32.xlu0 %v540, 104
      %v543 = vpop.permute.xlu0 %542
      %544 = vrot.lane.b32.xlu0 %v540, 72
      %v545 = vpop.permute.xlu0 %544
      %v547 = vsel %vm133, %v543, 0
      %v550 = vsel %vm133, %v545, 0
      %552 = vmatprep.subr.bf16.mxu0 0
      %553 = vmatpush1.bf16.xpose.msra.mxu0 0
      %554 = vmatprep.subr.bf16.mxu0 0
      %555 = vmatpush1.bf16.xpose.msra.mxu0 0
      %556 = vmatprep.subr.bf16.mxu0 0
      %557 = vmatpush1.bf16.xpose.msra.mxu0 0
      %558 = vmatprep.subr.bf16.mxu0 0
      %559 = vmatpush1.bf16.xpose.msra.mxu0 0
      %560 = vmatprep.subr.bf16.mxu0 0
      %561 = vmatpush1.bf16.xpose.msra.mxu0 0
      %562 = vmatprep.subr.bf16.mxu0 0
      %563 = vmatpush1.bf16.xpose.msra.mxu0 0
      %564 = vmatprep.subr.bf16.mxu0 0
      %565 = vmatpush1.bf16.xpose.msra.mxu0 0
      %566 = vmatprep.subr.bf16.mxu0 0
      %567 = vmatpush1.bf16.xpose.msra.mxu0 %v550
      %568 = vmatprep.subr.bf16.mxu0 0
      %569 = vmatpush2.bf16.xpose.msra.mxu0 0
      %570 = vmatprep.subr.bf16.mxu0 0
      %571 = vmatpush2.bf16.xpose.msra.mxu0 0
      %572 = vmatprep.subr.bf16.mxu0 0
      %573 = vmatpush2.bf16.xpose.msra.mxu0 0
      %574 = vmatprep.subr.bf16.mxu0 0
      %575 = vmatpush2.bf16.xpose.msra.mxu0 0
      %576 = vmatprep.subr.bf16.mxu0 0
      %577 = vmatpush2.bf16.xpose.msra.mxu0 0
      %578 = vmatprep.subr.bf16.mxu0 0
      %579 = vmatpush2.bf16.xpose.msra.mxu0 0
      %580 = vmatprep.subr.bf16.mxu0 0
      %581 = vmatpush2.bf16.xpose.msra.mxu0 0
      %582 = vmatprep.subr.bf16.mxu0 0
      %583 = vmatpush2.bf16.xpose.msra.mxu0 0
      %584 = vmatprep.mubr.bf16.mxu0 0
      %585 = vmatmul.mubr.bf16.gmra.mxu0 %v547
      %v586 = vpop.f32.mrf.mxu0
      %v587 = vadd.f32 0.0, %v586
      %v588 = vpop.f32.mrf.mxu0
      %v589 = vpop.f32.mrf.mxu0
      %v590 = vadd.f32 0.0, %v589
      %v591 = vpop.f32.mrf.mxu0
      %592 = vdwg.mxu0
      %v593 = vmul.f32 %v587, 0.35355338
      %v594 = vmul.f32 %v590, 0.35355338
      %v595 = vadd.f32 %v593, %v125
      %v596 = vadd.f32 %v594, %v126
      %v597 = vsel %vm185, %v595, -inf
      %598 = vmax.xlane.f32.xlu0 %v597
      %v599 = vpop.xlane.xlu0 %598
      %v600 = vsel %vm185, %v596, -inf
      %601 = vmax.xlane.f32.xlu0 %v600
      %v602 = vpop.xlane.xlu0 %601
      %v603 = vsub.f32 %v595, %v599
      %v604 = vsub.f32 %v596, %v602
      %v605 = vmul.f32 %v603, 1.442695
      %v606 = vpow.pop %v605
      %v607 = vmul.f32 %v604, 1.442695
      %v608 = vpow.pop %v607
      %v609 = vsel %vm185, %v606, 0.0
      %610 = vadd.xlane.f32.xlu0 %v609
      %v611 = vpop.xlane.xlu0 %610
      %v612 = vsel %vm185, %v608, 0.0
      %613 = vadd.xlane.f32.xlu0 %v612
      %v614 = vpop.xlane.xlu0 %613
      %v615 = vrcp.pop %v611
      %v616 = vrcp.pop %v614
      %v617 = vmul.f32 %v606, %v615
      %v618 = vmul.f32 %v608, %v616
      %v619 = vpack.c.bf16 %v618, %v617
      %620 = vrot.lane.b32.xlu0 %v540, 40
      %v621 = vpop.permute.xlu0 %620
      %v624 = vsel %vm185, %v619, 0
      %626 = vmatprep.subr.bf16.mxu0 0
      %627 = vmatpush1.bf16.msra.mxu0 0
      %628 = vmatprep.subr.bf16.mxu0 0
      %629 = vmatpush1.bf16.msra.mxu0 0
      %630 = vmatprep.subr.bf16.mxu0 0
      %631 = vmatpush1.bf16.msra.mxu0 0
      %632 = vmatprep.subr.bf16.mxu0 0
      %633 = vmatpush1.bf16.msra.mxu0 0
      %634 = vmatprep.subr.bf16.mxu0 0
      %635 = vmatpush1.bf16.msra.mxu0 0
      %636 = vmatprep.subr.bf16.mxu0 0
      %637 = vmatpush1.bf16.msra.mxu0 0
      %638 = vmatprep.subr.bf16.mxu0 0
      %639 = vmatpush1.bf16.msra.mxu0 0
      %640 = vmatprep.subr.bf16.mxu0 0
      %641 = vmatpush1.bf16.msra.mxu0 %v621
      %642 = vmatprep.subr.bf16.mxu0 0
      %643 = vmatpush2.bf16.msra.mxu0 0
      %644 = vmatprep.subr.bf16.mxu0 0
      %645 = vmatpush2.bf16.msra.mxu0 0
      %646 = vmatprep.subr.bf16.mxu0 0
      %647 = vmatpush2.bf16.msra.mxu0 0
      %648 = vmatprep.subr.bf16.mxu0 0
      %649 = vmatpush2.bf16.msra.mxu0 0
      %650 = vmatprep.subr.bf16.mxu0 0
      %651 = vmatpush2.bf16.msra.mxu0 0
      %652 = vmatprep.subr.bf16.mxu0 0
      %653 = vmatpush2.bf16.msra.mxu0 0
      %654 = vmatprep.subr.bf16.mxu0 0
      %655 = vmatpush2.bf16.msra.mxu0 0
      %656 = vmatprep.subr.bf16.mxu0 0
      %657 = vmatpush2.bf16.msra.mxu0 0
      %658 = vmatprep.mubr.bf16.mxu0 0
      %659 = vmatmul.mubr.bf16.gmra.mxu0 %v624
      %v660 = vpop.f32.mrf.mxu0
      %v661 = vadd.f32 0.0, %v660
      %v662 = vpop.f32.mrf.mxu0
      %v663 = vpop.f32.mrf.mxu0
      %v664 = vadd.f32 0.0, %v663
      %v665 = vpop.f32.mrf.mxu0
      %666 = vdwg.mxu0
      %669 = vrot.lane.b32.xlu0 %v661, 24
      %v670 = vpop.permute.xlu0 %669
      %671 = vrot.lane.b32.xlu0 %v664, 24
      %v672 = vpop.permute.xlu0 %671
      %vm675 = vcmask 261312
      %676 = vst.msk [vmem:[%s116] sm:$0xff] %vm675, %v670
      %677 = vst.msk [vmem:[%s116 + $0x8] sm:$0xff] %vm675, %v672
      %p678 = scmp.lt.s32.totalorder %s12, 2
      %s679 = scalar_select %p678, %s12, 2
      %s680 = smul.addr %s679, 2
      %s681 = smul.addr %s680, 8
      %s682 = scalar_lea.vmem %s1, %s681
      // Predicated region
      $region25: #{_lambda_.39} parent=23 // pred_check
        %p683 = pneg %p56
      $region26: #{_lambda_.39} parent=23 // pred_check_branch
        %685 = sbr.rel (%p683) target = $region28
      $region27: #{_lambda_.39} parent=23 // pred_region
        _
      $region28: #{_lambda_.39} parent=23 // pred_fallthru
        _
    $region24: #{_lambda_.39} parent=5 // pred_fallthru
      _
    %p686 = scmp.le.s32.totalorder 2, %s7
    // Predicated region
    $region29: #{_lambda_.39} parent=5 // pred_check
      %p687 = pneg %p686
    $region30: #{_lambda_.39} parent=5 // pred_check_branch
      %689 = sbr.rel (%p687) target = $region32
    $region31: #{_lambda_.39} parent=5 // pred_region
      %s690 = ssub.s32 %s7, 2
      // Predicated region
      $region33: #{_lambda_.39} parent=31 // pred_check
        %p691 = pneg %p62
      $region34: #{_lambda_.39} parent=31 // pred_check_branch
        %693 = sbr.rel (%p691) target = $region36
      $region35: #{_lambda_.39} parent=31 // pred_region
        %p694 = scmp.lt.s32.totalorder %s13, 2
        %s695 = scalar_select %p694, %s13, 2
        %s696 = smul.addr %s695, 2
        %s697 = smul.addr %s696, 8
        %s698 = scalar_lea.vmem %s1, %s697
      $region36: #{_lambda_.39} parent=31 // pred_fallthru
        _
    $region32: #{_lambda_.39} parent=5 // pred_fallthru
      _
  $region6: #{_lambda_.39} parent=0 // loop_footer
    %s11 = sadd.s32 1, %s7
  $region7: #{_lambda_.39} parent=0 // loop_footer_branch
    %6 = sbr.rel target = $region3
  $region8: #{_lambda_.39} parent=0 // loop_exit
    _

// kernel: _lambda_.42
$region0: #{_lambda_.42}
  #allocation0 [shape = 'u32[]', space=smem, size = 0x4, offset = 0x4, fixed_abs, tag = 'smem constant byte address 0x4 - core index']
  #allocation1 [shape = 'u32[144,128]{1,0:T(1,128)}', space=vmem, size = 0x12000, scoped, tag = 'internal scratch']
  #allocation2 [shape = 'f32[48,32]{1,0:T(8,128)}', space=vmem, size = 0x6000, scoped, tag = 'scratch operand']
  %s0 = inlined_call_operand.vmem [shape: f32[48,128], index: 0, kind: input, shape index: {}]
  %s1 = inlined_call_operand.vmem [shape: bf16[128,32], index: 1, kind: input, shape index: {}]
  %s2 = inlined_call_operand.vmem [shape: f32[1,32], index: 2, kind: input, shape index: {}]
  %s3 = inlined_call_operand.vmem [shape: f32[48,32], index: 3, kind: input, shape index: {}]
  %s4 = inlined_call_operand.vmem [shape: f32[48,32], index: 4, kind: output, shape index: {}]
  %s5 = sld [smem:[#allocation0]]
  $region34: #{_lambda_.42} parent=0
    _
  %s7 = ssub.s32 1, %s5
  %s8 = scalar_select 0, %s7, %s5
  // Predicated region
  $region2: #{_lambda_.42} parent=0 // pred_check
    _
  $region3: #{_lambda_.42} parent=0 // pred_check_branch
    %10 = sbr.rel (0) target = $region5
  $region4: #{_lambda_.42} parent=0 // pred_region
    _
  $region5: #{_lambda_.42} parent=0 // pred_fallthru
    _
  // Predicated region
  $region6: #{_lambda_.42} parent=0 // pred_check
    _
  $region7: #{_lambda_.42} parent=0 // pred_check_branch
    %12 = sbr.rel (0) target = $region9
  $region8: #{_lambda_.42} parent=0 // pred_region
    _
  $region9: #{_lambda_.42} parent=0 // pred_fallthru
    _
  // Predicated region
  $region10: #{_lambda_.42} parent=0 // pred_check
    _
  $region11: #{_lambda_.42} parent=0 // pred_check_branch
    %14 = sbr.rel (0) target = $region13
  $region12: #{_lambda_.42} parent=0 // pred_region
    _
  $region13: #{_lambda_.42} parent=0 // pred_fallthru
    _
  // Predicated region
  $region14: #{_lambda_.42} parent=0 // pred_check
    _
  $region15: #{_lambda_.42} parent=0 // pred_check_branch
    %16 = sbr.rel (0) target = $region17
  $region16: #{_lambda_.42} parent=0 // pred_region
    _
  $region17: #{_lambda_.42} parent=0 // pred_fallthru
    _
  %p18 = scmp.eq.s32.totalorder 0, 0
  // Predicated region
  $region18: #{_lambda_.42} parent=0 // pred_check
    %p19 = pneg %p18
  $region19: #{_lambda_.42} parent=0 // pred_check_branch
    %21 = sbr.rel (%p19) target = $region21
  $region20: #{_lambda_.42} parent=0 // pred_region
    %vm22 = vcmask 261120
    %23 = vst.msk [vmem:[#allocation2] sm:$0xff] %vm22, 0.0
    %24 = vst.msk [vmem:[#allocation2 + $0x8] sm:$0xff] %vm22, 0.0
    %25 = vst.msk [vmem:[#allocation2 + $0x10] sm:$0xff] %vm22, 0.0
    %26 = vst.msk [vmem:[#allocation2 + $0x18] sm:$0xff] %vm22, 0.0
    %27 = vst.msk [vmem:[#allocation2 + $0x20] sm:$0xff] %vm22, 0.0
    %28 = vst.msk [vmem:[#allocation2 + $0x28] sm:$0xff] %vm22, 0.0
  $region21: #{_lambda_.42} parent=0 // pred_fallthru
    _
  %v29 = vld [vmem:[%s0] sm:$0xff]
  %v30 = vld [vmem:[%s0 + $0x8] sm:$0xff]
  %v31 = vld [vmem:[%s0 + $0x10] sm:$0xff]
  %v32 = vld [vmem:[%s0 + $0x18] sm:$0xff]
  %v33 = vld [vmem:[%s0 + $0x20] sm:$0xff]
  %v34 = vld [vmem:[%s0 + $0x28] sm:$0xff]
  %v35 = vpack.c.bf16 %v30, %v29
  %v36 = vpack.c.bf16 %v32, %v31
  %v37 = vpack.c.bf16 %v34, %v33
  %v38 = vld [vmem:[#allocation2] sm:$0xff]
  %v39 = vld [vmem:[#allocation2 + $0x8] sm:$0xff]
  %v40 = vld [vmem:[#allocation2 + $0x10] sm:$0xff]
  %v41 = vld [vmem:[#allocation2 + $0x18] sm:$0xff]
  %v42 = vld [vmem:[#allocation2 + $0x20] sm:$0xff]
  %v43 = vld [vmem:[#allocation2 + $0x28] sm:$0xff]
  %v44 = vld [vmem:[%s1] sm:$0xf]
  %v45 = vld [vmem:[%s1 + $0x4] sm:$0xf]
  %v46 = vld [vmem:[%s1 + $0x8] sm:$0xf]
  %v47 = vld [vmem:[%s1 + $0xc] sm:$0xf]
  %v48 = vld [vmem:[%s1 + $0x10] sm:$0xf]
  %v49 = vld [vmem:[%s1 + $0x14] sm:$0xf]
  %v50 = vld [vmem:[%s1 + $0x18] sm:$0xf]
  %v51 = vld [vmem:[%s1 + $0x1c] sm:$0xf]
  %v52 = vld [vmem:[%s1 + $0x20] sm:$0xf]
  %v53 = vld [vmem:[%s1 + $0x24] sm:$0xf]
  %v54 = vld [vmem:[%s1 + $0x28] sm:$0xf]
  %v55 = vld [vmem:[%s1 + $0x2c] sm:$0xf]
  %v56 = vld [vmem:[%s1 + $0x30] sm:$0xf]
  %v57 = vld [vmem:[%s1 + $0x34] sm:$0xf]
  %v58 = vld [vmem:[%s1 + $0x38] sm:$0xf]
  %v59 = vld [vmem:[%s1 + $0x3c] sm:$0xf]
  %v76 = vunpack.c.l.b16 %v44
  %v77 = vunpack.c.l.b16 %v45
  %v78 = vunpack.c.l.b16 %v46
  %v79 = vunpack.c.l.b16 %v47
  %v80 = vunpack.c.l.b16 %v48
  %v81 = vunpack.c.l.b16 %v49
  %v82 = vunpack.c.l.b16 %v50
  %v83 = vunpack.c.l.b16 %v51
  %v84 = vunpack.c.l.b16 %v52
  %v85 = vunpack.c.l.b16 %v53
  %v86 = vunpack.c.l.b16 %v54
  %v87 = vunpack.c.l.b16 %v55
  %v88 = vunpack.c.l.b16 %v56
  %v89 = vunpack.c.l.b16 %v57
  %v90 = vunpack.c.l.b16 %v58
  %v91 = vunpack.c.l.b16 %v59
  %v92 = vpack.c.b16 %v77, %v76
  %v93 = vpack.c.b16 %v79, %v78
  %v94 = vpack.c.b16 %v81, %v80
  %v95 = vpack.c.b16 %v83, %v82
  %v96 = vpack.c.b16 %v85, %v84
  %v97 = vpack.c.b16 %v87, %v86
  %v98 = vpack.c.b16 %v89, %v88
  %v99 = vpack.c.b16 %v91, %v90
  %108 = vmatprep.subr.bf16.mxu0 0
  %109 = vmatpush1.bf16.msra.mxu0 %v99
  %110 = vmatprep.subr.bf16.mxu0 0
  %111 = vmatpush1.bf16.msra.mxu0 %v98
  %112 = vmatprep.subr.bf16.mxu0 0
  %113 = vmatpush1.bf16.msra.mxu0 %v97
  %114 = vmatprep.subr.bf16.mxu0 0
  %115 = vmatpush1.bf16.msra.mxu0 %v96
  %116 = vmatprep.subr.bf16.mxu0 0
  %117 = vmatpush1.bf16.msra.mxu0 %v95
  %118 = vmatprep.subr.bf16.mxu0 0
  %119 = vmatpush1.bf16.msra.mxu0 %v94
  %120 = vmatprep.subr.bf16.mxu0 0
  %121 = vmatpush1.bf16.msra.mxu0 %v93
  %122 = vmatprep.subr.bf16.mxu0 0
  %123 = vmatpush1.bf16.msra.mxu0 %v92
  %124 = vmatprep.subr.bf16.mxu0 0
  %125 = vmatpush2.bf16.msra.mxu0 0
  %126 = vmatprep.subr.bf16.mxu0 0
  %127 = vmatpush2.bf16.msra.mxu0 0
  %128 = vmatprep.subr.bf16.mxu0 0
  %129 = vmatpush2.bf16.msra.mxu0 0
  %130 = vmatprep.subr.bf16.mxu0 0
  %131 = vmatpush2.bf16.msra.mxu0 0
  %132 = vmatprep.subr.bf16.mxu0 0
  %133 = vmatpush2.bf16.msra.mxu0 0
  %134 = vmatprep.subr.bf16.mxu0 0
  %135 = vmatpush2.bf16.msra.mxu0 0
  %136 = vmatprep.subr.bf16.mxu0 0
  %137 = vmatpush2.bf16.msra.mxu0 0
  %138 = vmatprep.subr.bf16.mxu0 0
  %139 = vmatpush2.bf16.msra.mxu0 0
  %140 = vmatprep.mubr.bf16.mxu0 0
  %141 = vmatmul.mubr.bf16.gmra.mxu0 %v35
  %v142 = vpop.f32.mrf.mxu0
  %v143 = vadd.f32 0.0, %v142
  %v144 = vpop.f32.mrf.mxu0
  %v145 = vpop.f32.mrf.mxu0
  %v146 = vadd.f32 0.0, %v145
  %v147 = vpop.f32.mrf.mxu0
  %148 = vmatprep.mubr.bf16.mxu0 0
  %149 = vmatmul.mubr.bf16.gmra.mxu0 %v36
  %v150 = vpop.f32.mrf.mxu0
  %v151 = vadd.f32 0.0, %v150
  %v152 = vpop.f32.mrf.mxu0
  %v153 = vpop.f32.mrf.mxu0
  %v154 = vadd.f32 0.0, %v153
  %v155 = vpop.f32.mrf.mxu0
  %156 = vmatprep.mubr.bf16.mxu0 0
  %157 = vmatmul.mubr.bf16.gmra.mxu0 %v37
  %v158 = vpop.f32.mrf.mxu0
  %v159 = vadd.f32 0.0, %v158
  %v160 = vpop.f32.mrf.mxu0
  %v161 = vpop.f32.mrf.mxu0
  %v162 = vadd.f32 0.0, %v161
  %v163 = vpop.f32.mrf.mxu0
  %164 = vdwg.mxu0
  %v165 = vadd.f32 %v38, %v143
  %v166 = vadd.f32 %v39, %v146
  %v167 = vadd.f32 %v40, %v151
  %v168 = vadd.f32 %v41, %v154
  %v169 = vadd.f32 %v42, %v159
  %v170 = vadd.f32 %v43, %v162
  %vm171 = vcmask 261120
  %172 = vst.msk [vmem:[#allocation2] sm:$0xff] %vm171, %v165
  %173 = vst.msk [vmem:[#allocation2 + $0x8] sm:$0xff] %vm171, %v166
  %174 = vst.msk [vmem:[#allocation2 + $0x10] sm:$0xff] %vm171, %v167
  %175 = vst.msk [vmem:[#allocation2 + $0x18] sm:$0xff] %vm171, %v168
  %176 = vst.msk [vmem:[#allocation2 + $0x20] sm:$0xff] %vm171, %v169
  %177 = vst.msk [vmem:[#allocation2 + $0x28] sm:$0xff] %vm171, %v170
  // Predicated region
  $region22: #{_lambda_.42} parent=0 // pred_check
    %p178 = pneg %p18
  $region23: #{_lambda_.42} parent=0 // pred_check_branch
    %180 = sbr.rel (%p178) target = $region25
  $region24: #{_lambda_.42} parent=0 // pred_region
    %v181 = vld [vmem:[#allocation2] sm:$0xff]
    %v182 = vld [vmem:[#allocation2 + $0x8] sm:$0xff]
    %v183 = vld [vmem:[#allocation2 + $0x10] sm:$0xff]
    %v184 = vld [vmem:[#allocation2 + $0x18] sm:$0xff]
    %v185 = vld [vmem:[#allocation2 + $0x20] sm:$0xff]
    %v186 = vld [vmem:[#allocation2 + $0x28] sm:$0xff]
    %v187 = vld [vmem:[%s2] sm:$0x1]
    %v189 = vlaneseq
    %v190 = vshrl.u32 %v189, 7
    %v191 = vsub.s32 0, %v190
    %v192 = vrot.slane %v187, %v191
    %v194 = vadd.f32 %v181, %v192
    %v195 = vadd.f32 %v182, %v192
    %v196 = vadd.f32 %v183, %v192
    %v197 = vadd.f32 %v184, %v192
    %v198 = vadd.f32 %v185, %v192
    %v199 = vadd.f32 %v186, %v192
    %v200 = vld [vmem:[%s3] sm:$0xff]
    %v201 = vld [vmem:[%s3 + $0x8] sm:$0xff]
    %v202 = vld [vmem:[%s3 + $0x10] sm:$0xff]
    %v203 = vld [vmem:[%s3 + $0x18] sm:$0xff]
    %v204 = vld [vmem:[%s3 + $0x20] sm:$0xff]
    %v205 = vld [vmem:[%s3 + $0x28] sm:$0xff]
    %v206 = vadd.f32 %v194, %v200
    %v207 = vadd.f32 %v195, %v201
    %v208 = vadd.f32 %v196, %v202
    %v209 = vadd.f32 %v197, %v203
    %v210 = vadd.f32 %v198, %v204
    %v211 = vadd.f32 %v199, %v205
    %212 = vst.msk [vmem:[%s4] sm:$0xff] %vm171, %v206
    %213 = vst.msk [vmem:[%s4 + $0x8] sm:$0xff] %vm171, %v207
    %214 = vst.msk [vmem:[%s4 + $0x10] sm:$0xff] %vm171, %v208
    %215 = vst.msk [vmem:[%s4 + $0x18] sm:$0xff] %vm171, %v209
    %216 = vst.msk [vmem:[%s4 + $0x20] sm:$0xff] %vm171, %v210
    %217 = vst.msk [vmem:[%s4 + $0x28] sm:$0xff] %vm171, %v211
  $region25: #{_lambda_.42} parent=0 // pred_fallthru
    _
  // Predicated region
  $region26: #{_lambda_.42} parent=0 // pred_check
    _
  $region27: #{_lambda_.42} parent=0 // pred_check_branch
    %219 = sbr.rel (0) target = $region29
  $region28: #{_lambda_.42} parent=0 // pred_region
    _
  $region29: #{_lambda_.42} parent=0 // pred_fallthru
    _
  // Predicated region
  $region30: #{_lambda_.42} parent=0 // pred_check
    _
  $region31: #{_lambda_.42} parent=0 // pred_check_branch
    %221 = sbr.rel (0) target = $region33
  $region32: #{_lambda_.42} parent=0 // pred_region
    _
  $region33: #{_lambda_.42} parent=0 // pred_fallthru
    _

// kernel: _lambda_.48
$region0: #{_lambda_.48}
  #allocation0 [shape = 'u32[]', space=smem, size = 0x4, offset = 0x4, fixed_abs, tag = 'smem constant byte address 0x4 - core index']
  #allocation1 [shape = 'u32[144,128]{1,0:T(1,128)}', space=vmem, size = 0x12000, scoped, tag = 'internal scratch']
  #allocation2 [shape = 'f32[3,16]{1,0:T(4,128)}', space=vmem, size = 0x800, scoped, tag = 'scratch operand']
  %s0 = inlined_call_operand.vmem [shape: f32[3,32], index: 0, kind: input, shape index: {}]
  %s1 = inlined_call_operand.vmem [shape: bf16[32,16], index: 1, kind: input, shape index: {}]
  %s2 = inlined_call_operand.vmem [shape: f32[1,32], index: 2, kind: input, shape index: {}]
  %s3 = inlined_call_operand.vmem [shape: f32[1,32], index: 3, kind: input, shape index: {}]
  %s4 = inlined_call_operand.vmem [shape: f32[3,16], index: 4, kind: output, shape index: {}]
  %s5 = sld [smem:[#allocation0]]
  $region34: #{_lambda_.48} parent=0
    _
  %s7 = ssub.s32 1, %s5
  %s8 = scalar_select 0, %s7, %s5
  // Predicated region
  $region2: #{_lambda_.48} parent=0 // pred_check
    _
  $region3: #{_lambda_.48} parent=0 // pred_check_branch
    %10 = sbr.rel (0) target = $region5
  $region4: #{_lambda_.48} parent=0 // pred_region
    _
  $region5: #{_lambda_.48} parent=0 // pred_fallthru
    _
  // Predicated region
  $region6: #{_lambda_.48} parent=0 // pred_check
    _
  $region7: #{_lambda_.48} parent=0 // pred_check_branch
    %12 = sbr.rel (0) target = $region9
  $region8: #{_lambda_.48} parent=0 // pred_region
    _
  $region9: #{_lambda_.48} parent=0 // pred_fallthru
    _
  // Predicated region
  $region10: #{_lambda_.48} parent=0 // pred_check
    _
  $region11: #{_lambda_.48} parent=0 // pred_check_branch
    %14 = sbr.rel (0) target = $region13
  $region12: #{_lambda_.48} parent=0 // pred_region
    _
  $region13: #{_lambda_.48} parent=0 // pred_fallthru
    _
  // Predicated region
  $region14: #{_lambda_.48} parent=0 // pred_check
    _
  $region15: #{_lambda_.48} parent=0 // pred_check_branch
    %16 = sbr.rel (0) target = $region17
  $region16: #{_lambda_.48} parent=0 // pred_region
    _
  $region17: #{_lambda_.48} parent=0 // pred_fallthru
    _
  %p18 = scmp.eq.s32.totalorder 0, 0
  // Predicated region
  $region18: #{_lambda_.48} parent=0 // pred_check
    %p19 = pneg %p18
  $region19: #{_lambda_.48} parent=0 // pred_check_branch
    %21 = sbr.rel (%p19) target = $region21
  $region20: #{_lambda_.48} parent=0 // pred_region
    %vm22 = vcmask 124928
    %23 = vst.msk [vmem:[#allocation2] sm:$0x7] %vm22, 0.0
  $region21: #{_lambda_.48} parent=0 // pred_fallthru
    _
  %v24 = vld [vmem:[%s0] sm:$0x7]
  %vm25 = vcmask 256000
  %v26 = vsel %vm25, %v24, 0.0
  %27 = vadd.xlane.f32.xlu0 %v26
  %v28 = vpop.xlane.xlu0 %27
  %v29 = vrcp.pop 32.0
  %v30 = vmul.f32 %v28, %v29
  %v31 = vsub.f32 %v24, %v30
  %v32 = vmul.f32 %v31, %v31
  %v33 = vsel %vm25, %v32, 0.0
  %34 = vadd.xlane.f32.xlu0 %v33
  %v35 = vpop.xlane.xlu0 %34
  %v36 = vmul.f32 %v35, %v29
  %v37 = vadd.f32 %v36, 1e-05
  %v38 = vrsqrt.pop %v37
  %v39 = vmul.f32 %v31, %v38
  %v40 = vld [vmem:[%s2] sm:$0x1]
  %v42 = vlaneseq
  %v43 = vshrl.u32 %v42, 7
  %v44 = vsub.s32 0, %v43
  %v45 = vrot.slane %v40, %v44
  %v47 = vmul.f32 %v39, %v45
  %v48 = vld [vmem:[%s3] sm:$0x1]
  %v50 = vlaneseq
  %v51 = vshrl.u32 %v50, 7
  %v52 = vsub.s32 0, %v51
  %v53 = vrot.slane %v48, %v52
  %v55 = vadd.f32 %v47, %v53
  %v56 = vpack.c.bf16 %v55, %v55
  %v57 = vld [vmem:[#allocation2] sm:$0x7]
  %v58 = vld [vmem:[%s1] sm:$0xf]
  %v59 = vld [vmem:[%s1 + $0x4] sm:$0xf]
  %v60 = vld [vmem:[%s1 + $0x8] sm:$0xf]
  %v61 = vld [vmem:[%s1 + $0xc] sm:$0xf]
  %v66 = vunpack.c.l.b16 %v58
  %v67 = vunpack.c.l.b16 %v59
  %v68 = vunpack.c.l.b16 %v60
  %v69 = vunpack.c.l.b16 %v61
  %v70 = vpack.c.b16 %v67, %v66
  %v71 = vpack.c.b16 %v69, %v68
  %vm74 = vcmask 261120
  %v76 = vsel %vm74, %v56, 0
  %78 = vmatprep.subr.bf16.mxu0 0
  %79 = vmatpush1.bf16.msra.mxu0 0
  %80 = vmatprep.subr.bf16.mxu0 0
  %81 = vmatpush1.bf16.msra.mxu0 0
  %82 = vmatprep.subr.bf16.mxu0 0
  %83 = vmatpush1.bf16.msra.mxu0 0
  %84 = vmatprep.subr.bf16.mxu0 0
  %85 = vmatpush1.bf16.msra.mxu0 0
  %86 = vmatprep.subr.bf16.mxu0 0
  %87 = vmatpush1.bf16.msra.mxu0 0
  %88 = vmatprep.subr.bf16.mxu0 0
  %89 = vmatpush1.bf16.msra.mxu0 0
  %90 = vmatprep.subr.bf16.mxu0 0
  %91 = vmatpush1.bf16.msra.mxu0 %v71
  %92 = vmatprep.subr.bf16.mxu0 0
  %93 = vmatpush1.bf16.msra.mxu0 %v70
  %94 = vmatprep.subr.bf16.mxu0 0
  %95 = vmatpush2.bf16.msra.mxu0 0
  %96 = vmatprep.subr.bf16.mxu0 0
  %97 = vmatpush2.bf16.msra.mxu0 0
  %98 = vmatprep.subr.bf16.mxu0 0
  %99 = vmatpush2.bf16.msra.mxu0 0
  %100 = vmatprep.subr.bf16.mxu0 0
  %101 = vmatpush2.bf16.msra.mxu0 0
  %102 = vmatprep.subr.bf16.mxu0 0
  %103 = vmatpush2.bf16.msra.mxu0 0
  %104 = vmatprep.subr.bf16.mxu0 0
  %105 = vmatpush2.bf16.msra.mxu0 0
  %106 = vmatprep.subr.bf16.mxu0 0
  %107 = vmatpush2.bf16.msra.mxu0 0
  %108 = vmatprep.subr.bf16.mxu0 0
  %109 = vmatpush2.bf16.msra.mxu0 0
  %110 = vmatprep.mubr.bf16.mxu0 0
  %111 = vmatmul.mubr.bf16.gmra.mxu0 %v76
  %v112 = vpop.f32.mrf.mxu0
  %v113 = vadd.f32 0.0, %v112
  %v114 = vpop.f32.mrf.mxu0
  %v115 = vpop.f32.mrf.mxu0
  %v116 = vpop.f32.mrf.mxu0
  %117 = vdwg.mxu0
  %v118 = vadd.f32 %v57, %v113
  %vm119 = vcmask 124928
  %120 = vst.msk [vmem:[#allocation2] sm:$0x7] %vm119, %v118
  // Predicated region
  $region22: #{_lambda_.48} parent=0 // pred_check
    %p121 = pneg %p18
  $region23: #{_lambda_.48} parent=0 // pred_check_branch
    %123 = sbr.rel (%p121) target = $region25
  $region24: #{_lambda_.48} parent=0 // pred_region
    %v124 = vld [vmem:[#allocation2] sm:$0x7]
    %125 = vst.msk [vmem:[%s4] sm:$0x7] %vm119, %v124
  $region25: #{_lambda_.48} parent=0 // pred_fallthru
    _
  // Predicated region
  $region26: #{_lambda_.48} parent=0 // pred_check
    _
  $region27: #{_lambda_.48} parent=0 // pred_check_branch
    %127 = sbr.rel (0) target = $region29
  $region28: #{_lambda_.48} parent=0 // pred_region
    _
  $region29: #{_lambda_.48} parent=0 // pred_fallthru
    _
  // Predicated region
  $region30: #{_lambda_.48} parent=0 // pred_check
    _
  $region31: #{_lambda_.48} parent=0 // pred_check_branch
    %129 = sbr.rel (0) target = $region33
  $region32: #{_lambda_.48} parent=0 // pred_region
    _
  $region33: #{_lambda_.48} parent=0 // pred_fallthru
    _

// kernel: _lambda_.49
$region0: #{_lambda_.49}
  #allocation0 [shape = 'u32[]', space=smem, size = 0x4, offset = 0x4, fixed_abs, tag = 'smem constant byte address 0x4 - core index']
  #allocation1 [shape = 'u32[144,128]{1,0:T(1,128)}', space=vmem, size = 0x12000, scoped, tag = 'internal scratch']
  #allocation2 [shape = 'f32[1,1]{1,0:T(1,128)S(6)}', space=smem, size = 0x200, scoped, tag = 'scoped memory for _lambda_.49']
  %s0 = inlined_call_operand.<no memory space> [shape: f32[1,1], index: 0, kind: input, shape index: {}]
  %s1 = inlined_call_operand.vmem [shape: f32[2,16], index: 1, kind: input, shape index: {}]
  %s2 = inlined_call_operand.vmem [shape: f32[128,16], index: 2, kind: input, shape index: {}]
  %s3 = inlined_call_operand.hbm [shape: f32[2,128], index: 3, kind: output, shape index: {}]
  %s4 = sld [smem:[#allocation0]]
  $region22: #{_lambda_.49} parent=0
    _
  %s6 = ssub.s32 1, %s4
  %s7 = scalar_select 0, %s6, %s4
  %8 = sst [smem:[#allocation2]] %s0
  $region1: #{_lambda_.49} parent=0
    #allocation3 [shape = 'u8[1024]{0}', space=vmem, size = 0x400, scoped, tag = 'output window, operand 0, single buffered']
    #allocation4 [shape = 's32[1]{0}', space=sflag, size = 0x4, scoped, tag = 'scoped memory for _lambda_.49']
    %9 = vsyncpa [#allocation4], 0
    // Predicated region
    $region2: #{_lambda_.49} parent=1 // pred_check
      _
    $region3: #{_lambda_.49} parent=1 // pred_check_branch
      %11 = sbr.rel (0) target = $region5
    $region4: #{_lambda_.49} parent=1 // pred_region
      _
    $region5: #{_lambda_.49} parent=1 // pred_fallthru
      _
    // Predicated region
    $region6: #{_lambda_.49} parent=1 // pred_check
      _
    $region7: #{_lambda_.49} parent=1 // pred_check_branch
      %13 = sbr.rel (0) target = $region9
    $region8: #{_lambda_.49} parent=1 // pred_region
      _
    $region9: #{_lambda_.49} parent=1 // pred_fallthru
      _
    // Predicated region
    $region10: #{_lambda_.49} parent=1 // pred_check
      _
    $region11: #{_lambda_.49} parent=1 // pred_check_branch
      %15 = sbr.rel (0) target = $region13
    $region12: #{_lambda_.49} parent=1 // pred_region
      _
    $region13: #{_lambda_.49} parent=1 // pred_fallthru
      _
    %v16 = vld [vmem:[%s1] sm:$0x3]
    %v17 = vld [vmem:[%s2] sm:$0xff]
    %v18 = vld [vmem:[%s2 + $0x8] sm:$0xff]
    %v19 = vld [vmem:[%s2 + $0x10] sm:$0xff]
    %v20 = vld [vmem:[%s2 + $0x18] sm:$0xff]
    %v21 = vld [vmem:[%s2 + $0x20] sm:$0xff]
    %v22 = vld [vmem:[%s2 + $0x28] sm:$0xff]
    %v23 = vld [vmem:[%s2 + $0x30] sm:$0xff]
    %v24 = vld [vmem:[%s2 + $0x38] sm:$0xff]
    %v25 = vld [vmem:[%s2 + $0x40] sm:$0xff]
    %v26 = vld [vmem:[%s2 + $0x48] sm:$0xff]
    %v27 = vld [vmem:[%s2 + $0x50] sm:$0xff]
    %v28 = vld [vmem:[%s2 + $0x58] sm:$0xff]
    %v29 = vld [vmem:[%s2 + $0x60] sm:$0xff]
    %v30 = vld [vmem:[%s2 + $0x68] sm:$0xff]
    %v31 = vld [vmem:[%s2 + $0x70] sm:$0xff]
    %v32 = vld [vmem:[%s2 + $0x78] sm:$0xff]
    %v33 = vmul.f32 %v16, %v16
    %vm34 = vcmask 123904
    %v35 = vsel %vm34, %v33, 0.0
    %36 = vadd.xlane.f32.xlu0 %v35
    %v37 = vpop.xlane.xlu0 %36
    %v38 = vadd.f32 %v37, 1e-12
    %v39 = vrsqrt.pop %v38
    %v40 = vmul.f32 %v16, %v39
    %v41 = vmul.f32 %v17, %v17
    %v42 = vmul.f32 %v18, %v18
    %v43 = vmul.f32 %v19, %v19
    %v44 = vmul.f32 %v20, %v20
    %v45 = vmul.f32 %v21, %v21
    %v46 = vmul.f32 %v22, %v22
    %v47 = vmul.f32 %v23, %v23
    %v48 = vmul.f32 %v24, %v24
    %v49 = vmul.f32 %v25, %v25
    %v50 = vmul.f32 %v26, %v26
    %v51 = vmul.f32 %v27, %v27
    %v52 = vmul.f32 %v28, %v28
    %v53 = vmul.f32 %v29, %v29
    %v54 = vmul.f32 %v30, %v30
    %v55 = vmul.f32 %v31, %v31
    %v56 = vmul.f32 %v32, %v32
    %vm57 = vcmask 130048
    %v58 = vsel %vm57, %v41, 0.0
    %59 = vadd.xlane.f32.xlu0 %v58
    %v60 = vpop.xlane.xlu0 %59
    %v61 = vsel %vm57, %v42, 0.0
    %62 = vadd.xlane.f32.xlu0 %v61
    %v63 = vpop.xlane.xlu0 %62
    %v64 = vsel %vm57, %v43, 0.0
    %65 = vadd.xlane.f32.xlu0 %v64
    %v66 = vpop.xlane.xlu0 %65
    %v67 = vsel %vm57, %v44, 0.0
    %68 = vadd.xlane.f32.xlu0 %v67
    %v69 = vpop.xlane.xlu0 %68
    %v70 = vsel %vm57, %v45, 0.0
    %71 = vadd.xlane.f32.xlu0 %v70
    %v72 = vpop.xlane.xlu0 %71
    %v73 = vsel %vm57, %v46, 0.0
    %74 = vadd.xlane.f32.xlu0 %v73
    %v75 = vpop.xlane.xlu0 %74
    %v76 = vsel %vm57, %v47, 0.0
    %77 = vadd.xlane.f32.xlu0 %v76
    %v78 = vpop.xlane.xlu0 %77
    %v79 = vsel %vm57, %v48, 0.0
    %80 = vadd.xlane.f32.xlu0 %v79
    %v81 = vpop.xlane.xlu0 %80
    %v82 = vsel %vm57, %v49, 0.0
    %83 = vadd.xlane.f32.xlu0 %v82
    %v84 = vpop.xlane.xlu0 %83
    %v85 = vsel %vm57, %v50, 0.0
    %86 = vadd.xlane.f32.xlu0 %v85
    %v87 = vpop.xlane.xlu0 %86
    %v88 = vsel %vm57, %v51, 0.0
    %89 = vadd.xlane.f32.xlu0 %v88
    %v90 = vpop.xlane.xlu0 %89
    %v91 = vsel %vm57, %v52, 0.0
    %92 = vadd.xlane.f32.xlu0 %v91
    %v93 = vpop.xlane.xlu0 %92
    %v94 = vsel %vm57, %v53, 0.0
    %95 = vadd.xlane.f32.xlu0 %v94
    %v96 = vpop.xlane.xlu0 %95
    %v97 = vsel %vm57, %v54, 0.0
    %98 = vadd.xlane.f32.xlu0 %v97
    %v99 = vpop.xlane.xlu0 %98
    %v100 = vsel %vm57, %v55, 0.0
    %101 = vadd.xlane.f32.xlu0 %v100
    %v102 = vpop.xlane.xlu0 %101
    %v103 = vsel %vm57, %v56, 0.0
    %104 = vadd.xlane.f32.xlu0 %v103
    %v105 = vpop.xlane.xlu0 %104
    %v106 = vadd.f32 %v60, 1e-12
    %v107 = vadd.f32 %v63, 1e-12
    %v108 = vadd.f32 %v66, 1e-12
    %v109 = vadd.f32 %v69, 1e-12
    %v110 = vadd.f32 %v72, 1e-12
    %v111 = vadd.f32 %v75, 1e-12
    %v112 = vadd.f32 %v78, 1e-12
    %v113 = vadd.f32 %v81, 1e-12
    %v114 = vadd.f32 %v84, 1e-12
    %v115 = vadd.f32 %v87, 1e-12
    %v116 = vadd.f32 %v90, 1e-12
    %v117 = vadd.f32 %v93, 1e-12
    %v118 = vadd.f32 %v96, 1e-12
    %v119 = vadd.f32 %v99, 1e-12
    %v120 = vadd.f32 %v102, 1e-12
    %v121 = vadd.f32 %v105, 1e-12
    %v122 = vrsqrt.pop %v106
    %v123 = vrsqrt.pop %v107
    %v124 = vrsqrt.pop %v108
    %v125 = vrsqrt.pop %v109
    %v126 = vrsqrt.pop %v110
    %v127 = vrsqrt.pop %v111
    %v128 = vrsqrt.pop %v112
    %v129 = vrsqrt.pop %v113
    %v130 = vrsqrt.pop %v114
    %v131 = vrsqrt.pop %v115
    %v132 = vrsqrt.pop %v116
    %v133 = vrsqrt.pop %v117
    %v134 = vrsqrt.pop %v118
    %v135 = vrsqrt.pop %v119
    %v136 = vrsqrt.pop %v120
    %v137 = vrsqrt.pop %v121
    %v138 = vmul.f32 %v17, %v122
    %v139 = vmul.f32 %v18, %v123
    %v140 = vmul.f32 %v19, %v124
    %v141 = vmul.f32 %v20, %v125
    %v142 = vmul.f32 %v21, %v126
    %v143 = vmul.f32 %v22, %v127
    %v144 = vmul.f32 %v23, %v128
    %v145 = vmul.f32 %v24, %v129
    %v146 = vmul.f32 %v25, %v130
    %v147 = vmul.f32 %v26, %v131
    %v148 = vmul.f32 %v27, %v132
    %v149 = vmul.f32 %v28, %v133
    %v150 = vmul.f32 %v29, %v134
    %v151 = vmul.f32 %v30, %v135
    %v152 = vmul.f32 %v31, %v136
    %v153 = vmul.f32 %v32, %v137
    %s154 = sld [smem:[#allocation2]]
    %v155 = vstv %s154
    %v156 = vmul.f32 %v155, 1.442695
    %v157 = vpow.pop %v156
    %s158 = vtos %v157
    %v160 = vsel %vm57, %v40, 0
    %v163 = vsel %vm57, %v138, 0
    %v166 = vsel %vm57, %v139, 0
    %v169 = vsel %vm57, %v140, 0
    %v172 = vsel %vm57, %v141, 0
    %v175 = vsel %vm57, %v142, 0
    %v178 = vsel %vm57, %v143, 0
    %v181 = vsel %vm57, %v144, 0
    %v184 = vsel %vm57, %v145, 0
    %v187 = vsel %vm57, %v146, 0
    %v190 = vsel %vm57, %v147, 0
    %v193 = vsel %vm57, %v148, 0
    %v196 = vsel %vm57, %v149, 0
    %v199 = vsel %vm57, %v150, 0
    %v202 = vsel %vm57, %v151, 0
    %v205 = vsel %vm57, %v152, 0
    %v208 = vsel %vm57, %v153, 0
    %210 = vmatprep.subr.mxu0 0.0
    %211 = vmatpush1.xpose.msra.mxu0 %v208
    %212 = vmatprep.subr.mxu0 0.0
    %213 = vmatpush1.xpose.msra.mxu0 %v205
    %214 = vmatprep.subr.mxu0 0.0
    %215 = vmatpush1.xpose.msra.mxu0 %v202
    %216 = vmatprep.subr.mxu0 0.0
    %217 = vmatpush1.xpose.msra.mxu0 %v199
    %218 = vmatprep.subr.mxu0 0.0
    %219 = vmatpush1.xpose.msra.mxu0 %v196
    %220 = vmatprep.subr.mxu0 0.0
    %221 = vmatpush1.xpose.msra.mxu0 %v193
    %222 = vmatprep.subr.mxu0 0.0
    %223 = vmatpush1.xpose.msra.mxu0 %v190
    %224 = vmatprep.subr.mxu0 0.0
    %225 = vmatpush1.xpose.msra.mxu0 %v187
    %226 = vmatprep.subr.mxu0 0.0
    %227 = vmatpush1.xpose.msra.mxu0 %v184
    %228 = vmatprep.subr.mxu0 0.0
    %229 = vmatpush1.xpose.msra.mxu0 %v181
    %230 = vmatprep.subr.mxu0 0.0
    %231 = vmatpush1.xpose.msra.mxu0 %v178
    %232 = vmatprep.subr.mxu0 0.0
    %233 = vmatpush1.xpose.msra.mxu0 %v175
    %234 = vmatprep.subr.mxu0 0.0
    %235 = vmatpush1.xpose.msra.mxu0 %v172
    %236 = vmatprep.subr.mxu0 0.0
    %237 = vmatpush1.xpose.msra.mxu0 %v169
    %238 = vmatprep.subr.mxu0 0.0
    %239 = vmatpush1.xpose.msra.mxu0 %v166
    %240 = vmatprep.subr.mxu0 0.0
    %241 = vmatpush1.xpose.msra.mxu0 %v163
    %242 = vmatprep.subr.mxu0 0.0
    %243 = vmatpush2.xpose.msra.mxu0 0.0
    %244 = vmatprep.subr.mxu0 0.0
    %245 = vmatpush2.xpose.msra.mxu0 0.0
    %246 = vmatprep.subr.mxu0 0.0
    %247 = vmatpush2.xpose.msra.mxu0 0.0
    %248 = vmatprep.subr.mxu0 0.0
    %249 = vmatpush2.xpose.msra.mxu0 0.0
    %250 = vmatprep.subr.mxu0 0.0
    %251 = vmatpush2.xpose.msra.mxu0 0.0
    %252 = vmatprep.subr.mxu0 0.0
    %253 = vmatpush2.xpose.msra.mxu0 0.0
    %254 = vmatprep.subr.mxu0 0.0
    %255 = vmatpush2.xpose.msra.mxu0 0.0
    %256 = vmatprep.subr.mxu0 0.0
    %257 = vmatpush2.xpose.msra.mxu0 0.0
    %258 = vmatprep.subr.mxu0 0.0
    %259 = vmatpush2.xpose.msra.mxu0 0.0
    %260 = vmatprep.subr.mxu0 0.0
    %261 = vmatpush2.xpose.msra.mxu0 0.0
    %262 = vmatprep.subr.mxu0 0.0
    %263 = vmatpush2.xpose.msra.mxu0 0.0
    %264 = vmatprep.subr.mxu0 0.0
    %265 = vmatpush2.xpose.msra.mxu0 0.0
    %266 = vmatprep.subr.mxu0 0.0
    %267 = vmatpush2.xpose.msra.mxu0 0.0
    %268 = vmatprep.subr.mxu0 0.0
    %269 = vmatpush2.xpose.msra.mxu0 0.0
    %270 = vmatprep.subr.mxu0 0.0
    %271 = vmatpush2.xpose.msra.mxu0 0.0
    %272 = vmatprep.subr.mxu0 0.0
    %273 = vmatpush2.xpose.msra.mxu0 0.0
    %274 = vmatprep.mubr.f32.mxu0 0.0
    %275 = vmatmul.mubr.f32.gmra.mxu0 %v160
    %v276 = vpop.f32.mrf.mxu0
    %v277 = vadd.f32 0.0, %v276
    %v278 = vpop.f32.mrf.mxu0
    %279 = vdwg.mxu0
    %v280 = vstv %s158
    %v281 = vmul.f32 %v280, %v277
    %282 = vst [vmem:[#allocation3] sm:$0x3] %v281
    // Predicated region
    $region14: #{_lambda_.49} parent=1 // pred_check
      _
    $region15: #{_lambda_.49} parent=1 // pred_check_branch
      %284 = sbr.rel (0) target = $region17
    $region16: #{_lambda_.49} parent=1 // pred_region
      %s286 = ssub.s32 32, 32
      %287 = vsyncadd [#allocation4], %s286
      %s289 = sshll.u32 [#allocation3], 4
      %s290 = int_to_ptr.vmem [resolvable:$true] %s289
      %292 = dma.vmem_to_hbm [thread:$0]  %s290, 32, %s3, [#allocation4]
    $region17: #{_lambda_.49} parent=1 // pred_fallthru
      _
    // Predicated region
    $region18: #{_lambda_.49} parent=1 // pred_check
      _
    $region19: #{_lambda_.49} parent=1 // pred_check_branch
      %294 = sbr.rel (0) target = $region21
    $region20: #{_lambda_.49} parent=1 // pred_region
      %295 = dma.done [#allocation4], 32
    $region21: #{_lambda_.49} parent=1 // pred_fallthru
      _
    %296 = vsyncpa [#allocation4], 1

</llo_original>
